<compile_context>
chip_gen: v7x
topology: tpu7x:2x2x1
jax: 0.10.0
libtpu: 0.0.40
codegen_flags: <defaults>
</compile_context>

<pallas_src>
import functools

import jax
import jax.numpy as jnp
import numpy as np
from jax.experimental import pallas as pl
from jax.experimental.pallas import tpu as pltpu

HIDDEN_SIZE = 256
N_ACTIONS = 12

_VMEM = pl.BlockSpec(memory_space=pltpu.MemorySpace.VMEM)


# ----------------------------------------------------------------------------
# Pallas kernels
# ----------------------------------------------------------------------------
def _conv_mm_kernel(w_ref, b_ref, p_ref, o_ref, *, relu):
    """(Cout, K) @ (K, Mp) + bias, optional ReLU; Mp = lane-padded B*Ho*Wo."""
    acc = jnp.dot(w_ref[...], p_ref[...], preferred_element_type=jnp.float32)
    acc = acc + b_ref[...]                       # (Cout, 1) broadcasts over Mp
    if relu:
        acc = jnp.maximum(acc, 0.0)
    o_ref[...] = acc


def conv_matmul(w_mat, bias_col, patches, relu):
    """w_mat (Cout,K) bf16, bias_col (Cout,1) f32, patches (K,Mp) bf16 -> (Cout,Mp) f32."""
    Cout, K = w_mat.shape
    Mp = patches.shape[1]
    cost = pl.CostEstimate(
        flops=2 * Cout * K * Mp,
        transcendentals=0,
        bytes_accessed=2 * (Cout * K + K * Mp) + 4 * (Cout + Cout * Mp))
    return pl.pallas_call(
        functools.partial(_conv_mm_kernel, relu=relu),
        out_shape=jax.ShapeDtypeStruct((Cout, Mp), jnp.float32),
        in_specs=[_VMEM, _VMEM, _VMEM],
        out_specs=_VMEM,
        cost_estimate=cost,
    )(w_mat, bias_col, patches)


def _fused_fc_lstm_kernel(x_ref, ar_ref, hx_ref, cx_ref,
                          w1_ref, b1_ref,
                          wxh_ref, war_ref, bl_ref,
                          w2_ref, b2_ref,
                          y_ref):
    """fc1(+ReLU) -> LSTMCell -> fc2(+ReLU); weights VMEM-resident, f32 epilogue."""
    H = hx_ref.shape[1]
    bf16 = jnp.bfloat16

    # fc_layer1: Linear(2048, H) + ReLU
    h1 = jnp.dot(x_ref[...].astype(bf16), w1_ref[...],
                 preferred_element_type=jnp.float32) + b1_ref[...]
    h1 = jnp.maximum(h1, 0.0)

    # LSTMCell: gates = [h1|hx] @ [w_ih_x ; w_hh]^T  (one K=2H MXU pass)
    #                 + [action|reward] @ w_ih_ar^T + (b_ih + b_hh)
    xh = jnp.concatenate([h1, hx_ref[...]], axis=1).astype(bf16)     # (B, 2H)
    gates = (jnp.dot(xh, wxh_ref[...], preferred_element_type=jnp.float32)
             + jnp.dot(ar_ref[...].astype(bf16), war_ref[...],
                       preferred_element_type=jnp.float32)
             + bl_ref[...])
    # PyTorch LSTMCell gate order: input, forget, cell(g), output
    i = jax.nn.sigmoid(gates[:, 0 * H:1 * H])
    f = jax.nn.sigmoid(gates[:, 1 * H:2 * H])
    g = jnp.tanh(gates[:, 2 * H:3 * H])
    o = jax.nn.sigmoid(gates[:, 3 * H:4 * H])
    c_new = f * cx_ref[...] + i * g
    h_new = o * jnp.tanh(c_new)

    # fc_layer2: Linear(H, 1568) + ReLU
    y = jnp.dot(h_new.astype(bf16), w2_ref[...],
                preferred_element_type=jnp.float32) + b2_ref[...]
    y_ref[...] = jnp.maximum(y, 0.0)


def fused_fc_lstm(p, x_flat, ar, hx, cx):
    B, n_in = x_flat.shape
    H = hx.shape[1]
    n_ar = ar.shape[1]
    n_out = p["fc2_b"].shape[1]
    mm = n_in * H + 2 * H * 4 * H + n_ar * 4 * H + H * n_out
    cost = pl.CostEstimate(
        flops=2 * B * mm,
        transcendentals=5 * B * H,
        bytes_accessed=2 * mm + 4 * (B * (n_in + n_ar + 2 * H + n_out) + 5 * H + n_out))
    return pl.pallas_call(
        _fused_fc_lstm_kernel,
        out_shape=jax.ShapeDtypeStruct((B, n_out), jnp.float32),
        in_specs=[_VMEM] * 11,
        out_specs=_VMEM,
        cost_estimate=cost,
    )(x_flat, ar, hx, cx,
      p["fc1_wt"], p["fc1_b"],
      p["lstm_wxh"], p["lstm_war"], p["lstm_b"],
      p["fc2_wt"], p["fc2_b"])


# ----------------------------------------------------------------------------
# Layout glue (no compute): batch-folded im2col, padding
# ----------------------------------------------------------------------------
def im2col_folded(x, k, stride, lane_pad=128):
    """x (B,C,H,W) f32 -> (C*k*k, Mp) bf16, Mp = B*Ho*Wo padded to lane_pad.

    Rows ordered (c, ki, kj); columns ordered (b, oy, ox)."""
    B, C, H, W = x.shape
    Ho = (H - k) // stride + 1
    Wo = (W - k) // stride + 1
    slabs = [x[:, :, ki:ki + stride * Ho:stride, kj:kj + stride * Wo:stride]
             for ki in range(k) for kj in range(k)]
    cols = jnp.stack(slabs, axis=2)                  # (B, C, k*k, Ho, Wo)
    cols = cols.transpose(1, 2, 0, 3, 4)             # (C, k*k, B, Ho, Wo)
    cols = cols.reshape(C * k * k, B * Ho * Wo)
    M = B * Ho * Wo
    Mp = pl.cdiv(M, lane_pad) * lane_pad
    if Mp != M:
        cols = jnp.pad(cols, ((0, 0), (0, Mp - M)))
    return cols.astype(jnp.bfloat16), (Ho, Wo)


def unfold_out(out, cout, B, Ho, Wo):
    """(Cout_p, Mp) f32 -> (B, cout, Ho, Wo); slices off lane/sublane padding."""
    o = out[:cout, :B * Ho * Wo].reshape(cout, B, Ho, Wo)
    return o.transpose(1, 0, 2, 3)


# ----------------------------------------------------------------------------
# Parameters (deterministic, PyTorch-default-like uniform init) + preparation
# ----------------------------------------------------------------------------
def _uinit(key, shape, fan_in):
    bound = 1.0 / np.sqrt(fan_in)
    return jax.random.uniform(key, shape, jnp.float32, -bound, bound)


def make_params(key, hidden_size=HIDDEN_SIZE, n_actions=N_ACTIONS):
    ks = jax.random.split(key, 18)
    p = {}
    p["conv1_w"] = _uinit(ks[0], (16, 3, 8, 8), 3 * 8 * 8)
    p["conv1_b"] = _uinit(ks[1], (16,), 3 * 8 * 8)
    p["conv2_w"] = _uinit(ks[2], (32, 16, 4, 4), 16 * 4 * 4)
    p["conv2_b"] = _uinit(ks[3], (32,), 16 * 4 * 4)
    p["fc1_w"] = _uinit(ks[4], (hidden_size, 2048), 2048)          # (out, in)
    p["fc1_b"] = _uinit(ks[5], (hidden_size,), 2048)
    in_lstm = hidden_size + n_actions + 1
    p["lstm_w_ih"] = _uinit(ks[6], (4 * hidden_size, in_lstm), hidden_size)
    p["lstm_w_hh"] = _uinit(ks[7], (4 * hidden_size, hidden_size), hidden_size)
    p["lstm_b_ih"] = _uinit(ks[8], (4 * hidden_size,), hidden_size)
    p["lstm_b_hh"] = _uinit(ks[9], (4 * hidden_size,), hidden_size)
    p["fc2_w"] = _uinit(ks[10], (32 * 7 * 7, hidden_size), hidden_size)
    p["fc2_b"] = _uinit(ks[11], (32 * 7 * 7,), hidden_size)
    p["dsp_w"] = _uinit(ks[12], (32, 32, 3, 3), 32 * 3 * 3)        # ConvTranspose: (Cin,Cout,k,k)
    p["dsp_b"] = _uinit(ks[13], (32,), 32 * 3 * 3)
    p["dval_w"] = _uinit(ks[14], (32, 1, 4, 4), 32 * 4 * 4)
    p["dval_b"] = _uinit(ks[15], (1,), 32 * 4 * 4)
    p["dadv_w"] = _uinit(ks[16], (32, n_actions, 4, 4), 32 * 4 * 4)
    p["dadv_b"] = _uinit(ks[17], (n_actions,), 32 * 4 * 4)
    return p


def prepare_params(raw):
    """Hoist all layout work (transposes, concats, ConvTranspose rewrites, the
    polyphase head decomposition, bf16 casts of MXU operands) out of the jitted
    forward.  Runs once."""
    H = HIDDEN_SIZE
    bf16 = jnp.bfloat16
    q = {}

    # Conv weights as (Cout, Cin*k*k) bf16 matmul operands; biases as f32 columns.
    q["conv1_wm"] = raw["conv1_w"].reshape(16, -1).astype(bf16)
    q["conv1_bc"] = raw["conv1_b"].reshape(-1, 1)
    q["conv2_wm"] = raw["conv2_w"].reshape(32, -1).astype(bf16)
    q["conv2_bc"] = raw["conv2_b"].reshape(-1, 1)

    # FC / LSTM weights pre-transposed; big MXU operands stored bf16 (f32 acc
    # inside the kernel).  The x-part of w_ih and w_hh are fused into one
    # (2H, 4H) operand; the [action|reward] part stays a separate tiny operand.
    q["fc1_wt"] = raw["fc1_w"].T.astype(bf16)                       # (2048, 256)
    q["fc1_b"] = raw["fc1_b"].reshape(1, -1)
    w_ih_t = raw["lstm_w_ih"].T                                     # (269, 1024)
    q["lstm_wxh"] = jnp.concatenate([w_ih_t[:H], raw["lstm_w_hh"].T],
                                    axis=0).astype(bf16)            # (512, 1024)
    q["lstm_war"] = w_ih_t[H:].astype(bf16)                         # (13, 1024)
    q["lstm_b"] = (raw["lstm_b_ih"] + raw["lstm_b_hh"]).reshape(1, -1)
    q["fc2_wt"] = raw["fc2_w"].T.astype(bf16)                       # (256, 1568)
    q["fc2_b"] = raw["fc2_b"].reshape(1, -1)

    # deconv_spatial: ConvTranspose2d(k3,s1) == Conv2d(k3,s1) on the 2-padded
    # input with spatially flipped, channel-swapped weights.
    dsp = jnp.flip(raw["dsp_w"], axis=(2, 3)).transpose(1, 0, 2, 3)  # (Cout,Cin,3,3)
    q["dsp_wm"] = dsp.reshape(32, -1).astype(bf16)                   # (32, 288)
    q["dsp_bc"] = raw["dsp_b"].reshape(-1, 1)

    # deconv_value + deconv_advantage (ConvTranspose k4,s2): polyphase rewrite.
    # Output phase (py,px): out[2qy+py, 2qx+px] = sum_{d in {0,1}^2}
    #   x_pad[qy+dy, qx+dx] * w[:, :, py+2-2dy, px+2-2dx]   (x padded by 1).
    # All four phases share the SAME K=128 im2col patches, so they fuse into a
    # single matmul with Cout = 4 phases * 13 channels (padded to 56 sublanes).
    w_cat = jnp.concatenate([raw["dval_w"], raw["dadv_w"]], axis=1)   # (32,13,4,4)
    b_cat = jnp.concatenate([raw["dval_b"], raw["dadv_b"]])           # (13,)
    phase_blocks = []
    for py in range(2):
        for px in range(2):
            sub = w_cat[:, :, (py + 2, py), :][:, :, :, (px + 2, px)]  # (32,13,2,2)
            sub = sub.transpose(1, 0, 2, 3).reshape(13, 32 * 2 * 2)    # (13,128)
            phase_blocks.append(sub)
    head_wm = jnp.concatenate(phase_blocks, axis=0)                    # (52,128)
    q["head_wm"] = jnp.pad(head_wm, ((0, 4), (0, 0))).astype(bf16)     # (56,128)
    q["head_bc"] = jnp.pad(jnp.tile(b_cat, 4), (0, 4)).reshape(-1, 1)  # (56,1)
    return q


# ----------------------------------------------------------------------------
# Forward pass (mirrors SimpleDeconv.forward)
# ----------------------------------------------------------------------------
def simple_deconv_forward(params, observation, reward, action, hidden_state):
    p = params
    hx, cx = hidden_state
    B = observation.shape[0]

    # conv_layer: Conv(3->16,k8,s4)+ReLU ; Conv(16->32,k4,s2)+ReLU
    pt1, (ho1, wo1) = im2col_folded(observation, 8, 4)              # (192, 768)
    c1 = conv_matmul(p["conv1_wm"], p["conv1_bc"], pt1, relu=True)  # (16, 768)
    c1 = unfold_out(c1, 16, B, ho1, wo1)                            # (B,16,18,18)

    pt2, (ho2, wo2) = im2col_folded(c1, 4, 2)                       # (256, 128)
    c2 = conv_matmul(p["conv2_wm"], p["conv2_bc"], pt2, relu=True)  # (32, 128)
    c2 = unfold_out(c2, 32, B, ho2, wo2)                            # (B,32,8,8)

    # fc_layer1 + LSTMCell + fc_layer2 : one fused Pallas kernel.
    # The updated LSTM state is computed in-register but (matching the PyTorch
    # module's return signature) is not an output.
    x_flat = c2.reshape(B, 32 * 8 * 8)                              # (B,2048)
    ar = jnp.concatenate([action, reward], axis=1)                  # (B,13)
    y = fused_fc_lstm(p, x_flat, ar, hx, cx)                        # (B,1568)
    x7 = y.reshape(B, 32, 7, 7)

    # deconv_spatial (ConvTranspose k3,s1) == Conv(k3,s1) on the 2-padded input
    xp = jnp.pad(x7, ((0, 0), (0, 0), (2, 2), (2, 2)))              # (B,32,11,11)
    pt3, (ho3, wo3) = im2col_folded(xp, 3, 1)                       # (288, 256)
    sp = conv_matmul(p["dsp_wm"], p["dsp_bc"], pt3, relu=True)      # (32, 256)
    x_spatial = unfold_out(sp, 32, B, ho3, wo3)                     # (B,32,9,9)

    # deconv_value + deconv_advantage: polyphase, one K=128 matmul for all 4
    # output phases and both heads.
    xsp = jnp.pad(x_spatial, ((0, 0), (0, 0), (1, 1), (1, 1)))      # (B,32,11,11)
    pt4, (ho4, wo4) = im2col_folded(xsp, 2, 1)                      # (128, 256)
    heads = conv_matmul(p["head_wm"], p["head_bc"], pt4, relu=False)  # (56, 256)
    heads = heads[:52, :B * ho4 * wo4].reshape(2, 2, 13, B, ho4, wo4)
    # (py, px, c, b, qy, qx) -> (b, c, qy, py, qx, px) -> (B, 13, 20, 20)
    heads = heads.transpose(3, 2, 4, 0, 5, 1).reshape(B, 13, 2 * ho4, 2 * wo4)
    value = heads[:, 0:1]
    advantage = heads[:, 1:]
    return value, advantage, x_spatial


if __name__ == "__main__":
    key = jax.random.PRNGKey(0)
    k_par, k_obs, k_act, k_rew, k_hx, k_cx = jax.random.split(key, 6)

    params = prepare_params(make_params(k_par))

    B = 2
    # 76x76 -> conv1 (k8,s4) -> 18x18 -> conv2 (k4,s2) -> 8x8 -> 32*8*8 = 2048
    observation = jax.random.normal(k_obs, (B, 3, 76, 76), jnp.float32)
    action = jax.random.normal(k_act, (B, N_ACTIONS), jnp.float32)
    reward = jax.random.normal(k_rew, (B, 1), jnp.float32)
    hx = jax.random.normal(k_hx, (B, HIDDEN_SIZE), jnp.float32)
    cx = jax.random.normal(k_cx, (B, HIDDEN_SIZE), jnp.float32)

    fwd = jax.jit(simple_deconv_forward)
    value, advantage, x_spatial = fwd(params, observation, reward, action, (hx, cx))
    jax.block_until_ready((value, advantage, x_spatial))

    assert value.shape == (B, 1, 20, 20)
    assert advantage.shape == (B, N_ACTIONS, 20, 20)
    assert x_spatial.shape == (B, 32, 9, 9)
    print("KERNEL_OK")
</pallas_src>

<mosaic_0001>
module attributes {stable_mosaic.version = 11 : i64} {
  func.func @_conv_mm_kernel(%arg0: memref<16x192xbf16, #tpu.memory_space<vmem>>, %arg1: memref<16x1xf32, #tpu.memory_space<vmem>>, %arg2: memref<192x768xbf16, #tpu.memory_space<vmem>>, %arg3: memref<16x768xf32, #tpu.memory_space<vmem>>) attributes {dimension_semantics = [], scalar_prefetch = 0 : i64, scratch_operands = 0 : i64, tpu.core_type = #tpu.core_type<tc>} {
    %c0 = arith.constant 0 : index
    %c0_0 = arith.constant 0 : index
    %0 = vector.load %arg0[%c0, %c0_0] : memref<16x192xbf16, #tpu.memory_space<vmem>>, vector<16x192xbf16>
    %c0_1 = arith.constant 0 : index
    %c0_2 = arith.constant 0 : index
    %1 = vector.load %arg2[%c0_1, %c0_2] : memref<192x768xbf16, #tpu.memory_space<vmem>>, vector<192x768xbf16>
    %cst = arith.constant dense<0.000000e+00> : vector<16x768xf32>
    %2 = tpu.matmul %0, %1, %cst {dimension_numbers = #tpu.dot_dimension_numbers<[1], [0], [0], [1], [0, 0, 1, 1], [], []>} : vector<16x192xbf16>, vector<192x768xbf16>, vector<16x768xf32> -> vector<16x768xf32>
    %c0_3 = arith.constant 0 : index
    %c0_4 = arith.constant 0 : index
    %3 = vector.load %arg1[%c0_3, %c0_4] : memref<16x1xf32, #tpu.memory_space<vmem>>, vector<16x1xf32>
    %4 = vector.broadcast %3 : vector<16x1xf32> to vector<16x768xf32>
    %5 = arith.addf %2, %4 : vector<16x768xf32>
    %cst_5 = arith.constant 0.000000e+00 : f32
    %6 = vector.broadcast %cst_5 : f32 to vector<16x768xf32>
    %7 = arith.maximumf %5, %6 : vector<16x768xf32>
    %c0_6 = arith.constant 0 : index
    %c0_7 = arith.constant 0 : index
    %8 = vector.load %arg3[%c0_6, %c0_7] : memref<16x768xf32, #tpu.memory_space<vmem>>, vector<16x768xf32>
    tpu.vector_store %arg3[%c0_6, %c0_7], %7 {strides = array<i32>} : memref<16x768xf32, #tpu.memory_space<vmem>>, vector<16x768xf32>,
    return
  }
}

module attributes {stable_mosaic.version = 11 : i64} {
  func.func @_conv_mm_kernel(%arg0: memref<32x256xbf16, #tpu.memory_space<vmem>>, %arg1: memref<32x1xf32, #tpu.memory_space<vmem>>, %arg2: memref<256x128xbf16, #tpu.memory_space<vmem>>, %arg3: memref<32x128xf32, #tpu.memory_space<vmem>>) attributes {dimension_semantics = [], scalar_prefetch = 0 : i64, scratch_operands = 0 : i64, tpu.core_type = #tpu.core_type<tc>} {
    %c0 = arith.constant 0 : index
    %c0_0 = arith.constant 0 : index
    %0 = vector.load %arg0[%c0, %c0_0] : memref<32x256xbf16, #tpu.memory_space<vmem>>, vector<32x256xbf16>
    %c0_1 = arith.constant 0 : index
    %c0_2 = arith.constant 0 : index
    %1 = vector.load %arg2[%c0_1, %c0_2] : memref<256x128xbf16, #tpu.memory_space<vmem>>, vector<256x128xbf16>
    %cst = arith.constant dense<0.000000e+00> : vector<32x128xf32>
    %2 = tpu.matmul %0, %1, %cst {dimension_numbers = #tpu.dot_dimension_numbers<[1], [0], [0], [1], [0, 0, 1, 1], [], []>} : vector<32x256xbf16>, vector<256x128xbf16>, vector<32x128xf32> -> vector<32x128xf32>
    %c0_3 = arith.constant 0 : index
    %c0_4 = arith.constant 0 : index
    %3 = vector.load %arg1[%c0_3, %c0_4] : memref<32x1xf32, #tpu.memory_space<vmem>>, vector<32x1xf32>
    %4 = vector.broadcast %3 : vector<32x1xf32> to vector<32x128xf32>
    %5 = arith.addf %2, %4 : vector<32x128xf32>
    %cst_5 = arith.constant 0.000000e+00 : f32
    %6 = vector.broadcast %cst_5 : f32 to vector<32x128xf32>
    %7 = arith.maximumf %5, %6 : vector<32x128xf32>
    %c0_6 = arith.constant 0 : index
    %c0_7 = arith.constant 0 : index
    %8 = vector.load %arg3[%c0_6, %c0_7] : memref<32x128xf32, #tpu.memory_space<vmem>>, vector<32x128xf32>
    tpu.vector_store %arg3[%c0_6, %c0_7], %7 {strides = array<i32>} : memref<32x128xf32, #tpu.memory_space<vmem>>, vector<32x128xf32>,
    return
  }
}

module attributes {stable_mosaic.version = 11 : i64} {
  func.func @_fused_fc_lstm_kernel(%arg0: memref<2x2048xf32, #tpu.memory_space<vmem>>, %arg1: memref<2x13xf32, #tpu.memory_space<vmem>>, %arg2: memref<2x256xf32, #tpu.memory_space<vmem>>, %arg3: memref<2x256xf32, #tpu.memory_space<vmem>>, %arg4: memref<2048x256xbf16, #tpu.memory_space<vmem>>, %arg5: memref<1x256xf32, #tpu.memory_space<vmem>>, %arg6: memref<512x1024xbf16, #tpu.memory_space<vmem>>, %arg7: memref<13x1024xbf16, #tpu.memory_space<vmem>>, %arg8: memref<1x1024xf32, #tpu.memory_space<vmem>>, %arg9: memref<256x1568xbf16, #tpu.memory_space<vmem>>, %arg10: memref<1x1568xf32, #tpu.memory_space<vmem>>, %arg11: memref<2x1568xf32, #tpu.memory_space<vmem>>) attributes {dimension_semantics = [], scalar_prefetch = 0 : i64, scratch_operands = 0 : i64, tpu.core_type = #tpu.core_type<tc>} {
    %c0 = arith.constant 0 : index
    %c0_0 = arith.constant 0 : index
    %0 = vector.load %arg0[%c0, %c0_0] : memref<2x2048xf32, #tpu.memory_space<vmem>>, vector<2x2048xf32>
    %1 = arith.truncf %0 : vector<2x2048xf32> to vector<2x2048xbf16>
    %c0_1 = arith.constant 0 : index
    %c0_2 = arith.constant 0 : index
    %2 = vector.load %arg4[%c0_1, %c0_2] : memref<2048x256xbf16, #tpu.memory_space<vmem>>, vector<2048x256xbf16>
    %cst = arith.constant dense<0.000000e+00> : vector<2x256xf32>
    %3 = tpu.matmul %1, %2, %cst {dimension_numbers = #tpu.dot_dimension_numbers<[1], [0], [0], [1], [0, 0, 1, 1], [], []>} : vector<2x2048xbf16>, vector<2048x256xbf16>, vector<2x256xf32> -> vector<2x256xf32>
    %c0_3 = arith.constant 0 : index
    %c0_4 = arith.constant 0 : index
    %4 = vector.load %arg5[%c0_3, %c0_4] : memref<1x256xf32, #tpu.memory_space<vmem>>, vector<1x256xf32>
    %5 = vector.broadcast %4 : vector<1x256xf32> to vector<2x256xf32>
    %6 = arith.addf %3, %5 : vector<2x256xf32>
    %cst_5 = arith.constant 0.000000e+00 : f32
    %7 = vector.broadcast %cst_5 : f32 to vector<2x256xf32>
    %8 = arith.maximumf %6, %7 : vector<2x256xf32>
    %c0_6 = arith.constant 0 : index
    %c0_7 = arith.constant 0 : index
    %9 = vector.load %arg2[%c0_6, %c0_7] : memref<2x256xf32, #tpu.memory_space<vmem>>, vector<2x256xf32>
    %10 = tpu.concatenate %8, %9 in 1 : vector<2x256xf32>, vector<2x256xf32> -> vector<2x512xf32>
    %11 = arith.truncf %10 : vector<2x512xf32> to vector<2x512xbf16>
    %c0_8 = arith.constant 0 : index
    %c0_9 = arith.constant 0 : index
    %12 = vector.load %arg6[%c0_8, %c0_9] : memref<512x1024xbf16, #tpu.memory_space<vmem>>, vector<512x1024xbf16>
    %cst_10 = arith.constant dense<0.000000e+00> : vector<2x1024xf32>
    %13 = tpu.matmul %11, %12, %cst_10 {dimension_numbers = #tpu.dot_dimension_numbers<[1], [0], [0], [1], [0, 0, 1, 1], [], []>} : vector<2x512xbf16>, vector<512x1024xbf16>, vector<2x1024xf32> -> vector<2x1024xf32>
    %c0_11 = arith.constant 0 : index
    %c0_12 = arith.constant 0 : index
    %14 = vector.load %arg1[%c0_11, %c0_12] : memref<2x13xf32, #tpu.memory_space<vmem>>, vector<2x13xf32>
    %15 = arith.truncf %14 : vector<2x13xf32> to vector<2x13xbf16>
    %c0_13 = arith.constant 0 : index
    %c0_14 = arith.constant 0 : index
    %16 = vector.load %arg7[%c0_13, %c0_14] : memref<13x1024xbf16, #tpu.memory_space<vmem>>, vector<13x1024xbf16>
    %cst_15 = arith.constant dense<0.000000e+00> : vector<2x1024xf32>
    %17 = tpu.matmul %15, %16, %cst_15 {dimension_numbers = #tpu.dot_dimension_numbers<[1], [0], [0], [1], [0, 0, 1, 1], [], []>} : vector<2x13xbf16>, vector<13x1024xbf16>, vector<2x1024xf32> -> vector<2x1024xf32>
    %18 = arith.addf %13, %17 : vector<2x1024xf32>
    %c0_16 = arith.constant 0 : index
    %c0_17 = arith.constant 0 : index
    %19 = vector.load %arg8[%c0_16, %c0_17] : memref<1x1024xf32, #tpu.memory_space<vmem>>, vector<1x1024xf32>
    %20 = vector.broadcast %19 : vector<1x1024xf32> to vector<2x1024xf32>
    %21 = arith.addf %18, %20 : vector<2x1024xf32>
    %22 = vector.extract_strided_slice %21 {offsets = [0, 0], sizes = [2, 256], strides = [1, 1]} : vector<2x1024xf32> to vector<2x256xf32>
    %23 = arith.negf %22 : vector<2x256xf32>
    %24 = math.exp %23 : vector<2x256xf32>
    %cst_18 = arith.constant 1.000000e+00 : f32
    %25 = vector.broadcast %cst_18 : f32 to vector<2x256xf32>
    %26 = arith.addf %25, %24 : vector<2x256xf32>
    %27 = arith.divf %25, %26 : vector<2x256xf32>
    %28 = vector.extract_strided_slice %21 {offsets = [0, 256], sizes = [2, 256], strides = [1, 1]} : vector<2x1024xf32> to vector<2x256xf32>
    %29 = arith.negf %28 : vector<2x256xf32>
    %30 = math.exp %29 : vector<2x256xf32>
    %cst_19 = arith.constant 1.000000e+00 : f32
    %31 = vector.broadcast %cst_19 : f32 to vector<2x256xf32>
    %32 = arith.addf %31, %30 : vector<2x256xf32>
    %33 = arith.divf %31, %32 : vector<2x256xf32>
    %34 = vector.extract_strided_slice %21 {offsets = [0, 512], sizes = [2, 256], strides = [1, 1]} : vector<2x1024xf32> to vector<2x256xf32>
    %35 = math.tanh %34 : vector<2x256xf32>
    %36 = vector.extract_strided_slice %21 {offsets = [0, 768], sizes = [2, 256], strides = [1, 1]} : vector<2x1024xf32> to vector<2x256xf32>
    %37 = arith.negf %36 : vector<2x256xf32>
    %38 = math.exp %37 : vector<2x256xf32>
    %cst_20 = arith.constant 1.000000e+00 : f32
    %39 = vector.broadcast %cst_20 : f32 to vector<2x256xf32>
    %40 = arith.addf %39, %38 : vector<2x256xf32>
    %41 = arith.divf %39, %40 : vector<2x256xf32>
    %c0_21 = arith.constant 0 : index
    %c0_22 = arith.constant 0 : index
    %42 = vector.load %arg3[%c0_21, %c0_22] : memref<2x256xf32, #tpu.memory_space<vmem>>, vector<2x256xf32>
    %43 = arith.mulf %33, %42 : vector<2x256xf32>
    %44 = arith.mulf %27, %35 : vector<2x256xf32>
    %45 = arith.addf %43, %44 : vector<2x256xf32>
    %46 = math.tanh %45 : vector<2x256xf32>
    %47 = arith.mulf %41, %46 : vector<2x256xf32>
    %48 = arith.truncf %47 : vector<2x256xf32> to vector<2x256xbf16>
    %c0_23 = arith.constant 0 : index
    %c0_24 = arith.constant 0 : index
    %49 = vector.load %arg9[%c0_23, %c0_24] : memref<256x1568xbf16, #tpu.memory_space<vmem>>, vector<256x1568xbf16>
    %cst_25 = arith.constant dense<0.000000e+00> : vector<2x1568xf32>
    %50 = tpu.matmul %48, %49, %cst_25 {dimension_numbers = #tpu.dot_dimension_numbers<[1], [0], [0], [1], [0, 0, 1, 1], [], []>} : vector<2x256xbf16>, vector<256x1568xbf16>, vector<2x1568xf32> -> vector<2x1568xf32>
    %c0_26 = arith.constant 0 : index
    %c0_27 = arith.constant 0 : index
    %51 = vector.load %arg10[%c0_26, %c0_27] : memref<1x1568xf32, #tpu.memory_space<vmem>>, vector<1x1568xf32>
    %52 = vector.broadcast %51 : vector<1x1568xf32> to vector<2x1568xf32>
    %53 = arith.addf %50, %52 : vector<2x1568xf32>
    %cst_28 = arith.constant 0.000000e+00 : f32
    %54 = vector.broadcast %cst_28 : f32 to vector<2x1568xf32>
    %55 = arith.maximumf %53, %54 : vector<2x1568xf32>
    %c0_29 = arith.constant 0 : index
    %c0_30 = arith.constant 0 : index
    %56 = vector.load %arg11[%c0_29, %c0_30] : memref<2x1568xf32, #tpu.memory_space<vmem>>, vector<2x1568xf32>
    tpu.vector_store %arg11[%c0_29, %c0_30], %55 {strides = array<i32>} : memref<2x1568xf32, #tpu.memory_space<vmem>>, vector<2x1568xf32>,
    return
  }
}

module attributes {stable_mosaic.version = 11 : i64} {
  func.func @_conv_mm_kernel(%arg0: memref<32x288xbf16, #tpu.memory_space<vmem>>, %arg1: memref<32x1xf32, #tpu.memory_space<vmem>>, %arg2: memref<288x256xbf16, #tpu.memory_space<vmem>>, %arg3: memref<32x256xf32, #tpu.memory_space<vmem>>) attributes {dimension_semantics = [], scalar_prefetch = 0 : i64, scratch_operands = 0 : i64, tpu.core_type = #tpu.core_type<tc>} {
    %c0 = arith.constant 0 : index
    %c0_0 = arith.constant 0 : index
    %0 = vector.load %arg0[%c0, %c0_0] : memref<32x288xbf16, #tpu.memory_space<vmem>>, vector<32x288xbf16>
    %c0_1 = arith.constant 0 : index
    %c0_2 = arith.constant 0 : index
    %1 = vector.load %arg2[%c0_1, %c0_2] : memref<288x256xbf16, #tpu.memory_space<vmem>>, vector<288x256xbf16>
    %cst = arith.constant dense<0.000000e+00> : vector<32x256xf32>
    %2 = tpu.matmul %0, %1, %cst {dimension_numbers = #tpu.dot_dimension_numbers<[1], [0], [0], [1], [0, 0, 1, 1], [], []>} : vector<32x288xbf16>, vector<288x256xbf16>, vector<32x256xf32> -> vector<32x256xf32>
    %c0_3 = arith.constant 0 : index
    %c0_4 = arith.constant 0 : index
    %3 = vector.load %arg1[%c0_3, %c0_4] : memref<32x1xf32, #tpu.memory_space<vmem>>, vector<32x1xf32>
    %4 = vector.broadcast %3 : vector<32x1xf32> to vector<32x256xf32>
    %5 = arith.addf %2, %4 : vector<32x256xf32>
    %cst_5 = arith.constant 0.000000e+00 : f32
    %6 = vector.broadcast %cst_5 : f32 to vector<32x256xf32>
    %7 = arith.maximumf %5, %6 : vector<32x256xf32>
    %c0_6 = arith.constant 0 : index
    %c0_7 = arith.constant 0 : index
    %8 = vector.load %arg3[%c0_6, %c0_7] : memref<32x256xf32, #tpu.memory_space<vmem>>, vector<32x256xf32>
    tpu.vector_store %arg3[%c0_6, %c0_7], %7 {strides = array<i32>} : memref<32x256xf32, #tpu.memory_space<vmem>>, vector<32x256xf32>,
    return
  }
}

module attributes {stable_mosaic.version = 11 : i64} {
  func.func @_conv_mm_kernel(%arg0: memref<56x128xbf16, #tpu.memory_space<vmem>>, %arg1: memref<56x1xf32, #tpu.memory_space<vmem>>, %arg2: memref<128x256xbf16, #tpu.memory_space<vmem>>, %arg3: memref<56x256xf32, #tpu.memory_space<vmem>>) attributes {dimension_semantics = [], scalar_prefetch = 0 : i64, scratch_operands = 0 : i64, tpu.core_type = #tpu.core_type<tc>} {
    %c0 = arith.constant 0 : index
    %c0_0 = arith.constant 0 : index
    %0 = vector.load %arg0[%c0, %c0_0] : memref<56x128xbf16, #tpu.memory_space<vmem>>, vector<56x128xbf16>
    %c0_1 = arith.constant 0 : index
    %c0_2 = arith.constant 0 : index
    %1 = vector.load %arg2[%c0_1, %c0_2] : memref<128x256xbf16, #tpu.memory_space<vmem>>, vector<128x256xbf16>
    %cst = arith.constant dense<0.000000e+00> : vector<56x256xf32>
    %2 = tpu.matmul %0, %1, %cst {dimension_numbers = #tpu.dot_dimension_numbers<[1], [0], [0], [1], [0, 0, 1, 1], [], []>} : vector<56x128xbf16>, vector<128x256xbf16>, vector<56x256xf32> -> vector<56x256xf32>
    %c0_3 = arith.constant 0 : index
    %c0_4 = arith.constant 0 : index
    %3 = vector.load %arg1[%c0_3, %c0_4] : memref<56x1xf32, #tpu.memory_space<vmem>>, vector<56x1xf32>
    %4 = vector.broadcast %3 : vector<56x1xf32> to vector<56x256xf32>
    %5 = arith.addf %2, %4 : vector<56x256xf32>
    %c0_5 = arith.constant 0 : index
    %c0_6 = arith.constant 0 : index
    %6 = vector.load %arg3[%c0_5, %c0_6] : memref<56x256xf32, #tpu.memory_space<vmem>>, vector<56x256xf32>
    tpu.vector_store %arg3[%c0_5, %c0_6], %5 {strides = array<i32>} : memref<56x256xf32, #tpu.memory_space<vmem>>, vector<56x256xf32>,
    return
  }
}

</mosaic_0001>

<llo_original>
// kernel: simple_deconv_forward.5
$region0: #{simple_deconv_forward.5}
  #allocation0 [shape = 'u32[]', space=smem, size = 0x4, offset = 0x4, fixed_abs, tag = 'smem constant byte address 0x4 - core index']
  #allocation1 [shape = 'u32[144,128]{1,0:T(1,128)}', space=vmem, size = 0x12000, scoped, tag = 'internal scratch']
  %s0 = inlined_call_operand.vmem [shape: bf16[16,192], index: 0, kind: input, shape index: {}]
  %s1 = inlined_call_operand.vmem [shape: f32[16,1], index: 1, kind: input, shape index: {}]
  %s2 = inlined_call_operand.vmem [shape: bf16[192,768], index: 2, kind: input, shape index: {}]
  %s3 = inlined_call_operand.vmem [shape: f32[16,768], index: 3, kind: output, shape index: {}]
  %s4 = sld [smem:[#allocation0]]
  $region22: #{simple_deconv_forward.5} parent=0
    _
  %s6 = ssub.s32 1, %s4
  %s7 = scalar_select 0, %s6, %s4
  // Predicated region
  $region2: #{simple_deconv_forward.5} parent=0 // pred_check
    _
  $region3: #{simple_deconv_forward.5} parent=0 // pred_check_branch
    %9 = sbr.rel (0) target = $region5
  $region4: #{simple_deconv_forward.5} parent=0 // pred_region
    _
  $region5: #{simple_deconv_forward.5} parent=0 // pred_fallthru
    _
  // Predicated region
  $region6: #{simple_deconv_forward.5} parent=0 // pred_check
    _
  $region7: #{simple_deconv_forward.5} parent=0 // pred_check_branch
    %11 = sbr.rel (0) target = $region9
  $region8: #{simple_deconv_forward.5} parent=0 // pred_region
    _
  $region9: #{simple_deconv_forward.5} parent=0 // pred_fallthru
    _
  // Predicated region
  $region10: #{simple_deconv_forward.5} parent=0 // pred_check
    _
  $region11: #{simple_deconv_forward.5} parent=0 // pred_check_branch
    %13 = sbr.rel (0) target = $region13
  $region12: #{simple_deconv_forward.5} parent=0 // pred_region
    _
  $region13: #{simple_deconv_forward.5} parent=0 // pred_fallthru
    _
  %v15 = vld [vmem:[%s0] sm:$0xff]
  %v16 = vld [vmem:[%s0 + $0x8] sm:$0xff]
  %v17 = vld [vmem:[%s2] sm:$0xff]
  %v18 = vld [vmem:[%s2 + $0x8] sm:$0xff]
  %v19 = vld [vmem:[%s2 + $0x10] sm:$0xff]
  %v20 = vld [vmem:[%s2 + $0x18] sm:$0xff]
  %v21 = vld [vmem:[%s2 + $0x20] sm:$0xff]
  %v22 = vld [vmem:[%s2 + $0x28] sm:$0xff]
  %v23 = vld [vmem:[%s2 + $0x30] sm:$0xff]
  %v24 = vld [vmem:[%s2 + $0x38] sm:$0xff]
  %v25 = vld [vmem:[%s2 + $0x40] sm:$0xff]
  %v26 = vld [vmem:[%s2 + $0x48] sm:$0xff]
  %v27 = vld [vmem:[%s2 + $0x50] sm:$0xff]
  %v28 = vld [vmem:[%s2 + $0x58] sm:$0xff]
  %v29 = vld [vmem:[%s2 + $0x60] sm:$0xff]
  %v30 = vld [vmem:[%s2 + $0x68] sm:$0xff]
  %v31 = vld [vmem:[%s2 + $0x70] sm:$0xff]
  %v32 = vld [vmem:[%s2 + $0x78] sm:$0xff]
  %v33 = vld [vmem:[%s2 + $0x80] sm:$0xff]
  %v34 = vld [vmem:[%s2 + $0x88] sm:$0xff]
  %v35 = vld [vmem:[%s2 + $0x90] sm:$0xff]
  %v36 = vld [vmem:[%s2 + $0x98] sm:$0xff]
  %v37 = vld [vmem:[%s2 + $0xa0] sm:$0xff]
  %v38 = vld [vmem:[%s2 + $0xa8] sm:$0xff]
  %v39 = vld [vmem:[%s2 + $0xb0] sm:$0xff]
  %v40 = vld [vmem:[%s2 + $0xb8] sm:$0xff]
  %v41 = vld [vmem:[%s2 + $0xc0] sm:$0xff]
  %v42 = vld [vmem:[%s2 + $0xc8] sm:$0xff]
  %v43 = vld [vmem:[%s2 + $0xd0] sm:$0xff]
  %v44 = vld [vmem:[%s2 + $0xd8] sm:$0xff]
  %v45 = vld [vmem:[%s2 + $0xe0] sm:$0xff]
  %v46 = vld [vmem:[%s2 + $0xe8] sm:$0xff]
  %v47 = vld [vmem:[%s2 + $0xf0] sm:$0xff]
  %v48 = vld [vmem:[%s2 + $0xf8] sm:$0xff]
  %v49 = vld [vmem:[%s2 + $0x100] sm:$0xff]
  %v50 = vld [vmem:[%s2 + $0x108] sm:$0xff]
  %v51 = vld [vmem:[%s2 + $0x110] sm:$0xff]
  %v52 = vld [vmem:[%s2 + $0x118] sm:$0xff]
  %v53 = vld [vmem:[%s2 + $0x120] sm:$0xff]
  %v54 = vld [vmem:[%s2 + $0x128] sm:$0xff]
  %v55 = vld [vmem:[%s2 + $0x130] sm:$0xff]
  %v56 = vld [vmem:[%s2 + $0x138] sm:$0xff]
  %v57 = vld [vmem:[%s2 + $0x140] sm:$0xff]
  %v58 = vld [vmem:[%s2 + $0x148] sm:$0xff]
  %v59 = vld [vmem:[%s2 + $0x150] sm:$0xff]
  %v60 = vld [vmem:[%s2 + $0x158] sm:$0xff]
  %v61 = vld [vmem:[%s2 + $0x160] sm:$0xff]
  %v62 = vld [vmem:[%s2 + $0x168] sm:$0xff]
  %v63 = vld [vmem:[%s2 + $0x170] sm:$0xff]
  %v64 = vld [vmem:[%s2 + $0x178] sm:$0xff]
  %v65 = vld [vmem:[%s2 + $0x180] sm:$0xff]
  %v66 = vld [vmem:[%s2 + $0x188] sm:$0xff]
  %v67 = vld [vmem:[%s2 + $0x190] sm:$0xff]
  %v68 = vld [vmem:[%s2 + $0x198] sm:$0xff]
  %v69 = vld [vmem:[%s2 + $0x1a0] sm:$0xff]
  %v70 = vld [vmem:[%s2 + $0x1a8] sm:$0xff]
  %v71 = vld [vmem:[%s2 + $0x1b0] sm:$0xff]
  %v72 = vld [vmem:[%s2 + $0x1b8] sm:$0xff]
  %v73 = vld [vmem:[%s2 + $0x1c0] sm:$0xff]
  %v74 = vld [vmem:[%s2 + $0x1c8] sm:$0xff]
  %v75 = vld [vmem:[%s2 + $0x1d0] sm:$0xff]
  %v76 = vld [vmem:[%s2 + $0x1d8] sm:$0xff]
  %v77 = vld [vmem:[%s2 + $0x1e0] sm:$0xff]
  %v78 = vld [vmem:[%s2 + $0x1e8] sm:$0xff]
  %v79 = vld [vmem:[%s2 + $0x1f0] sm:$0xff]
  %v80 = vld [vmem:[%s2 + $0x1f8] sm:$0xff]
  %v81 = vld [vmem:[%s2 + $0x200] sm:$0xff]
  %v82 = vld [vmem:[%s2 + $0x208] sm:$0xff]
  %v83 = vld [vmem:[%s2 + $0x210] sm:$0xff]
  %v84 = vld [vmem:[%s2 + $0x218] sm:$0xff]
  %v85 = vld [vmem:[%s2 + $0x220] sm:$0xff]
  %v86 = vld [vmem:[%s2 + $0x228] sm:$0xff]
  %v87 = vld [vmem:[%s2 + $0x230] sm:$0xff]
  %v88 = vld [vmem:[%s2 + $0x238] sm:$0xff]
  %v89 = vld [vmem:[%s1] sm:$0xff]
  %v90 = vld [vmem:[%s1 + $0x8] sm:$0xff]
  %92 = vset.pattern.permute.xlu0 0
  %93 = vperm.xlu0 %92, %v89
  %v94 = vpop.permute.xlu0 %93
  %97 = vset.pattern.permute.xlu0 0
  %98 = vperm.xlu0 %97, %v90
  %v99 = vpop.permute.xlu0 %98
  %v103 = vunpack.c.l.b16 %v15
  %v104 = vunpack.c.h.b16 %v15
  %v105 = vunpack.c.l.b16 %v16
  %v106 = vunpack.c.h.b16 %v16
  %v107 = vpack.c.b16 %v105, %v103
  %v108 = vpack.c.b16 %v106, %v104
  %v182 = vunpack.c.l.b16 %v17
  %v183 = vunpack.c.h.b16 %v17
  %v184 = vunpack.c.l.b16 %v18
  %v185 = vunpack.c.h.b16 %v18
  %v186 = vunpack.c.l.b16 %v19
  %v187 = vunpack.c.h.b16 %v19
  %v188 = vunpack.c.l.b16 %v20
  %v189 = vunpack.c.h.b16 %v20
  %v190 = vunpack.c.l.b16 %v21
  %v191 = vunpack.c.h.b16 %v21
  %v192 = vunpack.c.l.b16 %v22
  %v193 = vunpack.c.h.b16 %v22
  %v194 = vunpack.c.l.b16 %v23
  %v195 = vunpack.c.h.b16 %v23
  %v196 = vunpack.c.l.b16 %v24
  %v197 = vunpack.c.h.b16 %v24
  %v198 = vunpack.c.l.b16 %v25
  %v199 = vunpack.c.h.b16 %v25
  %v200 = vunpack.c.l.b16 %v26
  %v201 = vunpack.c.h.b16 %v26
  %v202 = vunpack.c.l.b16 %v27
  %v203 = vunpack.c.h.b16 %v27
  %v204 = vunpack.c.l.b16 %v28
  %v205 = vunpack.c.h.b16 %v28
  %v206 = vunpack.c.l.b16 %v29
  %v207 = vunpack.c.h.b16 %v29
  %v208 = vunpack.c.l.b16 %v30
  %v209 = vunpack.c.h.b16 %v30
  %v210 = vunpack.c.l.b16 %v31
  %v211 = vunpack.c.h.b16 %v31
  %v212 = vunpack.c.l.b16 %v32
  %v213 = vunpack.c.h.b16 %v32
  %v214 = vunpack.c.l.b16 %v33
  %v215 = vunpack.c.h.b16 %v33
  %v216 = vunpack.c.l.b16 %v34
  %v217 = vunpack.c.h.b16 %v34
  %v218 = vunpack.c.l.b16 %v35
  %v219 = vunpack.c.h.b16 %v35
  %v220 = vunpack.c.l.b16 %v36
  %v221 = vunpack.c.h.b16 %v36
  %v222 = vunpack.c.l.b16 %v37
  %v223 = vunpack.c.h.b16 %v37
  %v224 = vunpack.c.l.b16 %v38
  %v225 = vunpack.c.h.b16 %v38
  %v226 = vunpack.c.l.b16 %v39
  %v227 = vunpack.c.h.b16 %v39
  %v228 = vunpack.c.l.b16 %v40
  %v229 = vunpack.c.h.b16 %v40
  %v230 = vunpack.c.l.b16 %v41
  %v231 = vunpack.c.h.b16 %v41
  %v232 = vunpack.c.l.b16 %v42
  %v233 = vunpack.c.h.b16 %v42
  %v234 = vunpack.c.l.b16 %v43
  %v235 = vunpack.c.h.b16 %v43
  %v236 = vunpack.c.l.b16 %v44
  %v237 = vunpack.c.h.b16 %v44
  %v238 = vunpack.c.l.b16 %v45
  %v239 = vunpack.c.h.b16 %v45
  %v240 = vunpack.c.l.b16 %v46
  %v241 = vunpack.c.h.b16 %v46
  %v242 = vunpack.c.l.b16 %v47
  %v243 = vunpack.c.h.b16 %v47
  %v244 = vunpack.c.l.b16 %v48
  %v245 = vunpack.c.h.b16 %v48
  %v246 = vunpack.c.l.b16 %v49
  %v247 = vunpack.c.h.b16 %v49
  %v248 = vunpack.c.l.b16 %v50
  %v249 = vunpack.c.h.b16 %v50
  %v250 = vunpack.c.l.b16 %v51
  %v251 = vunpack.c.h.b16 %v51
  %v252 = vunpack.c.l.b16 %v52
  %v253 = vunpack.c.h.b16 %v52
  %v254 = vunpack.c.l.b16 %v53
  %v255 = vunpack.c.h.b16 %v53
  %v256 = vunpack.c.l.b16 %v54
  %v257 = vunpack.c.h.b16 %v54
  %v258 = vunpack.c.l.b16 %v55
  %v259 = vunpack.c.h.b16 %v55
  %v260 = vunpack.c.l.b16 %v56
  %v261 = vunpack.c.h.b16 %v56
  %v262 = vunpack.c.l.b16 %v57
  %v263 = vunpack.c.h.b16 %v57
  %v264 = vunpack.c.l.b16 %v58
  %v265 = vunpack.c.h.b16 %v58
  %v266 = vunpack.c.l.b16 %v59
  %v267 = vunpack.c.h.b16 %v59
  %v268 = vunpack.c.l.b16 %v60
  %v269 = vunpack.c.h.b16 %v60
  %v270 = vunpack.c.l.b16 %v61
  %v271 = vunpack.c.h.b16 %v61
  %v272 = vunpack.c.l.b16 %v62
  %v273 = vunpack.c.h.b16 %v62
  %v274 = vunpack.c.l.b16 %v63
  %v275 = vunpack.c.h.b16 %v63
  %v276 = vunpack.c.l.b16 %v64
  %v277 = vunpack.c.h.b16 %v64
  %v278 = vunpack.c.l.b16 %v65
  %v279 = vunpack.c.h.b16 %v65
  %v280 = vunpack.c.l.b16 %v66
  %v281 = vunpack.c.h.b16 %v66
  %v282 = vunpack.c.l.b16 %v67
  %v283 = vunpack.c.h.b16 %v67
  %v284 = vunpack.c.l.b16 %v68
  %v285 = vunpack.c.h.b16 %v68
  %v286 = vunpack.c.l.b16 %v69
  %v287 = vunpack.c.h.b16 %v69
  %v288 = vunpack.c.l.b16 %v70
  %v289 = vunpack.c.h.b16 %v70
  %v290 = vunpack.c.l.b16 %v71
  %v291 = vunpack.c.h.b16 %v71
  %v292 = vunpack.c.l.b16 %v72
  %v293 = vunpack.c.h.b16 %v72
  %v294 = vunpack.c.l.b16 %v73
  %v295 = vunpack.c.h.b16 %v73
  %v296 = vunpack.c.l.b16 %v74
  %v297 = vunpack.c.h.b16 %v74
  %v298 = vunpack.c.l.b16 %v75
  %v299 = vunpack.c.h.b16 %v75
  %v300 = vunpack.c.l.b16 %v76
  %v301 = vunpack.c.h.b16 %v76
  %v302 = vunpack.c.l.b16 %v77
  %v303 = vunpack.c.h.b16 %v77
  %v304 = vunpack.c.l.b16 %v78
  %v305 = vunpack.c.h.b16 %v78
  %v306 = vunpack.c.l.b16 %v79
  %v307 = vunpack.c.h.b16 %v79
  %v308 = vunpack.c.l.b16 %v80
  %v309 = vunpack.c.h.b16 %v80
  %v310 = vunpack.c.l.b16 %v81
  %v311 = vunpack.c.h.b16 %v81
  %v312 = vunpack.c.l.b16 %v82
  %v313 = vunpack.c.h.b16 %v82
  %v314 = vunpack.c.l.b16 %v83
  %v315 = vunpack.c.h.b16 %v83
  %v316 = vunpack.c.l.b16 %v84
  %v317 = vunpack.c.h.b16 %v84
  %v318 = vunpack.c.l.b16 %v85
  %v319 = vunpack.c.h.b16 %v85
  %v320 = vunpack.c.l.b16 %v86
  %v321 = vunpack.c.h.b16 %v86
  %v322 = vunpack.c.l.b16 %v87
  %v323 = vunpack.c.h.b16 %v87
  %v324 = vunpack.c.l.b16 %v88
  %v325 = vunpack.c.h.b16 %v88
  %v326 = vpack.c.b16 %v188, %v182
  %v327 = vpack.c.b16 %v189, %v183
  %v328 = vpack.c.b16 %v190, %v184
  %v329 = vpack.c.b16 %v191, %v185
  %v330 = vpack.c.b16 %v192, %v186
  %v331 = vpack.c.b16 %v193, %v187
  %v332 = vpack.c.b16 %v200, %v194
  %v333 = vpack.c.b16 %v201, %v195
  %v334 = vpack.c.b16 %v202, %v196
  %v335 = vpack.c.b16 %v203, %v197
  %v336 = vpack.c.b16 %v204, %v198
  %v337 = vpack.c.b16 %v205, %v199
  %v338 = vpack.c.b16 %v212, %v206
  %v339 = vpack.c.b16 %v213, %v207
  %v340 = vpack.c.b16 %v214, %v208
  %v341 = vpack.c.b16 %v215, %v209
  %v342 = vpack.c.b16 %v216, %v210
  %v343 = vpack.c.b16 %v217, %v211
  %v344 = vpack.c.b16 %v224, %v218
  %v345 = vpack.c.b16 %v225, %v219
  %v346 = vpack.c.b16 %v226, %v220
  %v347 = vpack.c.b16 %v227, %v221
  %v348 = vpack.c.b16 %v228, %v222
  %v349 = vpack.c.b16 %v229, %v223
  %v350 = vpack.c.b16 %v236, %v230
  %v351 = vpack.c.b16 %v237, %v231
  %v352 = vpack.c.b16 %v238, %v232
  %v353 = vpack.c.b16 %v239, %v233
  %v354 = vpack.c.b16 %v240, %v234
  %v355 = vpack.c.b16 %v241, %v235
  %v356 = vpack.c.b16 %v248, %v242
  %v357 = vpack.c.b16 %v249, %v243
  %v358 = vpack.c.b16 %v250, %v244
  %v359 = vpack.c.b16 %v251, %v245
  %v360 = vpack.c.b16 %v252, %v246
  %v361 = vpack.c.b16 %v253, %v247
  %v362 = vpack.c.b16 %v260, %v254
  %v363 = vpack.c.b16 %v261, %v255
  %v364 = vpack.c.b16 %v262, %v256
  %v365 = vpack.c.b16 %v263, %v257
  %v366 = vpack.c.b16 %v264, %v258
  %v367 = vpack.c.b16 %v265, %v259
  %v368 = vpack.c.b16 %v272, %v266
  %v369 = vpack.c.b16 %v273, %v267
  %v370 = vpack.c.b16 %v274, %v268
  %v371 = vpack.c.b16 %v275, %v269
  %v372 = vpack.c.b16 %v276, %v270
  %v373 = vpack.c.b16 %v277, %v271
  %v374 = vpack.c.b16 %v284, %v278
  %v375 = vpack.c.b16 %v285, %v279
  %v376 = vpack.c.b16 %v286, %v280
  %v377 = vpack.c.b16 %v287, %v281
  %v378 = vpack.c.b16 %v288, %v282
  %v379 = vpack.c.b16 %v289, %v283
  %v380 = vpack.c.b16 %v296, %v290
  %v381 = vpack.c.b16 %v297, %v291
  %v382 = vpack.c.b16 %v298, %v292
  %v383 = vpack.c.b16 %v299, %v293
  %v384 = vpack.c.b16 %v300, %v294
  %v385 = vpack.c.b16 %v301, %v295
  %v386 = vpack.c.b16 %v308, %v302
  %v387 = vpack.c.b16 %v309, %v303
  %v388 = vpack.c.b16 %v310, %v304
  %v389 = vpack.c.b16 %v311, %v305
  %v390 = vpack.c.b16 %v312, %v306
  %v391 = vpack.c.b16 %v313, %v307
  %v392 = vpack.c.b16 %v320, %v314
  %v393 = vpack.c.b16 %v321, %v315
  %v394 = vpack.c.b16 %v322, %v316
  %v395 = vpack.c.b16 %v323, %v317
  %v396 = vpack.c.b16 %v324, %v318
  %v397 = vpack.c.b16 %v325, %v319
  %vm470 = vcmask 523264
  %v472 = vsel %vm470, %v108, 0
  %474 = vmatprep.subr.bf16.mxu0 %v327
  %475 = vmatpush1.bf16.msra.mxu0 %v326
  %476 = vmatprep.subr.bf16.mxu0 %v333
  %477 = vmatpush1.bf16.msra.mxu0 %v332
  %478 = vmatprep.subr.bf16.mxu0 %v339
  %479 = vmatpush1.bf16.msra.mxu0 %v338
  %480 = vmatprep.subr.bf16.mxu0 %v345
  %481 = vmatpush1.bf16.msra.mxu0 %v344
  %482 = vmatprep.subr.bf16.mxu0 %v351
  %483 = vmatpush1.bf16.msra.mxu0 %v350
  %484 = vmatprep.subr.bf16.mxu0 %v357
  %485 = vmatpush1.bf16.msra.mxu0 %v356
  %486 = vmatprep.subr.bf16.mxu0 %v363
  %487 = vmatpush1.bf16.msra.mxu0 %v362
  %488 = vmatprep.subr.bf16.mxu0 %v369
  %489 = vmatpush1.bf16.msra.mxu0 %v368
  %490 = vmatprep.subr.bf16.mxu0 %v375
  %491 = vmatpush1.bf16.msra.mxu0 %v374
  %492 = vmatprep.subr.bf16.mxu0 %v381
  %493 = vmatpush1.bf16.msra.mxu0 %v380
  %494 = vmatprep.subr.bf16.mxu0 %v387
  %495 = vmatpush1.bf16.msra.mxu0 %v386
  %496 = vmatprep.subr.bf16.mxu0 %v393
  %497 = vmatpush1.bf16.msra.mxu0 %v392
  %498 = vmatprep.subr.bf16.mxu0 0
  %499 = vmatpush1.bf16.msra.mxu0 0
  %500 = vmatprep.subr.bf16.mxu0 0
  %501 = vmatpush1.bf16.msra.mxu0 0
  %502 = vmatprep.subr.bf16.mxu0 0
  %503 = vmatpush1.bf16.msra.mxu0 0
  %504 = vmatprep.subr.bf16.mxu0 0
  %505 = vmatpush1.bf16.msra.mxu0 0
  %506 = vmatprep.mubr.bf16.mxu0 %v472
  %507 = vmatmul.mubr.bf16.gmra.mrb[0].mxu0 %v107
  %v508 = vpop.f32.mrb[0].mxu0
  %v509 = vadd.f32 %v94, %v508
  %v510 = vpop.f32.mrb[0].mxu0
  %v511 = vadd.f32 %v94, %v510
  %v512 = vpop.f32.mrb[0].mxu0
  %v513 = vadd.f32 %v99, %v512
  %v514 = vpop.f32.mrb[0].mxu0
  %v515 = vadd.f32 %v99, %v514
  %516 = vdwg.mxu0
  %517 = vmatprep.subr.bf16.mxu0 %v329
  %518 = vmatpush1.bf16.msra.mxu0 %v328
  %519 = vmatprep.subr.bf16.mxu0 %v335
  %520 = vmatpush1.bf16.msra.mxu0 %v334
  %521 = vmatprep.subr.bf16.mxu0 %v341
  %522 = vmatpush1.bf16.msra.mxu0 %v340
  %523 = vmatprep.subr.bf16.mxu0 %v347
  %524 = vmatpush1.bf16.msra.mxu0 %v346
  %525 = vmatprep.subr.bf16.mxu0 %v353
  %526 = vmatpush1.bf16.msra.mxu0 %v352
  %527 = vmatprep.subr.bf16.mxu0 %v359
  %528 = vmatpush1.bf16.msra.mxu0 %v358
  %529 = vmatprep.subr.bf16.mxu0 %v365
  %530 = vmatpush1.bf16.msra.mxu0 %v364
  %531 = vmatprep.subr.bf16.mxu0 %v371
  %532 = vmatpush1.bf16.msra.mxu0 %v370
  %533 = vmatprep.subr.bf16.mxu0 %v377
  %534 = vmatpush1.bf16.msra.mxu0 %v376
  %535 = vmatprep.subr.bf16.mxu0 %v383
  %536 = vmatpush1.bf16.msra.mxu0 %v382
  %537 = vmatprep.subr.bf16.mxu0 %v389
  %538 = vmatpush1.bf16.msra.mxu0 %v388
  %539 = vmatprep.subr.bf16.mxu0 %v395
  %540 = vmatpush1.bf16.msra.mxu0 %v394
  %541 = vmatprep.subr.bf16.mxu0 0
  %542 = vmatpush1.bf16.msra.mxu0 0
  %543 = vmatprep.subr.bf16.mxu0 0
  %544 = vmatpush1.bf16.msra.mxu0 0
  %545 = vmatprep.subr.bf16.mxu0 0
  %546 = vmatpush1.bf16.msra.mxu0 0
  %547 = vmatprep.subr.bf16.mxu0 0
  %548 = vmatpush1.bf16.msra.mxu0 0
  %549 = vmatprep.mubr.bf16.mxu0 %v472
  %550 = vmatmul.mubr.bf16.gmra.mrb[0].mxu0 %v107
  %v551 = vpop.f32.mrb[0].mxu0
  %v552 = vadd.f32 %v94, %v551
  %v553 = vpop.f32.mrb[0].mxu0
  %v554 = vadd.f32 %v94, %v553
  %v555 = vpop.f32.mrb[0].mxu0
  %v556 = vadd.f32 %v99, %v555
  %v557 = vpop.f32.mrb[0].mxu0
  %v558 = vadd.f32 %v99, %v557
  %559 = vdwg.mxu0
  %560 = vmatprep.subr.bf16.mxu0 %v331
  %561 = vmatpush1.bf16.msra.mxu0 %v330
  %562 = vmatprep.subr.bf16.mxu0 %v337
  %563 = vmatpush1.bf16.msra.mxu0 %v336
  %564 = vmatprep.subr.bf16.mxu0 %v343
  %565 = vmatpush1.bf16.msra.mxu0 %v342
  %566 = vmatprep.subr.bf16.mxu0 %v349
  %567 = vmatpush1.bf16.msra.mxu0 %v348
  %568 = vmatprep.subr.bf16.mxu0 %v355
  %569 = vmatpush1.bf16.msra.mxu0 %v354
  %570 = vmatprep.subr.bf16.mxu0 %v361
  %571 = vmatpush1.bf16.msra.mxu0 %v360
  %572 = vmatprep.subr.bf16.mxu0 %v367
  %573 = vmatpush1.bf16.msra.mxu0 %v366
  %574 = vmatprep.subr.bf16.mxu0 %v373
  %575 = vmatpush1.bf16.msra.mxu0 %v372
  %576 = vmatprep.subr.bf16.mxu0 %v379
  %577 = vmatpush1.bf16.msra.mxu0 %v378
  %578 = vmatprep.subr.bf16.mxu0 %v385
  %579 = vmatpush1.bf16.msra.mxu0 %v384
  %580 = vmatprep.subr.bf16.mxu0 %v391
  %581 = vmatpush1.bf16.msra.mxu0 %v390
  %582 = vmatprep.subr.bf16.mxu0 %v397
  %583 = vmatpush1.bf16.msra.mxu0 %v396
  %584 = vmatprep.subr.bf16.mxu0 0
  %585 = vmatpush1.bf16.msra.mxu0 0
  %586 = vmatprep.subr.bf16.mxu0 0
  %587 = vmatpush1.bf16.msra.mxu0 0
  %588 = vmatprep.subr.bf16.mxu0 0
  %589 = vmatpush1.bf16.msra.mxu0 0
  %590 = vmatprep.subr.bf16.mxu0 0
  %591 = vmatpush1.bf16.msra.mxu0 0
  %592 = vmatprep.mubr.bf16.mxu0 %v472
  %593 = vmatmul.mubr.bf16.gmra.mrb[0].mxu0 %v107
  %v594 = vpop.f32.mrb[0].mxu0
  %v595 = vadd.f32 %v94, %v594
  %v596 = vpop.f32.mrb[0].mxu0
  %v597 = vadd.f32 %v94, %v596
  %v598 = vpop.f32.mrb[0].mxu0
  %v599 = vadd.f32 %v99, %v598
  %v600 = vpop.f32.mrb[0].mxu0
  %v601 = vadd.f32 %v99, %v600
  %602 = vdwg.mxu0
  %v603 = vmax.f32 %v509, 0.0
  %v604 = vmax.f32 %v511, 0.0
  %v605 = vmax.f32 %v552, 0.0
  %v606 = vmax.f32 %v554, 0.0
  %v607 = vmax.f32 %v595, 0.0
  %v608 = vmax.f32 %v597, 0.0
  %v609 = vmax.f32 %v513, 0.0
  %v610 = vmax.f32 %v515, 0.0
  %v611 = vmax.f32 %v556, 0.0
  %v612 = vmax.f32 %v558, 0.0
  %v613 = vmax.f32 %v599, 0.0
  %v614 = vmax.f32 %v601, 0.0
  %615 = vst [vmem:[%s3] sm:$0xff] %v603
  %616 = vst [vmem:[%s3 + $0x8] sm:$0xff] %v604
  %617 = vst [vmem:[%s3 + $0x10] sm:$0xff] %v605
  %618 = vst [vmem:[%s3 + $0x18] sm:$0xff] %v606
  %619 = vst [vmem:[%s3 + $0x20] sm:$0xff] %v607
  %620 = vst [vmem:[%s3 + $0x28] sm:$0xff] %v608
  %621 = vst [vmem:[%s3 + $0x30] sm:$0xff] %v609
  %622 = vst [vmem:[%s3 + $0x38] sm:$0xff] %v610
  %623 = vst [vmem:[%s3 + $0x40] sm:$0xff] %v611
  %624 = vst [vmem:[%s3 + $0x48] sm:$0xff] %v612
  %625 = vst [vmem:[%s3 + $0x50] sm:$0xff] %v613
  %626 = vst [vmem:[%s3 + $0x58] sm:$0xff] %v614
  // Predicated region
  $region14: #{simple_deconv_forward.5} parent=0 // pred_check
    _
  $region15: #{simple_deconv_forward.5} parent=0 // pred_check_branch
    %628 = sbr.rel (0) target = $region17
  $region16: #{simple_deconv_forward.5} parent=0 // pred_region
    _
  $region17: #{simple_deconv_forward.5} parent=0 // pred_fallthru
    _
  // Predicated region
  $region18: #{simple_deconv_forward.5} parent=0 // pred_check
    _
  $region19: #{simple_deconv_forward.5} parent=0 // pred_check_branch
    %630 = sbr.rel (0) target = $region21
  $region20: #{simple_deconv_forward.5} parent=0 // pred_region
    _
  $region21: #{simple_deconv_forward.5} parent=0 // pred_fallthru
    _

// kernel: simple_deconv_forward.6
$region0: #{simple_deconv_forward.6}
  #allocation0 [shape = 'u32[]', space=smem, size = 0x4, offset = 0x4, fixed_abs, tag = 'smem constant byte address 0x4 - core index']
  #allocation1 [shape = 'u32[144,128]{1,0:T(1,128)}', space=vmem, size = 0x12000, scoped, tag = 'internal scratch']
  %s0 = inlined_call_operand.vmem [shape: bf16[32,256], index: 0, kind: input, shape index: {}]
  %s1 = inlined_call_operand.vmem [shape: f32[32,1], index: 1, kind: input, shape index: {}]
  %s2 = inlined_call_operand.vmem [shape: bf16[256,128], index: 2, kind: input, shape index: {}]
  %s3 = inlined_call_operand.vmem [shape: f32[32,128], index: 3, kind: output, shape index: {}]
  %s4 = sld [smem:[#allocation0]]
  $region22: #{simple_deconv_forward.6} parent=0
    _
  %s6 = ssub.s32 1, %s4
  %s7 = scalar_select 0, %s6, %s4
  // Predicated region
  $region2: #{simple_deconv_forward.6} parent=0 // pred_check
    _
  $region3: #{simple_deconv_forward.6} parent=0 // pred_check_branch
    %9 = sbr.rel (0) target = $region5
  $region4: #{simple_deconv_forward.6} parent=0 // pred_region
    _
  $region5: #{simple_deconv_forward.6} parent=0 // pred_fallthru
    _
  // Predicated region
  $region6: #{simple_deconv_forward.6} parent=0 // pred_check
    _
  $region7: #{simple_deconv_forward.6} parent=0 // pred_check_branch
    %11 = sbr.rel (0) target = $region9
  $region8: #{simple_deconv_forward.6} parent=0 // pred_region
    _
  $region9: #{simple_deconv_forward.6} parent=0 // pred_fallthru
    _
  // Predicated region
  $region10: #{simple_deconv_forward.6} parent=0 // pred_check
    _
  $region11: #{simple_deconv_forward.6} parent=0 // pred_check_branch
    %13 = sbr.rel (0) target = $region13
  $region12: #{simple_deconv_forward.6} parent=0 // pred_region
    _
  $region13: #{simple_deconv_forward.6} parent=0 // pred_fallthru
    _
  %v15 = vld [vmem:[%s0] sm:$0xff]
  %v16 = vld [vmem:[%s0 + $0x8] sm:$0xff]
  %v17 = vld [vmem:[%s0 + $0x10] sm:$0xff]
  %v18 = vld [vmem:[%s0 + $0x18] sm:$0xff]
  %v19 = vld [vmem:[%s2] sm:$0xf]
  %v20 = vld [vmem:[%s2 + $0x4] sm:$0xf]
  %v21 = vld [vmem:[%s2 + $0x8] sm:$0xf]
  %v22 = vld [vmem:[%s2 + $0xc] sm:$0xf]
  %v23 = vld [vmem:[%s2 + $0x10] sm:$0xf]
  %v24 = vld [vmem:[%s2 + $0x14] sm:$0xf]
  %v25 = vld [vmem:[%s2 + $0x18] sm:$0xf]
  %v26 = vld [vmem:[%s2 + $0x1c] sm:$0xf]
  %v27 = vld [vmem:[%s2 + $0x20] sm:$0xf]
  %v28 = vld [vmem:[%s2 + $0x24] sm:$0xf]
  %v29 = vld [vmem:[%s2 + $0x28] sm:$0xf]
  %v30 = vld [vmem:[%s2 + $0x2c] sm:$0xf]
  %v31 = vld [vmem:[%s2 + $0x30] sm:$0xf]
  %v32 = vld [vmem:[%s2 + $0x34] sm:$0xf]
  %v33 = vld [vmem:[%s2 + $0x38] sm:$0xf]
  %v34 = vld [vmem:[%s2 + $0x3c] sm:$0xf]
  %v35 = vld [vmem:[%s2 + $0x40] sm:$0xf]
  %v36 = vld [vmem:[%s2 + $0x44] sm:$0xf]
  %v37 = vld [vmem:[%s2 + $0x48] sm:$0xf]
  %v38 = vld [vmem:[%s2 + $0x4c] sm:$0xf]
  %v39 = vld [vmem:[%s2 + $0x50] sm:$0xf]
  %v40 = vld [vmem:[%s2 + $0x54] sm:$0xf]
  %v41 = vld [vmem:[%s2 + $0x58] sm:$0xf]
  %v42 = vld [vmem:[%s2 + $0x5c] sm:$0xf]
  %v43 = vld [vmem:[%s2 + $0x60] sm:$0xf]
  %v44 = vld [vmem:[%s2 + $0x64] sm:$0xf]
  %v45 = vld [vmem:[%s2 + $0x68] sm:$0xf]
  %v46 = vld [vmem:[%s2 + $0x6c] sm:$0xf]
  %v47 = vld [vmem:[%s2 + $0x70] sm:$0xf]
  %v48 = vld [vmem:[%s2 + $0x74] sm:$0xf]
  %v49 = vld [vmem:[%s2 + $0x78] sm:$0xf]
  %v50 = vld [vmem:[%s2 + $0x7c] sm:$0xf]
  %v51 = vld [vmem:[%s1] sm:$0xff]
  %v52 = vld [vmem:[%s1 + $0x8] sm:$0xff]
  %v53 = vld [vmem:[%s1 + $0x10] sm:$0xff]
  %v54 = vld [vmem:[%s1 + $0x18] sm:$0xff]
  %56 = vset.pattern.permute.xlu0 0
  %57 = vperm.xlu0 %56, %v51
  %v58 = vpop.permute.xlu0 %57
  %61 = vset.pattern.permute.xlu0 0
  %62 = vperm.xlu0 %61, %v52
  %v63 = vpop.permute.xlu0 %62
  %66 = vset.pattern.permute.xlu0 0
  %67 = vperm.xlu0 %66, %v53
  %v68 = vpop.permute.xlu0 %67
  %71 = vset.pattern.permute.xlu0 0
  %72 = vperm.xlu0 %71, %v54
  %v73 = vpop.permute.xlu0 %72
  %v79 = vunpack.c.l.b16 %v15
  %v80 = vunpack.c.h.b16 %v15
  %v81 = vunpack.c.l.b16 %v16
  %v82 = vunpack.c.h.b16 %v16
  %v83 = vunpack.c.l.b16 %v17
  %v84 = vunpack.c.h.b16 %v17
  %v85 = vunpack.c.l.b16 %v18
  %v86 = vunpack.c.h.b16 %v18
  %v87 = vpack.c.b16 %v81, %v79
  %v88 = vpack.c.b16 %v82, %v80
  %v89 = vpack.c.b16 %v85, %v83
  %v90 = vpack.c.b16 %v86, %v84
  %v127 = vunpack.c.l.b16 %v19
  %v128 = vunpack.c.l.b16 %v20
  %v129 = vunpack.c.l.b16 %v21
  %v130 = vunpack.c.l.b16 %v22
  %v131 = vunpack.c.l.b16 %v23
  %v132 = vunpack.c.l.b16 %v24
  %v133 = vunpack.c.l.b16 %v25
  %v134 = vunpack.c.l.b16 %v26
  %v135 = vunpack.c.l.b16 %v27
  %v136 = vunpack.c.l.b16 %v28
  %v137 = vunpack.c.l.b16 %v29
  %v138 = vunpack.c.l.b16 %v30
  %v139 = vunpack.c.l.b16 %v31
  %v140 = vunpack.c.l.b16 %v32
  %v141 = vunpack.c.l.b16 %v33
  %v142 = vunpack.c.l.b16 %v34
  %v143 = vunpack.c.l.b16 %v35
  %v144 = vunpack.c.l.b16 %v36
  %v145 = vunpack.c.l.b16 %v37
  %v146 = vunpack.c.l.b16 %v38
  %v147 = vunpack.c.l.b16 %v39
  %v148 = vunpack.c.l.b16 %v40
  %v149 = vunpack.c.l.b16 %v41
  %v150 = vunpack.c.l.b16 %v42
  %v151 = vunpack.c.l.b16 %v43
  %v152 = vunpack.c.l.b16 %v44
  %v153 = vunpack.c.l.b16 %v45
  %v154 = vunpack.c.l.b16 %v46
  %v155 = vunpack.c.l.b16 %v47
  %v156 = vunpack.c.l.b16 %v48
  %v157 = vunpack.c.l.b16 %v49
  %v158 = vunpack.c.l.b16 %v50
  %v159 = vpack.c.b16 %v128, %v127
  %v160 = vpack.c.b16 %v130, %v129
  %v161 = vpack.c.b16 %v132, %v131
  %v162 = vpack.c.b16 %v134, %v133
  %v163 = vpack.c.b16 %v136, %v135
  %v164 = vpack.c.b16 %v138, %v137
  %v165 = vpack.c.b16 %v140, %v139
  %v166 = vpack.c.b16 %v142, %v141
  %v167 = vpack.c.b16 %v144, %v143
  %v168 = vpack.c.b16 %v146, %v145
  %v169 = vpack.c.b16 %v148, %v147
  %v170 = vpack.c.b16 %v150, %v149
  %v171 = vpack.c.b16 %v152, %v151
  %v172 = vpack.c.b16 %v154, %v153
  %v173 = vpack.c.b16 %v156, %v155
  %v174 = vpack.c.b16 %v158, %v157
  %191 = vmatprep.subr.bf16.mxu0 0
  %192 = vmatpush1.bf16.msra.mxu0 %v159
  %193 = vmatprep.subr.bf16.mxu0 0
  %194 = vmatpush1.bf16.msra.mxu0 %v160
  %195 = vmatprep.subr.bf16.mxu0 0
  %196 = vmatpush1.bf16.msra.mxu0 %v161
  %197 = vmatprep.subr.bf16.mxu0 0
  %198 = vmatpush1.bf16.msra.mxu0 %v162
  %199 = vmatprep.subr.bf16.mxu0 0
  %200 = vmatpush1.bf16.msra.mxu0 %v163
  %201 = vmatprep.subr.bf16.mxu0 0
  %202 = vmatpush1.bf16.msra.mxu0 %v164
  %203 = vmatprep.subr.bf16.mxu0 0
  %204 = vmatpush1.bf16.msra.mxu0 %v165
  %205 = vmatprep.subr.bf16.mxu0 0
  %206 = vmatpush1.bf16.msra.mxu0 %v166
  %207 = vmatprep.subr.bf16.mxu0 0
  %208 = vmatpush1.bf16.msra.mxu0 %v167
  %209 = vmatprep.subr.bf16.mxu0 0
  %210 = vmatpush1.bf16.msra.mxu0 %v168
  %211 = vmatprep.subr.bf16.mxu0 0
  %212 = vmatpush1.bf16.msra.mxu0 %v169
  %213 = vmatprep.subr.bf16.mxu0 0
  %214 = vmatpush1.bf16.msra.mxu0 %v170
  %215 = vmatprep.subr.bf16.mxu0 0
  %216 = vmatpush1.bf16.msra.mxu0 %v171
  %217 = vmatprep.subr.bf16.mxu0 0
  %218 = vmatpush1.bf16.msra.mxu0 %v172
  %219 = vmatprep.subr.bf16.mxu0 0
  %220 = vmatpush1.bf16.msra.mxu0 %v173
  %221 = vmatprep.subr.bf16.mxu0 0
  %222 = vmatpush1.bf16.msra.mxu0 %v174
  %223 = vmatprep.mubr.bf16.mxu0 %v88
  %224 = vmatmul.mubr.bf16.gmra.mrb[0].mxu0 %v87
  %v225 = vpop.f32.mrb[0].mxu0
  %v226 = vadd.f32 %v58, %v225
  %v227 = vpop.f32.mrb[0].mxu0
  %v228 = vpop.f32.mrb[0].mxu0
  %v229 = vadd.f32 %v63, %v228
  %v230 = vpop.f32.mrb[0].mxu0
  %231 = vmatprep.mubr.bf16.mxu0 %v90
  %232 = vmatmul.mubr.bf16.gmra.mrb[0].mxu0 %v89
  %v233 = vpop.f32.mrb[0].mxu0
  %v234 = vadd.f32 %v68, %v233
  %v235 = vpop.f32.mrb[0].mxu0
  %v236 = vpop.f32.mrb[0].mxu0
  %v237 = vadd.f32 %v73, %v236
  %v238 = vpop.f32.mrb[0].mxu0
  %239 = vdwg.mxu0
  %v240 = vmax.f32 %v226, 0.0
  %v241 = vmax.f32 %v229, 0.0
  %v242 = vmax.f32 %v234, 0.0
  %v243 = vmax.f32 %v237, 0.0
  %244 = vst [vmem:[%s3] sm:$0xff] %v240
  %245 = vst [vmem:[%s3 + $0x8] sm:$0xff] %v241
  %246 = vst [vmem:[%s3 + $0x10] sm:$0xff] %v242
  %247 = vst [vmem:[%s3 + $0x18] sm:$0xff] %v243
  // Predicated region
  $region14: #{simple_deconv_forward.6} parent=0 // pred_check
    _
  $region15: #{simple_deconv_forward.6} parent=0 // pred_check_branch
    %249 = sbr.rel (0) target = $region17
  $region16: #{simple_deconv_forward.6} parent=0 // pred_region
    _
  $region17: #{simple_deconv_forward.6} parent=0 // pred_fallthru
    _
  // Predicated region
  $region18: #{simple_deconv_forward.6} parent=0 // pred_check
    _
  $region19: #{simple_deconv_forward.6} parent=0 // pred_check_branch
    %251 = sbr.rel (0) target = $region21
  $region20: #{simple_deconv_forward.6} parent=0 // pred_region
    _
  $region21: #{simple_deconv_forward.6} parent=0 // pred_fallthru
    _

// kernel: simple_deconv_forward.7
$region0: #{simple_deconv_forward.7}
  #allocation0 [shape = 'u32[]', space=smem, size = 0x4, offset = 0x4, fixed_abs, tag = 'smem constant byte address 0x4 - core index']
  #allocation1 [shape = 'u32[144,128]{1,0:T(1,128)}', space=vmem, size = 0x12000, scoped, tag = 'internal scratch']
  %s0 = inlined_call_operand.vmem [shape: f32[2,2048], index: 0, kind: input, shape index: {}]
  %s1 = inlined_call_operand.vmem [shape: f32[2,13], index: 1, kind: input, shape index: {}]
  %s2 = inlined_call_operand.vmem [shape: f32[2,256], index: 2, kind: input, shape index: {}]
  %s3 = inlined_call_operand.vmem [shape: f32[2,256], index: 3, kind: input, shape index: {}]
  %s4 = inlined_call_operand.vmem [shape: bf16[2048,256], index: 4, kind: input, shape index: {}]
  %s5 = inlined_call_operand.vmem [shape: f32[1,256], index: 5, kind: input, shape index: {}]
  %s6 = inlined_call_operand.vmem [shape: bf16[512,1024], index: 6, kind: input, shape index: {}]
  %s7 = inlined_call_operand.vmem [shape: bf16[13,1024], index: 7, kind: input, shape index: {}]
  %s8 = inlined_call_operand.vmem [shape: f32[1,1024], index: 8, kind: input, shape index: {}]
  %s9 = inlined_call_operand.vmem [shape: bf16[256,1568], index: 9, kind: input, shape index: {}]
  %s10 = inlined_call_operand.vmem [shape: f32[1,1568], index: 10, kind: input, shape index: {}]
  %s11 = inlined_call_operand.vmem [shape: f32[2,1568], index: 11, kind: output, shape index: {}]
  %s12 = sld [smem:[#allocation0]]
  $region54: #{simple_deconv_forward.7} parent=0
    _
  %s14 = ssub.s32 1, %s12
  %s15 = scalar_select 0, %s14, %s12
  // Predicated region
  $region2: #{simple_deconv_forward.7} parent=0 // pred_check
    _
  $region3: #{simple_deconv_forward.7} parent=0 // pred_check_branch
    %17 = sbr.rel (0) target = $region5
  $region4: #{simple_deconv_forward.7} parent=0 // pred_region
    _
  $region5: #{simple_deconv_forward.7} parent=0 // pred_fallthru
    _
  // Predicated region
  $region6: #{simple_deconv_forward.7} parent=0 // pred_check
    _
  $region7: #{simple_deconv_forward.7} parent=0 // pred_check_branch
    %19 = sbr.rel (0) target = $region9
  $region8: #{simple_deconv_forward.7} parent=0 // pred_region
    _
  $region9: #{simple_deconv_forward.7} parent=0 // pred_fallthru
    _
  // Predicated region
  $region10: #{simple_deconv_forward.7} parent=0 // pred_check
    _
  $region11: #{simple_deconv_forward.7} parent=0 // pred_check_branch
    %21 = sbr.rel (0) target = $region13
  $region12: #{simple_deconv_forward.7} parent=0 // pred_region
    _
  $region13: #{simple_deconv_forward.7} parent=0 // pred_fallthru
    _
  // Predicated region
  $region14: #{simple_deconv_forward.7} parent=0 // pred_check
    _
  $region15: #{simple_deconv_forward.7} parent=0 // pred_check_branch
    %23 = sbr.rel (0) target = $region17
  $region16: #{simple_deconv_forward.7} parent=0 // pred_region
    _
  $region17: #{simple_deconv_forward.7} parent=0 // pred_fallthru
    _
  // Predicated region
  $region18: #{simple_deconv_forward.7} parent=0 // pred_check
    _
  $region19: #{simple_deconv_forward.7} parent=0 // pred_check_branch
    %25 = sbr.rel (0) target = $region21
  $region20: #{simple_deconv_forward.7} parent=0 // pred_region
    _
  $region21: #{simple_deconv_forward.7} parent=0 // pred_fallthru
    _
  // Predicated region
  $region22: #{simple_deconv_forward.7} parent=0 // pred_check
    _
  $region23: #{simple_deconv_forward.7} parent=0 // pred_check_branch
    %27 = sbr.rel (0) target = $region25
  $region24: #{simple_deconv_forward.7} parent=0 // pred_region
    _
  $region25: #{simple_deconv_forward.7} parent=0 // pred_fallthru
    _
  // Predicated region
  $region26: #{simple_deconv_forward.7} parent=0 // pred_check
    _
  $region27: #{simple_deconv_forward.7} parent=0 // pred_check_branch
    %29 = sbr.rel (0) target = $region29
  $region28: #{simple_deconv_forward.7} parent=0 // pred_region
    _
  $region29: #{simple_deconv_forward.7} parent=0 // pred_fallthru
    _
  // Predicated region
  $region30: #{simple_deconv_forward.7} parent=0 // pred_check
    _
  $region31: #{simple_deconv_forward.7} parent=0 // pred_check_branch
    %31 = sbr.rel (0) target = $region33
  $region32: #{simple_deconv_forward.7} parent=0 // pred_region
    _
  $region33: #{simple_deconv_forward.7} parent=0 // pred_fallthru
    _
  // Predicated region
  $region34: #{simple_deconv_forward.7} parent=0 // pred_check
    _
  $region35: #{simple_deconv_forward.7} parent=0 // pred_check_branch
    %33 = sbr.rel (0) target = $region37
  $region36: #{simple_deconv_forward.7} parent=0 // pred_region
    _
  $region37: #{simple_deconv_forward.7} parent=0 // pred_fallthru
    _
  // Predicated region
  $region38: #{simple_deconv_forward.7} parent=0 // pred_check
    _
  $region39: #{simple_deconv_forward.7} parent=0 // pred_check_branch
    %35 = sbr.rel (0) target = $region41
  $region40: #{simple_deconv_forward.7} parent=0 // pred_region
    _
  $region41: #{simple_deconv_forward.7} parent=0 // pred_fallthru
    _
  // Predicated region
  $region42: #{simple_deconv_forward.7} parent=0 // pred_check
    _
  $region43: #{simple_deconv_forward.7} parent=0 // pred_check_branch
    %37 = sbr.rel (0) target = $region45
  $region44: #{simple_deconv_forward.7} parent=0 // pred_region
    _
  $region45: #{simple_deconv_forward.7} parent=0 // pred_fallthru
    _
  %v39 = vld [vmem:[%s0] sm:$0xff]
  %v40 = vld [vmem:[%s0 + $0x8] sm:$0xff]
  %v41 = vld [vmem:[%s0 + $0x10] sm:$0xff]
  %v42 = vld [vmem:[%s0 + $0x18] sm:$0xff]
  %v47 = vcombine.high %v39, %v39
  %v49 = vunpack.c.l.s4 1983009808
  %v50 = vunpack.c.0.s8 %v49
  %v51 = vlaneseq
  %v52 = vshrl.u32 %v51, 7
  %v53 = vsub.s32 %v50, %v52
  %v54 = vrot.slane %v39, %v53
  %v56 = vunpack.c.l.s4 1983009808
  %v57 = vunpack.c.0.s8 %v56
  %v58 = vlaneseq
  %v59 = vshrl.u32 %v58, 7
  %v60 = vsub.s32 %v57, %v59
  %v61 = vrot.slane %v47, %v60
  %v62 = vcombine.high %v54, %v54
  %v63 = vcombine.high %v61, %v61
  %v64 = vcombine.high %v40, %v40
  %v66 = vunpack.c.l.s4 1983009808
  %v67 = vunpack.c.0.s8 %v66
  %v68 = vlaneseq
  %v69 = vshrl.u32 %v68, 7
  %v70 = vsub.s32 %v67, %v69
  %v71 = vrot.slane %v40, %v70
  %v73 = vunpack.c.l.s4 1983009808
  %v74 = vunpack.c.0.s8 %v73
  %v75 = vlaneseq
  %v76 = vshrl.u32 %v75, 7
  %v77 = vsub.s32 %v74, %v76
  %v78 = vrot.slane %v64, %v77
  %v79 = vcombine.high %v71, %v71
  %v80 = vcombine.high %v78, %v78
  %v81 = vcombine.high %v41, %v41
  %v83 = vunpack.c.l.s4 1983009808
  %v84 = vunpack.c.0.s8 %v83
  %v85 = vlaneseq
  %v86 = vshrl.u32 %v85, 7
  %v87 = vsub.s32 %v84, %v86
  %v88 = vrot.slane %v41, %v87
  %v90 = vunpack.c.l.s4 1983009808
  %v91 = vunpack.c.0.s8 %v90
  %v92 = vlaneseq
  %v93 = vshrl.u32 %v92, 7
  %v94 = vsub.s32 %v91, %v93
  %v95 = vrot.slane %v81, %v94
  %v96 = vcombine.high %v88, %v88
  %v97 = vcombine.high %v95, %v95
  %v98 = vcombine.high %v42, %v42
  %v100 = vunpack.c.l.s4 1983009808
  %v101 = vunpack.c.0.s8 %v100
  %v102 = vlaneseq
  %v103 = vshrl.u32 %v102, 7
  %v104 = vsub.s32 %v101, %v103
  %v105 = vrot.slane %v42, %v104
  %v107 = vunpack.c.l.s4 1983009808
  %v108 = vunpack.c.0.s8 %v107
  %v109 = vlaneseq
  %v110 = vshrl.u32 %v109, 7
  %v111 = vsub.s32 %v108, %v110
  %v112 = vrot.slane %v98, %v111
  %v113 = vcombine.high %v105, %v105
  %v114 = vcombine.high %v112, %v112
  %v131 = vpack.c.bf16 %v54, %v54
  %v132 = vpack.c.bf16 %v62, %v62
  %v133 = vpack.c.bf16 %v61, %v61
  %v134 = vpack.c.bf16 %v63, %v63
  %v135 = vpack.c.bf16 %v71, %v71
  %v136 = vpack.c.bf16 %v79, %v79
  %v137 = vpack.c.bf16 %v78, %v78
  %v138 = vpack.c.bf16 %v80, %v80
  %v139 = vpack.c.bf16 %v88, %v88
  %v140 = vpack.c.bf16 %v96, %v96
  %v141 = vpack.c.bf16 %v95, %v95
  %v142 = vpack.c.bf16 %v97, %v97
  %v143 = vpack.c.bf16 %v105, %v105
  %v144 = vpack.c.bf16 %v113, %v113
  %v145 = vpack.c.bf16 %v112, %v112
  %v146 = vpack.c.bf16 %v114, %v114
  %v147 = vld [vmem:[%s4] sm:$0xff]
  %v148 = vld [vmem:[%s4 + $0x8] sm:$0xff]
  %v149 = vld [vmem:[%s4 + $0x10] sm:$0xff]
  %v150 = vld [vmem:[%s4 + $0x18] sm:$0xff]
  %v151 = vld [vmem:[%s4 + $0x20] sm:$0xff]
  %v152 = vld [vmem:[%s4 + $0x28] sm:$0xff]
  %v153 = vld [vmem:[%s4 + $0x30] sm:$0xff]
  %v154 = vld [vmem:[%s4 + $0x38] sm:$0xff]
  %v155 = vld [vmem:[%s4 + $0x40] sm:$0xff]
  %v156 = vld [vmem:[%s4 + $0x48] sm:$0xff]
  %v157 = vld [vmem:[%s4 + $0x50] sm:$0xff]
  %v158 = vld [vmem:[%s4 + $0x58] sm:$0xff]
  %v159 = vld [vmem:[%s4 + $0x60] sm:$0xff]
  %v160 = vld [vmem:[%s4 + $0x68] sm:$0xff]
  %v161 = vld [vmem:[%s4 + $0x70] sm:$0xff]
  %v162 = vld [vmem:[%s4 + $0x78] sm:$0xff]
  %v163 = vld [vmem:[%s4 + $0x80] sm:$0xff]
  %v164 = vld [vmem:[%s4 + $0x88] sm:$0xff]
  %v165 = vld [vmem:[%s4 + $0x90] sm:$0xff]
  %v166 = vld [vmem:[%s4 + $0x98] sm:$0xff]
  %v167 = vld [vmem:[%s4 + $0xa0] sm:$0xff]
  %v168 = vld [vmem:[%s4 + $0xa8] sm:$0xff]
  %v169 = vld [vmem:[%s4 + $0xb0] sm:$0xff]
  %v170 = vld [vmem:[%s4 + $0xb8] sm:$0xff]
  %v171 = vld [vmem:[%s4 + $0xc0] sm:$0xff]
  %v172 = vld [vmem:[%s4 + $0xc8] sm:$0xff]
  %v173 = vld [vmem:[%s4 + $0xd0] sm:$0xff]
  %v174 = vld [vmem:[%s4 + $0xd8] sm:$0xff]
  %v175 = vld [vmem:[%s4 + $0xe0] sm:$0xff]
  %v176 = vld [vmem:[%s4 + $0xe8] sm:$0xff]
  %v177 = vld [vmem:[%s4 + $0xf0] sm:$0xff]
  %v178 = vld [vmem:[%s4 + $0xf8] sm:$0xff]
  %v179 = vld [vmem:[%s4 + $0x100] sm:$0xff]
  %v180 = vld [vmem:[%s4 + $0x108] sm:$0xff]
  %v181 = vld [vmem:[%s4 + $0x110] sm:$0xff]
  %v182 = vld [vmem:[%s4 + $0x118] sm:$0xff]
  %v183 = vld [vmem:[%s4 + $0x120] sm:$0xff]
  %v184 = vld [vmem:[%s4 + $0x128] sm:$0xff]
  %v185 = vld [vmem:[%s4 + $0x130] sm:$0xff]
  %v186 = vld [vmem:[%s4 + $0x138] sm:$0xff]
  %v187 = vld [vmem:[%s4 + $0x140] sm:$0xff]
  %v188 = vld [vmem:[%s4 + $0x148] sm:$0xff]
  %v189 = vld [vmem:[%s4 + $0x150] sm:$0xff]
  %v190 = vld [vmem:[%s4 + $0x158] sm:$0xff]
  %v191 = vld [vmem:[%s4 + $0x160] sm:$0xff]
  %v192 = vld [vmem:[%s4 + $0x168] sm:$0xff]
  %v193 = vld [vmem:[%s4 + $0x170] sm:$0xff]
  %v194 = vld [vmem:[%s4 + $0x178] sm:$0xff]
  %v195 = vld [vmem:[%s4 + $0x180] sm:$0xff]
  %v196 = vld [vmem:[%s4 + $0x188] sm:$0xff]
  %v197 = vld [vmem:[%s4 + $0x190] sm:$0xff]
  %v198 = vld [vmem:[%s4 + $0x198] sm:$0xff]
  %v199 = vld [vmem:[%s4 + $0x1a0] sm:$0xff]
  %v200 = vld [vmem:[%s4 + $0x1a8] sm:$0xff]
  %v201 = vld [vmem:[%s4 + $0x1b0] sm:$0xff]
  %v202 = vld [vmem:[%s4 + $0x1b8] sm:$0xff]
  %v203 = vld [vmem:[%s4 + $0x1c0] sm:$0xff]
  %v204 = vld [vmem:[%s4 + $0x1c8] sm:$0xff]
  %v205 = vld [vmem:[%s4 + $0x1d0] sm:$0xff]
  %v206 = vld [vmem:[%s4 + $0x1d8] sm:$0xff]
  %v207 = vld [vmem:[%s4 + $0x1e0] sm:$0xff]
  %v208 = vld [vmem:[%s4 + $0x1e8] sm:$0xff]
  %v209 = vld [vmem:[%s4 + $0x1f0] sm:$0xff]
  %v210 = vld [vmem:[%s4 + $0x1f8] sm:$0xff]
  %v211 = vld [vmem:[%s4 + $0x200] sm:$0xff]
  %v212 = vld [vmem:[%s4 + $0x208] sm:$0xff]
  %v213 = vld [vmem:[%s4 + $0x210] sm:$0xff]
  %v214 = vld [vmem:[%s4 + $0x218] sm:$0xff]
  %v215 = vld [vmem:[%s4 + $0x220] sm:$0xff]
  %v216 = vld [vmem:[%s4 + $0x228] sm:$0xff]
  %v217 = vld [vmem:[%s4 + $0x230] sm:$0xff]
  %v218 = vld [vmem:[%s4 + $0x238] sm:$0xff]
  %v219 = vld [vmem:[%s4 + $0x240] sm:$0xff]
  %v220 = vld [vmem:[%s4 + $0x248] sm:$0xff]
  %v221 = vld [vmem:[%s4 + $0x250] sm:$0xff]
  %v222 = vld [vmem:[%s4 + $0x258] sm:$0xff]
  %v223 = vld [vmem:[%s4 + $0x260] sm:$0xff]
  %v224 = vld [vmem:[%s4 + $0x268] sm:$0xff]
  %v225 = vld [vmem:[%s4 + $0x270] sm:$0xff]
  %v226 = vld [vmem:[%s4 + $0x278] sm:$0xff]
  %v227 = vld [vmem:[%s4 + $0x280] sm:$0xff]
  %v228 = vld [vmem:[%s4 + $0x288] sm:$0xff]
  %v229 = vld [vmem:[%s4 + $0x290] sm:$0xff]
  %v230 = vld [vmem:[%s4 + $0x298] sm:$0xff]
  %v231 = vld [vmem:[%s4 + $0x2a0] sm:$0xff]
  %v232 = vld [vmem:[%s4 + $0x2a8] sm:$0xff]
  %v233 = vld [vmem:[%s4 + $0x2b0] sm:$0xff]
  %v234 = vld [vmem:[%s4 + $0x2b8] sm:$0xff]
  %v235 = vld [vmem:[%s4 + $0x2c0] sm:$0xff]
  %v236 = vld [vmem:[%s4 + $0x2c8] sm:$0xff]
  %v237 = vld [vmem:[%s4 + $0x2d0] sm:$0xff]
  %v238 = vld [vmem:[%s4 + $0x2d8] sm:$0xff]
  %v239 = vld [vmem:[%s4 + $0x2e0] sm:$0xff]
  %v240 = vld [vmem:[%s4 + $0x2e8] sm:$0xff]
  %v241 = vld [vmem:[%s4 + $0x2f0] sm:$0xff]
  %v242 = vld [vmem:[%s4 + $0x2f8] sm:$0xff]
  %v243 = vld [vmem:[%s4 + $0x300] sm:$0xff]
  %v244 = vld [vmem:[%s4 + $0x308] sm:$0xff]
  %v245 = vld [vmem:[%s4 + $0x310] sm:$0xff]
  %v246 = vld [vmem:[%s4 + $0x318] sm:$0xff]
  %v247 = vld [vmem:[%s4 + $0x320] sm:$0xff]
  %v248 = vld [vmem:[%s4 + $0x328] sm:$0xff]
  %v249 = vld [vmem:[%s4 + $0x330] sm:$0xff]
  %v250 = vld [vmem:[%s4 + $0x338] sm:$0xff]
  %v251 = vld [vmem:[%s4 + $0x340] sm:$0xff]
  %v252 = vld [vmem:[%s4 + $0x348] sm:$0xff]
  %v253 = vld [vmem:[%s4 + $0x350] sm:$0xff]
  %v254 = vld [vmem:[%s4 + $0x358] sm:$0xff]
  %v255 = vld [vmem:[%s4 + $0x360] sm:$0xff]
  %v256 = vld [vmem:[%s4 + $0x368] sm:$0xff]
  %v257 = vld [vmem:[%s4 + $0x370] sm:$0xff]
  %v258 = vld [vmem:[%s4 + $0x378] sm:$0xff]
  %v259 = vld [vmem:[%s4 + $0x380] sm:$0xff]
  %v260 = vld [vmem:[%s4 + $0x388] sm:$0xff]
  %v261 = vld [vmem:[%s4 + $0x390] sm:$0xff]
  %v262 = vld [vmem:[%s4 + $0x398] sm:$0xff]
  %v263 = vld [vmem:[%s4 + $0x3a0] sm:$0xff]
  %v264 = vld [vmem:[%s4 + $0x3a8] sm:$0xff]
  %v265 = vld [vmem:[%s4 + $0x3b0] sm:$0xff]
  %v266 = vld [vmem:[%s4 + $0x3b8] sm:$0xff]
  %v267 = vld [vmem:[%s4 + $0x3c0] sm:$0xff]
  %v268 = vld [vmem:[%s4 + $0x3c8] sm:$0xff]
  %v269 = vld [vmem:[%s4 + $0x3d0] sm:$0xff]
  %v270 = vld [vmem:[%s4 + $0x3d8] sm:$0xff]
  %v271 = vld [vmem:[%s4 + $0x3e0] sm:$0xff]
  %v272 = vld [vmem:[%s4 + $0x3e8] sm:$0xff]
  %v273 = vld [vmem:[%s4 + $0x3f0] sm:$0xff]
  %v274 = vld [vmem:[%s4 + $0x3f8] sm:$0xff]
  %v275 = vld [vmem:[%s4 + $0x400] sm:$0xff]
  %v276 = vld [vmem:[%s4 + $0x408] sm:$0xff]
  %v277 = vld [vmem:[%s4 + $0x410] sm:$0xff]
  %v278 = vld [vmem:[%s4 + $0x418] sm:$0xff]
  %v279 = vld [vmem:[%s4 + $0x420] sm:$0xff]
  %v280 = vld [vmem:[%s4 + $0x428] sm:$0xff]
  %v281 = vld [vmem:[%s4 + $0x430] sm:$0xff]
  %v282 = vld [vmem:[%s4 + $0x438] sm:$0xff]
  %v283 = vld [vmem:[%s4 + $0x440] sm:$0xff]
  %v284 = vld [vmem:[%s4 + $0x448] sm:$0xff]
  %v285 = vld [vmem:[%s4 + $0x450] sm:$0xff]
  %v286 = vld [vmem:[%s4 + $0x458] sm:$0xff]
  %v287 = vld [vmem:[%s4 + $0x460] sm:$0xff]
  %v288 = vld [vmem:[%s4 + $0x468] sm:$0xff]
  %v289 = vld [vmem:[%s4 + $0x470] sm:$0xff]
  %v290 = vld [vmem:[%s4 + $0x478] sm:$0xff]
  %v291 = vld [vmem:[%s4 + $0x480] sm:$0xff]
  %v292 = vld [vmem:[%s4 + $0x488] sm:$0xff]
  %v293 = vld [vmem:[%s4 + $0x490] sm:$0xff]
  %v294 = vld [vmem:[%s4 + $0x498] sm:$0xff]
  %v295 = vld [vmem:[%s4 + $0x4a0] sm:$0xff]
  %v296 = vld [vmem:[%s4 + $0x4a8] sm:$0xff]
  %v297 = vld [vmem:[%s4 + $0x4b0] sm:$0xff]
  %v298 = vld [vmem:[%s4 + $0x4b8] sm:$0xff]
  %v299 = vld [vmem:[%s4 + $0x4c0] sm:$0xff]
  %v300 = vld [vmem:[%s4 + $0x4c8] sm:$0xff]
  %v301 = vld [vmem:[%s4 + $0x4d0] sm:$0xff]
  %v302 = vld [vmem:[%s4 + $0x4d8] sm:$0xff]
  %v303 = vld [vmem:[%s4 + $0x4e0] sm:$0xff]
  %v304 = vld [vmem:[%s4 + $0x4e8] sm:$0xff]
  %v305 = vld [vmem:[%s4 + $0x4f0] sm:$0xff]
  %v306 = vld [vmem:[%s4 + $0x4f8] sm:$0xff]
  %v307 = vld [vmem:[%s4 + $0x500] sm:$0xff]
  %v308 = vld [vmem:[%s4 + $0x508] sm:$0xff]
  %v309 = vld [vmem:[%s4 + $0x510] sm:$0xff]
  %v310 = vld [vmem:[%s4 + $0x518] sm:$0xff]
  %v311 = vld [vmem:[%s4 + $0x520] sm:$0xff]
  %v312 = vld [vmem:[%s4 + $0x528] sm:$0xff]
  %v313 = vld [vmem:[%s4 + $0x530] sm:$0xff]
  %v314 = vld [vmem:[%s4 + $0x538] sm:$0xff]
  %v315 = vld [vmem:[%s4 + $0x540] sm:$0xff]
  %v316 = vld [vmem:[%s4 + $0x548] sm:$0xff]
  %v317 = vld [vmem:[%s4 + $0x550] sm:$0xff]
  %v318 = vld [vmem:[%s4 + $0x558] sm:$0xff]
  %v319 = vld [vmem:[%s4 + $0x560] sm:$0xff]
  %v320 = vld [vmem:[%s4 + $0x568] sm:$0xff]
  %v321 = vld [vmem:[%s4 + $0x570] sm:$0xff]
  %v322 = vld [vmem:[%s4 + $0x578] sm:$0xff]
  %v323 = vld [vmem:[%s4 + $0x580] sm:$0xff]
  %v324 = vld [vmem:[%s4 + $0x588] sm:$0xff]
  %v325 = vld [vmem:[%s4 + $0x590] sm:$0xff]
  %v326 = vld [vmem:[%s4 + $0x598] sm:$0xff]
  %v327 = vld [vmem:[%s4 + $0x5a0] sm:$0xff]
  %v328 = vld [vmem:[%s4 + $0x5a8] sm:$0xff]
  %v329 = vld [vmem:[%s4 + $0x5b0] sm:$0xff]
  %v330 = vld [vmem:[%s4 + $0x5b8] sm:$0xff]
  %v331 = vld [vmem:[%s4 + $0x5c0] sm:$0xff]
  %v332 = vld [vmem:[%s4 + $0x5c8] sm:$0xff]
  %v333 = vld [vmem:[%s4 + $0x5d0] sm:$0xff]
  %v334 = vld [vmem:[%s4 + $0x5d8] sm:$0xff]
  %v335 = vld [vmem:[%s4 + $0x5e0] sm:$0xff]
  %v336 = vld [vmem:[%s4 + $0x5e8] sm:$0xff]
  %v337 = vld [vmem:[%s4 + $0x5f0] sm:$0xff]
  %v338 = vld [vmem:[%s4 + $0x5f8] sm:$0xff]
  %v339 = vld [vmem:[%s4 + $0x600] sm:$0xff]
  %v340 = vld [vmem:[%s4 + $0x608] sm:$0xff]
  %v341 = vld [vmem:[%s4 + $0x610] sm:$0xff]
  %v342 = vld [vmem:[%s4 + $0x618] sm:$0xff]
  %v343 = vld [vmem:[%s4 + $0x620] sm:$0xff]
  %v344 = vld [vmem:[%s4 + $0x628] sm:$0xff]
  %v345 = vld [vmem:[%s4 + $0x630] sm:$0xff]
  %v346 = vld [vmem:[%s4 + $0x638] sm:$0xff]
  %v347 = vld [vmem:[%s4 + $0x640] sm:$0xff]
  %v348 = vld [vmem:[%s4 + $0x648] sm:$0xff]
  %v349 = vld [vmem:[%s4 + $0x650] sm:$0xff]
  %v350 = vld [vmem:[%s4 + $0x658] sm:$0xff]
  %v351 = vld [vmem:[%s4 + $0x660] sm:$0xff]
  %v352 = vld [vmem:[%s4 + $0x668] sm:$0xff]
  %v353 = vld [vmem:[%s4 + $0x670] sm:$0xff]
  %v354 = vld [vmem:[%s4 + $0x678] sm:$0xff]
  %v355 = vld [vmem:[%s4 + $0x680] sm:$0xff]
  %v356 = vld [vmem:[%s4 + $0x688] sm:$0xff]
  %v357 = vld [vmem:[%s4 + $0x690] sm:$0xff]
  %v358 = vld [vmem:[%s4 + $0x698] sm:$0xff]
  %v359 = vld [vmem:[%s4 + $0x6a0] sm:$0xff]
  %v360 = vld [vmem:[%s4 + $0x6a8] sm:$0xff]
  %v361 = vld [vmem:[%s4 + $0x6b0] sm:$0xff]
  %v362 = vld [vmem:[%s4 + $0x6b8] sm:$0xff]
  %v363 = vld [vmem:[%s4 + $0x6c0] sm:$0xff]
  %v364 = vld [vmem:[%s4 + $0x6c8] sm:$0xff]
  %v365 = vld [vmem:[%s4 + $0x6d0] sm:$0xff]
  %v366 = vld [vmem:[%s4 + $0x6d8] sm:$0xff]
  %v367 = vld [vmem:[%s4 + $0x6e0] sm:$0xff]
  %v368 = vld [vmem:[%s4 + $0x6e8] sm:$0xff]
  %v369 = vld [vmem:[%s4 + $0x6f0] sm:$0xff]
  %v370 = vld [vmem:[%s4 + $0x6f8] sm:$0xff]
  %v371 = vld [vmem:[%s4 + $0x700] sm:$0xff]
  %v372 = vld [vmem:[%s4 + $0x708] sm:$0xff]
  %v373 = vld [vmem:[%s4 + $0x710] sm:$0xff]
  %v374 = vld [vmem:[%s4 + $0x718] sm:$0xff]
  %v375 = vld [vmem:[%s4 + $0x720] sm:$0xff]
  %v376 = vld [vmem:[%s4 + $0x728] sm:$0xff]
  %v377 = vld [vmem:[%s4 + $0x730] sm:$0xff]
  %v378 = vld [vmem:[%s4 + $0x738] sm:$0xff]
  %v379 = vld [vmem:[%s4 + $0x740] sm:$0xff]
  %v380 = vld [vmem:[%s4 + $0x748] sm:$0xff]
  %v381 = vld [vmem:[%s4 + $0x750] sm:$0xff]
  %v382 = vld [vmem:[%s4 + $0x758] sm:$0xff]
  %v383 = vld [vmem:[%s4 + $0x760] sm:$0xff]
  %v384 = vld [vmem:[%s4 + $0x768] sm:$0xff]
  %v385 = vld [vmem:[%s4 + $0x770] sm:$0xff]
  %v386 = vld [vmem:[%s4 + $0x778] sm:$0xff]
  %v387 = vld [vmem:[%s4 + $0x780] sm:$0xff]
  %v388 = vld [vmem:[%s4 + $0x788] sm:$0xff]
  %v389 = vld [vmem:[%s4 + $0x790] sm:$0xff]
  %v390 = vld [vmem:[%s4 + $0x798] sm:$0xff]
  %v391 = vld [vmem:[%s4 + $0x7a0] sm:$0xff]
  %v392 = vld [vmem:[%s4 + $0x7a8] sm:$0xff]
  %v393 = vld [vmem:[%s4 + $0x7b0] sm:$0xff]
  %v394 = vld [vmem:[%s4 + $0x7b8] sm:$0xff]
  %v395 = vld [vmem:[%s4 + $0x7c0] sm:$0xff]
  %v396 = vld [vmem:[%s4 + $0x7c8] sm:$0xff]
  %v397 = vld [vmem:[%s4 + $0x7d0] sm:$0xff]
  %v398 = vld [vmem:[%s4 + $0x7d8] sm:$0xff]
  %v399 = vld [vmem:[%s4 + $0x7e0] sm:$0xff]
  %v400 = vld [vmem:[%s4 + $0x7e8] sm:$0xff]
  %v401 = vld [vmem:[%s4 + $0x7f0] sm:$0xff]
  %v402 = vld [vmem:[%s4 + $0x7f8] sm:$0xff]
  %v403 = vld [vmem:[%s5] sm:$0x3]
  %v405 = vlaneseq
  %v406 = vshrl.u32 %v405, 7
  %v407 = vsub.s32 0, %v406
  %v408 = vrot.slane %v403, %v407
  %v409 = vlaneseq
  %v410 = vshrl.u32 %v409, 7
  %v411 = vsub.s32 1, %v410
  %v412 = vrot.slane %v403, %v411
  %v671 = vunpack.c.l.b16 %v147
  %v672 = vunpack.c.h.b16 %v147
  %v673 = vunpack.c.l.b16 %v148
  %v674 = vunpack.c.h.b16 %v148
  %v675 = vunpack.c.l.b16 %v149
  %v676 = vunpack.c.h.b16 %v149
  %v677 = vunpack.c.l.b16 %v150
  %v678 = vunpack.c.h.b16 %v150
  %v679 = vunpack.c.l.b16 %v151
  %v680 = vunpack.c.h.b16 %v151
  %v681 = vunpack.c.l.b16 %v152
  %v682 = vunpack.c.h.b16 %v152
  %v683 = vunpack.c.l.b16 %v153
  %v684 = vunpack.c.h.b16 %v153
  %v685 = vunpack.c.l.b16 %v154
  %v686 = vunpack.c.h.b16 %v154
  %v687 = vunpack.c.l.b16 %v155
  %v688 = vunpack.c.h.b16 %v155
  %v689 = vunpack.c.l.b16 %v156
  %v690 = vunpack.c.h.b16 %v156
  %v691 = vunpack.c.l.b16 %v157
  %v692 = vunpack.c.h.b16 %v157
  %v693 = vunpack.c.l.b16 %v158
  %v694 = vunpack.c.h.b16 %v158
  %v695 = vunpack.c.l.b16 %v159
  %v696 = vunpack.c.h.b16 %v159
  %v697 = vunpack.c.l.b16 %v160
  %v698 = vunpack.c.h.b16 %v160
  %v699 = vunpack.c.l.b16 %v161
  %v700 = vunpack.c.h.b16 %v161
  %v701 = vunpack.c.l.b16 %v162
  %v702 = vunpack.c.h.b16 %v162
  %v703 = vunpack.c.l.b16 %v163
  %v704 = vunpack.c.h.b16 %v163
  %v705 = vunpack.c.l.b16 %v164
  %v706 = vunpack.c.h.b16 %v164
  %v707 = vunpack.c.l.b16 %v165
  %v708 = vunpack.c.h.b16 %v165
  %v709 = vunpack.c.l.b16 %v166
  %v710 = vunpack.c.h.b16 %v166
  %v711 = vunpack.c.l.b16 %v167
  %v712 = vunpack.c.h.b16 %v167
  %v713 = vunpack.c.l.b16 %v168
  %v714 = vunpack.c.h.b16 %v168
  %v715 = vunpack.c.l.b16 %v169
  %v716 = vunpack.c.h.b16 %v169
  %v717 = vunpack.c.l.b16 %v170
  %v718 = vunpack.c.h.b16 %v170
  %v719 = vunpack.c.l.b16 %v171
  %v720 = vunpack.c.h.b16 %v171
  %v721 = vunpack.c.l.b16 %v172
  %v722 = vunpack.c.h.b16 %v172
  %v723 = vunpack.c.l.b16 %v173
  %v724 = vunpack.c.h.b16 %v173
  %v725 = vunpack.c.l.b16 %v174
  %v726 = vunpack.c.h.b16 %v174
  %v727 = vunpack.c.l.b16 %v175
  %v728 = vunpack.c.h.b16 %v175
  %v729 = vunpack.c.l.b16 %v176
  %v730 = vunpack.c.h.b16 %v176
  %v731 = vunpack.c.l.b16 %v177
  %v732 = vunpack.c.h.b16 %v177
  %v733 = vunpack.c.l.b16 %v178
  %v734 = vunpack.c.h.b16 %v178
  %v735 = vunpack.c.l.b16 %v179
  %v736 = vunpack.c.h.b16 %v179
  %v737 = vunpack.c.l.b16 %v180
  %v738 = vunpack.c.h.b16 %v180
  %v739 = vunpack.c.l.b16 %v181
  %v740 = vunpack.c.h.b16 %v181
  %v741 = vunpack.c.l.b16 %v182
  %v742 = vunpack.c.h.b16 %v182
  %v743 = vunpack.c.l.b16 %v183
  %v744 = vunpack.c.h.b16 %v183
  %v745 = vunpack.c.l.b16 %v184
  %v746 = vunpack.c.h.b16 %v184
  %v747 = vunpack.c.l.b16 %v185
  %v748 = vunpack.c.h.b16 %v185
  %v749 = vunpack.c.l.b16 %v186
  %v750 = vunpack.c.h.b16 %v186
  %v751 = vunpack.c.l.b16 %v187
  %v752 = vunpack.c.h.b16 %v187
  %v753 = vunpack.c.l.b16 %v188
  %v754 = vunpack.c.h.b16 %v188
  %v755 = vunpack.c.l.b16 %v189
  %v756 = vunpack.c.h.b16 %v189
  %v757 = vunpack.c.l.b16 %v190
  %v758 = vunpack.c.h.b16 %v190
  %v759 = vunpack.c.l.b16 %v191
  %v760 = vunpack.c.h.b16 %v191
  %v761 = vunpack.c.l.b16 %v192
  %v762 = vunpack.c.h.b16 %v192
  %v763 = vunpack.c.l.b16 %v193
  %v764 = vunpack.c.h.b16 %v193
  %v765 = vunpack.c.l.b16 %v194
  %v766 = vunpack.c.h.b16 %v194
  %v767 = vunpack.c.l.b16 %v195
  %v768 = vunpack.c.h.b16 %v195
  %v769 = vunpack.c.l.b16 %v196
  %v770 = vunpack.c.h.b16 %v196
  %v771 = vunpack.c.l.b16 %v197
  %v772 = vunpack.c.h.b16 %v197
  %v773 = vunpack.c.l.b16 %v198
  %v774 = vunpack.c.h.b16 %v198
  %v775 = vunpack.c.l.b16 %v199
  %v776 = vunpack.c.h.b16 %v199
  %v777 = vunpack.c.l.b16 %v200
  %v778 = vunpack.c.h.b16 %v200
  %v779 = vunpack.c.l.b16 %v201
  %v780 = vunpack.c.h.b16 %v201
  %v781 = vunpack.c.l.b16 %v202
  %v782 = vunpack.c.h.b16 %v202
  %v783 = vunpack.c.l.b16 %v203
  %v784 = vunpack.c.h.b16 %v203
  %v785 = vunpack.c.l.b16 %v204
  %v786 = vunpack.c.h.b16 %v204
  %v787 = vunpack.c.l.b16 %v205
  %v788 = vunpack.c.h.b16 %v205
  %v789 = vunpack.c.l.b16 %v206
  %v790 = vunpack.c.h.b16 %v206
  %v791 = vunpack.c.l.b16 %v207
  %v792 = vunpack.c.h.b16 %v207
  %v793 = vunpack.c.l.b16 %v208
  %v794 = vunpack.c.h.b16 %v208
  %v795 = vunpack.c.l.b16 %v209
  %v796 = vunpack.c.h.b16 %v209
  %v797 = vunpack.c.l.b16 %v210
  %v798 = vunpack.c.h.b16 %v210
  %v799 = vunpack.c.l.b16 %v211
  %v800 = vunpack.c.h.b16 %v211
  %v801 = vunpack.c.l.b16 %v212
  %v802 = vunpack.c.h.b16 %v212
  %v803 = vunpack.c.l.b16 %v213
  %v804 = vunpack.c.h.b16 %v213
  %v805 = vunpack.c.l.b16 %v214
  %v806 = vunpack.c.h.b16 %v214
  %v807 = vunpack.c.l.b16 %v215
  %v808 = vunpack.c.h.b16 %v215
  %v809 = vunpack.c.l.b16 %v216
  %v810 = vunpack.c.h.b16 %v216
  %v811 = vunpack.c.l.b16 %v217
  %v812 = vunpack.c.h.b16 %v217
  %v813 = vunpack.c.l.b16 %v218
  %v814 = vunpack.c.h.b16 %v218
  %v815 = vunpack.c.l.b16 %v219
  %v816 = vunpack.c.h.b16 %v219
  %v817 = vunpack.c.l.b16 %v220
  %v818 = vunpack.c.h.b16 %v220
  %v819 = vunpack.c.l.b16 %v221
  %v820 = vunpack.c.h.b16 %v221
  %v821 = vunpack.c.l.b16 %v222
  %v822 = vunpack.c.h.b16 %v222
  %v823 = vunpack.c.l.b16 %v223
  %v824 = vunpack.c.h.b16 %v223
  %v825 = vunpack.c.l.b16 %v224
  %v826 = vunpack.c.h.b16 %v224
  %v827 = vunpack.c.l.b16 %v225
  %v828 = vunpack.c.h.b16 %v225
  %v829 = vunpack.c.l.b16 %v226
  %v830 = vunpack.c.h.b16 %v226
  %v831 = vunpack.c.l.b16 %v227
  %v832 = vunpack.c.h.b16 %v227
  %v833 = vunpack.c.l.b16 %v228
  %v834 = vunpack.c.h.b16 %v228
  %v835 = vunpack.c.l.b16 %v229
  %v836 = vunpack.c.h.b16 %v229
  %v837 = vunpack.c.l.b16 %v230
  %v838 = vunpack.c.h.b16 %v230
  %v839 = vunpack.c.l.b16 %v231
  %v840 = vunpack.c.h.b16 %v231
  %v841 = vunpack.c.l.b16 %v232
  %v842 = vunpack.c.h.b16 %v232
  %v843 = vunpack.c.l.b16 %v233
  %v844 = vunpack.c.h.b16 %v233
  %v845 = vunpack.c.l.b16 %v234
  %v846 = vunpack.c.h.b16 %v234
  %v847 = vunpack.c.l.b16 %v235
  %v848 = vunpack.c.h.b16 %v235
  %v849 = vunpack.c.l.b16 %v236
  %v850 = vunpack.c.h.b16 %v236
  %v851 = vunpack.c.l.b16 %v237
  %v852 = vunpack.c.h.b16 %v237
  %v853 = vunpack.c.l.b16 %v238
  %v854 = vunpack.c.h.b16 %v238
  %v855 = vunpack.c.l.b16 %v239
  %v856 = vunpack.c.h.b16 %v239
  %v857 = vunpack.c.l.b16 %v240
  %v858 = vunpack.c.h.b16 %v240
  %v859 = vunpack.c.l.b16 %v241
  %v860 = vunpack.c.h.b16 %v241
  %v861 = vunpack.c.l.b16 %v242
  %v862 = vunpack.c.h.b16 %v242
  %v863 = vunpack.c.l.b16 %v243
  %v864 = vunpack.c.h.b16 %v243
  %v865 = vunpack.c.l.b16 %v244
  %v866 = vunpack.c.h.b16 %v244
  %v867 = vunpack.c.l.b16 %v245
  %v868 = vunpack.c.h.b16 %v245
  %v869 = vunpack.c.l.b16 %v246
  %v870 = vunpack.c.h.b16 %v246
  %v871 = vunpack.c.l.b16 %v247
  %v872 = vunpack.c.h.b16 %v247
  %v873 = vunpack.c.l.b16 %v248
  %v874 = vunpack.c.h.b16 %v248
  %v875 = vunpack.c.l.b16 %v249
  %v876 = vunpack.c.h.b16 %v249
  %v877 = vunpack.c.l.b16 %v250
  %v878 = vunpack.c.h.b16 %v250
  %v879 = vunpack.c.l.b16 %v251
  %v880 = vunpack.c.h.b16 %v251
  %v881 = vunpack.c.l.b16 %v252
  %v882 = vunpack.c.h.b16 %v252
  %v883 = vunpack.c.l.b16 %v253
  %v884 = vunpack.c.h.b16 %v253
  %v885 = vunpack.c.l.b16 %v254
  %v886 = vunpack.c.h.b16 %v254
  %v887 = vunpack.c.l.b16 %v255
  %v888 = vunpack.c.h.b16 %v255
  %v889 = vunpack.c.l.b16 %v256
  %v890 = vunpack.c.h.b16 %v256
  %v891 = vunpack.c.l.b16 %v257
  %v892 = vunpack.c.h.b16 %v257
  %v893 = vunpack.c.l.b16 %v258
  %v894 = vunpack.c.h.b16 %v258
  %v895 = vunpack.c.l.b16 %v259
  %v896 = vunpack.c.h.b16 %v259
  %v897 = vunpack.c.l.b16 %v260
  %v898 = vunpack.c.h.b16 %v260
  %v899 = vunpack.c.l.b16 %v261
  %v900 = vunpack.c.h.b16 %v261
  %v901 = vunpack.c.l.b16 %v262
  %v902 = vunpack.c.h.b16 %v262
  %v903 = vunpack.c.l.b16 %v263
  %v904 = vunpack.c.h.b16 %v263
  %v905 = vunpack.c.l.b16 %v264
  %v906 = vunpack.c.h.b16 %v264
  %v907 = vunpack.c.l.b16 %v265
  %v908 = vunpack.c.h.b16 %v265
  %v909 = vunpack.c.l.b16 %v266
  %v910 = vunpack.c.h.b16 %v266
  %v911 = vunpack.c.l.b16 %v267
  %v912 = vunpack.c.h.b16 %v267
  %v913 = vunpack.c.l.b16 %v268
  %v914 = vunpack.c.h.b16 %v268
  %v915 = vunpack.c.l.b16 %v269
  %v916 = vunpack.c.h.b16 %v269
  %v917 = vunpack.c.l.b16 %v270
  %v918 = vunpack.c.h.b16 %v270
  %v919 = vunpack.c.l.b16 %v271
  %v920 = vunpack.c.h.b16 %v271
  %v921 = vunpack.c.l.b16 %v272
  %v922 = vunpack.c.h.b16 %v272
  %v923 = vunpack.c.l.b16 %v273
  %v924 = vunpack.c.h.b16 %v273
  %v925 = vunpack.c.l.b16 %v274
  %v926 = vunpack.c.h.b16 %v274
  %v927 = vunpack.c.l.b16 %v275
  %v928 = vunpack.c.h.b16 %v275
  %v929 = vunpack.c.l.b16 %v276
  %v930 = vunpack.c.h.b16 %v276
  %v931 = vunpack.c.l.b16 %v277
  %v932 = vunpack.c.h.b16 %v277
  %v933 = vunpack.c.l.b16 %v278
  %v934 = vunpack.c.h.b16 %v278
  %v935 = vunpack.c.l.b16 %v279
  %v936 = vunpack.c.h.b16 %v279
  %v937 = vunpack.c.l.b16 %v280
  %v938 = vunpack.c.h.b16 %v280
  %v939 = vunpack.c.l.b16 %v281
  %v940 = vunpack.c.h.b16 %v281
  %v941 = vunpack.c.l.b16 %v282
  %v942 = vunpack.c.h.b16 %v282
  %v943 = vunpack.c.l.b16 %v283
  %v944 = vunpack.c.h.b16 %v283
  %v945 = vunpack.c.l.b16 %v284
  %v946 = vunpack.c.h.b16 %v284
  %v947 = vunpack.c.l.b16 %v285
  %v948 = vunpack.c.h.b16 %v285
  %v949 = vunpack.c.l.b16 %v286
  %v950 = vunpack.c.h.b16 %v286
  %v951 = vunpack.c.l.b16 %v287
  %v952 = vunpack.c.h.b16 %v287
  %v953 = vunpack.c.l.b16 %v288
  %v954 = vunpack.c.h.b16 %v288
  %v955 = vunpack.c.l.b16 %v289
  %v956 = vunpack.c.h.b16 %v289
  %v957 = vunpack.c.l.b16 %v290
  %v958 = vunpack.c.h.b16 %v290
  %v959 = vunpack.c.l.b16 %v291
  %v960 = vunpack.c.h.b16 %v291
  %v961 = vunpack.c.l.b16 %v292
  %v962 = vunpack.c.h.b16 %v292
  %v963 = vunpack.c.l.b16 %v293
  %v964 = vunpack.c.h.b16 %v293
  %v965 = vunpack.c.l.b16 %v294
  %v966 = vunpack.c.h.b16 %v294
  %v967 = vunpack.c.l.b16 %v295
  %v968 = vunpack.c.h.b16 %v295
  %v969 = vunpack.c.l.b16 %v296
  %v970 = vunpack.c.h.b16 %v296
  %v971 = vunpack.c.l.b16 %v297
  %v972 = vunpack.c.h.b16 %v297
  %v973 = vunpack.c.l.b16 %v298
  %v974 = vunpack.c.h.b16 %v298
  %v975 = vunpack.c.l.b16 %v299
  %v976 = vunpack.c.h.b16 %v299
  %v977 = vunpack.c.l.b16 %v300
  %v978 = vunpack.c.h.b16 %v300
  %v979 = vunpack.c.l.b16 %v301
  %v980 = vunpack.c.h.b16 %v301
  %v981 = vunpack.c.l.b16 %v302
  %v982 = vunpack.c.h.b16 %v302
  %v983 = vunpack.c.l.b16 %v303
  %v984 = vunpack.c.h.b16 %v303
  %v985 = vunpack.c.l.b16 %v304
  %v986 = vunpack.c.h.b16 %v304
  %v987 = vunpack.c.l.b16 %v305
  %v988 = vunpack.c.h.b16 %v305
  %v989 = vunpack.c.l.b16 %v306
  %v990 = vunpack.c.h.b16 %v306
  %v991 = vunpack.c.l.b16 %v307
  %v992 = vunpack.c.h.b16 %v307
  %v993 = vunpack.c.l.b16 %v308
  %v994 = vunpack.c.h.b16 %v308
  %v995 = vunpack.c.l.b16 %v309
  %v996 = vunpack.c.h.b16 %v309
  %v997 = vunpack.c.l.b16 %v310
  %v998 = vunpack.c.h.b16 %v310
  %v999 = vunpack.c.l.b16 %v311
  %v1000 = vunpack.c.h.b16 %v311
  %v1001 = vunpack.c.l.b16 %v312
  %v1002 = vunpack.c.h.b16 %v312
  %v1003 = vunpack.c.l.b16 %v313
  %v1004 = vunpack.c.h.b16 %v313
  %v1005 = vunpack.c.l.b16 %v314
  %v1006 = vunpack.c.h.b16 %v314
  %v1007 = vunpack.c.l.b16 %v315
  %v1008 = vunpack.c.h.b16 %v315
  %v1009 = vunpack.c.l.b16 %v316
  %v1010 = vunpack.c.h.b16 %v316
  %v1011 = vunpack.c.l.b16 %v317
  %v1012 = vunpack.c.h.b16 %v317
  %v1013 = vunpack.c.l.b16 %v318
  %v1014 = vunpack.c.h.b16 %v318
  %v1015 = vunpack.c.l.b16 %v319
  %v1016 = vunpack.c.h.b16 %v319
  %v1017 = vunpack.c.l.b16 %v320
  %v1018 = vunpack.c.h.b16 %v320
  %v1019 = vunpack.c.l.b16 %v321
  %v1020 = vunpack.c.h.b16 %v321
  %v1021 = vunpack.c.l.b16 %v322
  %v1022 = vunpack.c.h.b16 %v322
  %v1023 = vunpack.c.l.b16 %v323
  %v1024 = vunpack.c.h.b16 %v323
  %v1025 = vunpack.c.l.b16 %v324
  %v1026 = vunpack.c.h.b16 %v324
  %v1027 = vunpack.c.l.b16 %v325
  %v1028 = vunpack.c.h.b16 %v325
  %v1029 = vunpack.c.l.b16 %v326
  %v1030 = vunpack.c.h.b16 %v326
  %v1031 = vunpack.c.l.b16 %v327
  %v1032 = vunpack.c.h.b16 %v327
  %v1033 = vunpack.c.l.b16 %v328
  %v1034 = vunpack.c.h.b16 %v328
  %v1035 = vunpack.c.l.b16 %v329
  %v1036 = vunpack.c.h.b16 %v329
  %v1037 = vunpack.c.l.b16 %v330
  %v1038 = vunpack.c.h.b16 %v330
  %v1039 = vunpack.c.l.b16 %v331
  %v1040 = vunpack.c.h.b16 %v331
  %v1041 = vunpack.c.l.b16 %v332
  %v1042 = vunpack.c.h.b16 %v332
  %v1043 = vunpack.c.l.b16 %v333
  %v1044 = vunpack.c.h.b16 %v333
  %v1045 = vunpack.c.l.b16 %v334
  %v1046 = vunpack.c.h.b16 %v334
  %v1047 = vunpack.c.l.b16 %v335
  %v1048 = vunpack.c.h.b16 %v335
  %v1049 = vunpack.c.l.b16 %v336
  %v1050 = vunpack.c.h.b16 %v336
  %v1051 = vunpack.c.l.b16 %v337
  %v1052 = vunpack.c.h.b16 %v337
  %v1053 = vunpack.c.l.b16 %v338
  %v1054 = vunpack.c.h.b16 %v338
  %v1055 = vunpack.c.l.b16 %v339
  %v1056 = vunpack.c.h.b16 %v339
  %v1057 = vunpack.c.l.b16 %v340
  %v1058 = vunpack.c.h.b16 %v340
  %v1059 = vunpack.c.l.b16 %v341
  %v1060 = vunpack.c.h.b16 %v341
  %v1061 = vunpack.c.l.b16 %v342
  %v1062 = vunpack.c.h.b16 %v342
  %v1063 = vunpack.c.l.b16 %v343
  %v1064 = vunpack.c.h.b16 %v343
  %v1065 = vunpack.c.l.b16 %v344
  %v1066 = vunpack.c.h.b16 %v344
  %v1067 = vunpack.c.l.b16 %v345
  %v1068 = vunpack.c.h.b16 %v345
  %v1069 = vunpack.c.l.b16 %v346
  %v1070 = vunpack.c.h.b16 %v346
  %v1071 = vunpack.c.l.b16 %v347
  %v1072 = vunpack.c.h.b16 %v347
  %v1073 = vunpack.c.l.b16 %v348
  %v1074 = vunpack.c.h.b16 %v348
  %v1075 = vunpack.c.l.b16 %v349
  %v1076 = vunpack.c.h.b16 %v349
  %v1077 = vunpack.c.l.b16 %v350
  %v1078 = vunpack.c.h.b16 %v350
  %v1079 = vunpack.c.l.b16 %v351
  %v1080 = vunpack.c.h.b16 %v351
  %v1081 = vunpack.c.l.b16 %v352
  %v1082 = vunpack.c.h.b16 %v352
  %v1083 = vunpack.c.l.b16 %v353
  %v1084 = vunpack.c.h.b16 %v353
  %v1085 = vunpack.c.l.b16 %v354
  %v1086 = vunpack.c.h.b16 %v354
  %v1087 = vunpack.c.l.b16 %v355
  %v1088 = vunpack.c.h.b16 %v355
  %v1089 = vunpack.c.l.b16 %v356
  %v1090 = vunpack.c.h.b16 %v356
  %v1091 = vunpack.c.l.b16 %v357
  %v1092 = vunpack.c.h.b16 %v357
  %v1093 = vunpack.c.l.b16 %v358
  %v1094 = vunpack.c.h.b16 %v358
  %v1095 = vunpack.c.l.b16 %v359
  %v1096 = vunpack.c.h.b16 %v359
  %v1097 = vunpack.c.l.b16 %v360
  %v1098 = vunpack.c.h.b16 %v360
  %v1099 = vunpack.c.l.b16 %v361
  %v1100 = vunpack.c.h.b16 %v361
  %v1101 = vunpack.c.l.b16 %v362
  %v1102 = vunpack.c.h.b16 %v362
  %v1103 = vunpack.c.l.b16 %v363
  %v1104 = vunpack.c.h.b16 %v363
  %v1105 = vunpack.c.l.b16 %v364
  %v1106 = vunpack.c.h.b16 %v364
  %v1107 = vunpack.c.l.b16 %v365
  %v1108 = vunpack.c.h.b16 %v365
  %v1109 = vunpack.c.l.b16 %v366
  %v1110 = vunpack.c.h.b16 %v366
  %v1111 = vunpack.c.l.b16 %v367
  %v1112 = vunpack.c.h.b16 %v367
  %v1113 = vunpack.c.l.b16 %v368
  %v1114 = vunpack.c.h.b16 %v368
  %v1115 = vunpack.c.l.b16 %v369
  %v1116 = vunpack.c.h.b16 %v369
  %v1117 = vunpack.c.l.b16 %v370
  %v1118 = vunpack.c.h.b16 %v370
  %v1119 = vunpack.c.l.b16 %v371
  %v1120 = vunpack.c.h.b16 %v371
  %v1121 = vunpack.c.l.b16 %v372
  %v1122 = vunpack.c.h.b16 %v372
  %v1123 = vunpack.c.l.b16 %v373
  %v1124 = vunpack.c.h.b16 %v373
  %v1125 = vunpack.c.l.b16 %v374
  %v1126 = vunpack.c.h.b16 %v374
  %v1127 = vunpack.c.l.b16 %v375
  %v1128 = vunpack.c.h.b16 %v375
  %v1129 = vunpack.c.l.b16 %v376
  %v1130 = vunpack.c.h.b16 %v376
  %v1131 = vunpack.c.l.b16 %v377
  %v1132 = vunpack.c.h.b16 %v377
  %v1133 = vunpack.c.l.b16 %v378
  %v1134 = vunpack.c.h.b16 %v378
  %v1135 = vunpack.c.l.b16 %v379
  %v1136 = vunpack.c.h.b16 %v379
  %v1137 = vunpack.c.l.b16 %v380
  %v1138 = vunpack.c.h.b16 %v380
  %v1139 = vunpack.c.l.b16 %v381
  %v1140 = vunpack.c.h.b16 %v381
  %v1141 = vunpack.c.l.b16 %v382
  %v1142 = vunpack.c.h.b16 %v382
  %v1143 = vunpack.c.l.b16 %v383
  %v1144 = vunpack.c.h.b16 %v383
  %v1145 = vunpack.c.l.b16 %v384
  %v1146 = vunpack.c.h.b16 %v384
  %v1147 = vunpack.c.l.b16 %v385
  %v1148 = vunpack.c.h.b16 %v385
  %v1149 = vunpack.c.l.b16 %v386
  %v1150 = vunpack.c.h.b16 %v386
  %v1151 = vunpack.c.l.b16 %v387
  %v1152 = vunpack.c.h.b16 %v387
  %v1153 = vunpack.c.l.b16 %v388
  %v1154 = vunpack.c.h.b16 %v388
  %v1155 = vunpack.c.l.b16 %v389
  %v1156 = vunpack.c.h.b16 %v389
  %v1157 = vunpack.c.l.b16 %v390
  %v1158 = vunpack.c.h.b16 %v390
  %v1159 = vunpack.c.l.b16 %v391
  %v1160 = vunpack.c.h.b16 %v391
  %v1161 = vunpack.c.l.b16 %v392
  %v1162 = vunpack.c.h.b16 %v392
  %v1163 = vunpack.c.l.b16 %v393
  %v1164 = vunpack.c.h.b16 %v393
  %v1165 = vunpack.c.l.b16 %v394
  %v1166 = vunpack.c.h.b16 %v394
  %v1167 = vunpack.c.l.b16 %v395
  %v1168 = vunpack.c.h.b16 %v395
  %v1169 = vunpack.c.l.b16 %v396
  %v1170 = vunpack.c.h.b16 %v396
  %v1171 = vunpack.c.l.b16 %v397
  %v1172 = vunpack.c.h.b16 %v397
  %v1173 = vunpack.c.l.b16 %v398
  %v1174 = vunpack.c.h.b16 %v398
  %v1175 = vunpack.c.l.b16 %v399
  %v1176 = vunpack.c.h.b16 %v399
  %v1177 = vunpack.c.l.b16 %v400
  %v1178 = vunpack.c.h.b16 %v400
  %v1179 = vunpack.c.l.b16 %v401
  %v1180 = vunpack.c.h.b16 %v401
  %v1181 = vunpack.c.l.b16 %v402
  %v1182 = vunpack.c.h.b16 %v402
  %v1183 = vpack.c.b16 %v673, %v671
  %v1184 = vpack.c.b16 %v674, %v672
  %v1185 = vpack.c.b16 %v677, %v675
  %v1186 = vpack.c.b16 %v678, %v676
  %v1187 = vpack.c.b16 %v681, %v679
  %v1188 = vpack.c.b16 %v682, %v680
  %v1189 = vpack.c.b16 %v685, %v683
  %v1190 = vpack.c.b16 %v686, %v684
  %v1191 = vpack.c.b16 %v689, %v687
  %v1192 = vpack.c.b16 %v690, %v688
  %v1193 = vpack.c.b16 %v693, %v691
  %v1194 = vpack.c.b16 %v694, %v692
  %v1195 = vpack.c.b16 %v697, %v695
  %v1196 = vpack.c.b16 %v698, %v696
  %v1197 = vpack.c.b16 %v701, %v699
  %v1198 = vpack.c.b16 %v702, %v700
  %v1199 = vpack.c.b16 %v705, %v703
  %v1200 = vpack.c.b16 %v706, %v704
  %v1201 = vpack.c.b16 %v709, %v707
  %v1202 = vpack.c.b16 %v710, %v708
  %v1203 = vpack.c.b16 %v713, %v711
  %v1204 = vpack.c.b16 %v714, %v712
  %v1205 = vpack.c.b16 %v717, %v715
  %v1206 = vpack.c.b16 %v718, %v716
  %v1207 = vpack.c.b16 %v721, %v719
  %v1208 = vpack.c.b16 %v722, %v720
  %v1209 = vpack.c.b16 %v725, %v723
  %v1210 = vpack.c.b16 %v726, %v724
  %v1211 = vpack.c.b16 %v729, %v727
  %v1212 = vpack.c.b16 %v730, %v728
  %v1213 = vpack.c.b16 %v733, %v731
  %v1214 = vpack.c.b16 %v734, %v732
  %v1215 = vpack.c.b16 %v737, %v735
  %v1216 = vpack.c.b16 %v738, %v736
  %v1217 = vpack.c.b16 %v741, %v739
  %v1218 = vpack.c.b16 %v742, %v740
  %v1219 = vpack.c.b16 %v745, %v743
  %v1220 = vpack.c.b16 %v746, %v744
  %v1221 = vpack.c.b16 %v749, %v747
  %v1222 = vpack.c.b16 %v750, %v748
  %v1223 = vpack.c.b16 %v753, %v751
  %v1224 = vpack.c.b16 %v754, %v752
  %v1225 = vpack.c.b16 %v757, %v755
  %v1226 = vpack.c.b16 %v758, %v756
  %v1227 = vpack.c.b16 %v761, %v759
  %v1228 = vpack.c.b16 %v762, %v760
  %v1229 = vpack.c.b16 %v765, %v763
  %v1230 = vpack.c.b16 %v766, %v764
  %v1231 = vpack.c.b16 %v769, %v767
  %v1232 = vpack.c.b16 %v770, %v768
  %v1233 = vpack.c.b16 %v773, %v771
  %v1234 = vpack.c.b16 %v774, %v772
  %v1235 = vpack.c.b16 %v777, %v775
  %v1236 = vpack.c.b16 %v778, %v776
  %v1237 = vpack.c.b16 %v781, %v779
  %v1238 = vpack.c.b16 %v782, %v780
  %v1239 = vpack.c.b16 %v785, %v783
  %v1240 = vpack.c.b16 %v786, %v784
  %v1241 = vpack.c.b16 %v789, %v787
  %v1242 = vpack.c.b16 %v790, %v788
  %v1243 = vpack.c.b16 %v793, %v791
  %v1244 = vpack.c.b16 %v794, %v792
  %v1245 = vpack.c.b16 %v797, %v795
  %v1246 = vpack.c.b16 %v798, %v796
  %v1247 = vpack.c.b16 %v801, %v799
  %v1248 = vpack.c.b16 %v802, %v800
  %v1249 = vpack.c.b16 %v805, %v803
  %v1250 = vpack.c.b16 %v806, %v804
  %v1251 = vpack.c.b16 %v809, %v807
  %v1252 = vpack.c.b16 %v810, %v808
  %v1253 = vpack.c.b16 %v813, %v811
  %v1254 = vpack.c.b16 %v814, %v812
  %v1255 = vpack.c.b16 %v817, %v815
  %v1256 = vpack.c.b16 %v818, %v816
  %v1257 = vpack.c.b16 %v821, %v819
  %v1258 = vpack.c.b16 %v822, %v820
  %v1259 = vpack.c.b16 %v825, %v823
  %v1260 = vpack.c.b16 %v826, %v824
  %v1261 = vpack.c.b16 %v829, %v827
  %v1262 = vpack.c.b16 %v830, %v828
  %v1263 = vpack.c.b16 %v833, %v831
  %v1264 = vpack.c.b16 %v834, %v832
  %v1265 = vpack.c.b16 %v837, %v835
  %v1266 = vpack.c.b16 %v838, %v836
  %v1267 = vpack.c.b16 %v841, %v839
  %v1268 = vpack.c.b16 %v842, %v840
  %v1269 = vpack.c.b16 %v845, %v843
  %v1270 = vpack.c.b16 %v846, %v844
  %v1271 = vpack.c.b16 %v849, %v847
  %v1272 = vpack.c.b16 %v850, %v848
  %v1273 = vpack.c.b16 %v853, %v851
  %v1274 = vpack.c.b16 %v854, %v852
  %v1275 = vpack.c.b16 %v857, %v855
  %v1276 = vpack.c.b16 %v858, %v856
  %v1277 = vpack.c.b16 %v861, %v859
  %v1278 = vpack.c.b16 %v862, %v860
  %v1279 = vpack.c.b16 %v865, %v863
  %v1280 = vpack.c.b16 %v866, %v864
  %v1281 = vpack.c.b16 %v869, %v867
  %v1282 = vpack.c.b16 %v870, %v868
  %v1283 = vpack.c.b16 %v873, %v871
  %v1284 = vpack.c.b16 %v874, %v872
  %v1285 = vpack.c.b16 %v877, %v875
  %v1286 = vpack.c.b16 %v878, %v876
  %v1287 = vpack.c.b16 %v881, %v879
  %v1288 = vpack.c.b16 %v882, %v880
  %v1289 = vpack.c.b16 %v885, %v883
  %v1290 = vpack.c.b16 %v886, %v884
  %v1291 = vpack.c.b16 %v889, %v887
  %v1292 = vpack.c.b16 %v890, %v888
  %v1293 = vpack.c.b16 %v893, %v891
  %v1294 = vpack.c.b16 %v894, %v892
  %v1295 = vpack.c.b16 %v897, %v895
  %v1296 = vpack.c.b16 %v898, %v896
  %v1297 = vpack.c.b16 %v901, %v899
  %v1298 = vpack.c.b16 %v902, %v900
  %v1299 = vpack.c.b16 %v905, %v903
  %v1300 = vpack.c.b16 %v906, %v904
  %v1301 = vpack.c.b16 %v909, %v907
  %v1302 = vpack.c.b16 %v910, %v908
  %v1303 = vpack.c.b16 %v913, %v911
  %v1304 = vpack.c.b16 %v914, %v912
  %v1305 = vpack.c.b16 %v917, %v915
  %v1306 = vpack.c.b16 %v918, %v916
  %v1307 = vpack.c.b16 %v921, %v919
  %v1308 = vpack.c.b16 %v922, %v920
  %v1309 = vpack.c.b16 %v925, %v923
  %v1310 = vpack.c.b16 %v926, %v924
  %v1311 = vpack.c.b16 %v929, %v927
  %v1312 = vpack.c.b16 %v930, %v928
  %v1313 = vpack.c.b16 %v933, %v931
  %v1314 = vpack.c.b16 %v934, %v932
  %v1315 = vpack.c.b16 %v937, %v935
  %v1316 = vpack.c.b16 %v938, %v936
  %v1317 = vpack.c.b16 %v941, %v939
  %v1318 = vpack.c.b16 %v942, %v940
  %v1319 = vpack.c.b16 %v945, %v943
  %v1320 = vpack.c.b16 %v946, %v944
  %v1321 = vpack.c.b16 %v949, %v947
  %v1322 = vpack.c.b16 %v950, %v948
  %v1323 = vpack.c.b16 %v953, %v951
  %v1324 = vpack.c.b16 %v954, %v952
  %v1325 = vpack.c.b16 %v957, %v955
  %v1326 = vpack.c.b16 %v958, %v956
  %v1327 = vpack.c.b16 %v961, %v959
  %v1328 = vpack.c.b16 %v962, %v960
  %v1329 = vpack.c.b16 %v965, %v963
  %v1330 = vpack.c.b16 %v966, %v964
  %v1331 = vpack.c.b16 %v969, %v967
  %v1332 = vpack.c.b16 %v970, %v968
  %v1333 = vpack.c.b16 %v973, %v971
  %v1334 = vpack.c.b16 %v974, %v972
  %v1335 = vpack.c.b16 %v977, %v975
  %v1336 = vpack.c.b16 %v978, %v976
  %v1337 = vpack.c.b16 %v981, %v979
  %v1338 = vpack.c.b16 %v982, %v980
  %v1339 = vpack.c.b16 %v985, %v983
  %v1340 = vpack.c.b16 %v986, %v984
  %v1341 = vpack.c.b16 %v989, %v987
  %v1342 = vpack.c.b16 %v990, %v988
  %v1343 = vpack.c.b16 %v993, %v991
  %v1344 = vpack.c.b16 %v994, %v992
  %v1345 = vpack.c.b16 %v997, %v995
  %v1346 = vpack.c.b16 %v998, %v996
  %v1347 = vpack.c.b16 %v1001, %v999
  %v1348 = vpack.c.b16 %v1002, %v1000
  %v1349 = vpack.c.b16 %v1005, %v1003
  %v1350 = vpack.c.b16 %v1006, %v1004
  %v1351 = vpack.c.b16 %v1009, %v1007
  %v1352 = vpack.c.b16 %v1010, %v1008
  %v1353 = vpack.c.b16 %v1013, %v1011
  %v1354 = vpack.c.b16 %v1014, %v1012
  %v1355 = vpack.c.b16 %v1017, %v1015
  %v1356 = vpack.c.b16 %v1018, %v1016
  %v1357 = vpack.c.b16 %v1021, %v1019
  %v1358 = vpack.c.b16 %v1022, %v1020
  %v1359 = vpack.c.b16 %v1025, %v1023
  %v1360 = vpack.c.b16 %v1026, %v1024
  %v1361 = vpack.c.b16 %v1029, %v1027
  %v1362 = vpack.c.b16 %v1030, %v1028
  %v1363 = vpack.c.b16 %v1033, %v1031
  %v1364 = vpack.c.b16 %v1034, %v1032
  %v1365 = vpack.c.b16 %v1037, %v1035
  %v1366 = vpack.c.b16 %v1038, %v1036
  %v1367 = vpack.c.b16 %v1041, %v1039
  %v1368 = vpack.c.b16 %v1042, %v1040
  %v1369 = vpack.c.b16 %v1045, %v1043
  %v1370 = vpack.c.b16 %v1046, %v1044
  %v1371 = vpack.c.b16 %v1049, %v1047
  %v1372 = vpack.c.b16 %v1050, %v1048
  %v1373 = vpack.c.b16 %v1053, %v1051
  %v1374 = vpack.c.b16 %v1054, %v1052
  %v1375 = vpack.c.b16 %v1057, %v1055
  %v1376 = vpack.c.b16 %v1058, %v1056
  %v1377 = vpack.c.b16 %v1061, %v1059
  %v1378 = vpack.c.b16 %v1062, %v1060
  %v1379 = vpack.c.b16 %v1065, %v1063
  %v1380 = vpack.c.b16 %v1066, %v1064
  %v1381 = vpack.c.b16 %v1069, %v1067
  %v1382 = vpack.c.b16 %v1070, %v1068
  %v1383 = vpack.c.b16 %v1073, %v1071
  %v1384 = vpack.c.b16 %v1074, %v1072
  %v1385 = vpack.c.b16 %v1077, %v1075
  %v1386 = vpack.c.b16 %v1078, %v1076
  %v1387 = vpack.c.b16 %v1081, %v1079
  %v1388 = vpack.c.b16 %v1082, %v1080
  %v1389 = vpack.c.b16 %v1085, %v1083
  %v1390 = vpack.c.b16 %v1086, %v1084
  %v1391 = vpack.c.b16 %v1089, %v1087
  %v1392 = vpack.c.b16 %v1090, %v1088
  %v1393 = vpack.c.b16 %v1093, %v1091
  %v1394 = vpack.c.b16 %v1094, %v1092
  %v1395 = vpack.c.b16 %v1097, %v1095
  %v1396 = vpack.c.b16 %v1098, %v1096
  %v1397 = vpack.c.b16 %v1101, %v1099
  %v1398 = vpack.c.b16 %v1102, %v1100
  %v1399 = vpack.c.b16 %v1105, %v1103
  %v1400 = vpack.c.b16 %v1106, %v1104
  %v1401 = vpack.c.b16 %v1109, %v1107
  %v1402 = vpack.c.b16 %v1110, %v1108
  %v1403 = vpack.c.b16 %v1113, %v1111
  %v1404 = vpack.c.b16 %v1114, %v1112
  %v1405 = vpack.c.b16 %v1117, %v1115
  %v1406 = vpack.c.b16 %v1118, %v1116
  %v1407 = vpack.c.b16 %v1121, %v1119
  %v1408 = vpack.c.b16 %v1122, %v1120
  %v1409 = vpack.c.b16 %v1125, %v1123
  %v1410 = vpack.c.b16 %v1126, %v1124
  %v1411 = vpack.c.b16 %v1129, %v1127
  %v1412 = vpack.c.b16 %v1130, %v1128
  %v1413 = vpack.c.b16 %v1133, %v1131
  %v1414 = vpack.c.b16 %v1134, %v1132
  %v1415 = vpack.c.b16 %v1137, %v1135
  %v1416 = vpack.c.b16 %v1138, %v1136
  %v1417 = vpack.c.b16 %v1141, %v1139
  %v1418 = vpack.c.b16 %v1142, %v1140
  %v1419 = vpack.c.b16 %v1145, %v1143
  %v1420 = vpack.c.b16 %v1146, %v1144
  %v1421 = vpack.c.b16 %v1149, %v1147
  %v1422 = vpack.c.b16 %v1150, %v1148
  %v1423 = vpack.c.b16 %v1153, %v1151
  %v1424 = vpack.c.b16 %v1154, %v1152
  %v1425 = vpack.c.b16 %v1157, %v1155
  %v1426 = vpack.c.b16 %v1158, %v1156
  %v1427 = vpack.c.b16 %v1161, %v1159
  %v1428 = vpack.c.b16 %v1162, %v1160
  %v1429 = vpack.c.b16 %v1165, %v1163
  %v1430 = vpack.c.b16 %v1166, %v1164
  %v1431 = vpack.c.b16 %v1169, %v1167
  %v1432 = vpack.c.b16 %v1170, %v1168
  %v1433 = vpack.c.b16 %v1173, %v1171
  %v1434 = vpack.c.b16 %v1174, %v1172
  %v1435 = vpack.c.b16 %v1177, %v1175
  %v1436 = vpack.c.b16 %v1178, %v1176
  %v1437 = vpack.c.b16 %v1181, %v1179
  %v1438 = vpack.c.b16 %v1182, %v1180
  %1695 = vmatprep.subr.bf16.mxu0 %v1184
  %1696 = vmatpush1.bf16.msra.mxu0 %v1183
  %1697 = vmatprep.subr.bf16.mxu0 %v1186
  %1698 = vmatpush1.bf16.msra.mxu0 %v1185
  %1699 = vmatprep.subr.bf16.mxu0 %v1188
  %1700 = vmatpush1.bf16.msra.mxu0 %v1187
  %1701 = vmatprep.subr.bf16.mxu0 %v1190
  %1702 = vmatpush1.bf16.msra.mxu0 %v1189
  %1703 = vmatprep.subr.bf16.mxu0 %v1192
  %1704 = vmatpush1.bf16.msra.mxu0 %v1191
  %1705 = vmatprep.subr.bf16.mxu0 %v1194
  %1706 = vmatpush1.bf16.msra.mxu0 %v1193
  %1707 = vmatprep.subr.bf16.mxu0 %v1196
  %1708 = vmatpush1.bf16.msra.mxu0 %v1195
  %1709 = vmatprep.subr.bf16.mxu0 %v1198
  %1710 = vmatpush1.bf16.msra.mxu0 %v1197
  %1711 = vmatprep.subr.bf16.mxu0 %v1200
  %1712 = vmatpush1.bf16.msra.mxu0 %v1199
  %1713 = vmatprep.subr.bf16.mxu0 %v1202
  %1714 = vmatpush1.bf16.msra.mxu0 %v1201
  %1715 = vmatprep.subr.bf16.mxu0 %v1204
  %1716 = vmatpush1.bf16.msra.mxu0 %v1203
  %1717 = vmatprep.subr.bf16.mxu0 %v1206
  %1718 = vmatpush1.bf16.msra.mxu0 %v1205
  %1719 = vmatprep.subr.bf16.mxu0 %v1208
  %1720 = vmatpush1.bf16.msra.mxu0 %v1207
  %1721 = vmatprep.subr.bf16.mxu0 %v1210
  %1722 = vmatpush1.bf16.msra.mxu0 %v1209
  %1723 = vmatprep.subr.bf16.mxu0 %v1212
  %1724 = vmatpush1.bf16.msra.mxu0 %v1211
  %1725 = vmatprep.subr.bf16.mxu0 %v1214
  %1726 = vmatpush1.bf16.msra.mxu0 %v1213
  %1727 = vmatprep.mubr.bf16.mxu0 %v132
  %1728 = vmatmul.mubr.bf16.gmra.mrb[0].mxu0 %v131
  %v1729 = vpop.f32.mrb[0].mxu0
  %v1730 = vadd.f32 %v408, %v1729
  %v1731 = vpop.f32.mrb[0].mxu0
  %v1732 = vadd.f32 %v412, %v1731
  %v1733 = vpop.f32.mrb[0].mxu0
  %v1734 = vpop.f32.mrb[0].mxu0
  %1735 = vdwg.mxu0
  %1736 = vmatprep.subr.bf16.mxu0 %v1216
  %1737 = vmatpush1.bf16.msra.mxu0 %v1215
  %1738 = vmatprep.subr.bf16.mxu0 %v1218
  %1739 = vmatpush1.bf16.msra.mxu0 %v1217
  %1740 = vmatprep.subr.bf16.mxu0 %v1220
  %1741 = vmatpush1.bf16.msra.mxu0 %v1219
  %1742 = vmatprep.subr.bf16.mxu0 %v1222
  %1743 = vmatpush1.bf16.msra.mxu0 %v1221
  %1744 = vmatprep.subr.bf16.mxu0 %v1224
  %1745 = vmatpush1.bf16.msra.mxu0 %v1223
  %1746 = vmatprep.subr.bf16.mxu0 %v1226
  %1747 = vmatpush1.bf16.msra.mxu0 %v1225
  %1748 = vmatprep.subr.bf16.mxu0 %v1228
  %1749 = vmatpush1.bf16.msra.mxu0 %v1227
  %1750 = vmatprep.subr.bf16.mxu0 %v1230
  %1751 = vmatpush1.bf16.msra.mxu0 %v1229
  %1752 = vmatprep.subr.bf16.mxu0 %v1232
  %1753 = vmatpush1.bf16.msra.mxu0 %v1231
  %1754 = vmatprep.subr.bf16.mxu0 %v1234
  %1755 = vmatpush1.bf16.msra.mxu0 %v1233
  %1756 = vmatprep.subr.bf16.mxu0 %v1236
  %1757 = vmatpush1.bf16.msra.mxu0 %v1235
  %1758 = vmatprep.subr.bf16.mxu0 %v1238
  %1759 = vmatpush1.bf16.msra.mxu0 %v1237
  %1760 = vmatprep.subr.bf16.mxu0 %v1240
  %1761 = vmatpush1.bf16.msra.mxu0 %v1239
  %1762 = vmatprep.subr.bf16.mxu0 %v1242
  %1763 = vmatpush1.bf16.msra.mxu0 %v1241
  %1764 = vmatprep.subr.bf16.mxu0 %v1244
  %1765 = vmatpush1.bf16.msra.mxu0 %v1243
  %1766 = vmatprep.subr.bf16.mxu0 %v1246
  %1767 = vmatpush1.bf16.msra.mxu0 %v1245
  %1768 = vmatprep.mubr.bf16.mxu0 %v134
  %1769 = vmatmul.mubr.bf16.gmra.mrb[0].mxu0 %v133
  %v1770 = vpop.f32.mrb[0].mxu0
  %v1771 = vadd.f32 %v1730, %v1770
  %v1772 = vpop.f32.mrb[0].mxu0
  %v1773 = vadd.f32 %v1732, %v1772
  %v1774 = vpop.f32.mrb[0].mxu0
  %v1775 = vpop.f32.mrb[0].mxu0
  %1776 = vdwg.mxu0
  %1777 = vmatprep.subr.bf16.mxu0 %v1248
  %1778 = vmatpush1.bf16.msra.mxu0 %v1247
  %1779 = vmatprep.subr.bf16.mxu0 %v1250
  %1780 = vmatpush1.bf16.msra.mxu0 %v1249
  %1781 = vmatprep.subr.bf16.mxu0 %v1252
  %1782 = vmatpush1.bf16.msra.mxu0 %v1251
  %1783 = vmatprep.subr.bf16.mxu0 %v1254
  %1784 = vmatpush1.bf16.msra.mxu0 %v1253
  %1785 = vmatprep.subr.bf16.mxu0 %v1256
  %1786 = vmatpush1.bf16.msra.mxu0 %v1255
  %1787 = vmatprep.subr.bf16.mxu0 %v1258
  %1788 = vmatpush1.bf16.msra.mxu0 %v1257
  %1789 = vmatprep.subr.bf16.mxu0 %v1260
  %1790 = vmatpush1.bf16.msra.mxu0 %v1259
  %1791 = vmatprep.subr.bf16.mxu0 %v1262
  %1792 = vmatpush1.bf16.msra.mxu0 %v1261
  %1793 = vmatprep.subr.bf16.mxu0 %v1264
  %1794 = vmatpush1.bf16.msra.mxu0 %v1263
  %1795 = vmatprep.subr.bf16.mxu0 %v1266
  %1796 = vmatpush1.bf16.msra.mxu0 %v1265
  %1797 = vmatprep.subr.bf16.mxu0 %v1268
  %1798 = vmatpush1.bf16.msra.mxu0 %v1267
  %1799 = vmatprep.subr.bf16.mxu0 %v1270
  %1800 = vmatpush1.bf16.msra.mxu0 %v1269
  %1801 = vmatprep.subr.bf16.mxu0 %v1272
  %1802 = vmatpush1.bf16.msra.mxu0 %v1271
  %1803 = vmatprep.subr.bf16.mxu0 %v1274
  %1804 = vmatpush1.bf16.msra.mxu0 %v1273
  %1805 = vmatprep.subr.bf16.mxu0 %v1276
  %1806 = vmatpush1.bf16.msra.mxu0 %v1275
  %1807 = vmatprep.subr.bf16.mxu0 %v1278
  %1808 = vmatpush1.bf16.msra.mxu0 %v1277
  %1809 = vmatprep.mubr.bf16.mxu0 %v136
  %1810 = vmatmul.mubr.bf16.gmra.mrb[0].mxu0 %v135
  %v1811 = vpop.f32.mrb[0].mxu0
  %v1812 = vadd.f32 %v1771, %v1811
  %v1813 = vpop.f32.mrb[0].mxu0
  %v1814 = vadd.f32 %v1773, %v1813
  %v1815 = vpop.f32.mrb[0].mxu0
  %v1816 = vpop.f32.mrb[0].mxu0
  %1817 = vdwg.mxu0
  %1818 = vmatprep.subr.bf16.mxu0 %v1280
  %1819 = vmatpush1.bf16.msra.mxu0 %v1279
  %1820 = vmatprep.subr.bf16.mxu0 %v1282
  %1821 = vmatpush1.bf16.msra.mxu0 %v1281
  %1822 = vmatprep.subr.bf16.mxu0 %v1284
  %1823 = vmatpush1.bf16.msra.mxu0 %v1283
  %1824 = vmatprep.subr.bf16.mxu0 %v1286
  %1825 = vmatpush1.bf16.msra.mxu0 %v1285
  %1826 = vmatprep.subr.bf16.mxu0 %v1288
  %1827 = vmatpush1.bf16.msra.mxu0 %v1287
  %1828 = vmatprep.subr.bf16.mxu0 %v1290
  %1829 = vmatpush1.bf16.msra.mxu0 %v1289
  %1830 = vmatprep.subr.bf16.mxu0 %v1292
  %1831 = vmatpush1.bf16.msra.mxu0 %v1291
  %1832 = vmatprep.subr.bf16.mxu0 %v1294
  %1833 = vmatpush1.bf16.msra.mxu0 %v1293
  %1834 = vmatprep.subr.bf16.mxu0 %v1296
  %1835 = vmatpush1.bf16.msra.mxu0 %v1295
  %1836 = vmatprep.subr.bf16.mxu0 %v1298
  %1837 = vmatpush1.bf16.msra.mxu0 %v1297
  %1838 = vmatprep.subr.bf16.mxu0 %v1300
  %1839 = vmatpush1.bf16.msra.mxu0 %v1299
  %1840 = vmatprep.subr.bf16.mxu0 %v1302
  %1841 = vmatpush1.bf16.msra.mxu0 %v1301
  %1842 = vmatprep.subr.bf16.mxu0 %v1304
  %1843 = vmatpush1.bf16.msra.mxu0 %v1303
  %1844 = vmatprep.subr.bf16.mxu0 %v1306
  %1845 = vmatpush1.bf16.msra.mxu0 %v1305
  %1846 = vmatprep.subr.bf16.mxu0 %v1308
  %1847 = vmatpush1.bf16.msra.mxu0 %v1307
  %1848 = vmatprep.subr.bf16.mxu0 %v1310
  %1849 = vmatpush1.bf16.msra.mxu0 %v1309
  %1850 = vmatprep.mubr.bf16.mxu0 %v138
  %1851 = vmatmul.mubr.bf16.gmra.mrb[0].mxu0 %v137
  %v1852 = vpop.f32.mrb[0].mxu0
  %v1853 = vadd.f32 %v1812, %v1852
  %v1854 = vpop.f32.mrb[0].mxu0
  %v1855 = vadd.f32 %v1814, %v1854
  %v1856 = vpop.f32.mrb[0].mxu0
  %v1857 = vpop.f32.mrb[0].mxu0
  %1858 = vdwg.mxu0
  %1859 = vmatprep.subr.bf16.mxu0 %v1312
  %1860 = vmatpush1.bf16.msra.mxu0 %v1311
  %1861 = vmatprep.subr.bf16.mxu0 %v1314
  %1862 = vmatpush1.bf16.msra.mxu0 %v1313
  %1863 = vmatprep.subr.bf16.mxu0 %v1316
  %1864 = vmatpush1.bf16.msra.mxu0 %v1315
  %1865 = vmatprep.subr.bf16.mxu0 %v1318
  %1866 = vmatpush1.bf16.msra.mxu0 %v1317
  %1867 = vmatprep.subr.bf16.mxu0 %v1320
  %1868 = vmatpush1.bf16.msra.mxu0 %v1319
  %1869 = vmatprep.subr.bf16.mxu0 %v1322
  %1870 = vmatpush1.bf16.msra.mxu0 %v1321
  %1871 = vmatprep.subr.bf16.mxu0 %v1324
  %1872 = vmatpush1.bf16.msra.mxu0 %v1323
  %1873 = vmatprep.subr.bf16.mxu0 %v1326
  %1874 = vmatpush1.bf16.msra.mxu0 %v1325
  %1875 = vmatprep.subr.bf16.mxu0 %v1328
  %1876 = vmatpush1.bf16.msra.mxu0 %v1327
  %1877 = vmatprep.subr.bf16.mxu0 %v1330
  %1878 = vmatpush1.bf16.msra.mxu0 %v1329
  %1879 = vmatprep.subr.bf16.mxu0 %v1332
  %1880 = vmatpush1.bf16.msra.mxu0 %v1331
  %1881 = vmatprep.subr.bf16.mxu0 %v1334
  %1882 = vmatpush1.bf16.msra.mxu0 %v1333
  %1883 = vmatprep.subr.bf16.mxu0 %v1336
  %1884 = vmatpush1.bf16.msra.mxu0 %v1335
  %1885 = vmatprep.subr.bf16.mxu0 %v1338
  %1886 = vmatpush1.bf16.msra.mxu0 %v1337
  %1887 = vmatprep.subr.bf16.mxu0 %v1340
  %1888 = vmatpush1.bf16.msra.mxu0 %v1339
  %1889 = vmatprep.subr.bf16.mxu0 %v1342
  %1890 = vmatpush1.bf16.msra.mxu0 %v1341
  %1891 = vmatprep.mubr.bf16.mxu0 %v140
  %1892 = vmatmul.mubr.bf16.gmra.mrb[0].mxu0 %v139
  %v1893 = vpop.f32.mrb[0].mxu0
  %v1894 = vadd.f32 %v1853, %v1893
  %v1895 = vpop.f32.mrb[0].mxu0
  %v1896 = vadd.f32 %v1855, %v1895
  %v1897 = vpop.f32.mrb[0].mxu0
  %v1898 = vpop.f32.mrb[0].mxu0
  %1899 = vdwg.mxu0
  %1900 = vmatprep.subr.bf16.mxu0 %v1344
  %1901 = vmatpush1.bf16.msra.mxu0 %v1343
  %1902 = vmatprep.subr.bf16.mxu0 %v1346
  %1903 = vmatpush1.bf16.msra.mxu0 %v1345
  %1904 = vmatprep.subr.bf16.mxu0 %v1348
  %1905 = vmatpush1.bf16.msra.mxu0 %v1347
  %1906 = vmatprep.subr.bf16.mxu0 %v1350
  %1907 = vmatpush1.bf16.msra.mxu0 %v1349
  %1908 = vmatprep.subr.bf16.mxu0 %v1352
  %1909 = vmatpush1.bf16.msra.mxu0 %v1351
  %1910 = vmatprep.subr.bf16.mxu0 %v1354
  %1911 = vmatpush1.bf16.msra.mxu0 %v1353
  %1912 = vmatprep.subr.bf16.mxu0 %v1356
  %1913 = vmatpush1.bf16.msra.mxu0 %v1355
  %1914 = vmatprep.subr.bf16.mxu0 %v1358
  %1915 = vmatpush1.bf16.msra.mxu0 %v1357
  %1916 = vmatprep.subr.bf16.mxu0 %v1360
  %1917 = vmatpush1.bf16.msra.mxu0 %v1359
  %1918 = vmatprep.subr.bf16.mxu0 %v1362
  %1919 = vmatpush1.bf16.msra.mxu0 %v1361
  %1920 = vmatprep.subr.bf16.mxu0 %v1364
  %1921 = vmatpush1.bf16.msra.mxu0 %v1363
  %1922 = vmatprep.subr.bf16.mxu0 %v1366
  %1923 = vmatpush1.bf16.msra.mxu0 %v1365
  %1924 = vmatprep.subr.bf16.mxu0 %v1368
  %1925 = vmatpush1.bf16.msra.mxu0 %v1367
  %1926 = vmatprep.subr.bf16.mxu0 %v1370
  %1927 = vmatpush1.bf16.msra.mxu0 %v1369
  %1928 = vmatprep.subr.bf16.mxu0 %v1372
  %1929 = vmatpush1.bf16.msra.mxu0 %v1371
  %1930 = vmatprep.subr.bf16.mxu0 %v1374
  %1931 = vmatpush1.bf16.msra.mxu0 %v1373
  %1932 = vmatprep.mubr.bf16.mxu0 %v142
  %1933 = vmatmul.mubr.bf16.gmra.mrb[0].mxu0 %v141
  %v1934 = vpop.f32.mrb[0].mxu0
  %v1935 = vadd.f32 %v1894, %v1934
  %v1936 = vpop.f32.mrb[0].mxu0
  %v1937 = vadd.f32 %v1896, %v1936
  %v1938 = vpop.f32.mrb[0].mxu0
  %v1939 = vpop.f32.mrb[0].mxu0
  %1940 = vdwg.mxu0
  %1941 = vmatprep.subr.bf16.mxu0 %v1376
  %1942 = vmatpush1.bf16.msra.mxu0 %v1375
  %1943 = vmatprep.subr.bf16.mxu0 %v1378
  %1944 = vmatpush1.bf16.msra.mxu0 %v1377
  %1945 = vmatprep.subr.bf16.mxu0 %v1380
  %1946 = vmatpush1.bf16.msra.mxu0 %v1379
  %1947 = vmatprep.subr.bf16.mxu0 %v1382
  %1948 = vmatpush1.bf16.msra.mxu0 %v1381
  %1949 = vmatprep.subr.bf16.mxu0 %v1384
  %1950 = vmatpush1.bf16.msra.mxu0 %v1383
  %1951 = vmatprep.subr.bf16.mxu0 %v1386
  %1952 = vmatpush1.bf16.msra.mxu0 %v1385
  %1953 = vmatprep.subr.bf16.mxu0 %v1388
  %1954 = vmatpush1.bf16.msra.mxu0 %v1387
  %1955 = vmatprep.subr.bf16.mxu0 %v1390
  %1956 = vmatpush1.bf16.msra.mxu0 %v1389
  %1957 = vmatprep.subr.bf16.mxu0 %v1392
  %1958 = vmatpush1.bf16.msra.mxu0 %v1391
  %1959 = vmatprep.subr.bf16.mxu0 %v1394
  %1960 = vmatpush1.bf16.msra.mxu0 %v1393
  %1961 = vmatprep.subr.bf16.mxu0 %v1396
  %1962 = vmatpush1.bf16.msra.mxu0 %v1395
  %1963 = vmatprep.subr.bf16.mxu0 %v1398
  %1964 = vmatpush1.bf16.msra.mxu0 %v1397
  %1965 = vmatprep.subr.bf16.mxu0 %v1400
  %1966 = vmatpush1.bf16.msra.mxu0 %v1399
  %1967 = vmatprep.subr.bf16.mxu0 %v1402
  %1968 = vmatpush1.bf16.msra.mxu0 %v1401
  %1969 = vmatprep.subr.bf16.mxu0 %v1404
  %1970 = vmatpush1.bf16.msra.mxu0 %v1403
  %1971 = vmatprep.subr.bf16.mxu0 %v1406
  %1972 = vmatpush1.bf16.msra.mxu0 %v1405
  %1973 = vmatprep.mubr.bf16.mxu0 %v144
  %1974 = vmatmul.mubr.bf16.gmra.mrb[0].mxu0 %v143
  %v1975 = vpop.f32.mrb[0].mxu0
  %v1976 = vadd.f32 %v1935, %v1975
  %v1977 = vpop.f32.mrb[0].mxu0
  %v1978 = vadd.f32 %v1937, %v1977
  %v1979 = vpop.f32.mrb[0].mxu0
  %v1980 = vpop.f32.mrb[0].mxu0
  %1981 = vdwg.mxu0
  %1982 = vmatprep.subr.bf16.mxu0 %v1408
  %1983 = vmatpush1.bf16.msra.mxu0 %v1407
  %1984 = vmatprep.subr.bf16.mxu0 %v1410
  %1985 = vmatpush1.bf16.msra.mxu0 %v1409
  %1986 = vmatprep.subr.bf16.mxu0 %v1412
  %1987 = vmatpush1.bf16.msra.mxu0 %v1411
  %1988 = vmatprep.subr.bf16.mxu0 %v1414
  %1989 = vmatpush1.bf16.msra.mxu0 %v1413
  %1990 = vmatprep.subr.bf16.mxu0 %v1416
  %1991 = vmatpush1.bf16.msra.mxu0 %v1415
  %1992 = vmatprep.subr.bf16.mxu0 %v1418
  %1993 = vmatpush1.bf16.msra.mxu0 %v1417
  %1994 = vmatprep.subr.bf16.mxu0 %v1420
  %1995 = vmatpush1.bf16.msra.mxu0 %v1419
  %1996 = vmatprep.subr.bf16.mxu0 %v1422
  %1997 = vmatpush1.bf16.msra.mxu0 %v1421
  %1998 = vmatprep.subr.bf16.mxu0 %v1424
  %1999 = vmatpush1.bf16.msra.mxu0 %v1423
  %2000 = vmatprep.subr.bf16.mxu0 %v1426
  %2001 = vmatpush1.bf16.msra.mxu0 %v1425
  %2002 = vmatprep.subr.bf16.mxu0 %v1428
  %2003 = vmatpush1.bf16.msra.mxu0 %v1427
  %2004 = vmatprep.subr.bf16.mxu0 %v1430
  %2005 = vmatpush1.bf16.msra.mxu0 %v1429
  %2006 = vmatprep.subr.bf16.mxu0 %v1432
  %2007 = vmatpush1.bf16.msra.mxu0 %v1431
  %2008 = vmatprep.subr.bf16.mxu0 %v1434
  %2009 = vmatpush1.bf16.msra.mxu0 %v1433
  %2010 = vmatprep.subr.bf16.mxu0 %v1436
  %2011 = vmatpush1.bf16.msra.mxu0 %v1435
  %2012 = vmatprep.subr.bf16.mxu0 %v1438
  %2013 = vmatpush1.bf16.msra.mxu0 %v1437
  %2014 = vmatprep.mubr.bf16.mxu0 %v146
  %2015 = vmatmul.mubr.bf16.gmra.mrb[0].mxu0 %v145
  %v2016 = vpop.f32.mrb[0].mxu0
  %v2017 = vadd.f32 %v1976, %v2016
  %v2018 = vpop.f32.mrb[0].mxu0
  %v2019 = vadd.f32 %v1978, %v2018
  %v2020 = vpop.f32.mrb[0].mxu0
  %v2021 = vpop.f32.mrb[0].mxu0
  %2022 = vdwg.mxu0
  %v2023 = vmax.f32 %v2017, 0.0
  %v2024 = vmax.f32 %v2019, 0.0
  %v2025 = vld [vmem:[%s2] sm:$0xf]
  %v2028 = vunpack.c.l.s4 1983009808
  %v2029 = vunpack.c.0.s8 %v2028
  %v2030 = vlaneseq
  %v2031 = vshrl.u32 %v2030, 7
  %v2032 = vsub.s32 %v2029, %v2031
  %v2033 = vrot.slane %v2025, %v2032
  %v2034 = vcombine.high %v2033, %v2033
  %v2037 = vpack.c.bf16 %v2023, %v2023
  %v2038 = vpack.c.bf16 %v2024, %v2024
  %v2039 = vpack.c.bf16 %v2033, %v2033
  %v2040 = vpack.c.bf16 %v2034, %v2034
  %v2041 = vld [vmem:[%s6] sm:$0xff]
  %v2042 = vld [vmem:[%s6 + $0x8] sm:$0xff]
  %v2043 = vld [vmem:[%s6 + $0x10] sm:$0xff]
  %v2044 = vld [vmem:[%s6 + $0x18] sm:$0xff]
  %v2045 = vld [vmem:[%s6 + $0x20] sm:$0xff]
  %v2046 = vld [vmem:[%s6 + $0x28] sm:$0xff]
  %v2047 = vld [vmem:[%s6 + $0x30] sm:$0xff]
  %v2048 = vld [vmem:[%s6 + $0x38] sm:$0xff]
  %v2049 = vld [vmem:[%s6 + $0x40] sm:$0xff]
  %v2050 = vld [vmem:[%s6 + $0x48] sm:$0xff]
  %v2051 = vld [vmem:[%s6 + $0x50] sm:$0xff]
  %v2052 = vld [vmem:[%s6 + $0x58] sm:$0xff]
  %v2053 = vld [vmem:[%s6 + $0x60] sm:$0xff]
  %v2054 = vld [vmem:[%s6 + $0x68] sm:$0xff]
  %v2055 = vld [vmem:[%s6 + $0x70] sm:$0xff]
  %v2056 = vld [vmem:[%s6 + $0x78] sm:$0xff]
  %v2057 = vld [vmem:[%s6 + $0x80] sm:$0xff]
  %v2058 = vld [vmem:[%s6 + $0x88] sm:$0xff]
  %v2059 = vld [vmem:[%s6 + $0x90] sm:$0xff]
  %v2060 = vld [vmem:[%s6 + $0x98] sm:$0xff]
  %v2061 = vld [vmem:[%s6 + $0xa0] sm:$0xff]
  %v2062 = vld [vmem:[%s6 + $0xa8] sm:$0xff]
  %v2063 = vld [vmem:[%s6 + $0xb0] sm:$0xff]
  %v2064 = vld [vmem:[%s6 + $0xb8] sm:$0xff]
  %v2065 = vld [vmem:[%s6 + $0xc0] sm:$0xff]
  %v2066 = vld [vmem:[%s6 + $0xc8] sm:$0xff]
  %v2067 = vld [vmem:[%s6 + $0xd0] sm:$0xff]
  %v2068 = vld [vmem:[%s6 + $0xd8] sm:$0xff]
  %v2069 = vld [vmem:[%s6 + $0xe0] sm:$0xff]
  %v2070 = vld [vmem:[%s6 + $0xe8] sm:$0xff]
  %v2071 = vld [vmem:[%s6 + $0xf0] sm:$0xff]
  %v2072 = vld [vmem:[%s6 + $0xf8] sm:$0xff]
  %v2073 = vld [vmem:[%s6 + $0x100] sm:$0xff]
  %v2074 = vld [vmem:[%s6 + $0x108] sm:$0xff]
  %v2075 = vld [vmem:[%s6 + $0x110] sm:$0xff]
  %v2076 = vld [vmem:[%s6 + $0x118] sm:$0xff]
  %v2077 = vld [vmem:[%s6 + $0x120] sm:$0xff]
  %v2078 = vld [vmem:[%s6 + $0x128] sm:$0xff]
  %v2079 = vld [vmem:[%s6 + $0x130] sm:$0xff]
  %v2080 = vld [vmem:[%s6 + $0x138] sm:$0xff]
  %v2081 = vld [vmem:[%s6 + $0x140] sm:$0xff]
  %v2082 = vld [vmem:[%s6 + $0x148] sm:$0xff]
  %v2083 = vld [vmem:[%s6 + $0x150] sm:$0xff]
  %v2084 = vld [vmem:[%s6 + $0x158] sm:$0xff]
  %v2085 = vld [vmem:[%s6 + $0x160] sm:$0xff]
  %v2086 = vld [vmem:[%s6 + $0x168] sm:$0xff]
  %v2087 = vld [vmem:[%s6 + $0x170] sm:$0xff]
  %v2088 = vld [vmem:[%s6 + $0x178] sm:$0xff]
  %v2089 = vld [vmem:[%s6 + $0x180] sm:$0xff]
  %v2090 = vld [vmem:[%s6 + $0x188] sm:$0xff]
  %v2091 = vld [vmem:[%s6 + $0x190] sm:$0xff]
  %v2092 = vld [vmem:[%s6 + $0x198] sm:$0xff]
  %v2093 = vld [vmem:[%s6 + $0x1a0] sm:$0xff]
  %v2094 = vld [vmem:[%s6 + $0x1a8] sm:$0xff]
  %v2095 = vld [vmem:[%s6 + $0x1b0] sm:$0xff]
  %v2096 = vld [vmem:[%s6 + $0x1b8] sm:$0xff]
  %v2097 = vld [vmem:[%s6 + $0x1c0] sm:$0xff]
  %v2098 = vld [vmem:[%s6 + $0x1c8] sm:$0xff]
  %v2099 = vld [vmem:[%s6 + $0x1d0] sm:$0xff]
  %v2100 = vld [vmem:[%s6 + $0x1d8] sm:$0xff]
  %v2101 = vld [vmem:[%s6 + $0x1e0] sm:$0xff]
  %v2102 = vld [vmem:[%s6 + $0x1e8] sm:$0xff]
  %v2103 = vld [vmem:[%s6 + $0x1f0] sm:$0xff]
  %v2104 = vld [vmem:[%s6 + $0x1f8] sm:$0xff]
  %v2105 = vld [vmem:[%s6 + $0x200] sm:$0xff]
  %v2106 = vld [vmem:[%s6 + $0x208] sm:$0xff]
  %v2107 = vld [vmem:[%s6 + $0x210] sm:$0xff]
  %v2108 = vld [vmem:[%s6 + $0x218] sm:$0xff]
  %v2109 = vld [vmem:[%s6 + $0x220] sm:$0xff]
  %v2110 = vld [vmem:[%s6 + $0x228] sm:$0xff]
  %v2111 = vld [vmem:[%s6 + $0x230] sm:$0xff]
  %v2112 = vld [vmem:[%s6 + $0x238] sm:$0xff]
  %v2113 = vld [vmem:[%s6 + $0x240] sm:$0xff]
  %v2114 = vld [vmem:[%s6 + $0x248] sm:$0xff]
  %v2115 = vld [vmem:[%s6 + $0x250] sm:$0xff]
  %v2116 = vld [vmem:[%s6 + $0x258] sm:$0xff]
  %v2117 = vld [vmem:[%s6 + $0x260] sm:$0xff]
  %v2118 = vld [vmem:[%s6 + $0x268] sm:$0xff]
  %v2119 = vld [vmem:[%s6 + $0x270] sm:$0xff]
  %v2120 = vld [vmem:[%s6 + $0x278] sm:$0xff]
  %v2121 = vld [vmem:[%s6 + $0x280] sm:$0xff]
  %v2122 = vld [vmem:[%s6 + $0x288] sm:$0xff]
  %v2123 = vld [vmem:[%s6 + $0x290] sm:$0xff]
  %v2124 = vld [vmem:[%s6 + $0x298] sm:$0xff]
  %v2125 = vld [vmem:[%s6 + $0x2a0] sm:$0xff]
  %v2126 = vld [vmem:[%s6 + $0x2a8] sm:$0xff]
  %v2127 = vld [vmem:[%s6 + $0x2b0] sm:$0xff]
  %v2128 = vld [vmem:[%s6 + $0x2b8] sm:$0xff]
  %v2129 = vld [vmem:[%s6 + $0x2c0] sm:$0xff]
  %v2130 = vld [vmem:[%s6 + $0x2c8] sm:$0xff]
  %v2131 = vld [vmem:[%s6 + $0x2d0] sm:$0xff]
  %v2132 = vld [vmem:[%s6 + $0x2d8] sm:$0xff]
  %v2133 = vld [vmem:[%s6 + $0x2e0] sm:$0xff]
  %v2134 = vld [vmem:[%s6 + $0x2e8] sm:$0xff]
  %v2135 = vld [vmem:[%s6 + $0x2f0] sm:$0xff]
  %v2136 = vld [vmem:[%s6 + $0x2f8] sm:$0xff]
  %v2137 = vld [vmem:[%s6 + $0x300] sm:$0xff]
  %v2138 = vld [vmem:[%s6 + $0x308] sm:$0xff]
  %v2139 = vld [vmem:[%s6 + $0x310] sm:$0xff]
  %v2140 = vld [vmem:[%s6 + $0x318] sm:$0xff]
  %v2141 = vld [vmem:[%s6 + $0x320] sm:$0xff]
  %v2142 = vld [vmem:[%s6 + $0x328] sm:$0xff]
  %v2143 = vld [vmem:[%s6 + $0x330] sm:$0xff]
  %v2144 = vld [vmem:[%s6 + $0x338] sm:$0xff]
  %v2145 = vld [vmem:[%s6 + $0x340] sm:$0xff]
  %v2146 = vld [vmem:[%s6 + $0x348] sm:$0xff]
  %v2147 = vld [vmem:[%s6 + $0x350] sm:$0xff]
  %v2148 = vld [vmem:[%s6 + $0x358] sm:$0xff]
  %v2149 = vld [vmem:[%s6 + $0x360] sm:$0xff]
  %v2150 = vld [vmem:[%s6 + $0x368] sm:$0xff]
  %v2151 = vld [vmem:[%s6 + $0x370] sm:$0xff]
  %v2152 = vld [vmem:[%s6 + $0x378] sm:$0xff]
  %v2153 = vld [vmem:[%s6 + $0x380] sm:$0xff]
  %v2154 = vld [vmem:[%s6 + $0x388] sm:$0xff]
  %v2155 = vld [vmem:[%s6 + $0x390] sm:$0xff]
  %v2156 = vld [vmem:[%s6 + $0x398] sm:$0xff]
  %v2157 = vld [vmem:[%s6 + $0x3a0] sm:$0xff]
  %v2158 = vld [vmem:[%s6 + $0x3a8] sm:$0xff]
  %v2159 = vld [vmem:[%s6 + $0x3b0] sm:$0xff]
  %v2160 = vld [vmem:[%s6 + $0x3b8] sm:$0xff]
  %v2161 = vld [vmem:[%s6 + $0x3c0] sm:$0xff]
  %v2162 = vld [vmem:[%s6 + $0x3c8] sm:$0xff]
  %v2163 = vld [vmem:[%s6 + $0x3d0] sm:$0xff]
  %v2164 = vld [vmem:[%s6 + $0x3d8] sm:$0xff]
  %v2165 = vld [vmem:[%s6 + $0x3e0] sm:$0xff]
  %v2166 = vld [vmem:[%s6 + $0x3e8] sm:$0xff]
  %v2167 = vld [vmem:[%s6 + $0x3f0] sm:$0xff]
  %v2168 = vld [vmem:[%s6 + $0x3f8] sm:$0xff]
  %v2169 = vld [vmem:[%s6 + $0x400] sm:$0xff]
  %v2170 = vld [vmem:[%s6 + $0x408] sm:$0xff]
  %v2171 = vld [vmem:[%s6 + $0x410] sm:$0xff]
  %v2172 = vld [vmem:[%s6 + $0x418] sm:$0xff]
  %v2173 = vld [vmem:[%s6 + $0x420] sm:$0xff]
  %v2174 = vld [vmem:[%s6 + $0x428] sm:$0xff]
  %v2175 = vld [vmem:[%s6 + $0x430] sm:$0xff]
  %v2176 = vld [vmem:[%s6 + $0x438] sm:$0xff]
  %v2177 = vld [vmem:[%s6 + $0x440] sm:$0xff]
  %v2178 = vld [vmem:[%s6 + $0x448] sm:$0xff]
  %v2179 = vld [vmem:[%s6 + $0x450] sm:$0xff]
  %v2180 = vld [vmem:[%s6 + $0x458] sm:$0xff]
  %v2181 = vld [vmem:[%s6 + $0x460] sm:$0xff]
  %v2182 = vld [vmem:[%s6 + $0x468] sm:$0xff]
  %v2183 = vld [vmem:[%s6 + $0x470] sm:$0xff]
  %v2184 = vld [vmem:[%s6 + $0x478] sm:$0xff]
  %v2185 = vld [vmem:[%s6 + $0x480] sm:$0xff]
  %v2186 = vld [vmem:[%s6 + $0x488] sm:$0xff]
  %v2187 = vld [vmem:[%s6 + $0x490] sm:$0xff]
  %v2188 = vld [vmem:[%s6 + $0x498] sm:$0xff]
  %v2189 = vld [vmem:[%s6 + $0x4a0] sm:$0xff]
  %v2190 = vld [vmem:[%s6 + $0x4a8] sm:$0xff]
  %v2191 = vld [vmem:[%s6 + $0x4b0] sm:$0xff]
  %v2192 = vld [vmem:[%s6 + $0x4b8] sm:$0xff]
  %v2193 = vld [vmem:[%s6 + $0x4c0] sm:$0xff]
  %v2194 = vld [vmem:[%s6 + $0x4c8] sm:$0xff]
  %v2195 = vld [vmem:[%s6 + $0x4d0] sm:$0xff]
  %v2196 = vld [vmem:[%s6 + $0x4d8] sm:$0xff]
  %v2197 = vld [vmem:[%s6 + $0x4e0] sm:$0xff]
  %v2198 = vld [vmem:[%s6 + $0x4e8] sm:$0xff]
  %v2199 = vld [vmem:[%s6 + $0x4f0] sm:$0xff]
  %v2200 = vld [vmem:[%s6 + $0x4f8] sm:$0xff]
  %v2201 = vld [vmem:[%s6 + $0x500] sm:$0xff]
  %v2202 = vld [vmem:[%s6 + $0x508] sm:$0xff]
  %v2203 = vld [vmem:[%s6 + $0x510] sm:$0xff]
  %v2204 = vld [vmem:[%s6 + $0x518] sm:$0xff]
  %v2205 = vld [vmem:[%s6 + $0x520] sm:$0xff]
  %v2206 = vld [vmem:[%s6 + $0x528] sm:$0xff]
  %v2207 = vld [vmem:[%s6 + $0x530] sm:$0xff]
  %v2208 = vld [vmem:[%s6 + $0x538] sm:$0xff]
  %v2209 = vld [vmem:[%s6 + $0x540] sm:$0xff]
  %v2210 = vld [vmem:[%s6 + $0x548] sm:$0xff]
  %v2211 = vld [vmem:[%s6 + $0x550] sm:$0xff]
  %v2212 = vld [vmem:[%s6 + $0x558] sm:$0xff]
  %v2213 = vld [vmem:[%s6 + $0x560] sm:$0xff]
  %v2214 = vld [vmem:[%s6 + $0x568] sm:$0xff]
  %v2215 = vld [vmem:[%s6 + $0x570] sm:$0xff]
  %v2216 = vld [vmem:[%s6 + $0x578] sm:$0xff]
  %v2217 = vld [vmem:[%s6 + $0x580] sm:$0xff]
  %v2218 = vld [vmem:[%s6 + $0x588] sm:$0xff]
  %v2219 = vld [vmem:[%s6 + $0x590] sm:$0xff]
  %v2220 = vld [vmem:[%s6 + $0x598] sm:$0xff]
  %v2221 = vld [vmem:[%s6 + $0x5a0] sm:$0xff]
  %v2222 = vld [vmem:[%s6 + $0x5a8] sm:$0xff]
  %v2223 = vld [vmem:[%s6 + $0x5b0] sm:$0xff]
  %v2224 = vld [vmem:[%s6 + $0x5b8] sm:$0xff]
  %v2225 = vld [vmem:[%s6 + $0x5c0] sm:$0xff]
  %v2226 = vld [vmem:[%s6 + $0x5c8] sm:$0xff]
  %v2227 = vld [vmem:[%s6 + $0x5d0] sm:$0xff]
  %v2228 = vld [vmem:[%s6 + $0x5d8] sm:$0xff]
  %v2229 = vld [vmem:[%s6 + $0x5e0] sm:$0xff]
  %v2230 = vld [vmem:[%s6 + $0x5e8] sm:$0xff]
  %v2231 = vld [vmem:[%s6 + $0x5f0] sm:$0xff]
  %v2232 = vld [vmem:[%s6 + $0x5f8] sm:$0xff]
  %v2233 = vld [vmem:[%s6 + $0x600] sm:$0xff]
  %v2234 = vld [vmem:[%s6 + $0x608] sm:$0xff]
  %v2235 = vld [vmem:[%s6 + $0x610] sm:$0xff]
  %v2236 = vld [vmem:[%s6 + $0x618] sm:$0xff]
  %v2237 = vld [vmem:[%s6 + $0x620] sm:$0xff]
  %v2238 = vld [vmem:[%s6 + $0x628] sm:$0xff]
  %v2239 = vld [vmem:[%s6 + $0x630] sm:$0xff]
  %v2240 = vld [vmem:[%s6 + $0x638] sm:$0xff]
  %v2241 = vld [vmem:[%s6 + $0x640] sm:$0xff]
  %v2242 = vld [vmem:[%s6 + $0x648] sm:$0xff]
  %v2243 = vld [vmem:[%s6 + $0x650] sm:$0xff]
  %v2244 = vld [vmem:[%s6 + $0x658] sm:$0xff]
  %v2245 = vld [vmem:[%s6 + $0x660] sm:$0xff]
  %v2246 = vld [vmem:[%s6 + $0x668] sm:$0xff]
  %v2247 = vld [vmem:[%s6 + $0x670] sm:$0xff]
  %v2248 = vld [vmem:[%s6 + $0x678] sm:$0xff]
  %v2249 = vld [vmem:[%s6 + $0x680] sm:$0xff]
  %v2250 = vld [vmem:[%s6 + $0x688] sm:$0xff]
  %v2251 = vld [vmem:[%s6 + $0x690] sm:$0xff]
  %v2252 = vld [vmem:[%s6 + $0x698] sm:$0xff]
  %v2253 = vld [vmem:[%s6 + $0x6a0] sm:$0xff]
  %v2254 = vld [vmem:[%s6 + $0x6a8] sm:$0xff]
  %v2255 = vld [vmem:[%s6 + $0x6b0] sm:$0xff]
  %v2256 = vld [vmem:[%s6 + $0x6b8] sm:$0xff]
  %v2257 = vld [vmem:[%s6 + $0x6c0] sm:$0xff]
  %v2258 = vld [vmem:[%s6 + $0x6c8] sm:$0xff]
  %v2259 = vld [vmem:[%s6 + $0x6d0] sm:$0xff]
  %v2260 = vld [vmem:[%s6 + $0x6d8] sm:$0xff]
  %v2261 = vld [vmem:[%s6 + $0x6e0] sm:$0xff]
  %v2262 = vld [vmem:[%s6 + $0x6e8] sm:$0xff]
  %v2263 = vld [vmem:[%s6 + $0x6f0] sm:$0xff]
  %v2264 = vld [vmem:[%s6 + $0x6f8] sm:$0xff]
  %v2265 = vld [vmem:[%s6 + $0x700] sm:$0xff]
  %v2266 = vld [vmem:[%s6 + $0x708] sm:$0xff]
  %v2267 = vld [vmem:[%s6 + $0x710] sm:$0xff]
  %v2268 = vld [vmem:[%s6 + $0x718] sm:$0xff]
  %v2269 = vld [vmem:[%s6 + $0x720] sm:$0xff]
  %v2270 = vld [vmem:[%s6 + $0x728] sm:$0xff]
  %v2271 = vld [vmem:[%s6 + $0x730] sm:$0xff]
  %v2272 = vld [vmem:[%s6 + $0x738] sm:$0xff]
  %v2273 = vld [vmem:[%s6 + $0x740] sm:$0xff]
  %v2274 = vld [vmem:[%s6 + $0x748] sm:$0xff]
  %v2275 = vld [vmem:[%s6 + $0x750] sm:$0xff]
  %v2276 = vld [vmem:[%s6 + $0x758] sm:$0xff]
  %v2277 = vld [vmem:[%s6 + $0x760] sm:$0xff]
  %v2278 = vld [vmem:[%s6 + $0x768] sm:$0xff]
  %v2279 = vld [vmem:[%s6 + $0x770] sm:$0xff]
  %v2280 = vld [vmem:[%s6 + $0x778] sm:$0xff]
  %v2281 = vld [vmem:[%s6 + $0x780] sm:$0xff]
  %v2282 = vld [vmem:[%s6 + $0x788] sm:$0xff]
  %v2283 = vld [vmem:[%s6 + $0x790] sm:$0xff]
  %v2284 = vld [vmem:[%s6 + $0x798] sm:$0xff]
  %v2285 = vld [vmem:[%s6 + $0x7a0] sm:$0xff]
  %v2286 = vld [vmem:[%s6 + $0x7a8] sm:$0xff]
  %v2287 = vld [vmem:[%s6 + $0x7b0] sm:$0xff]
  %v2288 = vld [vmem:[%s6 + $0x7b8] sm:$0xff]
  %v2289 = vld [vmem:[%s6 + $0x7c0] sm:$0xff]
  %v2290 = vld [vmem:[%s6 + $0x7c8] sm:$0xff]
  %v2291 = vld [vmem:[%s6 + $0x7d0] sm:$0xff]
  %v2292 = vld [vmem:[%s6 + $0x7d8] sm:$0xff]
  %v2293 = vld [vmem:[%s6 + $0x7e0] sm:$0xff]
  %v2294 = vld [vmem:[%s6 + $0x7e8] sm:$0xff]
  %v2295 = vld [vmem:[%s6 + $0x7f0] sm:$0xff]
  %v2296 = vld [vmem:[%s6 + $0x7f8] sm:$0xff]
  %v2297 = vld [vmem:[%s1] sm:$0x3]
  %v2298 = vpack.c.bf16 %v2297, %v2297
  %v2299 = vld [vmem:[%s7] sm:$0xff]
  %v2300 = vld [vmem:[%s7 + $0x8] sm:$0xff]
  %v2301 = vld [vmem:[%s7 + $0x10] sm:$0xff]
  %v2302 = vld [vmem:[%s7 + $0x18] sm:$0xff]
  %v2303 = vld [vmem:[%s7 + $0x20] sm:$0x77]
  %v2304 = vld [vmem:[%s7 + $0x28] sm:$0x77]
  %v2305 = vld [vmem:[%s7 + $0x30] sm:$0x77]
  %v2306 = vld [vmem:[%s7 + $0x38] sm:$0x77]
  %v2315 = vunpack.c.l.b16 %v2299
  %v2316 = vunpack.c.h.b16 %v2299
  %v2317 = vunpack.c.l.b16 %v2300
  %v2318 = vunpack.c.h.b16 %v2300
  %v2319 = vunpack.c.l.b16 %v2301
  %v2320 = vunpack.c.h.b16 %v2301
  %v2321 = vunpack.c.l.b16 %v2302
  %v2322 = vunpack.c.h.b16 %v2302
  %v2323 = vunpack.c.l.b16 %v2303
  %v2324 = vunpack.c.h.b16 %v2303
  %v2325 = vunpack.c.l.b16 %v2304
  %v2326 = vunpack.c.h.b16 %v2304
  %v2327 = vunpack.c.l.b16 %v2305
  %v2328 = vunpack.c.h.b16 %v2305
  %v2329 = vunpack.c.l.b16 %v2306
  %v2330 = vunpack.c.h.b16 %v2306
  %v2331 = vpack.c.b16 %v2323, %v2315
  %v2332 = vpack.c.b16 %v2324, %v2316
  %v2333 = vpack.c.b16 %v2325, %v2317
  %v2334 = vpack.c.b16 %v2326, %v2318
  %v2335 = vpack.c.b16 %v2327, %v2319
  %v2336 = vpack.c.b16 %v2328, %v2320
  %v2337 = vpack.c.b16 %v2329, %v2321
  %v2338 = vpack.c.b16 %v2330, %v2322
  %vm2339 = vcmask 105472
  %v2341 = vsel %vm2339, %v2298, 0
  %vm2343 = vcmask 1045504
  %vm2344 = vcmask 1046528
  %v2345 = vsel %vm2343, 4294967295, 65535
  %v2346 = vsel %vm2344, %v2345, 0
  %v2348 = vand.u32 %v2331, %v2346
  %v2351 = vand.u32 %v2332, %v2346
  %v2354 = vand.u32 %v2333, %v2346
  %v2357 = vand.u32 %v2334, %v2346
  %v2360 = vand.u32 %v2335, %v2346
  %v2363 = vand.u32 %v2336, %v2346
  %v2366 = vand.u32 %v2337, %v2346
  %v2369 = vand.u32 %v2338, %v2346
  %2371 = vmatprep.subr.bf16.mxu0 %v2351
  %2372 = vmatpush1.bf16.msra.mxu0 %v2348
  %2373 = vmatprep.subr.bf16.mxu0 0
  %2374 = vmatpush1.bf16.msra.mxu0 0
  %2375 = vmatprep.subr.bf16.mxu0 0
  %2376 = vmatpush1.bf16.msra.mxu0 0
  %2377 = vmatprep.subr.bf16.mxu0 0
  %2378 = vmatpush1.bf16.msra.mxu0 0
  %2379 = vmatprep.subr.bf16.mxu0 0
  %2380 = vmatpush1.bf16.msra.mxu0 0
  %2381 = vmatprep.subr.bf16.mxu0 0
  %2382 = vmatpush1.bf16.msra.mxu0 0
  %2383 = vmatprep.subr.bf16.mxu0 0
  %2384 = vmatpush1.bf16.msra.mxu0 0
  %2385 = vmatprep.subr.bf16.mxu0 0
  %2386 = vmatpush1.bf16.msra.mxu0 0
  %2387 = vmatprep.subr.bf16.mxu0 0
  %2388 = vmatpush1.bf16.msra.mxu0 0
  %2389 = vmatprep.subr.bf16.mxu0 0
  %2390 = vmatpush1.bf16.msra.mxu0 0
  %2391 = vmatprep.subr.bf16.mxu0 0
  %2392 = vmatpush1.bf16.msra.mxu0 0
  %2393 = vmatprep.subr.bf16.mxu0 0
  %2394 = vmatpush1.bf16.msra.mxu0 0
  %2395 = vmatprep.subr.bf16.mxu0 0
  %2396 = vmatpush1.bf16.msra.mxu0 0
  %2397 = vmatprep.subr.bf16.mxu0 0
  %2398 = vmatpush1.bf16.msra.mxu0 0
  %2399 = vmatprep.subr.bf16.mxu0 0
  %2400 = vmatpush1.bf16.msra.mxu0 0
  %2401 = vmatprep.subr.bf16.mxu0 0
  %2402 = vmatpush1.bf16.msra.mxu0 0
  %2403 = vmatprep.mubr.bf16.mxu0 0
  %2404 = vmatmul.mubr.bf16.gmra.mrb[0].mxu0 %v2341
  %v2405 = vpop.f32.mrb[0].mxu0
  %v2406 = vadd.f32 0.0, %v2405
  %v2407 = vpop.f32.mrb[0].mxu0
  %v2408 = vadd.f32 0.0, %v2407
  %v2409 = vpop.f32.mrb[0].mxu0
  %v2410 = vpop.f32.mrb[0].mxu0
  %2411 = vdwg.mxu0
  %2412 = vmatprep.subr.bf16.mxu0 %v2357
  %2413 = vmatpush1.bf16.msra.mxu0 %v2354
  %2414 = vmatprep.subr.bf16.mxu0 0
  %2415 = vmatpush1.bf16.msra.mxu0 0
  %2416 = vmatprep.subr.bf16.mxu0 0
  %2417 = vmatpush1.bf16.msra.mxu0 0
  %2418 = vmatprep.subr.bf16.mxu0 0
  %2419 = vmatpush1.bf16.msra.mxu0 0
  %2420 = vmatprep.subr.bf16.mxu0 0
  %2421 = vmatpush1.bf16.msra.mxu0 0
  %2422 = vmatprep.subr.bf16.mxu0 0
  %2423 = vmatpush1.bf16.msra.mxu0 0
  %2424 = vmatprep.subr.bf16.mxu0 0
  %2425 = vmatpush1.bf16.msra.mxu0 0
  %2426 = vmatprep.subr.bf16.mxu0 0
  %2427 = vmatpush1.bf16.msra.mxu0 0
  %2428 = vmatprep.subr.bf16.mxu0 0
  %2429 = vmatpush1.bf16.msra.mxu0 0
  %2430 = vmatprep.subr.bf16.mxu0 0
  %2431 = vmatpush1.bf16.msra.mxu0 0
  %2432 = vmatprep.subr.bf16.mxu0 0
  %2433 = vmatpush1.bf16.msra.mxu0 0
  %2434 = vmatprep.subr.bf16.mxu0 0
  %2435 = vmatpush1.bf16.msra.mxu0 0
  %2436 = vmatprep.subr.bf16.mxu0 0
  %2437 = vmatpush1.bf16.msra.mxu0 0
  %2438 = vmatprep.subr.bf16.mxu0 0
  %2439 = vmatpush1.bf16.msra.mxu0 0
  %2440 = vmatprep.subr.bf16.mxu0 0
  %2441 = vmatpush1.bf16.msra.mxu0 0
  %2442 = vmatprep.subr.bf16.mxu0 0
  %2443 = vmatpush1.bf16.msra.mxu0 0
  %2444 = vmatprep.mubr.bf16.mxu0 0
  %2445 = vmatmul.mubr.bf16.gmra.mrb[0].mxu0 %v2341
  %v2446 = vpop.f32.mrb[0].mxu0
  %v2447 = vadd.f32 0.0, %v2446
  %v2448 = vpop.f32.mrb[0].mxu0
  %v2449 = vadd.f32 0.0, %v2448
  %v2450 = vpop.f32.mrb[0].mxu0
  %v2451 = vpop.f32.mrb[0].mxu0
  %2452 = vdwg.mxu0
  %2453 = vmatprep.subr.bf16.mxu0 %v2363
  %2454 = vmatpush1.bf16.msra.mxu0 %v2360
  %2455 = vmatprep.subr.bf16.mxu0 0
  %2456 = vmatpush1.bf16.msra.mxu0 0
  %2457 = vmatprep.subr.bf16.mxu0 0
  %2458 = vmatpush1.bf16.msra.mxu0 0
  %2459 = vmatprep.subr.bf16.mxu0 0
  %2460 = vmatpush1.bf16.msra.mxu0 0
  %2461 = vmatprep.subr.bf16.mxu0 0
  %2462 = vmatpush1.bf16.msra.mxu0 0
  %2463 = vmatprep.subr.bf16.mxu0 0
  %2464 = vmatpush1.bf16.msra.mxu0 0
  %2465 = vmatprep.subr.bf16.mxu0 0
  %2466 = vmatpush1.bf16.msra.mxu0 0
  %2467 = vmatprep.subr.bf16.mxu0 0
  %2468 = vmatpush1.bf16.msra.mxu0 0
  %2469 = vmatprep.subr.bf16.mxu0 0
  %2470 = vmatpush1.bf16.msra.mxu0 0
  %2471 = vmatprep.subr.bf16.mxu0 0
  %2472 = vmatpush1.bf16.msra.mxu0 0
  %2473 = vmatprep.subr.bf16.mxu0 0
  %2474 = vmatpush1.bf16.msra.mxu0 0
  %2475 = vmatprep.subr.bf16.mxu0 0
  %2476 = vmatpush1.bf16.msra.mxu0 0
  %2477 = vmatprep.subr.bf16.mxu0 0
  %2478 = vmatpush1.bf16.msra.mxu0 0
  %2479 = vmatprep.subr.bf16.mxu0 0
  %2480 = vmatpush1.bf16.msra.mxu0 0
  %2481 = vmatprep.subr.bf16.mxu0 0
  %2482 = vmatpush1.bf16.msra.mxu0 0
  %2483 = vmatprep.subr.bf16.mxu0 0
  %2484 = vmatpush1.bf16.msra.mxu0 0
  %2485 = vmatprep.mubr.bf16.mxu0 0
  %2486 = vmatmul.mubr.bf16.gmra.mrb[0].mxu0 %v2341
  %v2487 = vpop.f32.mrb[0].mxu0
  %v2488 = vadd.f32 0.0, %v2487
  %v2489 = vpop.f32.mrb[0].mxu0
  %v2490 = vadd.f32 0.0, %v2489
  %v2491 = vpop.f32.mrb[0].mxu0
  %v2492 = vpop.f32.mrb[0].mxu0
  %2493 = vdwg.mxu0
  %2494 = vmatprep.subr.bf16.mxu0 %v2369
  %2495 = vmatpush1.bf16.msra.mxu0 %v2366
  %2496 = vmatprep.subr.bf16.mxu0 0
  %2497 = vmatpush1.bf16.msra.mxu0 0
  %2498 = vmatprep.subr.bf16.mxu0 0
  %2499 = vmatpush1.bf16.msra.mxu0 0
  %2500 = vmatprep.subr.bf16.mxu0 0
  %2501 = vmatpush1.bf16.msra.mxu0 0
  %2502 = vmatprep.subr.bf16.mxu0 0
  %2503 = vmatpush1.bf16.msra.mxu0 0
  %2504 = vmatprep.subr.bf16.mxu0 0
  %2505 = vmatpush1.bf16.msra.mxu0 0
  %2506 = vmatprep.subr.bf16.mxu0 0
  %2507 = vmatpush1.bf16.msra.mxu0 0
  %2508 = vmatprep.subr.bf16.mxu0 0
  %2509 = vmatpush1.bf16.msra.mxu0 0
  %2510 = vmatprep.subr.bf16.mxu0 0
  %2511 = vmatpush1.bf16.msra.mxu0 0
  %2512 = vmatprep.subr.bf16.mxu0 0
  %2513 = vmatpush1.bf16.msra.mxu0 0
  %2514 = vmatprep.subr.bf16.mxu0 0
  %2515 = vmatpush1.bf16.msra.mxu0 0
  %2516 = vmatprep.subr.bf16.mxu0 0
  %2517 = vmatpush1.bf16.msra.mxu0 0
  %2518 = vmatprep.subr.bf16.mxu0 0
  %2519 = vmatpush1.bf16.msra.mxu0 0
  %2520 = vmatprep.subr.bf16.mxu0 0
  %2521 = vmatpush1.bf16.msra.mxu0 0
  %2522 = vmatprep.subr.bf16.mxu0 0
  %2523 = vmatpush1.bf16.msra.mxu0 0
  %2524 = vmatprep.subr.bf16.mxu0 0
  %2525 = vmatpush1.bf16.msra.mxu0 0
  %2526 = vmatprep.mubr.bf16.mxu0 0
  %2527 = vmatmul.mubr.bf16.gmra.mrb[0].mxu0 %v2341
  %v2528 = vpop.f32.mrb[0].mxu0
  %v2529 = vadd.f32 0.0, %v2528
  %v2530 = vpop.f32.mrb[0].mxu0
  %v2531 = vadd.f32 0.0, %v2530
  %v2532 = vpop.f32.mrb[0].mxu0
  %v2533 = vpop.f32.mrb[0].mxu0
  %2534 = vdwg.mxu0
  %v2791 = vunpack.c.l.b16 %v2041
  %v2792 = vunpack.c.h.b16 %v2041
  %v2793 = vunpack.c.l.b16 %v2042
  %v2794 = vunpack.c.h.b16 %v2042
  %v2795 = vunpack.c.l.b16 %v2043
  %v2796 = vunpack.c.h.b16 %v2043
  %v2797 = vunpack.c.l.b16 %v2044
  %v2798 = vunpack.c.h.b16 %v2044
  %v2799 = vunpack.c.l.b16 %v2045
  %v2800 = vunpack.c.h.b16 %v2045
  %v2801 = vunpack.c.l.b16 %v2046
  %v2802 = vunpack.c.h.b16 %v2046
  %v2803 = vunpack.c.l.b16 %v2047
  %v2804 = vunpack.c.h.b16 %v2047
  %v2805 = vunpack.c.l.b16 %v2048
  %v2806 = vunpack.c.h.b16 %v2048
  %v2807 = vunpack.c.l.b16 %v2049
  %v2808 = vunpack.c.h.b16 %v2049
  %v2809 = vunpack.c.l.b16 %v2050
  %v2810 = vunpack.c.h.b16 %v2050
  %v2811 = vunpack.c.l.b16 %v2051
  %v2812 = vunpack.c.h.b16 %v2051
  %v2813 = vunpack.c.l.b16 %v2052
  %v2814 = vunpack.c.h.b16 %v2052
  %v2815 = vunpack.c.l.b16 %v2053
  %v2816 = vunpack.c.h.b16 %v2053
  %v2817 = vunpack.c.l.b16 %v2054
  %v2818 = vunpack.c.h.b16 %v2054
  %v2819 = vunpack.c.l.b16 %v2055
  %v2820 = vunpack.c.h.b16 %v2055
  %v2821 = vunpack.c.l.b16 %v2056
  %v2822 = vunpack.c.h.b16 %v2056
  %v2823 = vunpack.c.l.b16 %v2057
  %v2824 = vunpack.c.h.b16 %v2057
  %v2825 = vunpack.c.l.b16 %v2058
  %v2826 = vunpack.c.h.b16 %v2058
  %v2827 = vunpack.c.l.b16 %v2059
  %v2828 = vunpack.c.h.b16 %v2059
  %v2829 = vunpack.c.l.b16 %v2060
  %v2830 = vunpack.c.h.b16 %v2060
  %v2831 = vunpack.c.l.b16 %v2061
  %v2832 = vunpack.c.h.b16 %v2061
  %v2833 = vunpack.c.l.b16 %v2062
  %v2834 = vunpack.c.h.b16 %v2062
  %v2835 = vunpack.c.l.b16 %v2063
  %v2836 = vunpack.c.h.b16 %v2063
  %v2837 = vunpack.c.l.b16 %v2064
  %v2838 = vunpack.c.h.b16 %v2064
  %v2839 = vunpack.c.l.b16 %v2065
  %v2840 = vunpack.c.h.b16 %v2065
  %v2841 = vunpack.c.l.b16 %v2066
  %v2842 = vunpack.c.h.b16 %v2066
  %v2843 = vunpack.c.l.b16 %v2067
  %v2844 = vunpack.c.h.b16 %v2067
  %v2845 = vunpack.c.l.b16 %v2068
  %v2846 = vunpack.c.h.b16 %v2068
  %v2847 = vunpack.c.l.b16 %v2069
  %v2848 = vunpack.c.h.b16 %v2069
  %v2849 = vunpack.c.l.b16 %v2070
  %v2850 = vunpack.c.h.b16 %v2070
  %v2851 = vunpack.c.l.b16 %v2071
  %v2852 = vunpack.c.h.b16 %v2071
  %v2853 = vunpack.c.l.b16 %v2072
  %v2854 = vunpack.c.h.b16 %v2072
  %v2855 = vunpack.c.l.b16 %v2073
  %v2856 = vunpack.c.h.b16 %v2073
  %v2857 = vunpack.c.l.b16 %v2074
  %v2858 = vunpack.c.h.b16 %v2074
  %v2859 = vunpack.c.l.b16 %v2075
  %v2860 = vunpack.c.h.b16 %v2075
  %v2861 = vunpack.c.l.b16 %v2076
  %v2862 = vunpack.c.h.b16 %v2076
  %v2863 = vunpack.c.l.b16 %v2077
  %v2864 = vunpack.c.h.b16 %v2077
  %v2865 = vunpack.c.l.b16 %v2078
  %v2866 = vunpack.c.h.b16 %v2078
  %v2867 = vunpack.c.l.b16 %v2079
  %v2868 = vunpack.c.h.b16 %v2079
  %v2869 = vunpack.c.l.b16 %v2080
  %v2870 = vunpack.c.h.b16 %v2080
  %v2871 = vunpack.c.l.b16 %v2081
  %v2872 = vunpack.c.h.b16 %v2081
  %v2873 = vunpack.c.l.b16 %v2082
  %v2874 = vunpack.c.h.b16 %v2082
  %v2875 = vunpack.c.l.b16 %v2083
  %v2876 = vunpack.c.h.b16 %v2083
  %v2877 = vunpack.c.l.b16 %v2084
  %v2878 = vunpack.c.h.b16 %v2084
  %v2879 = vunpack.c.l.b16 %v2085
  %v2880 = vunpack.c.h.b16 %v2085
  %v2881 = vunpack.c.l.b16 %v2086
  %v2882 = vunpack.c.h.b16 %v2086
  %v2883 = vunpack.c.l.b16 %v2087
  %v2884 = vunpack.c.h.b16 %v2087
  %v2885 = vunpack.c.l.b16 %v2088
  %v2886 = vunpack.c.h.b16 %v2088
  %v2887 = vunpack.c.l.b16 %v2089
  %v2888 = vunpack.c.h.b16 %v2089
  %v2889 = vunpack.c.l.b16 %v2090
  %v2890 = vunpack.c.h.b16 %v2090
  %v2891 = vunpack.c.l.b16 %v2091
  %v2892 = vunpack.c.h.b16 %v2091
  %v2893 = vunpack.c.l.b16 %v2092
  %v2894 = vunpack.c.h.b16 %v2092
  %v2895 = vunpack.c.l.b16 %v2093
  %v2896 = vunpack.c.h.b16 %v2093
  %v2897 = vunpack.c.l.b16 %v2094
  %v2898 = vunpack.c.h.b16 %v2094
  %v2899 = vunpack.c.l.b16 %v2095
  %v2900 = vunpack.c.h.b16 %v2095
  %v2901 = vunpack.c.l.b16 %v2096
  %v2902 = vunpack.c.h.b16 %v2096
  %v2903 = vunpack.c.l.b16 %v2097
  %v2904 = vunpack.c.h.b16 %v2097
  %v2905 = vunpack.c.l.b16 %v2098
  %v2906 = vunpack.c.h.b16 %v2098
  %v2907 = vunpack.c.l.b16 %v2099
  %v2908 = vunpack.c.h.b16 %v2099
  %v2909 = vunpack.c.l.b16 %v2100
  %v2910 = vunpack.c.h.b16 %v2100
  %v2911 = vunpack.c.l.b16 %v2101
  %v2912 = vunpack.c.h.b16 %v2101
  %v2913 = vunpack.c.l.b16 %v2102
  %v2914 = vunpack.c.h.b16 %v2102
  %v2915 = vunpack.c.l.b16 %v2103
  %v2916 = vunpack.c.h.b16 %v2103
  %v2917 = vunpack.c.l.b16 %v2104
  %v2918 = vunpack.c.h.b16 %v2104
  %v2919 = vunpack.c.l.b16 %v2105
  %v2920 = vunpack.c.h.b16 %v2105
  %v2921 = vunpack.c.l.b16 %v2106
  %v2922 = vunpack.c.h.b16 %v2106
  %v2923 = vunpack.c.l.b16 %v2107
  %v2924 = vunpack.c.h.b16 %v2107
  %v2925 = vunpack.c.l.b16 %v2108
  %v2926 = vunpack.c.h.b16 %v2108
  %v2927 = vunpack.c.l.b16 %v2109
  %v2928 = vunpack.c.h.b16 %v2109
  %v2929 = vunpack.c.l.b16 %v2110
  %v2930 = vunpack.c.h.b16 %v2110
  %v2931 = vunpack.c.l.b16 %v2111
  %v2932 = vunpack.c.h.b16 %v2111
  %v2933 = vunpack.c.l.b16 %v2112
  %v2934 = vunpack.c.h.b16 %v2112
  %v2935 = vunpack.c.l.b16 %v2113
  %v2936 = vunpack.c.h.b16 %v2113
  %v2937 = vunpack.c.l.b16 %v2114
  %v2938 = vunpack.c.h.b16 %v2114
  %v2939 = vunpack.c.l.b16 %v2115
  %v2940 = vunpack.c.h.b16 %v2115
  %v2941 = vunpack.c.l.b16 %v2116
  %v2942 = vunpack.c.h.b16 %v2116
  %v2943 = vunpack.c.l.b16 %v2117
  %v2944 = vunpack.c.h.b16 %v2117
  %v2945 = vunpack.c.l.b16 %v2118
  %v2946 = vunpack.c.h.b16 %v2118
  %v2947 = vunpack.c.l.b16 %v2119
  %v2948 = vunpack.c.h.b16 %v2119
  %v2949 = vunpack.c.l.b16 %v2120
  %v2950 = vunpack.c.h.b16 %v2120
  %v2951 = vunpack.c.l.b16 %v2121
  %v2952 = vunpack.c.h.b16 %v2121
  %v2953 = vunpack.c.l.b16 %v2122
  %v2954 = vunpack.c.h.b16 %v2122
  %v2955 = vunpack.c.l.b16 %v2123
  %v2956 = vunpack.c.h.b16 %v2123
  %v2957 = vunpack.c.l.b16 %v2124
  %v2958 = vunpack.c.h.b16 %v2124
  %v2959 = vunpack.c.l.b16 %v2125
  %v2960 = vunpack.c.h.b16 %v2125
  %v2961 = vunpack.c.l.b16 %v2126
  %v2962 = vunpack.c.h.b16 %v2126
  %v2963 = vunpack.c.l.b16 %v2127
  %v2964 = vunpack.c.h.b16 %v2127
  %v2965 = vunpack.c.l.b16 %v2128
  %v2966 = vunpack.c.h.b16 %v2128
  %v2967 = vunpack.c.l.b16 %v2129
  %v2968 = vunpack.c.h.b16 %v2129
  %v2969 = vunpack.c.l.b16 %v2130
  %v2970 = vunpack.c.h.b16 %v2130
  %v2971 = vunpack.c.l.b16 %v2131
  %v2972 = vunpack.c.h.b16 %v2131
  %v2973 = vunpack.c.l.b16 %v2132
  %v2974 = vunpack.c.h.b16 %v2132
  %v2975 = vunpack.c.l.b16 %v2133
  %v2976 = vunpack.c.h.b16 %v2133
  %v2977 = vunpack.c.l.b16 %v2134
  %v2978 = vunpack.c.h.b16 %v2134
  %v2979 = vunpack.c.l.b16 %v2135
  %v2980 = vunpack.c.h.b16 %v2135
  %v2981 = vunpack.c.l.b16 %v2136
  %v2982 = vunpack.c.h.b16 %v2136
  %v2983 = vunpack.c.l.b16 %v2137
  %v2984 = vunpack.c.h.b16 %v2137
  %v2985 = vunpack.c.l.b16 %v2138
  %v2986 = vunpack.c.h.b16 %v2138
  %v2987 = vunpack.c.l.b16 %v2139
  %v2988 = vunpack.c.h.b16 %v2139
  %v2989 = vunpack.c.l.b16 %v2140
  %v2990 = vunpack.c.h.b16 %v2140
  %v2991 = vunpack.c.l.b16 %v2141
  %v2992 = vunpack.c.h.b16 %v2141
  %v2993 = vunpack.c.l.b16 %v2142
  %v2994 = vunpack.c.h.b16 %v2142
  %v2995 = vunpack.c.l.b16 %v2143
  %v2996 = vunpack.c.h.b16 %v2143
  %v2997 = vunpack.c.l.b16 %v2144
  %v2998 = vunpack.c.h.b16 %v2144
  %v2999 = vunpack.c.l.b16 %v2145
  %v3000 = vunpack.c.h.b16 %v2145
  %v3001 = vunpack.c.l.b16 %v2146
  %v3002 = vunpack.c.h.b16 %v2146
  %v3003 = vunpack.c.l.b16 %v2147
  %v3004 = vunpack.c.h.b16 %v2147
  %v3005 = vunpack.c.l.b16 %v2148
  %v3006 = vunpack.c.h.b16 %v2148
  %v3007 = vunpack.c.l.b16 %v2149
  %v3008 = vunpack.c.h.b16 %v2149
  %v3009 = vunpack.c.l.b16 %v2150
  %v3010 = vunpack.c.h.b16 %v2150
  %v3011 = vunpack.c.l.b16 %v2151
  %v3012 = vunpack.c.h.b16 %v2151
  %v3013 = vunpack.c.l.b16 %v2152
  %v3014 = vunpack.c.h.b16 %v2152
  %v3015 = vunpack.c.l.b16 %v2153
  %v3016 = vunpack.c.h.b16 %v2153
  %v3017 = vunpack.c.l.b16 %v2154
  %v3018 = vunpack.c.h.b16 %v2154
  %v3019 = vunpack.c.l.b16 %v2155
  %v3020 = vunpack.c.h.b16 %v2155
  %v3021 = vunpack.c.l.b16 %v2156
  %v3022 = vunpack.c.h.b16 %v2156
  %v3023 = vunpack.c.l.b16 %v2157
  %v3024 = vunpack.c.h.b16 %v2157
  %v3025 = vunpack.c.l.b16 %v2158
  %v3026 = vunpack.c.h.b16 %v2158
  %v3027 = vunpack.c.l.b16 %v2159
  %v3028 = vunpack.c.h.b16 %v2159
  %v3029 = vunpack.c.l.b16 %v2160
  %v3030 = vunpack.c.h.b16 %v2160
  %v3031 = vunpack.c.l.b16 %v2161
  %v3032 = vunpack.c.h.b16 %v2161
  %v3033 = vunpack.c.l.b16 %v2162
  %v3034 = vunpack.c.h.b16 %v2162
  %v3035 = vunpack.c.l.b16 %v2163
  %v3036 = vunpack.c.h.b16 %v2163
  %v3037 = vunpack.c.l.b16 %v2164
  %v3038 = vunpack.c.h.b16 %v2164
  %v3039 = vunpack.c.l.b16 %v2165
  %v3040 = vunpack.c.h.b16 %v2165
  %v3041 = vunpack.c.l.b16 %v2166
  %v3042 = vunpack.c.h.b16 %v2166
  %v3043 = vunpack.c.l.b16 %v2167
  %v3044 = vunpack.c.h.b16 %v2167
  %v3045 = vunpack.c.l.b16 %v2168
  %v3046 = vunpack.c.h.b16 %v2168
  %v3047 = vunpack.c.l.b16 %v2169
  %v3048 = vunpack.c.h.b16 %v2169
  %v3049 = vunpack.c.l.b16 %v2170
  %v3050 = vunpack.c.h.b16 %v2170
  %v3051 = vunpack.c.l.b16 %v2171
  %v3052 = vunpack.c.h.b16 %v2171
  %v3053 = vunpack.c.l.b16 %v2172
  %v3054 = vunpack.c.h.b16 %v2172
  %v3055 = vunpack.c.l.b16 %v2173
  %v3056 = vunpack.c.h.b16 %v2173
  %v3057 = vunpack.c.l.b16 %v2174
  %v3058 = vunpack.c.h.b16 %v2174
  %v3059 = vunpack.c.l.b16 %v2175
  %v3060 = vunpack.c.h.b16 %v2175
  %v3061 = vunpack.c.l.b16 %v2176
  %v3062 = vunpack.c.h.b16 %v2176
  %v3063 = vunpack.c.l.b16 %v2177
  %v3064 = vunpack.c.h.b16 %v2177
  %v3065 = vunpack.c.l.b16 %v2178
  %v3066 = vunpack.c.h.b16 %v2178
  %v3067 = vunpack.c.l.b16 %v2179
  %v3068 = vunpack.c.h.b16 %v2179
  %v3069 = vunpack.c.l.b16 %v2180
  %v3070 = vunpack.c.h.b16 %v2180
  %v3071 = vunpack.c.l.b16 %v2181
  %v3072 = vunpack.c.h.b16 %v2181
  %v3073 = vunpack.c.l.b16 %v2182
  %v3074 = vunpack.c.h.b16 %v2182
  %v3075 = vunpack.c.l.b16 %v2183
  %v3076 = vunpack.c.h.b16 %v2183
  %v3077 = vunpack.c.l.b16 %v2184
  %v3078 = vunpack.c.h.b16 %v2184
  %v3079 = vunpack.c.l.b16 %v2185
  %v3080 = vunpack.c.h.b16 %v2185
  %v3081 = vunpack.c.l.b16 %v2186
  %v3082 = vunpack.c.h.b16 %v2186
  %v3083 = vunpack.c.l.b16 %v2187
  %v3084 = vunpack.c.h.b16 %v2187
  %v3085 = vunpack.c.l.b16 %v2188
  %v3086 = vunpack.c.h.b16 %v2188
  %v3087 = vunpack.c.l.b16 %v2189
  %v3088 = vunpack.c.h.b16 %v2189
  %v3089 = vunpack.c.l.b16 %v2190
  %v3090 = vunpack.c.h.b16 %v2190
  %v3091 = vunpack.c.l.b16 %v2191
  %v3092 = vunpack.c.h.b16 %v2191
  %v3093 = vunpack.c.l.b16 %v2192
  %v3094 = vunpack.c.h.b16 %v2192
  %v3095 = vunpack.c.l.b16 %v2193
  %v3096 = vunpack.c.h.b16 %v2193
  %v3097 = vunpack.c.l.b16 %v2194
  %v3098 = vunpack.c.h.b16 %v2194
  %v3099 = vunpack.c.l.b16 %v2195
  %v3100 = vunpack.c.h.b16 %v2195
  %v3101 = vunpack.c.l.b16 %v2196
  %v3102 = vunpack.c.h.b16 %v2196
  %v3103 = vunpack.c.l.b16 %v2197
  %v3104 = vunpack.c.h.b16 %v2197
  %v3105 = vunpack.c.l.b16 %v2198
  %v3106 = vunpack.c.h.b16 %v2198
  %v3107 = vunpack.c.l.b16 %v2199
  %v3108 = vunpack.c.h.b16 %v2199
  %v3109 = vunpack.c.l.b16 %v2200
  %v3110 = vunpack.c.h.b16 %v2200
  %v3111 = vunpack.c.l.b16 %v2201
  %v3112 = vunpack.c.h.b16 %v2201
  %v3113 = vunpack.c.l.b16 %v2202
  %v3114 = vunpack.c.h.b16 %v2202
  %v3115 = vunpack.c.l.b16 %v2203
  %v3116 = vunpack.c.h.b16 %v2203
  %v3117 = vunpack.c.l.b16 %v2204
  %v3118 = vunpack.c.h.b16 %v2204
  %v3119 = vunpack.c.l.b16 %v2205
  %v3120 = vunpack.c.h.b16 %v2205
  %v3121 = vunpack.c.l.b16 %v2206
  %v3122 = vunpack.c.h.b16 %v2206
  %v3123 = vunpack.c.l.b16 %v2207
  %v3124 = vunpack.c.h.b16 %v2207
  %v3125 = vunpack.c.l.b16 %v2208
  %v3126 = vunpack.c.h.b16 %v2208
  %v3127 = vunpack.c.l.b16 %v2209
  %v3128 = vunpack.c.h.b16 %v2209
  %v3129 = vunpack.c.l.b16 %v2210
  %v3130 = vunpack.c.h.b16 %v2210
  %v3131 = vunpack.c.l.b16 %v2211
  %v3132 = vunpack.c.h.b16 %v2211
  %v3133 = vunpack.c.l.b16 %v2212
  %v3134 = vunpack.c.h.b16 %v2212
  %v3135 = vunpack.c.l.b16 %v2213
  %v3136 = vunpack.c.h.b16 %v2213
  %v3137 = vunpack.c.l.b16 %v2214
  %v3138 = vunpack.c.h.b16 %v2214
  %v3139 = vunpack.c.l.b16 %v2215
  %v3140 = vunpack.c.h.b16 %v2215
  %v3141 = vunpack.c.l.b16 %v2216
  %v3142 = vunpack.c.h.b16 %v2216
  %v3143 = vunpack.c.l.b16 %v2217
  %v3144 = vunpack.c.h.b16 %v2217
  %v3145 = vunpack.c.l.b16 %v2218
  %v3146 = vunpack.c.h.b16 %v2218
  %v3147 = vunpack.c.l.b16 %v2219
  %v3148 = vunpack.c.h.b16 %v2219
  %v3149 = vunpack.c.l.b16 %v2220
  %v3150 = vunpack.c.h.b16 %v2220
  %v3151 = vunpack.c.l.b16 %v2221
  %v3152 = vunpack.c.h.b16 %v2221
  %v3153 = vunpack.c.l.b16 %v2222
  %v3154 = vunpack.c.h.b16 %v2222
  %v3155 = vunpack.c.l.b16 %v2223
  %v3156 = vunpack.c.h.b16 %v2223
  %v3157 = vunpack.c.l.b16 %v2224
  %v3158 = vunpack.c.h.b16 %v2224
  %v3159 = vunpack.c.l.b16 %v2225
  %v3160 = vunpack.c.h.b16 %v2225
  %v3161 = vunpack.c.l.b16 %v2226
  %v3162 = vunpack.c.h.b16 %v2226
  %v3163 = vunpack.c.l.b16 %v2227
  %v3164 = vunpack.c.h.b16 %v2227
  %v3165 = vunpack.c.l.b16 %v2228
  %v3166 = vunpack.c.h.b16 %v2228
  %v3167 = vunpack.c.l.b16 %v2229
  %v3168 = vunpack.c.h.b16 %v2229
  %v3169 = vunpack.c.l.b16 %v2230
  %v3170 = vunpack.c.h.b16 %v2230
  %v3171 = vunpack.c.l.b16 %v2231
  %v3172 = vunpack.c.h.b16 %v2231
  %v3173 = vunpack.c.l.b16 %v2232
  %v3174 = vunpack.c.h.b16 %v2232
  %v3175 = vunpack.c.l.b16 %v2233
  %v3176 = vunpack.c.h.b16 %v2233
  %v3177 = vunpack.c.l.b16 %v2234
  %v3178 = vunpack.c.h.b16 %v2234
  %v3179 = vunpack.c.l.b16 %v2235
  %v3180 = vunpack.c.h.b16 %v2235
  %v3181 = vunpack.c.l.b16 %v2236
  %v3182 = vunpack.c.h.b16 %v2236
  %v3183 = vunpack.c.l.b16 %v2237
  %v3184 = vunpack.c.h.b16 %v2237
  %v3185 = vunpack.c.l.b16 %v2238
  %v3186 = vunpack.c.h.b16 %v2238
  %v3187 = vunpack.c.l.b16 %v2239
  %v3188 = vunpack.c.h.b16 %v2239
  %v3189 = vunpack.c.l.b16 %v2240
  %v3190 = vunpack.c.h.b16 %v2240
  %v3191 = vunpack.c.l.b16 %v2241
  %v3192 = vunpack.c.h.b16 %v2241
  %v3193 = vunpack.c.l.b16 %v2242
  %v3194 = vunpack.c.h.b16 %v2242
  %v3195 = vunpack.c.l.b16 %v2243
  %v3196 = vunpack.c.h.b16 %v2243
  %v3197 = vunpack.c.l.b16 %v2244
  %v3198 = vunpack.c.h.b16 %v2244
  %v3199 = vunpack.c.l.b16 %v2245
  %v3200 = vunpack.c.h.b16 %v2245
  %v3201 = vunpack.c.l.b16 %v2246
  %v3202 = vunpack.c.h.b16 %v2246
  %v3203 = vunpack.c.l.b16 %v2247
  %v3204 = vunpack.c.h.b16 %v2247
  %v3205 = vunpack.c.l.b16 %v2248
  %v3206 = vunpack.c.h.b16 %v2248
  %v3207 = vunpack.c.l.b16 %v2249
  %v3208 = vunpack.c.h.b16 %v2249
  %v3209 = vunpack.c.l.b16 %v2250
  %v3210 = vunpack.c.h.b16 %v2250
  %v3211 = vunpack.c.l.b16 %v2251
  %v3212 = vunpack.c.h.b16 %v2251
  %v3213 = vunpack.c.l.b16 %v2252
  %v3214 = vunpack.c.h.b16 %v2252
  %v3215 = vunpack.c.l.b16 %v2253
  %v3216 = vunpack.c.h.b16 %v2253
  %v3217 = vunpack.c.l.b16 %v2254
  %v3218 = vunpack.c.h.b16 %v2254
  %v3219 = vunpack.c.l.b16 %v2255
  %v3220 = vunpack.c.h.b16 %v2255
  %v3221 = vunpack.c.l.b16 %v2256
  %v3222 = vunpack.c.h.b16 %v2256
  %v3223 = vunpack.c.l.b16 %v2257
  %v3224 = vunpack.c.h.b16 %v2257
  %v3225 = vunpack.c.l.b16 %v2258
  %v3226 = vunpack.c.h.b16 %v2258
  %v3227 = vunpack.c.l.b16 %v2259
  %v3228 = vunpack.c.h.b16 %v2259
  %v3229 = vunpack.c.l.b16 %v2260
  %v3230 = vunpack.c.h.b16 %v2260
  %v3231 = vunpack.c.l.b16 %v2261
  %v3232 = vunpack.c.h.b16 %v2261
  %v3233 = vunpack.c.l.b16 %v2262
  %v3234 = vunpack.c.h.b16 %v2262
  %v3235 = vunpack.c.l.b16 %v2263
  %v3236 = vunpack.c.h.b16 %v2263
  %v3237 = vunpack.c.l.b16 %v2264
  %v3238 = vunpack.c.h.b16 %v2264
  %v3239 = vunpack.c.l.b16 %v2265
  %v3240 = vunpack.c.h.b16 %v2265
  %v3241 = vunpack.c.l.b16 %v2266
  %v3242 = vunpack.c.h.b16 %v2266
  %v3243 = vunpack.c.l.b16 %v2267
  %v3244 = vunpack.c.h.b16 %v2267
  %v3245 = vunpack.c.l.b16 %v2268
  %v3246 = vunpack.c.h.b16 %v2268
  %v3247 = vunpack.c.l.b16 %v2269
  %v3248 = vunpack.c.h.b16 %v2269
  %v3249 = vunpack.c.l.b16 %v2270
  %v3250 = vunpack.c.h.b16 %v2270
  %v3251 = vunpack.c.l.b16 %v2271
  %v3252 = vunpack.c.h.b16 %v2271
  %v3253 = vunpack.c.l.b16 %v2272
  %v3254 = vunpack.c.h.b16 %v2272
  %v3255 = vunpack.c.l.b16 %v2273
  %v3256 = vunpack.c.h.b16 %v2273
  %v3257 = vunpack.c.l.b16 %v2274
  %v3258 = vunpack.c.h.b16 %v2274
  %v3259 = vunpack.c.l.b16 %v2275
  %v3260 = vunpack.c.h.b16 %v2275
  %v3261 = vunpack.c.l.b16 %v2276
  %v3262 = vunpack.c.h.b16 %v2276
  %v3263 = vunpack.c.l.b16 %v2277
  %v3264 = vunpack.c.h.b16 %v2277
  %v3265 = vunpack.c.l.b16 %v2278
  %v3266 = vunpack.c.h.b16 %v2278
  %v3267 = vunpack.c.l.b16 %v2279
  %v3268 = vunpack.c.h.b16 %v2279
  %v3269 = vunpack.c.l.b16 %v2280
  %v3270 = vunpack.c.h.b16 %v2280
  %v3271 = vunpack.c.l.b16 %v2281
  %v3272 = vunpack.c.h.b16 %v2281
  %v3273 = vunpack.c.l.b16 %v2282
  %v3274 = vunpack.c.h.b16 %v2282
  %v3275 = vunpack.c.l.b16 %v2283
  %v3276 = vunpack.c.h.b16 %v2283
  %v3277 = vunpack.c.l.b16 %v2284
  %v3278 = vunpack.c.h.b16 %v2284
  %v3279 = vunpack.c.l.b16 %v2285
  %v3280 = vunpack.c.h.b16 %v2285
  %v3281 = vunpack.c.l.b16 %v2286
  %v3282 = vunpack.c.h.b16 %v2286
  %v3283 = vunpack.c.l.b16 %v2287
  %v3284 = vunpack.c.h.b16 %v2287
  %v3285 = vunpack.c.l.b16 %v2288
  %v3286 = vunpack.c.h.b16 %v2288
  %v3287 = vunpack.c.l.b16 %v2289
  %v3288 = vunpack.c.h.b16 %v2289
  %v3289 = vunpack.c.l.b16 %v2290
  %v3290 = vunpack.c.h.b16 %v2290
  %v3291 = vunpack.c.l.b16 %v2291
  %v3292 = vunpack.c.h.b16 %v2291
  %v3293 = vunpack.c.l.b16 %v2292
  %v3294 = vunpack.c.h.b16 %v2292
  %v3295 = vunpack.c.l.b16 %v2293
  %v3296 = vunpack.c.h.b16 %v2293
  %v3297 = vunpack.c.l.b16 %v2294
  %v3298 = vunpack.c.h.b16 %v2294
  %v3299 = vunpack.c.l.b16 %v2295
  %v3300 = vunpack.c.h.b16 %v2295
  %v3301 = vunpack.c.l.b16 %v2296
  %v3302 = vunpack.c.h.b16 %v2296
  %v3303 = vpack.c.b16 %v2799, %v2791
  %v3304 = vpack.c.b16 %v2800, %v2792
  %v3305 = vpack.c.b16 %v2801, %v2793
  %v3306 = vpack.c.b16 %v2802, %v2794
  %v3307 = vpack.c.b16 %v2803, %v2795
  %v3308 = vpack.c.b16 %v2804, %v2796
  %v3309 = vpack.c.b16 %v2805, %v2797
  %v3310 = vpack.c.b16 %v2806, %v2798
  %v3311 = vpack.c.b16 %v2815, %v2807
  %v3312 = vpack.c.b16 %v2816, %v2808
  %v3313 = vpack.c.b16 %v2817, %v2809
  %v3314 = vpack.c.b16 %v2818, %v2810
  %v3315 = vpack.c.b16 %v2819, %v2811
  %v3316 = vpack.c.b16 %v2820, %v2812
  %v3317 = vpack.c.b16 %v2821, %v2813
  %v3318 = vpack.c.b16 %v2822, %v2814
  %v3319 = vpack.c.b16 %v2831, %v2823
  %v3320 = vpack.c.b16 %v2832, %v2824
  %v3321 = vpack.c.b16 %v2833, %v2825
  %v3322 = vpack.c.b16 %v2834, %v2826
  %v3323 = vpack.c.b16 %v2835, %v2827
  %v3324 = vpack.c.b16 %v2836, %v2828
  %v3325 = vpack.c.b16 %v2837, %v2829
  %v3326 = vpack.c.b16 %v2838, %v2830
  %v3327 = vpack.c.b16 %v2847, %v2839
  %v3328 = vpack.c.b16 %v2848, %v2840
  %v3329 = vpack.c.b16 %v2849, %v2841
  %v3330 = vpack.c.b16 %v2850, %v2842
  %v3331 = vpack.c.b16 %v2851, %v2843
  %v3332 = vpack.c.b16 %v2852, %v2844
  %v3333 = vpack.c.b16 %v2853, %v2845
  %v3334 = vpack.c.b16 %v2854, %v2846
  %v3335 = vpack.c.b16 %v2863, %v2855
  %v3336 = vpack.c.b16 %v2864, %v2856
  %v3337 = vpack.c.b16 %v2865, %v2857
  %v3338 = vpack.c.b16 %v2866, %v2858
  %v3339 = vpack.c.b16 %v2867, %v2859
  %v3340 = vpack.c.b16 %v2868, %v2860
  %v3341 = vpack.c.b16 %v2869, %v2861
  %v3342 = vpack.c.b16 %v2870, %v2862
  %v3343 = vpack.c.b16 %v2879, %v2871
  %v3344 = vpack.c.b16 %v2880, %v2872
  %v3345 = vpack.c.b16 %v2881, %v2873
  %v3346 = vpack.c.b16 %v2882, %v2874
  %v3347 = vpack.c.b16 %v2883, %v2875
  %v3348 = vpack.c.b16 %v2884, %v2876
  %v3349 = vpack.c.b16 %v2885, %v2877
  %v3350 = vpack.c.b16 %v2886, %v2878
  %v3351 = vpack.c.b16 %v2895, %v2887
  %v3352 = vpack.c.b16 %v2896, %v2888
  %v3353 = vpack.c.b16 %v2897, %v2889
  %v3354 = vpack.c.b16 %v2898, %v2890
  %v3355 = vpack.c.b16 %v2899, %v2891
  %v3356 = vpack.c.b16 %v2900, %v2892
  %v3357 = vpack.c.b16 %v2901, %v2893
  %v3358 = vpack.c.b16 %v2902, %v2894
  %v3359 = vpack.c.b16 %v2911, %v2903
  %v3360 = vpack.c.b16 %v2912, %v2904
  %v3361 = vpack.c.b16 %v2913, %v2905
  %v3362 = vpack.c.b16 %v2914, %v2906
  %v3363 = vpack.c.b16 %v2915, %v2907
  %v3364 = vpack.c.b16 %v2916, %v2908
  %v3365 = vpack.c.b16 %v2917, %v2909
  %v3366 = vpack.c.b16 %v2918, %v2910
  %v3367 = vpack.c.b16 %v2927, %v2919
  %v3368 = vpack.c.b16 %v2928, %v2920
  %v3369 = vpack.c.b16 %v2929, %v2921
  %v3370 = vpack.c.b16 %v2930, %v2922
  %v3371 = vpack.c.b16 %v2931, %v2923
  %v3372 = vpack.c.b16 %v2932, %v2924
  %v3373 = vpack.c.b16 %v2933, %v2925
  %v3374 = vpack.c.b16 %v2934, %v2926
  %v3375 = vpack.c.b16 %v2943, %v2935
  %v3376 = vpack.c.b16 %v2944, %v2936
  %v3377 = vpack.c.b16 %v2945, %v2937
  %v3378 = vpack.c.b16 %v2946, %v2938
  %v3379 = vpack.c.b16 %v2947, %v2939
  %v3380 = vpack.c.b16 %v2948, %v2940
  %v3381 = vpack.c.b16 %v2949, %v2941
  %v3382 = vpack.c.b16 %v2950, %v2942
  %v3383 = vpack.c.b16 %v2959, %v2951
  %v3384 = vpack.c.b16 %v2960, %v2952
  %v3385 = vpack.c.b16 %v2961, %v2953
  %v3386 = vpack.c.b16 %v2962, %v2954
  %v3387 = vpack.c.b16 %v2963, %v2955
  %v3388 = vpack.c.b16 %v2964, %v2956
  %v3389 = vpack.c.b16 %v2965, %v2957
  %v3390 = vpack.c.b16 %v2966, %v2958
  %v3391 = vpack.c.b16 %v2975, %v2967
  %v3392 = vpack.c.b16 %v2976, %v2968
  %v3393 = vpack.c.b16 %v2977, %v2969
  %v3394 = vpack.c.b16 %v2978, %v2970
  %v3395 = vpack.c.b16 %v2979, %v2971
  %v3396 = vpack.c.b16 %v2980, %v2972
  %v3397 = vpack.c.b16 %v2981, %v2973
  %v3398 = vpack.c.b16 %v2982, %v2974
  %v3399 = vpack.c.b16 %v2991, %v2983
  %v3400 = vpack.c.b16 %v2992, %v2984
  %v3401 = vpack.c.b16 %v2993, %v2985
  %v3402 = vpack.c.b16 %v2994, %v2986
  %v3403 = vpack.c.b16 %v2995, %v2987
  %v3404 = vpack.c.b16 %v2996, %v2988
  %v3405 = vpack.c.b16 %v2997, %v2989
  %v3406 = vpack.c.b16 %v2998, %v2990
  %v3407 = vpack.c.b16 %v3007, %v2999
  %v3408 = vpack.c.b16 %v3008, %v3000
  %v3409 = vpack.c.b16 %v3009, %v3001
  %v3410 = vpack.c.b16 %v3010, %v3002
  %v3411 = vpack.c.b16 %v3011, %v3003
  %v3412 = vpack.c.b16 %v3012, %v3004
  %v3413 = vpack.c.b16 %v3013, %v3005
  %v3414 = vpack.c.b16 %v3014, %v3006
  %v3415 = vpack.c.b16 %v3023, %v3015
  %v3416 = vpack.c.b16 %v3024, %v3016
  %v3417 = vpack.c.b16 %v3025, %v3017
  %v3418 = vpack.c.b16 %v3026, %v3018
  %v3419 = vpack.c.b16 %v3027, %v3019
  %v3420 = vpack.c.b16 %v3028, %v3020
  %v3421 = vpack.c.b16 %v3029, %v3021
  %v3422 = vpack.c.b16 %v3030, %v3022
  %v3423 = vpack.c.b16 %v3039, %v3031
  %v3424 = vpack.c.b16 %v3040, %v3032
  %v3425 = vpack.c.b16 %v3041, %v3033
  %v3426 = vpack.c.b16 %v3042, %v3034
  %v3427 = vpack.c.b16 %v3043, %v3035
  %v3428 = vpack.c.b16 %v3044, %v3036
  %v3429 = vpack.c.b16 %v3045, %v3037
  %v3430 = vpack.c.b16 %v3046, %v3038
  %v3431 = vpack.c.b16 %v3055, %v3047
  %v3432 = vpack.c.b16 %v3056, %v3048
  %v3433 = vpack.c.b16 %v3057, %v3049
  %v3434 = vpack.c.b16 %v3058, %v3050
  %v3435 = vpack.c.b16 %v3059, %v3051
  %v3436 = vpack.c.b16 %v3060, %v3052
  %v3437 = vpack.c.b16 %v3061, %v3053
  %v3438 = vpack.c.b16 %v3062, %v3054
  %v3439 = vpack.c.b16 %v3071, %v3063
  %v3440 = vpack.c.b16 %v3072, %v3064
  %v3441 = vpack.c.b16 %v3073, %v3065
  %v3442 = vpack.c.b16 %v3074, %v3066
  %v3443 = vpack.c.b16 %v3075, %v3067
  %v3444 = vpack.c.b16 %v3076, %v3068
  %v3445 = vpack.c.b16 %v3077, %v3069
  %v3446 = vpack.c.b16 %v3078, %v3070
  %v3447 = vpack.c.b16 %v3087, %v3079
  %v3448 = vpack.c.b16 %v3088, %v3080
  %v3449 = vpack.c.b16 %v3089, %v3081
  %v3450 = vpack.c.b16 %v3090, %v3082
  %v3451 = vpack.c.b16 %v3091, %v3083
  %v3452 = vpack.c.b16 %v3092, %v3084
  %v3453 = vpack.c.b16 %v3093, %v3085
  %v3454 = vpack.c.b16 %v3094, %v3086
  %v3455 = vpack.c.b16 %v3103, %v3095
  %v3456 = vpack.c.b16 %v3104, %v3096
  %v3457 = vpack.c.b16 %v3105, %v3097
  %v3458 = vpack.c.b16 %v3106, %v3098
  %v3459 = vpack.c.b16 %v3107, %v3099
  %v3460 = vpack.c.b16 %v3108, %v3100
  %v3461 = vpack.c.b16 %v3109, %v3101
  %v3462 = vpack.c.b16 %v3110, %v3102
  %v3463 = vpack.c.b16 %v3119, %v3111
  %v3464 = vpack.c.b16 %v3120, %v3112
  %v3465 = vpack.c.b16 %v3121, %v3113
  %v3466 = vpack.c.b16 %v3122, %v3114
  %v3467 = vpack.c.b16 %v3123, %v3115
  %v3468 = vpack.c.b16 %v3124, %v3116
  %v3469 = vpack.c.b16 %v3125, %v3117
  %v3470 = vpack.c.b16 %v3126, %v3118
  %v3471 = vpack.c.b16 %v3135, %v3127
  %v3472 = vpack.c.b16 %v3136, %v3128
  %v3473 = vpack.c.b16 %v3137, %v3129
  %v3474 = vpack.c.b16 %v3138, %v3130
  %v3475 = vpack.c.b16 %v3139, %v3131
  %v3476 = vpack.c.b16 %v3140, %v3132
  %v3477 = vpack.c.b16 %v3141, %v3133
  %v3478 = vpack.c.b16 %v3142, %v3134
  %v3479 = vpack.c.b16 %v3151, %v3143
  %v3480 = vpack.c.b16 %v3152, %v3144
  %v3481 = vpack.c.b16 %v3153, %v3145
  %v3482 = vpack.c.b16 %v3154, %v3146
  %v3483 = vpack.c.b16 %v3155, %v3147
  %v3484 = vpack.c.b16 %v3156, %v3148
  %v3485 = vpack.c.b16 %v3157, %v3149
  %v3486 = vpack.c.b16 %v3158, %v3150
  %v3487 = vpack.c.b16 %v3167, %v3159
  %v3488 = vpack.c.b16 %v3168, %v3160
  %v3489 = vpack.c.b16 %v3169, %v3161
  %v3490 = vpack.c.b16 %v3170, %v3162
  %v3491 = vpack.c.b16 %v3171, %v3163
  %v3492 = vpack.c.b16 %v3172, %v3164
  %v3493 = vpack.c.b16 %v3173, %v3165
  %v3494 = vpack.c.b16 %v3174, %v3166
  %v3495 = vpack.c.b16 %v3183, %v3175
  %v3496 = vpack.c.b16 %v3184, %v3176
  %v3497 = vpack.c.b16 %v3185, %v3177
  %v3498 = vpack.c.b16 %v3186, %v3178
  %v3499 = vpack.c.b16 %v3187, %v3179
  %v3500 = vpack.c.b16 %v3188, %v3180
  %v3501 = vpack.c.b16 %v3189, %v3181
  %v3502 = vpack.c.b16 %v3190, %v3182
  %v3503 = vpack.c.b16 %v3199, %v3191
  %v3504 = vpack.c.b16 %v3200, %v3192
  %v3505 = vpack.c.b16 %v3201, %v3193
  %v3506 = vpack.c.b16 %v3202, %v3194
  %v3507 = vpack.c.b16 %v3203, %v3195
  %v3508 = vpack.c.b16 %v3204, %v3196
  %v3509 = vpack.c.b16 %v3205, %v3197
  %v3510 = vpack.c.b16 %v3206, %v3198
  %v3511 = vpack.c.b16 %v3215, %v3207
  %v3512 = vpack.c.b16 %v3216, %v3208
  %v3513 = vpack.c.b16 %v3217, %v3209
  %v3514 = vpack.c.b16 %v3218, %v3210
  %v3515 = vpack.c.b16 %v3219, %v3211
  %v3516 = vpack.c.b16 %v3220, %v3212
  %v3517 = vpack.c.b16 %v3221, %v3213
  %v3518 = vpack.c.b16 %v3222, %v3214
  %v3519 = vpack.c.b16 %v3231, %v3223
  %v3520 = vpack.c.b16 %v3232, %v3224
  %v3521 = vpack.c.b16 %v3233, %v3225
  %v3522 = vpack.c.b16 %v3234, %v3226
  %v3523 = vpack.c.b16 %v3235, %v3227
  %v3524 = vpack.c.b16 %v3236, %v3228
  %v3525 = vpack.c.b16 %v3237, %v3229
  %v3526 = vpack.c.b16 %v3238, %v3230
  %v3527 = vpack.c.b16 %v3247, %v3239
  %v3528 = vpack.c.b16 %v3248, %v3240
  %v3529 = vpack.c.b16 %v3249, %v3241
  %v3530 = vpack.c.b16 %v3250, %v3242
  %v3531 = vpack.c.b16 %v3251, %v3243
  %v3532 = vpack.c.b16 %v3252, %v3244
  %v3533 = vpack.c.b16 %v3253, %v3245
  %v3534 = vpack.c.b16 %v3254, %v3246
  %v3535 = vpack.c.b16 %v3263, %v3255
  %v3536 = vpack.c.b16 %v3264, %v3256
  %v3537 = vpack.c.b16 %v3265, %v3257
  %v3538 = vpack.c.b16 %v3266, %v3258
  %v3539 = vpack.c.b16 %v3267, %v3259
  %v3540 = vpack.c.b16 %v3268, %v3260
  %v3541 = vpack.c.b16 %v3269, %v3261
  %v3542 = vpack.c.b16 %v3270, %v3262
  %v3543 = vpack.c.b16 %v3279, %v3271
  %v3544 = vpack.c.b16 %v3280, %v3272
  %v3545 = vpack.c.b16 %v3281, %v3273
  %v3546 = vpack.c.b16 %v3282, %v3274
  %v3547 = vpack.c.b16 %v3283, %v3275
  %v3548 = vpack.c.b16 %v3284, %v3276
  %v3549 = vpack.c.b16 %v3285, %v3277
  %v3550 = vpack.c.b16 %v3286, %v3278
  %v3551 = vpack.c.b16 %v3295, %v3287
  %v3552 = vpack.c.b16 %v3296, %v3288
  %v3553 = vpack.c.b16 %v3297, %v3289
  %v3554 = vpack.c.b16 %v3298, %v3290
  %v3555 = vpack.c.b16 %v3299, %v3291
  %v3556 = vpack.c.b16 %v3300, %v3292
  %v3557 = vpack.c.b16 %v3301, %v3293
  %v3558 = vpack.c.b16 %v3302, %v3294
  %3815 = vmatprep.subr.bf16.mxu0 %v3304
  %3816 = vmatpush1.bf16.msra.mxu0 %v3303
  %3817 = vmatprep.subr.bf16.mxu0 %v3312
  %3818 = vmatpush1.bf16.msra.mxu0 %v3311
  %3819 = vmatprep.subr.bf16.mxu0 %v3320
  %3820 = vmatpush1.bf16.msra.mxu0 %v3319
  %3821 = vmatprep.subr.bf16.mxu0 %v3328
  %3822 = vmatpush1.bf16.msra.mxu0 %v3327
  %3823 = vmatprep.subr.bf16.mxu0 %v3336
  %3824 = vmatpush1.bf16.msra.mxu0 %v3335
  %3825 = vmatprep.subr.bf16.mxu0 %v3344
  %3826 = vmatpush1.bf16.msra.mxu0 %v3343
  %3827 = vmatprep.subr.bf16.mxu0 %v3352
  %3828 = vmatpush1.bf16.msra.mxu0 %v3351
  %3829 = vmatprep.subr.bf16.mxu0 %v3360
  %3830 = vmatpush1.bf16.msra.mxu0 %v3359
  %3831 = vmatprep.subr.bf16.mxu0 %v3368
  %3832 = vmatpush1.bf16.msra.mxu0 %v3367
  %3833 = vmatprep.subr.bf16.mxu0 %v3376
  %3834 = vmatpush1.bf16.msra.mxu0 %v3375
  %3835 = vmatprep.subr.bf16.mxu0 %v3384
  %3836 = vmatpush1.bf16.msra.mxu0 %v3383
  %3837 = vmatprep.subr.bf16.mxu0 %v3392
  %3838 = vmatpush1.bf16.msra.mxu0 %v3391
  %3839 = vmatprep.subr.bf16.mxu0 %v3400
  %3840 = vmatpush1.bf16.msra.mxu0 %v3399
  %3841 = vmatprep.subr.bf16.mxu0 %v3408
  %3842 = vmatpush1.bf16.msra.mxu0 %v3407
  %3843 = vmatprep.subr.bf16.mxu0 %v3416
  %3844 = vmatpush1.bf16.msra.mxu0 %v3415
  %3845 = vmatprep.subr.bf16.mxu0 %v3424
  %3846 = vmatpush1.bf16.msra.mxu0 %v3423
  %3847 = vmatprep.mubr.bf16.mxu0 %v2038
  %3848 = vmatmul.mubr.bf16.gmra.mrb[0].mxu0 %v2037
  %v3849 = vpop.f32.mrb[0].mxu0
  %v3850 = vadd.f32 %v2406, %v3849
  %v3851 = vpop.f32.mrb[0].mxu0
  %v3852 = vadd.f32 %v2408, %v3851
  %v3853 = vpop.f32.mrb[0].mxu0
  %v3854 = vpop.f32.mrb[0].mxu0
  %3855 = vdwg.mxu0
  %3856 = vmatprep.subr.bf16.mxu0 %v3432
  %3857 = vmatpush1.bf16.msra.mxu0 %v3431
  %3858 = vmatprep.subr.bf16.mxu0 %v3440
  %3859 = vmatpush1.bf16.msra.mxu0 %v3439
  %3860 = vmatprep.subr.bf16.mxu0 %v3448
  %3861 = vmatpush1.bf16.msra.mxu0 %v3447
  %3862 = vmatprep.subr.bf16.mxu0 %v3456
  %3863 = vmatpush1.bf16.msra.mxu0 %v3455
  %3864 = vmatprep.subr.bf16.mxu0 %v3464
  %3865 = vmatpush1.bf16.msra.mxu0 %v3463
  %3866 = vmatprep.subr.bf16.mxu0 %v3472
  %3867 = vmatpush1.bf16.msra.mxu0 %v3471
  %3868 = vmatprep.subr.bf16.mxu0 %v3480
  %3869 = vmatpush1.bf16.msra.mxu0 %v3479
  %3870 = vmatprep.subr.bf16.mxu0 %v3488
  %3871 = vmatpush1.bf16.msra.mxu0 %v3487
  %3872 = vmatprep.subr.bf16.mxu0 %v3496
  %3873 = vmatpush1.bf16.msra.mxu0 %v3495
  %3874 = vmatprep.subr.bf16.mxu0 %v3504
  %3875 = vmatpush1.bf16.msra.mxu0 %v3503
  %3876 = vmatprep.subr.bf16.mxu0 %v3512
  %3877 = vmatpush1.bf16.msra.mxu0 %v3511
  %3878 = vmatprep.subr.bf16.mxu0 %v3520
  %3879 = vmatpush1.bf16.msra.mxu0 %v3519
  %3880 = vmatprep.subr.bf16.mxu0 %v3528
  %3881 = vmatpush1.bf16.msra.mxu0 %v3527
  %3882 = vmatprep.subr.bf16.mxu0 %v3536
  %3883 = vmatpush1.bf16.msra.mxu0 %v3535
  %3884 = vmatprep.subr.bf16.mxu0 %v3544
  %3885 = vmatpush1.bf16.msra.mxu0 %v3543
  %3886 = vmatprep.subr.bf16.mxu0 %v3552
  %3887 = vmatpush1.bf16.msra.mxu0 %v3551
  %3888 = vmatprep.mubr.bf16.mxu0 %v2040
  %3889 = vmatmul.mubr.bf16.gmra.mrb[0].mxu0 %v2039
  %v3890 = vpop.f32.mrb[0].mxu0
  %v3891 = vadd.f32 %v3850, %v3890
  %v3892 = vpop.f32.mrb[0].mxu0
  %v3893 = vadd.f32 %v3852, %v3892
  %v3894 = vpop.f32.mrb[0].mxu0
  %v3895 = vpop.f32.mrb[0].mxu0
  %3896 = vdwg.mxu0
  %3897 = vmatprep.subr.bf16.mxu0 %v3306
  %3898 = vmatpush1.bf16.msra.mxu0 %v3305
  %3899 = vmatprep.subr.bf16.mxu0 %v3314
  %3900 = vmatpush1.bf16.msra.mxu0 %v3313
  %3901 = vmatprep.subr.bf16.mxu0 %v3322
  %3902 = vmatpush1.bf16.msra.mxu0 %v3321
  %3903 = vmatprep.subr.bf16.mxu0 %v3330
  %3904 = vmatpush1.bf16.msra.mxu0 %v3329
  %3905 = vmatprep.subr.bf16.mxu0 %v3338
  %3906 = vmatpush1.bf16.msra.mxu0 %v3337
  %3907 = vmatprep.subr.bf16.mxu0 %v3346
  %3908 = vmatpush1.bf16.msra.mxu0 %v3345
  %3909 = vmatprep.subr.bf16.mxu0 %v3354
  %3910 = vmatpush1.bf16.msra.mxu0 %v3353
  %3911 = vmatprep.subr.bf16.mxu0 %v3362
  %3912 = vmatpush1.bf16.msra.mxu0 %v3361
  %3913 = vmatprep.subr.bf16.mxu0 %v3370
  %3914 = vmatpush1.bf16.msra.mxu0 %v3369
  %3915 = vmatprep.subr.bf16.mxu0 %v3378
  %3916 = vmatpush1.bf16.msra.mxu0 %v3377
  %3917 = vmatprep.subr.bf16.mxu0 %v3386
  %3918 = vmatpush1.bf16.msra.mxu0 %v3385
  %3919 = vmatprep.subr.bf16.mxu0 %v3394
  %3920 = vmatpush1.bf16.msra.mxu0 %v3393
  %3921 = vmatprep.subr.bf16.mxu0 %v3402
  %3922 = vmatpush1.bf16.msra.mxu0 %v3401
  %3923 = vmatprep.subr.bf16.mxu0 %v3410
  %3924 = vmatpush1.bf16.msra.mxu0 %v3409
  %3925 = vmatprep.subr.bf16.mxu0 %v3418
  %3926 = vmatpush1.bf16.msra.mxu0 %v3417
  %3927 = vmatprep.subr.bf16.mxu0 %v3426
  %3928 = vmatpush1.bf16.msra.mxu0 %v3425
  %3929 = vmatprep.mubr.bf16.mxu0 %v2038
  %3930 = vmatmul.mubr.bf16.gmra.mrb[0].mxu0 %v2037
  %v3931 = vpop.f32.mrb[0].mxu0
  %v3932 = vadd.f32 %v2447, %v3931
  %v3933 = vpop.f32.mrb[0].mxu0
  %v3934 = vadd.f32 %v2449, %v3933
  %v3935 = vpop.f32.mrb[0].mxu0
  %v3936 = vpop.f32.mrb[0].mxu0
  %3937 = vdwg.mxu0
  %3938 = vmatprep.subr.bf16.mxu0 %v3434
  %3939 = vmatpush1.bf16.msra.mxu0 %v3433
  %3940 = vmatprep.subr.bf16.mxu0 %v3442
  %3941 = vmatpush1.bf16.msra.mxu0 %v3441
  %3942 = vmatprep.subr.bf16.mxu0 %v3450
  %3943 = vmatpush1.bf16.msra.mxu0 %v3449
  %3944 = vmatprep.subr.bf16.mxu0 %v3458
  %3945 = vmatpush1.bf16.msra.mxu0 %v3457
  %3946 = vmatprep.subr.bf16.mxu0 %v3466
  %3947 = vmatpush1.bf16.msra.mxu0 %v3465
  %3948 = vmatprep.subr.bf16.mxu0 %v3474
  %3949 = vmatpush1.bf16.msra.mxu0 %v3473
  %3950 = vmatprep.subr.bf16.mxu0 %v3482
  %3951 = vmatpush1.bf16.msra.mxu0 %v3481
  %3952 = vmatprep.subr.bf16.mxu0 %v3490
  %3953 = vmatpush1.bf16.msra.mxu0 %v3489
  %3954 = vmatprep.subr.bf16.mxu0 %v3498
  %3955 = vmatpush1.bf16.msra.mxu0 %v3497
  %3956 = vmatprep.subr.bf16.mxu0 %v3506
  %3957 = vmatpush1.bf16.msra.mxu0 %v3505
  %3958 = vmatprep.subr.bf16.mxu0 %v3514
  %3959 = vmatpush1.bf16.msra.mxu0 %v3513
  %3960 = vmatprep.subr.bf16.mxu0 %v3522
  %3961 = vmatpush1.bf16.msra.mxu0 %v3521
  %3962 = vmatprep.subr.bf16.mxu0 %v3530
  %3963 = vmatpush1.bf16.msra.mxu0 %v3529
  %3964 = vmatprep.subr.bf16.mxu0 %v3538
  %3965 = vmatpush1.bf16.msra.mxu0 %v3537
  %3966 = vmatprep.subr.bf16.mxu0 %v3546
  %3967 = vmatpush1.bf16.msra.mxu0 %v3545
  %3968 = vmatprep.subr.bf16.mxu0 %v3554
  %3969 = vmatpush1.bf16.msra.mxu0 %v3553
  %3970 = vmatprep.mubr.bf16.mxu0 %v2040
  %3971 = vmatmul.mubr.bf16.gmra.mrb[0].mxu0 %v2039
  %v3972 = vpop.f32.mrb[0].mxu0
  %v3973 = vadd.f32 %v3932, %v3972
  %v3974 = vpop.f32.mrb[0].mxu0
  %v3975 = vadd.f32 %v3934, %v3974
  %v3976 = vpop.f32.mrb[0].mxu0
  %v3977 = vpop.f32.mrb[0].mxu0
  %3978 = vdwg.mxu0
  %3979 = vmatprep.subr.bf16.mxu0 %v3308
  %3980 = vmatpush1.bf16.msra.mxu0 %v3307
  %3981 = vmatprep.subr.bf16.mxu0 %v3316
  %3982 = vmatpush1.bf16.msra.mxu0 %v3315
  %3983 = vmatprep.subr.bf16.mxu0 %v3324
  %3984 = vmatpush1.bf16.msra.mxu0 %v3323
  %3985 = vmatprep.subr.bf16.mxu0 %v3332
  %3986 = vmatpush1.bf16.msra.mxu0 %v3331
  %3987 = vmatprep.subr.bf16.mxu0 %v3340
  %3988 = vmatpush1.bf16.msra.mxu0 %v3339
  %3989 = vmatprep.subr.bf16.mxu0 %v3348
  %3990 = vmatpush1.bf16.msra.mxu0 %v3347
  %3991 = vmatprep.subr.bf16.mxu0 %v3356
  %3992 = vmatpush1.bf16.msra.mxu0 %v3355
  %3993 = vmatprep.subr.bf16.mxu0 %v3364
  %3994 = vmatpush1.bf16.msra.mxu0 %v3363
  %3995 = vmatprep.subr.bf16.mxu0 %v3372
  %3996 = vmatpush1.bf16.msra.mxu0 %v3371
  %3997 = vmatprep.subr.bf16.mxu0 %v3380
  %3998 = vmatpush1.bf16.msra.mxu0 %v3379
  %3999 = vmatprep.subr.bf16.mxu0 %v3388
  %4000 = vmatpush1.bf16.msra.mxu0 %v3387
  %4001 = vmatprep.subr.bf16.mxu0 %v3396
  %4002 = vmatpush1.bf16.msra.mxu0 %v3395
  %4003 = vmatprep.subr.bf16.mxu0 %v3404
  %4004 = vmatpush1.bf16.msra.mxu0 %v3403
  %4005 = vmatprep.subr.bf16.mxu0 %v3412
  %4006 = vmatpush1.bf16.msra.mxu0 %v3411
  %4007 = vmatprep.subr.bf16.mxu0 %v3420
  %4008 = vmatpush1.bf16.msra.mxu0 %v3419
  %4009 = vmatprep.subr.bf16.mxu0 %v3428
  %4010 = vmatpush1.bf16.msra.mxu0 %v3427
  %4011 = vmatprep.mubr.bf16.mxu0 %v2038
  %4012 = vmatmul.mubr.bf16.gmra.mrb[0].mxu0 %v2037
  %v4013 = vpop.f32.mrb[0].mxu0
  %v4014 = vadd.f32 %v2488, %v4013
  %v4015 = vpop.f32.mrb[0].mxu0
  %v4016 = vadd.f32 %v2490, %v4015
  %v4017 = vpop.f32.mrb[0].mxu0
  %v4018 = vpop.f32.mrb[0].mxu0
  %4019 = vdwg.mxu0
  %4020 = vmatprep.subr.bf16.mxu0 %v3436
  %4021 = vmatpush1.bf16.msra.mxu0 %v3435
  %4022 = vmatprep.subr.bf16.mxu0 %v3444
  %4023 = vmatpush1.bf16.msra.mxu0 %v3443
  %4024 = vmatprep.subr.bf16.mxu0 %v3452
  %4025 = vmatpush1.bf16.msra.mxu0 %v3451
  %4026 = vmatprep.subr.bf16.mxu0 %v3460
  %4027 = vmatpush1.bf16.msra.mxu0 %v3459
  %4028 = vmatprep.subr.bf16.mxu0 %v3468
  %4029 = vmatpush1.bf16.msra.mxu0 %v3467
  %4030 = vmatprep.subr.bf16.mxu0 %v3476
  %4031 = vmatpush1.bf16.msra.mxu0 %v3475
  %4032 = vmatprep.subr.bf16.mxu0 %v3484
  %4033 = vmatpush1.bf16.msra.mxu0 %v3483
  %4034 = vmatprep.subr.bf16.mxu0 %v3492
  %4035 = vmatpush1.bf16.msra.mxu0 %v3491
  %4036 = vmatprep.subr.bf16.mxu0 %v3500
  %4037 = vmatpush1.bf16.msra.mxu0 %v3499
  %4038 = vmatprep.subr.bf16.mxu0 %v3508
  %4039 = vmatpush1.bf16.msra.mxu0 %v3507
  %4040 = vmatprep.subr.bf16.mxu0 %v3516
  %4041 = vmatpush1.bf16.msra.mxu0 %v3515
  %4042 = vmatprep.subr.bf16.mxu0 %v3524
  %4043 = vmatpush1.bf16.msra.mxu0 %v3523
  %4044 = vmatprep.subr.bf16.mxu0 %v3532
  %4045 = vmatpush1.bf16.msra.mxu0 %v3531
  %4046 = vmatprep.subr.bf16.mxu0 %v3540
  %4047 = vmatpush1.bf16.msra.mxu0 %v3539
  %4048 = vmatprep.subr.bf16.mxu0 %v3548
  %4049 = vmatpush1.bf16.msra.mxu0 %v3547
  %4050 = vmatprep.subr.bf16.mxu0 %v3556
  %4051 = vmatpush1.bf16.msra.mxu0 %v3555
  %4052 = vmatprep.mubr.bf16.mxu0 %v2040
  %4053 = vmatmul.mubr.bf16.gmra.mrb[0].mxu0 %v2039
  %v4054 = vpop.f32.mrb[0].mxu0
  %v4055 = vadd.f32 %v4014, %v4054
  %v4056 = vpop.f32.mrb[0].mxu0
  %v4057 = vadd.f32 %v4016, %v4056
  %v4058 = vpop.f32.mrb[0].mxu0
  %v4059 = vpop.f32.mrb[0].mxu0
  %4060 = vdwg.mxu0
  %4061 = vmatprep.subr.bf16.mxu0 %v3310
  %4062 = vmatpush1.bf16.msra.mxu0 %v3309
  %4063 = vmatprep.subr.bf16.mxu0 %v3318
  %4064 = vmatpush1.bf16.msra.mxu0 %v3317
  %4065 = vmatprep.subr.bf16.mxu0 %v3326
  %4066 = vmatpush1.bf16.msra.mxu0 %v3325
  %4067 = vmatprep.subr.bf16.mxu0 %v3334
  %4068 = vmatpush1.bf16.msra.mxu0 %v3333
  %4069 = vmatprep.subr.bf16.mxu0 %v3342
  %4070 = vmatpush1.bf16.msra.mxu0 %v3341
  %4071 = vmatprep.subr.bf16.mxu0 %v3350
  %4072 = vmatpush1.bf16.msra.mxu0 %v3349
  %4073 = vmatprep.subr.bf16.mxu0 %v3358
  %4074 = vmatpush1.bf16.msra.mxu0 %v3357
  %4075 = vmatprep.subr.bf16.mxu0 %v3366
  %4076 = vmatpush1.bf16.msra.mxu0 %v3365
  %4077 = vmatprep.subr.bf16.mxu0 %v3374
  %4078 = vmatpush1.bf16.msra.mxu0 %v3373
  %4079 = vmatprep.subr.bf16.mxu0 %v3382
  %4080 = vmatpush1.bf16.msra.mxu0 %v3381
  %4081 = vmatprep.subr.bf16.mxu0 %v3390
  %4082 = vmatpush1.bf16.msra.mxu0 %v3389
  %4083 = vmatprep.subr.bf16.mxu0 %v3398
  %4084 = vmatpush1.bf16.msra.mxu0 %v3397
  %4085 = vmatprep.subr.bf16.mxu0 %v3406
  %4086 = vmatpush1.bf16.msra.mxu0 %v3405
  %4087 = vmatprep.subr.bf16.mxu0 %v3414
  %4088 = vmatpush1.bf16.msra.mxu0 %v3413
  %4089 = vmatprep.subr.bf16.mxu0 %v3422
  %4090 = vmatpush1.bf16.msra.mxu0 %v3421
  %4091 = vmatprep.subr.bf16.mxu0 %v3430
  %4092 = vmatpush1.bf16.msra.mxu0 %v3429
  %4093 = vmatprep.mubr.bf16.mxu0 %v2038
  %4094 = vmatmul.mubr.bf16.gmra.mrb[0].mxu0 %v2037
  %v4095 = vpop.f32.mrb[0].mxu0
  %v4096 = vadd.f32 %v2529, %v4095
  %v4097 = vpop.f32.mrb[0].mxu0
  %v4098 = vadd.f32 %v2531, %v4097
  %v4099 = vpop.f32.mrb[0].mxu0
  %v4100 = vpop.f32.mrb[0].mxu0
  %4101 = vdwg.mxu0
  %4102 = vmatprep.subr.bf16.mxu0 %v3438
  %4103 = vmatpush1.bf16.msra.mxu0 %v3437
  %4104 = vmatprep.subr.bf16.mxu0 %v3446
  %4105 = vmatpush1.bf16.msra.mxu0 %v3445
  %4106 = vmatprep.subr.bf16.mxu0 %v3454
  %4107 = vmatpush1.bf16.msra.mxu0 %v3453
  %4108 = vmatprep.subr.bf16.mxu0 %v3462
  %4109 = vmatpush1.bf16.msra.mxu0 %v3461
  %4110 = vmatprep.subr.bf16.mxu0 %v3470
  %4111 = vmatpush1.bf16.msra.mxu0 %v3469
  %4112 = vmatprep.subr.bf16.mxu0 %v3478
  %4113 = vmatpush1.bf16.msra.mxu0 %v3477
  %4114 = vmatprep.subr.bf16.mxu0 %v3486
  %4115 = vmatpush1.bf16.msra.mxu0 %v3485
  %4116 = vmatprep.subr.bf16.mxu0 %v3494
  %4117 = vmatpush1.bf16.msra.mxu0 %v3493
  %4118 = vmatprep.subr.bf16.mxu0 %v3502
  %4119 = vmatpush1.bf16.msra.mxu0 %v3501
  %4120 = vmatprep.subr.bf16.mxu0 %v3510
  %4121 = vmatpush1.bf16.msra.mxu0 %v3509
  %4122 = vmatprep.subr.bf16.mxu0 %v3518
  %4123 = vmatpush1.bf16.msra.mxu0 %v3517
  %4124 = vmatprep.subr.bf16.mxu0 %v3526
  %4125 = vmatpush1.bf16.msra.mxu0 %v3525
  %4126 = vmatprep.subr.bf16.mxu0 %v3534
  %4127 = vmatpush1.bf16.msra.mxu0 %v3533
  %4128 = vmatprep.subr.bf16.mxu0 %v3542
  %4129 = vmatpush1.bf16.msra.mxu0 %v3541
  %4130 = vmatprep.subr.bf16.mxu0 %v3550
  %4131 = vmatpush1.bf16.msra.mxu0 %v3549
  %4132 = vmatprep.subr.bf16.mxu0 %v3558
  %4133 = vmatpush1.bf16.msra.mxu0 %v3557
  %4134 = vmatprep.mubr.bf16.mxu0 %v2040
  %4135 = vmatmul.mubr.bf16.gmra.mrb[0].mxu0 %v2039
  %v4136 = vpop.f32.mrb[0].mxu0
  %v4137 = vadd.f32 %v4096, %v4136
  %v4138 = vpop.f32.mrb[0].mxu0
  %v4139 = vadd.f32 %v4098, %v4138
  %v4140 = vpop.f32.mrb[0].mxu0
  %v4141 = vpop.f32.mrb[0].mxu0
  %4142 = vdwg.mxu0
  %v4143 = vld [vmem:[%s8] sm:$0xff]
  %v4145 = vlaneseq
  %v4146 = vshrl.u32 %v4145, 7
  %v4147 = vsub.s32 0, %v4146
  %v4148 = vrot.slane %v4143, %v4147
  %v4149 = vlaneseq
  %v4150 = vshrl.u32 %v4149, 7
  %v4151 = vsub.s32 1, %v4150
  %v4152 = vrot.slane %v4143, %v4151
  %v4153 = vlaneseq
  %v4154 = vshrl.u32 %v4153, 7
  %v4155 = vsub.s32 2, %v4154
  %v4156 = vrot.slane %v4143, %v4155
  %v4157 = vlaneseq
  %v4158 = vshrl.u32 %v4157, 7
  %v4159 = vsub.s32 3, %v4158
  %v4160 = vrot.slane %v4143, %v4159
  %v4161 = vlaneseq
  %v4162 = vshrl.u32 %v4161, 7
  %v4163 = vsub.s32 4, %v4162
  %v4164 = vrot.slane %v4143, %v4163
  %v4165 = vlaneseq
  %v4166 = vshrl.u32 %v4165, 7
  %v4167 = vsub.s32 5, %v4166
  %v4168 = vrot.slane %v4143, %v4167
  %v4169 = vlaneseq
  %v4170 = vshrl.u32 %v4169, 7
  %v4171 = vsub.s32 6, %v4170
  %v4172 = vrot.slane %v4143, %v4171
  %v4173 = vlaneseq
  %v4174 = vshrl.u32 %v4173, 7
  %v4175 = vsub.s32 7, %v4174
  %v4176 = vrot.slane %v4143, %v4175
  %v4185 = vadd.f32 %v3891, %v4148
  %v4186 = vadd.f32 %v3893, %v4152
  %v4187 = vadd.f32 %v3973, %v4156
  %v4188 = vadd.f32 %v3975, %v4160
  %v4189 = vadd.f32 %v4055, %v4164
  %v4190 = vadd.f32 %v4057, %v4168
  %v4191 = vadd.f32 %v4137, %v4172
  %v4192 = vadd.f32 %v4139, %v4176
  %v4193 = vxor.u32 %v4185, 2147483648
  %v4194 = vxor.u32 %v4186, 2147483648
  %v4195 = vmul.f32 %v4193, 1.442695
  %v4196 = vpow.pop %v4195
  %v4197 = vmul.f32 %v4194, 1.442695
  %v4198 = vpow.pop %v4197
  %v4199 = vadd.f32 %v4196, 1.0
  %v4200 = vadd.f32 %v4198, 1.0
  %v4201 = vrcp.pop %v4199
  %v4202 = vmul.f32 1.0, %v4201
  %v4203 = vrcp.pop %v4200
  %v4204 = vmul.f32 1.0, %v4203
  %v4205 = vxor.u32 %v4187, 2147483648
  %v4206 = vxor.u32 %v4188, 2147483648
  %v4207 = vmul.f32 %v4205, 1.442695
  %v4208 = vpow.pop %v4207
  %v4209 = vmul.f32 %v4206, 1.442695
  %v4210 = vpow.pop %v4209
  %v4211 = vadd.f32 %v4208, 1.0
  %v4212 = vadd.f32 %v4210, 1.0
  %v4213 = vrcp.pop %v4211
  %v4214 = vmul.f32 1.0, %v4213
  %v4215 = vrcp.pop %v4212
  %v4216 = vmul.f32 1.0, %v4215
  %v4217 = vtanh.pop %v4189
  %v4218 = vtanh.pop %v4190
  %v4219 = vxor.u32 %v4191, 2147483648
  %v4220 = vxor.u32 %v4192, 2147483648
  %v4221 = vmul.f32 %v4219, 1.442695
  %v4222 = vpow.pop %v4221
  %v4223 = vmul.f32 %v4220, 1.442695
  %v4224 = vpow.pop %v4223
  %v4225 = vadd.f32 %v4222, 1.0
  %v4226 = vadd.f32 %v4224, 1.0
  %v4227 = vrcp.pop %v4225
  %v4228 = vmul.f32 1.0, %v4227
  %v4229 = vrcp.pop %v4226
  %v4230 = vmul.f32 1.0, %v4229
  %v4231 = vld [vmem:[%s3] sm:$0xf]
  %v4234 = vunpack.c.l.s4 1983009808
  %v4235 = vunpack.c.0.s8 %v4234
  %v4236 = vlaneseq
  %v4237 = vshrl.u32 %v4236, 7
  %v4238 = vsub.s32 %v4235, %v4237
  %v4239 = vrot.slane %v4231, %v4238
  %v4240 = vcombine.high %v4239, %v4239
  %v4243 = vmul.f32 %v4214, %v4239
  %v4244 = vmul.f32 %v4216, %v4240
  %v4245 = vmul.f32 %v4202, %v4217
  %v4246 = vmul.f32 %v4204, %v4218
  %v4247 = vadd.f32 %v4243, %v4245
  %v4248 = vadd.f32 %v4244, %v4246
  %v4249 = vtanh.pop %v4247
  %v4250 = vtanh.pop %v4248
  %v4251 = vmul.f32 %v4228, %v4249
  %v4252 = vmul.f32 %v4230, %v4250
  %v4253 = vpack.c.bf16 %v4251, %v4251
  %v4254 = vpack.c.bf16 %v4252, %v4252
  %v4255 = vld [vmem:[%s9] sm:$0xff]
  %v4256 = vld [vmem:[%s9 + $0x8] sm:$0xff]
  %v4257 = vld [vmem:[%s9 + $0x10] sm:$0xff]
  %v4258 = vld [vmem:[%s9 + $0x18] sm:$0xff]
  %v4259 = vld [vmem:[%s9 + $0x20] sm:$0xff]
  %v4260 = vld [vmem:[%s9 + $0x28] sm:$0xff]
  %v4261 = vld [vmem:[%s9 + $0x30] sm:$0xf]
  %v4262 = vld [vmem:[%s9 + $0x34] sm:$0xff]
  %v4263 = vld [vmem:[%s9 + $0x3c] sm:$0xff]
  %v4264 = vld [vmem:[%s9 + $0x44] sm:$0xff]
  %v4265 = vld [vmem:[%s9 + $0x4c] sm:$0xff]
  %v4266 = vld [vmem:[%s9 + $0x54] sm:$0xff]
  %v4267 = vld [vmem:[%s9 + $0x5c] sm:$0xff]
  %v4268 = vld [vmem:[%s9 + $0x64] sm:$0xf]
  %v4269 = vld [vmem:[%s9 + $0x68] sm:$0xff]
  %v4270 = vld [vmem:[%s9 + $0x70] sm:$0xff]
  %v4271 = vld [vmem:[%s9 + $0x78] sm:$0xff]
  %v4272 = vld [vmem:[%s9 + $0x80] sm:$0xff]
  %v4273 = vld [vmem:[%s9 + $0x88] sm:$0xff]
  %v4274 = vld [vmem:[%s9 + $0x90] sm:$0xff]
  %v4275 = vld [vmem:[%s9 + $0x98] sm:$0xf]
  %v4276 = vld [vmem:[%s9 + $0x9c] sm:$0xff]
  %v4277 = vld [vmem:[%s9 + $0xa4] sm:$0xff]
  %v4278 = vld [vmem:[%s9 + $0xac] sm:$0xff]
  %v4279 = vld [vmem:[%s9 + $0xb4] sm:$0xff]
  %v4280 = vld [vmem:[%s9 + $0xbc] sm:$0xff]
  %v4281 = vld [vmem:[%s9 + $0xc4] sm:$0xff]
  %v4282 = vld [vmem:[%s9 + $0xcc] sm:$0xf]
  %v4283 = vld [vmem:[%s9 + $0xd0] sm:$0xff]
  %v4284 = vld [vmem:[%s9 + $0xd8] sm:$0xff]
  %v4285 = vld [vmem:[%s9 + $0xe0] sm:$0xff]
  %v4286 = vld [vmem:[%s9 + $0xe8] sm:$0xff]
  %v4287 = vld [vmem:[%s9 + $0xf0] sm:$0xff]
  %v4288 = vld [vmem:[%s9 + $0xf8] sm:$0xff]
  %v4289 = vld [vmem:[%s9 + $0x100] sm:$0xf]
  %v4290 = vld [vmem:[%s9 + $0x104] sm:$0xff]
  %v4291 = vld [vmem:[%s9 + $0x10c] sm:$0xff]
  %v4292 = vld [vmem:[%s9 + $0x114] sm:$0xff]
  %v4293 = vld [vmem:[%s9 + $0x11c] sm:$0xff]
  %v4294 = vld [vmem:[%s9 + $0x124] sm:$0xff]
  %v4295 = vld [vmem:[%s9 + $0x12c] sm:$0xff]
  %v4296 = vld [vmem:[%s9 + $0x134] sm:$0xf]
  %v4297 = vld [vmem:[%s9 + $0x138] sm:$0xff]
  %v4298 = vld [vmem:[%s9 + $0x140] sm:$0xff]
  %v4299 = vld [vmem:[%s9 + $0x148] sm:$0xff]
  %v4300 = vld [vmem:[%s9 + $0x150] sm:$0xff]
  %v4301 = vld [vmem:[%s9 + $0x158] sm:$0xff]
  %v4302 = vld [vmem:[%s9 + $0x160] sm:$0xff]
  %v4303 = vld [vmem:[%s9 + $0x168] sm:$0xf]
  %v4304 = vld [vmem:[%s9 + $0x16c] sm:$0xff]
  %v4305 = vld [vmem:[%s9 + $0x174] sm:$0xff]
  %v4306 = vld [vmem:[%s9 + $0x17c] sm:$0xff]
  %v4307 = vld [vmem:[%s9 + $0x184] sm:$0xff]
  %v4308 = vld [vmem:[%s9 + $0x18c] sm:$0xff]
  %v4309 = vld [vmem:[%s9 + $0x194] sm:$0xff]
  %v4310 = vld [vmem:[%s9 + $0x19c] sm:$0xf]
  %v4311 = vld [vmem:[%s9 + $0x1a0] sm:$0xff]
  %v4312 = vld [vmem:[%s9 + $0x1a8] sm:$0xff]
  %v4313 = vld [vmem:[%s9 + $0x1b0] sm:$0xff]
  %v4314 = vld [vmem:[%s9 + $0x1b8] sm:$0xff]
  %v4315 = vld [vmem:[%s9 + $0x1c0] sm:$0xff]
  %v4316 = vld [vmem:[%s9 + $0x1c8] sm:$0xff]
  %v4317 = vld [vmem:[%s9 + $0x1d0] sm:$0xf]
  %v4318 = vld [vmem:[%s9 + $0x1d4] sm:$0xff]
  %v4319 = vld [vmem:[%s9 + $0x1dc] sm:$0xff]
  %v4320 = vld [vmem:[%s9 + $0x1e4] sm:$0xff]
  %v4321 = vld [vmem:[%s9 + $0x1ec] sm:$0xff]
  %v4322 = vld [vmem:[%s9 + $0x1f4] sm:$0xff]
  %v4323 = vld [vmem:[%s9 + $0x1fc] sm:$0xff]
  %v4324 = vld [vmem:[%s9 + $0x204] sm:$0xf]
  %v4325 = vld [vmem:[%s9 + $0x208] sm:$0xff]
  %v4326 = vld [vmem:[%s9 + $0x210] sm:$0xff]
  %v4327 = vld [vmem:[%s9 + $0x218] sm:$0xff]
  %v4328 = vld [vmem:[%s9 + $0x220] sm:$0xff]
  %v4329 = vld [vmem:[%s9 + $0x228] sm:$0xff]
  %v4330 = vld [vmem:[%s9 + $0x230] sm:$0xff]
  %v4331 = vld [vmem:[%s9 + $0x238] sm:$0xf]
  %v4332 = vld [vmem:[%s9 + $0x23c] sm:$0xff]
  %v4333 = vld [vmem:[%s9 + $0x244] sm:$0xff]
  %v4334 = vld [vmem:[%s9 + $0x24c] sm:$0xff]
  %v4335 = vld [vmem:[%s9 + $0x254] sm:$0xff]
  %v4336 = vld [vmem:[%s9 + $0x25c] sm:$0xff]
  %v4337 = vld [vmem:[%s9 + $0x264] sm:$0xff]
  %v4338 = vld [vmem:[%s9 + $0x26c] sm:$0xf]
  %v4339 = vld [vmem:[%s9 + $0x270] sm:$0xff]
  %v4340 = vld [vmem:[%s9 + $0x278] sm:$0xff]
  %v4341 = vld [vmem:[%s9 + $0x280] sm:$0xff]
  %v4342 = vld [vmem:[%s9 + $0x288] sm:$0xff]
  %v4343 = vld [vmem:[%s9 + $0x290] sm:$0xff]
  %v4344 = vld [vmem:[%s9 + $0x298] sm:$0xff]
  %v4345 = vld [vmem:[%s9 + $0x2a0] sm:$0xf]
  %v4346 = vld [vmem:[%s9 + $0x2a4] sm:$0xff]
  %v4347 = vld [vmem:[%s9 + $0x2ac] sm:$0xff]
  %v4348 = vld [vmem:[%s9 + $0x2b4] sm:$0xff]
  %v4349 = vld [vmem:[%s9 + $0x2bc] sm:$0xff]
  %v4350 = vld [vmem:[%s9 + $0x2c4] sm:$0xff]
  %v4351 = vld [vmem:[%s9 + $0x2cc] sm:$0xff]
  %v4352 = vld [vmem:[%s9 + $0x2d4] sm:$0xf]
  %v4353 = vld [vmem:[%s9 + $0x2d8] sm:$0xff]
  %v4354 = vld [vmem:[%s9 + $0x2e0] sm:$0xff]
  %v4355 = vld [vmem:[%s9 + $0x2e8] sm:$0xff]
  %v4356 = vld [vmem:[%s9 + $0x2f0] sm:$0xff]
  %v4357 = vld [vmem:[%s9 + $0x2f8] sm:$0xff]
  %v4358 = vld [vmem:[%s9 + $0x300] sm:$0xff]
  %v4359 = vld [vmem:[%s9 + $0x308] sm:$0xf]
  %v4360 = vld [vmem:[%s9 + $0x30c] sm:$0xff]
  %v4361 = vld [vmem:[%s9 + $0x314] sm:$0xff]
  %v4362 = vld [vmem:[%s9 + $0x31c] sm:$0xff]
  %v4363 = vld [vmem:[%s9 + $0x324] sm:$0xff]
  %v4364 = vld [vmem:[%s9 + $0x32c] sm:$0xff]
  %v4365 = vld [vmem:[%s9 + $0x334] sm:$0xff]
  %v4366 = vld [vmem:[%s9 + $0x33c] sm:$0xf]
  %v4367 = vld [vmem:[%s9 + $0x340] sm:$0xff]
  %v4368 = vld [vmem:[%s9 + $0x348] sm:$0xff]
  %v4369 = vld [vmem:[%s9 + $0x350] sm:$0xff]
  %v4370 = vld [vmem:[%s9 + $0x358] sm:$0xff]
  %v4371 = vld [vmem:[%s9 + $0x360] sm:$0xff]
  %v4372 = vld [vmem:[%s9 + $0x368] sm:$0xff]
  %v4373 = vld [vmem:[%s9 + $0x370] sm:$0xf]
  %v4374 = vld [vmem:[%s9 + $0x374] sm:$0xff]
  %v4375 = vld [vmem:[%s9 + $0x37c] sm:$0xff]
  %v4376 = vld [vmem:[%s9 + $0x384] sm:$0xff]
  %v4377 = vld [vmem:[%s9 + $0x38c] sm:$0xff]
  %v4378 = vld [vmem:[%s9 + $0x394] sm:$0xff]
  %v4379 = vld [vmem:[%s9 + $0x39c] sm:$0xff]
  %v4380 = vld [vmem:[%s9 + $0x3a4] sm:$0xf]
  %v4381 = vld [vmem:[%s9 + $0x3a8] sm:$0xff]
  %v4382 = vld [vmem:[%s9 + $0x3b0] sm:$0xff]
  %v4383 = vld [vmem:[%s9 + $0x3b8] sm:$0xff]
  %v4384 = vld [vmem:[%s9 + $0x3c0] sm:$0xff]
  %v4385 = vld [vmem:[%s9 + $0x3c8] sm:$0xff]
  %v4386 = vld [vmem:[%s9 + $0x3d0] sm:$0xff]
  %v4387 = vld [vmem:[%s9 + $0x3d8] sm:$0xf]
  %v4388 = vld [vmem:[%s9 + $0x3dc] sm:$0xff]
  %v4389 = vld [vmem:[%s9 + $0x3e4] sm:$0xff]
  %v4390 = vld [vmem:[%s9 + $0x3ec] sm:$0xff]
  %v4391 = vld [vmem:[%s9 + $0x3f4] sm:$0xff]
  %v4392 = vld [vmem:[%s9 + $0x3fc] sm:$0xff]
  %v4393 = vld [vmem:[%s9 + $0x404] sm:$0xff]
  %v4394 = vld [vmem:[%s9 + $0x40c] sm:$0xf]
  %v4395 = vld [vmem:[%s9 + $0x410] sm:$0xff]
  %v4396 = vld [vmem:[%s9 + $0x418] sm:$0xff]
  %v4397 = vld [vmem:[%s9 + $0x420] sm:$0xff]
  %v4398 = vld [vmem:[%s9 + $0x428] sm:$0xff]
  %v4399 = vld [vmem:[%s9 + $0x430] sm:$0xff]
  %v4400 = vld [vmem:[%s9 + $0x438] sm:$0xff]
  %v4401 = vld [vmem:[%s9 + $0x440] sm:$0xf]
  %v4402 = vld [vmem:[%s9 + $0x444] sm:$0xff]
  %v4403 = vld [vmem:[%s9 + $0x44c] sm:$0xff]
  %v4404 = vld [vmem:[%s9 + $0x454] sm:$0xff]
  %v4405 = vld [vmem:[%s9 + $0x45c] sm:$0xff]
  %v4406 = vld [vmem:[%s9 + $0x464] sm:$0xff]
  %v4407 = vld [vmem:[%s9 + $0x46c] sm:$0xff]
  %v4408 = vld [vmem:[%s9 + $0x474] sm:$0xf]
  %v4409 = vld [vmem:[%s9 + $0x478] sm:$0xff]
  %v4410 = vld [vmem:[%s9 + $0x480] sm:$0xff]
  %v4411 = vld [vmem:[%s9 + $0x488] sm:$0xff]
  %v4412 = vld [vmem:[%s9 + $0x490] sm:$0xff]
  %v4413 = vld [vmem:[%s9 + $0x498] sm:$0xff]
  %v4414 = vld [vmem:[%s9 + $0x4a0] sm:$0xff]
  %v4415 = vld [vmem:[%s9 + $0x4a8] sm:$0xf]
  %v4416 = vld [vmem:[%s9 + $0x4ac] sm:$0xff]
  %v4417 = vld [vmem:[%s9 + $0x4b4] sm:$0xff]
  %v4418 = vld [vmem:[%s9 + $0x4bc] sm:$0xff]
  %v4419 = vld [vmem:[%s9 + $0x4c4] sm:$0xff]
  %v4420 = vld [vmem:[%s9 + $0x4cc] sm:$0xff]
  %v4421 = vld [vmem:[%s9 + $0x4d4] sm:$0xff]
  %v4422 = vld [vmem:[%s9 + $0x4dc] sm:$0xf]
  %v4423 = vld [vmem:[%s9 + $0x4e0] sm:$0xff]
  %v4424 = vld [vmem:[%s9 + $0x4e8] sm:$0xff]
  %v4425 = vld [vmem:[%s9 + $0x4f0] sm:$0xff]
  %v4426 = vld [vmem:[%s9 + $0x4f8] sm:$0xff]
  %v4427 = vld [vmem:[%s9 + $0x500] sm:$0xff]
  %v4428 = vld [vmem:[%s9 + $0x508] sm:$0xff]
  %v4429 = vld [vmem:[%s9 + $0x510] sm:$0xf]
  %v4430 = vld [vmem:[%s9 + $0x514] sm:$0xff]
  %v4431 = vld [vmem:[%s9 + $0x51c] sm:$0xff]
  %v4432 = vld [vmem:[%s9 + $0x524] sm:$0xff]
  %v4433 = vld [vmem:[%s9 + $0x52c] sm:$0xff]
  %v4434 = vld [vmem:[%s9 + $0x534] sm:$0xff]
  %v4435 = vld [vmem:[%s9 + $0x53c] sm:$0xff]
  %v4436 = vld [vmem:[%s9 + $0x544] sm:$0xf]
  %v4437 = vld [vmem:[%s9 + $0x548] sm:$0xff]
  %v4438 = vld [vmem:[%s9 + $0x550] sm:$0xff]
  %v4439 = vld [vmem:[%s9 + $0x558] sm:$0xff]
  %v4440 = vld [vmem:[%s9 + $0x560] sm:$0xff]
  %v4441 = vld [vmem:[%s9 + $0x568] sm:$0xff]
  %v4442 = vld [vmem:[%s9 + $0x570] sm:$0xff]
  %v4443 = vld [vmem:[%s9 + $0x578] sm:$0xf]
  %v4444 = vld [vmem:[%s9 + $0x57c] sm:$0xff]
  %v4445 = vld [vmem:[%s9 + $0x584] sm:$0xff]
  %v4446 = vld [vmem:[%s9 + $0x58c] sm:$0xff]
  %v4447 = vld [vmem:[%s9 + $0x594] sm:$0xff]
  %v4448 = vld [vmem:[%s9 + $0x59c] sm:$0xff]
  %v4449 = vld [vmem:[%s9 + $0x5a4] sm:$0xff]
  %v4450 = vld [vmem:[%s9 + $0x5ac] sm:$0xf]
  %v4451 = vld [vmem:[%s9 + $0x5b0] sm:$0xff]
  %v4452 = vld [vmem:[%s9 + $0x5b8] sm:$0xff]
  %v4453 = vld [vmem:[%s9 + $0x5c0] sm:$0xff]
  %v4454 = vld [vmem:[%s9 + $0x5c8] sm:$0xff]
  %v4455 = vld [vmem:[%s9 + $0x5d0] sm:$0xff]
  %v4456 = vld [vmem:[%s9 + $0x5d8] sm:$0xff]
  %v4457 = vld [vmem:[%s9 + $0x5e0] sm:$0xf]
  %v4458 = vld [vmem:[%s9 + $0x5e4] sm:$0xff]
  %v4459 = vld [vmem:[%s9 + $0x5ec] sm:$0xff]
  %v4460 = vld [vmem:[%s9 + $0x5f4] sm:$0xff]
  %v4461 = vld [vmem:[%s9 + $0x5fc] sm:$0xff]
  %v4462 = vld [vmem:[%s9 + $0x604] sm:$0xff]
  %v4463 = vld [vmem:[%s9 + $0x60c] sm:$0xff]
  %v4464 = vld [vmem:[%s9 + $0x614] sm:$0xf]
  %v4465 = vld [vmem:[%s9 + $0x618] sm:$0xff]
  %v4466 = vld [vmem:[%s9 + $0x620] sm:$0xff]
  %v4467 = vld [vmem:[%s9 + $0x628] sm:$0xff]
  %v4468 = vld [vmem:[%s9 + $0x630] sm:$0xff]
  %v4469 = vld [vmem:[%s9 + $0x638] sm:$0xff]
  %v4470 = vld [vmem:[%s9 + $0x640] sm:$0xff]
  %v4471 = vld [vmem:[%s9 + $0x648] sm:$0xf]
  %v4472 = vld [vmem:[%s9 + $0x64c] sm:$0xff]
  %v4473 = vld [vmem:[%s9 + $0x654] sm:$0xff]
  %v4474 = vld [vmem:[%s9 + $0x65c] sm:$0xff]
  %v4475 = vld [vmem:[%s9 + $0x664] sm:$0xff]
  %v4476 = vld [vmem:[%s9 + $0x66c] sm:$0xff]
  %v4477 = vld [vmem:[%s9 + $0x674] sm:$0xff]
  %v4478 = vld [vmem:[%s9 + $0x67c] sm:$0xf]
  %v4479 = vld [vmem:[%s10] sm:$0xff]
  %v4480 = vld [vmem:[%s10 + $0x8] sm:$0x1f]
  %v4483 = vlaneseq
  %v4484 = vshrl.u32 %v4483, 7
  %v4485 = vsub.s32 0, %v4484
  %v4486 = vrot.slane %v4479, %v4485
  %v4487 = vlaneseq
  %v4488 = vshrl.u32 %v4487, 7
  %v4489 = vsub.s32 1, %v4488
  %v4490 = vrot.slane %v4479, %v4489
  %v4491 = vlaneseq
  %v4492 = vshrl.u32 %v4491, 7
  %v4493 = vsub.s32 2, %v4492
  %v4494 = vrot.slane %v4479, %v4493
  %v4495 = vlaneseq
  %v4496 = vshrl.u32 %v4495, 7
  %v4497 = vsub.s32 3, %v4496
  %v4498 = vrot.slane %v4479, %v4497
  %v4499 = vlaneseq
  %v4500 = vshrl.u32 %v4499, 7
  %v4501 = vsub.s32 4, %v4500
  %v4502 = vrot.slane %v4479, %v4501
  %v4503 = vlaneseq
  %v4504 = vshrl.u32 %v4503, 7
  %v4505 = vsub.s32 5, %v4504
  %v4506 = vrot.slane %v4479, %v4505
  %v4507 = vlaneseq
  %v4508 = vshrl.u32 %v4507, 7
  %v4509 = vsub.s32 6, %v4508
  %v4510 = vrot.slane %v4479, %v4509
  %v4511 = vlaneseq
  %v4512 = vshrl.u32 %v4511, 7
  %v4513 = vsub.s32 7, %v4512
  %v4514 = vrot.slane %v4479, %v4513
  %v4515 = vlaneseq
  %v4516 = vshrl.u32 %v4515, 7
  %v4517 = vsub.s32 0, %v4516
  %v4518 = vrot.slane %v4480, %v4517
  %v4519 = vlaneseq
  %v4520 = vshrl.u32 %v4519, 7
  %v4521 = vsub.s32 1, %v4520
  %v4522 = vrot.slane %v4480, %v4521
  %v4523 = vlaneseq
  %v4524 = vshrl.u32 %v4523, 7
  %v4525 = vsub.s32 2, %v4524
  %v4526 = vrot.slane %v4480, %v4525
  %v4527 = vlaneseq
  %v4528 = vshrl.u32 %v4527, 7
  %v4529 = vsub.s32 3, %v4528
  %v4530 = vrot.slane %v4480, %v4529
  %v4531 = vlaneseq
  %v4532 = vshrl.u32 %v4531, 7
  %v4533 = vsub.s32 4, %v4532
  %v4534 = vrot.slane %v4480, %v4533
  %v4772 = vunpack.c.l.b16 %v4255
  %v4773 = vunpack.c.h.b16 %v4255
  %v4774 = vunpack.c.l.b16 %v4256
  %v4775 = vunpack.c.h.b16 %v4256
  %v4776 = vunpack.c.l.b16 %v4257
  %v4777 = vunpack.c.h.b16 %v4257
  %v4778 = vunpack.c.l.b16 %v4258
  %v4779 = vunpack.c.h.b16 %v4258
  %v4780 = vunpack.c.l.b16 %v4259
  %v4781 = vunpack.c.h.b16 %v4259
  %v4782 = vunpack.c.l.b16 %v4260
  %v4783 = vunpack.c.h.b16 %v4260
  %v4784 = vunpack.c.l.b16 %v4261
  %v4785 = vunpack.c.l.b16 %v4262
  %v4786 = vunpack.c.h.b16 %v4262
  %v4787 = vunpack.c.l.b16 %v4263
  %v4788 = vunpack.c.h.b16 %v4263
  %v4789 = vunpack.c.l.b16 %v4264
  %v4790 = vunpack.c.h.b16 %v4264
  %v4791 = vunpack.c.l.b16 %v4265
  %v4792 = vunpack.c.h.b16 %v4265
  %v4793 = vunpack.c.l.b16 %v4266
  %v4794 = vunpack.c.h.b16 %v4266
  %v4795 = vunpack.c.l.b16 %v4267
  %v4796 = vunpack.c.h.b16 %v4267
  %v4797 = vunpack.c.l.b16 %v4268
  %v4798 = vunpack.c.l.b16 %v4269
  %v4799 = vunpack.c.h.b16 %v4269
  %v4800 = vunpack.c.l.b16 %v4270
  %v4801 = vunpack.c.h.b16 %v4270
  %v4802 = vunpack.c.l.b16 %v4271
  %v4803 = vunpack.c.h.b16 %v4271
  %v4804 = vunpack.c.l.b16 %v4272
  %v4805 = vunpack.c.h.b16 %v4272
  %v4806 = vunpack.c.l.b16 %v4273
  %v4807 = vunpack.c.h.b16 %v4273
  %v4808 = vunpack.c.l.b16 %v4274
  %v4809 = vunpack.c.h.b16 %v4274
  %v4810 = vunpack.c.l.b16 %v4275
  %v4811 = vunpack.c.l.b16 %v4276
  %v4812 = vunpack.c.h.b16 %v4276
  %v4813 = vunpack.c.l.b16 %v4277
  %v4814 = vunpack.c.h.b16 %v4277
  %v4815 = vunpack.c.l.b16 %v4278
  %v4816 = vunpack.c.h.b16 %v4278
  %v4817 = vunpack.c.l.b16 %v4279
  %v4818 = vunpack.c.h.b16 %v4279
  %v4819 = vunpack.c.l.b16 %v4280
  %v4820 = vunpack.c.h.b16 %v4280
  %v4821 = vunpack.c.l.b16 %v4281
  %v4822 = vunpack.c.h.b16 %v4281
  %v4823 = vunpack.c.l.b16 %v4282
  %v4824 = vunpack.c.l.b16 %v4283
  %v4825 = vunpack.c.h.b16 %v4283
  %v4826 = vunpack.c.l.b16 %v4284
  %v4827 = vunpack.c.h.b16 %v4284
  %v4828 = vunpack.c.l.b16 %v4285
  %v4829 = vunpack.c.h.b16 %v4285
  %v4830 = vunpack.c.l.b16 %v4286
  %v4831 = vunpack.c.h.b16 %v4286
  %v4832 = vunpack.c.l.b16 %v4287
  %v4833 = vunpack.c.h.b16 %v4287
  %v4834 = vunpack.c.l.b16 %v4288
  %v4835 = vunpack.c.h.b16 %v4288
  %v4836 = vunpack.c.l.b16 %v4289
  %v4837 = vunpack.c.l.b16 %v4290
  %v4838 = vunpack.c.h.b16 %v4290
  %v4839 = vunpack.c.l.b16 %v4291
  %v4840 = vunpack.c.h.b16 %v4291
  %v4841 = vunpack.c.l.b16 %v4292
  %v4842 = vunpack.c.h.b16 %v4292
  %v4843 = vunpack.c.l.b16 %v4293
  %v4844 = vunpack.c.h.b16 %v4293
  %v4845 = vunpack.c.l.b16 %v4294
  %v4846 = vunpack.c.h.b16 %v4294
  %v4847 = vunpack.c.l.b16 %v4295
  %v4848 = vunpack.c.h.b16 %v4295
  %v4849 = vunpack.c.l.b16 %v4296
  %v4850 = vunpack.c.l.b16 %v4297
  %v4851 = vunpack.c.h.b16 %v4297
  %v4852 = vunpack.c.l.b16 %v4298
  %v4853 = vunpack.c.h.b16 %v4298
  %v4854 = vunpack.c.l.b16 %v4299
  %v4855 = vunpack.c.h.b16 %v4299
  %v4856 = vunpack.c.l.b16 %v4300
  %v4857 = vunpack.c.h.b16 %v4300
  %v4858 = vunpack.c.l.b16 %v4301
  %v4859 = vunpack.c.h.b16 %v4301
  %v4860 = vunpack.c.l.b16 %v4302
  %v4861 = vunpack.c.h.b16 %v4302
  %v4862 = vunpack.c.l.b16 %v4303
  %v4863 = vunpack.c.l.b16 %v4304
  %v4864 = vunpack.c.h.b16 %v4304
  %v4865 = vunpack.c.l.b16 %v4305
  %v4866 = vunpack.c.h.b16 %v4305
  %v4867 = vunpack.c.l.b16 %v4306
  %v4868 = vunpack.c.h.b16 %v4306
  %v4869 = vunpack.c.l.b16 %v4307
  %v4870 = vunpack.c.h.b16 %v4307
  %v4871 = vunpack.c.l.b16 %v4308
  %v4872 = vunpack.c.h.b16 %v4308
  %v4873 = vunpack.c.l.b16 %v4309
  %v4874 = vunpack.c.h.b16 %v4309
  %v4875 = vunpack.c.l.b16 %v4310
  %v4876 = vunpack.c.l.b16 %v4311
  %v4877 = vunpack.c.h.b16 %v4311
  %v4878 = vunpack.c.l.b16 %v4312
  %v4879 = vunpack.c.h.b16 %v4312
  %v4880 = vunpack.c.l.b16 %v4313
  %v4881 = vunpack.c.h.b16 %v4313
  %v4882 = vunpack.c.l.b16 %v4314
  %v4883 = vunpack.c.h.b16 %v4314
  %v4884 = vunpack.c.l.b16 %v4315
  %v4885 = vunpack.c.h.b16 %v4315
  %v4886 = vunpack.c.l.b16 %v4316
  %v4887 = vunpack.c.h.b16 %v4316
  %v4888 = vunpack.c.l.b16 %v4317
  %v4889 = vunpack.c.l.b16 %v4318
  %v4890 = vunpack.c.h.b16 %v4318
  %v4891 = vunpack.c.l.b16 %v4319
  %v4892 = vunpack.c.h.b16 %v4319
  %v4893 = vunpack.c.l.b16 %v4320
  %v4894 = vunpack.c.h.b16 %v4320
  %v4895 = vunpack.c.l.b16 %v4321
  %v4896 = vunpack.c.h.b16 %v4321
  %v4897 = vunpack.c.l.b16 %v4322
  %v4898 = vunpack.c.h.b16 %v4322
  %v4899 = vunpack.c.l.b16 %v4323
  %v4900 = vunpack.c.h.b16 %v4323
  %v4901 = vunpack.c.l.b16 %v4324
  %v4902 = vunpack.c.l.b16 %v4325
  %v4903 = vunpack.c.h.b16 %v4325
  %v4904 = vunpack.c.l.b16 %v4326
  %v4905 = vunpack.c.h.b16 %v4326
  %v4906 = vunpack.c.l.b16 %v4327
  %v4907 = vunpack.c.h.b16 %v4327
  %v4908 = vunpack.c.l.b16 %v4328
  %v4909 = vunpack.c.h.b16 %v4328
  %v4910 = vunpack.c.l.b16 %v4329
  %v4911 = vunpack.c.h.b16 %v4329
  %v4912 = vunpack.c.l.b16 %v4330
  %v4913 = vunpack.c.h.b16 %v4330
  %v4914 = vunpack.c.l.b16 %v4331
  %v4915 = vunpack.c.l.b16 %v4332
  %v4916 = vunpack.c.h.b16 %v4332
  %v4917 = vunpack.c.l.b16 %v4333
  %v4918 = vunpack.c.h.b16 %v4333
  %v4919 = vunpack.c.l.b16 %v4334
  %v4920 = vunpack.c.h.b16 %v4334
  %v4921 = vunpack.c.l.b16 %v4335
  %v4922 = vunpack.c.h.b16 %v4335
  %v4923 = vunpack.c.l.b16 %v4336
  %v4924 = vunpack.c.h.b16 %v4336
  %v4925 = vunpack.c.l.b16 %v4337
  %v4926 = vunpack.c.h.b16 %v4337
  %v4927 = vunpack.c.l.b16 %v4338
  %v4928 = vunpack.c.l.b16 %v4339
  %v4929 = vunpack.c.h.b16 %v4339
  %v4930 = vunpack.c.l.b16 %v4340
  %v4931 = vunpack.c.h.b16 %v4340
  %v4932 = vunpack.c.l.b16 %v4341
  %v4933 = vunpack.c.h.b16 %v4341
  %v4934 = vunpack.c.l.b16 %v4342
  %v4935 = vunpack.c.h.b16 %v4342
  %v4936 = vunpack.c.l.b16 %v4343
  %v4937 = vunpack.c.h.b16 %v4343
  %v4938 = vunpack.c.l.b16 %v4344
  %v4939 = vunpack.c.h.b16 %v4344
  %v4940 = vunpack.c.l.b16 %v4345
  %v4941 = vunpack.c.l.b16 %v4346
  %v4942 = vunpack.c.h.b16 %v4346
  %v4943 = vunpack.c.l.b16 %v4347
  %v4944 = vunpack.c.h.b16 %v4347
  %v4945 = vunpack.c.l.b16 %v4348
  %v4946 = vunpack.c.h.b16 %v4348
  %v4947 = vunpack.c.l.b16 %v4349
  %v4948 = vunpack.c.h.b16 %v4349
  %v4949 = vunpack.c.l.b16 %v4350
  %v4950 = vunpack.c.h.b16 %v4350
  %v4951 = vunpack.c.l.b16 %v4351
  %v4952 = vunpack.c.h.b16 %v4351
  %v4953 = vunpack.c.l.b16 %v4352
  %v4954 = vunpack.c.l.b16 %v4353
  %v4955 = vunpack.c.h.b16 %v4353
  %v4956 = vunpack.c.l.b16 %v4354
  %v4957 = vunpack.c.h.b16 %v4354
  %v4958 = vunpack.c.l.b16 %v4355
  %v4959 = vunpack.c.h.b16 %v4355
  %v4960 = vunpack.c.l.b16 %v4356
  %v4961 = vunpack.c.h.b16 %v4356
  %v4962 = vunpack.c.l.b16 %v4357
  %v4963 = vunpack.c.h.b16 %v4357
  %v4964 = vunpack.c.l.b16 %v4358
  %v4965 = vunpack.c.h.b16 %v4358
  %v4966 = vunpack.c.l.b16 %v4359
  %v4967 = vunpack.c.l.b16 %v4360
  %v4968 = vunpack.c.h.b16 %v4360
  %v4969 = vunpack.c.l.b16 %v4361
  %v4970 = vunpack.c.h.b16 %v4361
  %v4971 = vunpack.c.l.b16 %v4362
  %v4972 = vunpack.c.h.b16 %v4362
  %v4973 = vunpack.c.l.b16 %v4363
  %v4974 = vunpack.c.h.b16 %v4363
  %v4975 = vunpack.c.l.b16 %v4364
  %v4976 = vunpack.c.h.b16 %v4364
  %v4977 = vunpack.c.l.b16 %v4365
  %v4978 = vunpack.c.h.b16 %v4365
  %v4979 = vunpack.c.l.b16 %v4366
  %v4980 = vunpack.c.l.b16 %v4367
  %v4981 = vunpack.c.h.b16 %v4367
  %v4982 = vunpack.c.l.b16 %v4368
  %v4983 = vunpack.c.h.b16 %v4368
  %v4984 = vunpack.c.l.b16 %v4369
  %v4985 = vunpack.c.h.b16 %v4369
  %v4986 = vunpack.c.l.b16 %v4370
  %v4987 = vunpack.c.h.b16 %v4370
  %v4988 = vunpack.c.l.b16 %v4371
  %v4989 = vunpack.c.h.b16 %v4371
  %v4990 = vunpack.c.l.b16 %v4372
  %v4991 = vunpack.c.h.b16 %v4372
  %v4992 = vunpack.c.l.b16 %v4373
  %v4993 = vunpack.c.l.b16 %v4374
  %v4994 = vunpack.c.h.b16 %v4374
  %v4995 = vunpack.c.l.b16 %v4375
  %v4996 = vunpack.c.h.b16 %v4375
  %v4997 = vunpack.c.l.b16 %v4376
  %v4998 = vunpack.c.h.b16 %v4376
  %v4999 = vunpack.c.l.b16 %v4377
  %v5000 = vunpack.c.h.b16 %v4377
  %v5001 = vunpack.c.l.b16 %v4378
  %v5002 = vunpack.c.h.b16 %v4378
  %v5003 = vunpack.c.l.b16 %v4379
  %v5004 = vunpack.c.h.b16 %v4379
  %v5005 = vunpack.c.l.b16 %v4380
  %v5006 = vunpack.c.l.b16 %v4381
  %v5007 = vunpack.c.h.b16 %v4381
  %v5008 = vunpack.c.l.b16 %v4382
  %v5009 = vunpack.c.h.b16 %v4382
  %v5010 = vunpack.c.l.b16 %v4383
  %v5011 = vunpack.c.h.b16 %v4383
  %v5012 = vunpack.c.l.b16 %v4384
  %v5013 = vunpack.c.h.b16 %v4384
  %v5014 = vunpack.c.l.b16 %v4385
  %v5015 = vunpack.c.h.b16 %v4385
  %v5016 = vunpack.c.l.b16 %v4386
  %v5017 = vunpack.c.h.b16 %v4386
  %v5018 = vunpack.c.l.b16 %v4387
  %v5019 = vunpack.c.l.b16 %v4388
  %v5020 = vunpack.c.h.b16 %v4388
  %v5021 = vunpack.c.l.b16 %v4389
  %v5022 = vunpack.c.h.b16 %v4389
  %v5023 = vunpack.c.l.b16 %v4390
  %v5024 = vunpack.c.h.b16 %v4390
  %v5025 = vunpack.c.l.b16 %v4391
  %v5026 = vunpack.c.h.b16 %v4391
  %v5027 = vunpack.c.l.b16 %v4392
  %v5028 = vunpack.c.h.b16 %v4392
  %v5029 = vunpack.c.l.b16 %v4393
  %v5030 = vunpack.c.h.b16 %v4393
  %v5031 = vunpack.c.l.b16 %v4394
  %v5032 = vunpack.c.l.b16 %v4395
  %v5033 = vunpack.c.h.b16 %v4395
  %v5034 = vunpack.c.l.b16 %v4396
  %v5035 = vunpack.c.h.b16 %v4396
  %v5036 = vunpack.c.l.b16 %v4397
  %v5037 = vunpack.c.h.b16 %v4397
  %v5038 = vunpack.c.l.b16 %v4398
  %v5039 = vunpack.c.h.b16 %v4398
  %v5040 = vunpack.c.l.b16 %v4399
  %v5041 = vunpack.c.h.b16 %v4399
  %v5042 = vunpack.c.l.b16 %v4400
  %v5043 = vunpack.c.h.b16 %v4400
  %v5044 = vunpack.c.l.b16 %v4401
  %v5045 = vunpack.c.l.b16 %v4402
  %v5046 = vunpack.c.h.b16 %v4402
  %v5047 = vunpack.c.l.b16 %v4403
  %v5048 = vunpack.c.h.b16 %v4403
  %v5049 = vunpack.c.l.b16 %v4404
  %v5050 = vunpack.c.h.b16 %v4404
  %v5051 = vunpack.c.l.b16 %v4405
  %v5052 = vunpack.c.h.b16 %v4405
  %v5053 = vunpack.c.l.b16 %v4406
  %v5054 = vunpack.c.h.b16 %v4406
  %v5055 = vunpack.c.l.b16 %v4407
  %v5056 = vunpack.c.h.b16 %v4407
  %v5057 = vunpack.c.l.b16 %v4408
  %v5058 = vunpack.c.l.b16 %v4409
  %v5059 = vunpack.c.h.b16 %v4409
  %v5060 = vunpack.c.l.b16 %v4410
  %v5061 = vunpack.c.h.b16 %v4410
  %v5062 = vunpack.c.l.b16 %v4411
  %v5063 = vunpack.c.h.b16 %v4411
  %v5064 = vunpack.c.l.b16 %v4412
  %v5065 = vunpack.c.h.b16 %v4412
  %v5066 = vunpack.c.l.b16 %v4413
  %v5067 = vunpack.c.h.b16 %v4413
  %v5068 = vunpack.c.l.b16 %v4414
  %v5069 = vunpack.c.h.b16 %v4414
  %v5070 = vunpack.c.l.b16 %v4415
  %v5071 = vunpack.c.l.b16 %v4416
  %v5072 = vunpack.c.h.b16 %v4416
  %v5073 = vunpack.c.l.b16 %v4417
  %v5074 = vunpack.c.h.b16 %v4417
  %v5075 = vunpack.c.l.b16 %v4418
  %v5076 = vunpack.c.h.b16 %v4418
  %v5077 = vunpack.c.l.b16 %v4419
  %v5078 = vunpack.c.h.b16 %v4419
  %v5079 = vunpack.c.l.b16 %v4420
  %v5080 = vunpack.c.h.b16 %v4420
  %v5081 = vunpack.c.l.b16 %v4421
  %v5082 = vunpack.c.h.b16 %v4421
  %v5083 = vunpack.c.l.b16 %v4422
  %v5084 = vunpack.c.l.b16 %v4423
  %v5085 = vunpack.c.h.b16 %v4423
  %v5086 = vunpack.c.l.b16 %v4424
  %v5087 = vunpack.c.h.b16 %v4424
  %v5088 = vunpack.c.l.b16 %v4425
  %v5089 = vunpack.c.h.b16 %v4425
  %v5090 = vunpack.c.l.b16 %v4426
  %v5091 = vunpack.c.h.b16 %v4426
  %v5092 = vunpack.c.l.b16 %v4427
  %v5093 = vunpack.c.h.b16 %v4427
  %v5094 = vunpack.c.l.b16 %v4428
  %v5095 = vunpack.c.h.b16 %v4428
  %v5096 = vunpack.c.l.b16 %v4429
  %v5097 = vunpack.c.l.b16 %v4430
  %v5098 = vunpack.c.h.b16 %v4430
  %v5099 = vunpack.c.l.b16 %v4431
  %v5100 = vunpack.c.h.b16 %v4431
  %v5101 = vunpack.c.l.b16 %v4432
  %v5102 = vunpack.c.h.b16 %v4432
  %v5103 = vunpack.c.l.b16 %v4433
  %v5104 = vunpack.c.h.b16 %v4433
  %v5105 = vunpack.c.l.b16 %v4434
  %v5106 = vunpack.c.h.b16 %v4434
  %v5107 = vunpack.c.l.b16 %v4435
  %v5108 = vunpack.c.h.b16 %v4435
  %v5109 = vunpack.c.l.b16 %v4436
  %v5110 = vunpack.c.l.b16 %v4437
  %v5111 = vunpack.c.h.b16 %v4437
  %v5112 = vunpack.c.l.b16 %v4438
  %v5113 = vunpack.c.h.b16 %v4438
  %v5114 = vunpack.c.l.b16 %v4439
  %v5115 = vunpack.c.h.b16 %v4439
  %v5116 = vunpack.c.l.b16 %v4440
  %v5117 = vunpack.c.h.b16 %v4440
  %v5118 = vunpack.c.l.b16 %v4441
  %v5119 = vunpack.c.h.b16 %v4441
  %v5120 = vunpack.c.l.b16 %v4442
  %v5121 = vunpack.c.h.b16 %v4442
  %v5122 = vunpack.c.l.b16 %v4443
  %v5123 = vunpack.c.l.b16 %v4444
  %v5124 = vunpack.c.h.b16 %v4444
  %v5125 = vunpack.c.l.b16 %v4445
  %v5126 = vunpack.c.h.b16 %v4445
  %v5127 = vunpack.c.l.b16 %v4446
  %v5128 = vunpack.c.h.b16 %v4446
  %v5129 = vunpack.c.l.b16 %v4447
  %v5130 = vunpack.c.h.b16 %v4447
  %v5131 = vunpack.c.l.b16 %v4448
  %v5132 = vunpack.c.h.b16 %v4448
  %v5133 = vunpack.c.l.b16 %v4449
  %v5134 = vunpack.c.h.b16 %v4449
  %v5135 = vunpack.c.l.b16 %v4450
  %v5136 = vunpack.c.l.b16 %v4451
  %v5137 = vunpack.c.h.b16 %v4451
  %v5138 = vunpack.c.l.b16 %v4452
  %v5139 = vunpack.c.h.b16 %v4452
  %v5140 = vunpack.c.l.b16 %v4453
  %v5141 = vunpack.c.h.b16 %v4453
  %v5142 = vunpack.c.l.b16 %v4454
  %v5143 = vunpack.c.h.b16 %v4454
  %v5144 = vunpack.c.l.b16 %v4455
  %v5145 = vunpack.c.h.b16 %v4455
  %v5146 = vunpack.c.l.b16 %v4456
  %v5147 = vunpack.c.h.b16 %v4456
  %v5148 = vunpack.c.l.b16 %v4457
  %v5149 = vunpack.c.l.b16 %v4458
  %v5150 = vunpack.c.h.b16 %v4458
  %v5151 = vunpack.c.l.b16 %v4459
  %v5152 = vunpack.c.h.b16 %v4459
  %v5153 = vunpack.c.l.b16 %v4460
  %v5154 = vunpack.c.h.b16 %v4460
  %v5155 = vunpack.c.l.b16 %v4461
  %v5156 = vunpack.c.h.b16 %v4461
  %v5157 = vunpack.c.l.b16 %v4462
  %v5158 = vunpack.c.h.b16 %v4462
  %v5159 = vunpack.c.l.b16 %v4463
  %v5160 = vunpack.c.h.b16 %v4463
  %v5161 = vunpack.c.l.b16 %v4464
  %v5162 = vunpack.c.l.b16 %v4465
  %v5163 = vunpack.c.h.b16 %v4465
  %v5164 = vunpack.c.l.b16 %v4466
  %v5165 = vunpack.c.h.b16 %v4466
  %v5166 = vunpack.c.l.b16 %v4467
  %v5167 = vunpack.c.h.b16 %v4467
  %v5168 = vunpack.c.l.b16 %v4468
  %v5169 = vunpack.c.h.b16 %v4468
  %v5170 = vunpack.c.l.b16 %v4469
  %v5171 = vunpack.c.h.b16 %v4469
  %v5172 = vunpack.c.l.b16 %v4470
  %v5173 = vunpack.c.h.b16 %v4470
  %v5174 = vunpack.c.l.b16 %v4471
  %v5175 = vunpack.c.l.b16 %v4472
  %v5176 = vunpack.c.h.b16 %v4472
  %v5177 = vunpack.c.l.b16 %v4473
  %v5178 = vunpack.c.h.b16 %v4473
  %v5179 = vunpack.c.l.b16 %v4474
  %v5180 = vunpack.c.h.b16 %v4474
  %v5181 = vunpack.c.l.b16 %v4475
  %v5182 = vunpack.c.h.b16 %v4475
  %v5183 = vunpack.c.l.b16 %v4476
  %v5184 = vunpack.c.h.b16 %v4476
  %v5185 = vunpack.c.l.b16 %v4477
  %v5186 = vunpack.c.h.b16 %v4477
  %v5187 = vunpack.c.l.b16 %v4478
  %v5188 = vpack.c.b16 %v4785, %v4772
  %v5189 = vpack.c.b16 %v4786, %v4773
  %v5190 = vpack.c.b16 %v4787, %v4774
  %v5191 = vpack.c.b16 %v4788, %v4775
  %v5192 = vpack.c.b16 %v4789, %v4776
  %v5193 = vpack.c.b16 %v4790, %v4777
  %v5194 = vpack.c.b16 %v4791, %v4778
  %v5195 = vpack.c.b16 %v4792, %v4779
  %v5196 = vpack.c.b16 %v4793, %v4780
  %v5197 = vpack.c.b16 %v4794, %v4781
  %v5198 = vpack.c.b16 %v4795, %v4782
  %v5199 = vpack.c.b16 %v4796, %v4783
  %v5200 = vpack.c.b16 %v4797, %v4784
  %v5201 = vpack.c.b16 %v4811, %v4798
  %v5202 = vpack.c.b16 %v4812, %v4799
  %v5203 = vpack.c.b16 %v4813, %v4800
  %v5204 = vpack.c.b16 %v4814, %v4801
  %v5205 = vpack.c.b16 %v4815, %v4802
  %v5206 = vpack.c.b16 %v4816, %v4803
  %v5207 = vpack.c.b16 %v4817, %v4804
  %v5208 = vpack.c.b16 %v4818, %v4805
  %v5209 = vpack.c.b16 %v4819, %v4806
  %v5210 = vpack.c.b16 %v4820, %v4807
  %v5211 = vpack.c.b16 %v4821, %v4808
  %v5212 = vpack.c.b16 %v4822, %v4809
  %v5213 = vpack.c.b16 %v4823, %v4810
  %v5214 = vpack.c.b16 %v4837, %v4824
  %v5215 = vpack.c.b16 %v4838, %v4825
  %v5216 = vpack.c.b16 %v4839, %v4826
  %v5217 = vpack.c.b16 %v4840, %v4827
  %v5218 = vpack.c.b16 %v4841, %v4828
  %v5219 = vpack.c.b16 %v4842, %v4829
  %v5220 = vpack.c.b16 %v4843, %v4830
  %v5221 = vpack.c.b16 %v4844, %v4831
  %v5222 = vpack.c.b16 %v4845, %v4832
  %v5223 = vpack.c.b16 %v4846, %v4833
  %v5224 = vpack.c.b16 %v4847, %v4834
  %v5225 = vpack.c.b16 %v4848, %v4835
  %v5226 = vpack.c.b16 %v4849, %v4836
  %v5227 = vpack.c.b16 %v4863, %v4850
  %v5228 = vpack.c.b16 %v4864, %v4851
  %v5229 = vpack.c.b16 %v4865, %v4852
  %v5230 = vpack.c.b16 %v4866, %v4853
  %v5231 = vpack.c.b16 %v4867, %v4854
  %v5232 = vpack.c.b16 %v4868, %v4855
  %v5233 = vpack.c.b16 %v4869, %v4856
  %v5234 = vpack.c.b16 %v4870, %v4857
  %v5235 = vpack.c.b16 %v4871, %v4858
  %v5236 = vpack.c.b16 %v4872, %v4859
  %v5237 = vpack.c.b16 %v4873, %v4860
  %v5238 = vpack.c.b16 %v4874, %v4861
  %v5239 = vpack.c.b16 %v4875, %v4862
  %v5240 = vpack.c.b16 %v4889, %v4876
  %v5241 = vpack.c.b16 %v4890, %v4877
  %v5242 = vpack.c.b16 %v4891, %v4878
  %v5243 = vpack.c.b16 %v4892, %v4879
  %v5244 = vpack.c.b16 %v4893, %v4880
  %v5245 = vpack.c.b16 %v4894, %v4881
  %v5246 = vpack.c.b16 %v4895, %v4882
  %v5247 = vpack.c.b16 %v4896, %v4883
  %v5248 = vpack.c.b16 %v4897, %v4884
  %v5249 = vpack.c.b16 %v4898, %v4885
  %v5250 = vpack.c.b16 %v4899, %v4886
  %v5251 = vpack.c.b16 %v4900, %v4887
  %v5252 = vpack.c.b16 %v4901, %v4888
  %v5253 = vpack.c.b16 %v4915, %v4902
  %v5254 = vpack.c.b16 %v4916, %v4903
  %v5255 = vpack.c.b16 %v4917, %v4904
  %v5256 = vpack.c.b16 %v4918, %v4905
  %v5257 = vpack.c.b16 %v4919, %v4906
  %v5258 = vpack.c.b16 %v4920, %v4907
  %v5259 = vpack.c.b16 %v4921, %v4908
  %v5260 = vpack.c.b16 %v4922, %v4909
  %v5261 = vpack.c.b16 %v4923, %v4910
  %v5262 = vpack.c.b16 %v4924, %v4911
  %v5263 = vpack.c.b16 %v4925, %v4912
  %v5264 = vpack.c.b16 %v4926, %v4913
  %v5265 = vpack.c.b16 %v4927, %v4914
  %v5266 = vpack.c.b16 %v4941, %v4928
  %v5267 = vpack.c.b16 %v4942, %v4929
  %v5268 = vpack.c.b16 %v4943, %v4930
  %v5269 = vpack.c.b16 %v4944, %v4931
  %v5270 = vpack.c.b16 %v4945, %v4932
  %v5271 = vpack.c.b16 %v4946, %v4933
  %v5272 = vpack.c.b16 %v4947, %v4934
  %v5273 = vpack.c.b16 %v4948, %v4935
  %v5274 = vpack.c.b16 %v4949, %v4936
  %v5275 = vpack.c.b16 %v4950, %v4937
  %v5276 = vpack.c.b16 %v4951, %v4938
  %v5277 = vpack.c.b16 %v4952, %v4939
  %v5278 = vpack.c.b16 %v4953, %v4940
  %v5279 = vpack.c.b16 %v4967, %v4954
  %v5280 = vpack.c.b16 %v4968, %v4955
  %v5281 = vpack.c.b16 %v4969, %v4956
  %v5282 = vpack.c.b16 %v4970, %v4957
  %v5283 = vpack.c.b16 %v4971, %v4958
  %v5284 = vpack.c.b16 %v4972, %v4959
  %v5285 = vpack.c.b16 %v4973, %v4960
  %v5286 = vpack.c.b16 %v4974, %v4961
  %v5287 = vpack.c.b16 %v4975, %v4962
  %v5288 = vpack.c.b16 %v4976, %v4963
  %v5289 = vpack.c.b16 %v4977, %v4964
  %v5290 = vpack.c.b16 %v4978, %v4965
  %v5291 = vpack.c.b16 %v4979, %v4966
  %v5292 = vpack.c.b16 %v4993, %v4980
  %v5293 = vpack.c.b16 %v4994, %v4981
  %v5294 = vpack.c.b16 %v4995, %v4982
  %v5295 = vpack.c.b16 %v4996, %v4983
  %v5296 = vpack.c.b16 %v4997, %v4984
  %v5297 = vpack.c.b16 %v4998, %v4985
  %v5298 = vpack.c.b16 %v4999, %v4986
  %v5299 = vpack.c.b16 %v5000, %v4987
  %v5300 = vpack.c.b16 %v5001, %v4988
  %v5301 = vpack.c.b16 %v5002, %v4989
  %v5302 = vpack.c.b16 %v5003, %v4990
  %v5303 = vpack.c.b16 %v5004, %v4991
  %v5304 = vpack.c.b16 %v5005, %v4992
  %v5305 = vpack.c.b16 %v5019, %v5006
  %v5306 = vpack.c.b16 %v5020, %v5007
  %v5307 = vpack.c.b16 %v5021, %v5008
  %v5308 = vpack.c.b16 %v5022, %v5009
  %v5309 = vpack.c.b16 %v5023, %v5010
  %v5310 = vpack.c.b16 %v5024, %v5011
  %v5311 = vpack.c.b16 %v5025, %v5012
  %v5312 = vpack.c.b16 %v5026, %v5013
  %v5313 = vpack.c.b16 %v5027, %v5014
  %v5314 = vpack.c.b16 %v5028, %v5015
  %v5315 = vpack.c.b16 %v5029, %v5016
  %v5316 = vpack.c.b16 %v5030, %v5017
  %v5317 = vpack.c.b16 %v5031, %v5018
  %v5318 = vpack.c.b16 %v5045, %v5032
  %v5319 = vpack.c.b16 %v5046, %v5033
  %v5320 = vpack.c.b16 %v5047, %v5034
  %v5321 = vpack.c.b16 %v5048, %v5035
  %v5322 = vpack.c.b16 %v5049, %v5036
  %v5323 = vpack.c.b16 %v5050, %v5037
  %v5324 = vpack.c.b16 %v5051, %v5038
  %v5325 = vpack.c.b16 %v5052, %v5039
  %v5326 = vpack.c.b16 %v5053, %v5040
  %v5327 = vpack.c.b16 %v5054, %v5041
  %v5328 = vpack.c.b16 %v5055, %v5042
  %v5329 = vpack.c.b16 %v5056, %v5043
  %v5330 = vpack.c.b16 %v5057, %v5044
  %v5331 = vpack.c.b16 %v5071, %v5058
  %v5332 = vpack.c.b16 %v5072, %v5059
  %v5333 = vpack.c.b16 %v5073, %v5060
  %v5334 = vpack.c.b16 %v5074, %v5061
  %v5335 = vpack.c.b16 %v5075, %v5062
  %v5336 = vpack.c.b16 %v5076, %v5063
  %v5337 = vpack.c.b16 %v5077, %v5064
  %v5338 = vpack.c.b16 %v5078, %v5065
  %v5339 = vpack.c.b16 %v5079, %v5066
  %v5340 = vpack.c.b16 %v5080, %v5067
  %v5341 = vpack.c.b16 %v5081, %v5068
  %v5342 = vpack.c.b16 %v5082, %v5069
  %v5343 = vpack.c.b16 %v5083, %v5070
  %v5344 = vpack.c.b16 %v5097, %v5084
  %v5345 = vpack.c.b16 %v5098, %v5085
  %v5346 = vpack.c.b16 %v5099, %v5086
  %v5347 = vpack.c.b16 %v5100, %v5087
  %v5348 = vpack.c.b16 %v5101, %v5088
  %v5349 = vpack.c.b16 %v5102, %v5089
  %v5350 = vpack.c.b16 %v5103, %v5090
  %v5351 = vpack.c.b16 %v5104, %v5091
  %v5352 = vpack.c.b16 %v5105, %v5092
  %v5353 = vpack.c.b16 %v5106, %v5093
  %v5354 = vpack.c.b16 %v5107, %v5094
  %v5355 = vpack.c.b16 %v5108, %v5095
  %v5356 = vpack.c.b16 %v5109, %v5096
  %v5357 = vpack.c.b16 %v5123, %v5110
  %v5358 = vpack.c.b16 %v5124, %v5111
  %v5359 = vpack.c.b16 %v5125, %v5112
  %v5360 = vpack.c.b16 %v5126, %v5113
  %v5361 = vpack.c.b16 %v5127, %v5114
  %v5362 = vpack.c.b16 %v5128, %v5115
  %v5363 = vpack.c.b16 %v5129, %v5116
  %v5364 = vpack.c.b16 %v5130, %v5117
  %v5365 = vpack.c.b16 %v5131, %v5118
  %v5366 = vpack.c.b16 %v5132, %v5119
  %v5367 = vpack.c.b16 %v5133, %v5120
  %v5368 = vpack.c.b16 %v5134, %v5121
  %v5369 = vpack.c.b16 %v5135, %v5122
  %v5370 = vpack.c.b16 %v5149, %v5136
  %v5371 = vpack.c.b16 %v5150, %v5137
  %v5372 = vpack.c.b16 %v5151, %v5138
  %v5373 = vpack.c.b16 %v5152, %v5139
  %v5374 = vpack.c.b16 %v5153, %v5140
  %v5375 = vpack.c.b16 %v5154, %v5141
  %v5376 = vpack.c.b16 %v5155, %v5142
  %v5377 = vpack.c.b16 %v5156, %v5143
  %v5378 = vpack.c.b16 %v5157, %v5144
  %v5379 = vpack.c.b16 %v5158, %v5145
  %v5380 = vpack.c.b16 %v5159, %v5146
  %v5381 = vpack.c.b16 %v5160, %v5147
  %v5382 = vpack.c.b16 %v5161, %v5148
  %v5383 = vpack.c.b16 %v5175, %v5162
  %v5384 = vpack.c.b16 %v5176, %v5163
  %v5385 = vpack.c.b16 %v5177, %v5164
  %v5386 = vpack.c.b16 %v5178, %v5165
  %v5387 = vpack.c.b16 %v5179, %v5166
  %v5388 = vpack.c.b16 %v5180, %v5167
  %v5389 = vpack.c.b16 %v5181, %v5168
  %v5390 = vpack.c.b16 %v5182, %v5169
  %v5391 = vpack.c.b16 %v5183, %v5170
  %v5392 = vpack.c.b16 %v5184, %v5171
  %v5393 = vpack.c.b16 %v5185, %v5172
  %v5394 = vpack.c.b16 %v5186, %v5173
  %v5395 = vpack.c.b16 %v5187, %v5174
  %5604 = vmatprep.subr.bf16.mxu0 %v5189
  %5605 = vmatpush1.bf16.msra.mxu0 %v5188
  %5606 = vmatprep.subr.bf16.mxu0 %v5202
  %5607 = vmatpush1.bf16.msra.mxu0 %v5201
  %5608 = vmatprep.subr.bf16.mxu0 %v5215
  %5609 = vmatpush1.bf16.msra.mxu0 %v5214
  %5610 = vmatprep.subr.bf16.mxu0 %v5228
  %5611 = vmatpush1.bf16.msra.mxu0 %v5227
  %5612 = vmatprep.subr.bf16.mxu0 %v5241
  %5613 = vmatpush1.bf16.msra.mxu0 %v5240
  %5614 = vmatprep.subr.bf16.mxu0 %v5254
  %5615 = vmatpush1.bf16.msra.mxu0 %v5253
  %5616 = vmatprep.subr.bf16.mxu0 %v5267
  %5617 = vmatpush1.bf16.msra.mxu0 %v5266
  %5618 = vmatprep.subr.bf16.mxu0 %v5280
  %5619 = vmatpush1.bf16.msra.mxu0 %v5279
  %5620 = vmatprep.subr.bf16.mxu0 %v5293
  %5621 = vmatpush1.bf16.msra.mxu0 %v5292
  %5622 = vmatprep.subr.bf16.mxu0 %v5306
  %5623 = vmatpush1.bf16.msra.mxu0 %v5305
  %5624 = vmatprep.subr.bf16.mxu0 %v5319
  %5625 = vmatpush1.bf16.msra.mxu0 %v5318
  %5626 = vmatprep.subr.bf16.mxu0 %v5332
  %5627 = vmatpush1.bf16.msra.mxu0 %v5331
  %5628 = vmatprep.subr.bf16.mxu0 %v5345
  %5629 = vmatpush1.bf16.msra.mxu0 %v5344
  %5630 = vmatprep.subr.bf16.mxu0 %v5358
  %5631 = vmatpush1.bf16.msra.mxu0 %v5357
  %5632 = vmatprep.subr.bf16.mxu0 %v5371
  %5633 = vmatpush1.bf16.msra.mxu0 %v5370
  %5634 = vmatprep.subr.bf16.mxu0 %v5384
  %5635 = vmatpush1.bf16.msra.mxu0 %v5383
  %5636 = vmatprep.mubr.bf16.mxu0 %v4254
  %5637 = vmatmul.mubr.bf16.gmra.mrb[0].mxu0 %v4253
  %v5638 = vpop.f32.mrb[0].mxu0
  %v5639 = vadd.f32 %v4486, %v5638
  %v5640 = vpop.f32.mrb[0].mxu0
  %v5641 = vadd.f32 %v4490, %v5640
  %v5642 = vpop.f32.mrb[0].mxu0
  %v5643 = vpop.f32.mrb[0].mxu0
  %5644 = vdwg.mxu0
  %5645 = vmatprep.subr.bf16.mxu0 %v5191
  %5646 = vmatpush1.bf16.msra.mxu0 %v5190
  %5647 = vmatprep.subr.bf16.mxu0 %v5204
  %5648 = vmatpush1.bf16.msra.mxu0 %v5203
  %5649 = vmatprep.subr.bf16.mxu0 %v5217
  %5650 = vmatpush1.bf16.msra.mxu0 %v5216
  %5651 = vmatprep.subr.bf16.mxu0 %v5230
  %5652 = vmatpush1.bf16.msra.mxu0 %v5229
  %5653 = vmatprep.subr.bf16.mxu0 %v5243
  %5654 = vmatpush1.bf16.msra.mxu0 %v5242
  %5655 = vmatprep.subr.bf16.mxu0 %v5256
  %5656 = vmatpush1.bf16.msra.mxu0 %v5255
  %5657 = vmatprep.subr.bf16.mxu0 %v5269
  %5658 = vmatpush1.bf16.msra.mxu0 %v5268
  %5659 = vmatprep.subr.bf16.mxu0 %v5282
  %5660 = vmatpush1.bf16.msra.mxu0 %v5281
  %5661 = vmatprep.subr.bf16.mxu0 %v5295
  %5662 = vmatpush1.bf16.msra.mxu0 %v5294
  %5663 = vmatprep.subr.bf16.mxu0 %v5308
  %5664 = vmatpush1.bf16.msra.mxu0 %v5307
  %5665 = vmatprep.subr.bf16.mxu0 %v5321
  %5666 = vmatpush1.bf16.msra.mxu0 %v5320
  %5667 = vmatprep.subr.bf16.mxu0 %v5334
  %5668 = vmatpush1.bf16.msra.mxu0 %v5333
  %5669 = vmatprep.subr.bf16.mxu0 %v5347
  %5670 = vmatpush1.bf16.msra.mxu0 %v5346
  %5671 = vmatprep.subr.bf16.mxu0 %v5360
  %5672 = vmatpush1.bf16.msra.mxu0 %v5359
  %5673 = vmatprep.subr.bf16.mxu0 %v5373
  %5674 = vmatpush1.bf16.msra.mxu0 %v5372
  %5675 = vmatprep.subr.bf16.mxu0 %v5386
  %5676 = vmatpush1.bf16.msra.mxu0 %v5385
  %5677 = vmatprep.mubr.bf16.mxu0 %v4254
  %5678 = vmatmul.mubr.bf16.gmra.mrb[0].mxu0 %v4253
  %v5679 = vpop.f32.mrb[0].mxu0
  %v5680 = vadd.f32 %v4494, %v5679
  %v5681 = vpop.f32.mrb[0].mxu0
  %v5682 = vadd.f32 %v4498, %v5681
  %v5683 = vpop.f32.mrb[0].mxu0
  %v5684 = vpop.f32.mrb[0].mxu0
  %5685 = vdwg.mxu0
  %5686 = vmatprep.subr.bf16.mxu0 %v5193
  %5687 = vmatpush1.bf16.msra.mxu0 %v5192
  %5688 = vmatprep.subr.bf16.mxu0 %v5206
  %5689 = vmatpush1.bf16.msra.mxu0 %v5205
  %5690 = vmatprep.subr.bf16.mxu0 %v5219
  %5691 = vmatpush1.bf16.msra.mxu0 %v5218
  %5692 = vmatprep.subr.bf16.mxu0 %v5232
  %5693 = vmatpush1.bf16.msra.mxu0 %v5231
  %5694 = vmatprep.subr.bf16.mxu0 %v5245
  %5695 = vmatpush1.bf16.msra.mxu0 %v5244
  %5696 = vmatprep.subr.bf16.mxu0 %v5258
  %5697 = vmatpush1.bf16.msra.mxu0 %v5257
  %5698 = vmatprep.subr.bf16.mxu0 %v5271
  %5699 = vmatpush1.bf16.msra.mxu0 %v5270
  %5700 = vmatprep.subr.bf16.mxu0 %v5284
  %5701 = vmatpush1.bf16.msra.mxu0 %v5283
  %5702 = vmatprep.subr.bf16.mxu0 %v5297
  %5703 = vmatpush1.bf16.msra.mxu0 %v5296
  %5704 = vmatprep.subr.bf16.mxu0 %v5310
  %5705 = vmatpush1.bf16.msra.mxu0 %v5309
  %5706 = vmatprep.subr.bf16.mxu0 %v5323
  %5707 = vmatpush1.bf16.msra.mxu0 %v5322
  %5708 = vmatprep.subr.bf16.mxu0 %v5336
  %5709 = vmatpush1.bf16.msra.mxu0 %v5335
  %5710 = vmatprep.subr.bf16.mxu0 %v5349
  %5711 = vmatpush1.bf16.msra.mxu0 %v5348
  %5712 = vmatprep.subr.bf16.mxu0 %v5362
  %5713 = vmatpush1.bf16.msra.mxu0 %v5361
  %5714 = vmatprep.subr.bf16.mxu0 %v5375
  %5715 = vmatpush1.bf16.msra.mxu0 %v5374
  %5716 = vmatprep.subr.bf16.mxu0 %v5388
  %5717 = vmatpush1.bf16.msra.mxu0 %v5387
  %5718 = vmatprep.mubr.bf16.mxu0 %v4254
  %5719 = vmatmul.mubr.bf16.gmra.mrb[0].mxu0 %v4253
  %v5720 = vpop.f32.mrb[0].mxu0
  %v5721 = vadd.f32 %v4502, %v5720
  %v5722 = vpop.f32.mrb[0].mxu0
  %v5723 = vadd.f32 %v4506, %v5722
  %v5724 = vpop.f32.mrb[0].mxu0
  %v5725 = vpop.f32.mrb[0].mxu0
  %5726 = vdwg.mxu0
  %5727 = vmatprep.subr.bf16.mxu0 %v5195
  %5728 = vmatpush1.bf16.msra.mxu0 %v5194
  %5729 = vmatprep.subr.bf16.mxu0 %v5208
  %5730 = vmatpush1.bf16.msra.mxu0 %v5207
  %5731 = vmatprep.subr.bf16.mxu0 %v5221
  %5732 = vmatpush1.bf16.msra.mxu0 %v5220
  %5733 = vmatprep.subr.bf16.mxu0 %v5234
  %5734 = vmatpush1.bf16.msra.mxu0 %v5233
  %5735 = vmatprep.subr.bf16.mxu0 %v5247
  %5736 = vmatpush1.bf16.msra.mxu0 %v5246
  %5737 = vmatprep.subr.bf16.mxu0 %v5260
  %5738 = vmatpush1.bf16.msra.mxu0 %v5259
  %5739 = vmatprep.subr.bf16.mxu0 %v5273
  %5740 = vmatpush1.bf16.msra.mxu0 %v5272
  %5741 = vmatprep.subr.bf16.mxu0 %v5286
  %5742 = vmatpush1.bf16.msra.mxu0 %v5285
  %5743 = vmatprep.subr.bf16.mxu0 %v5299
  %5744 = vmatpush1.bf16.msra.mxu0 %v5298
  %5745 = vmatprep.subr.bf16.mxu0 %v5312
  %5746 = vmatpush1.bf16.msra.mxu0 %v5311
  %5747 = vmatprep.subr.bf16.mxu0 %v5325
  %5748 = vmatpush1.bf16.msra.mxu0 %v5324
  %5749 = vmatprep.subr.bf16.mxu0 %v5338
  %5750 = vmatpush1.bf16.msra.mxu0 %v5337
  %5751 = vmatprep.subr.bf16.mxu0 %v5351
  %5752 = vmatpush1.bf16.msra.mxu0 %v5350
  %5753 = vmatprep.subr.bf16.mxu0 %v5364
  %5754 = vmatpush1.bf16.msra.mxu0 %v5363
  %5755 = vmatprep.subr.bf16.mxu0 %v5377
  %5756 = vmatpush1.bf16.msra.mxu0 %v5376
  %5757 = vmatprep.subr.bf16.mxu0 %v5390
  %5758 = vmatpush1.bf16.msra.mxu0 %v5389
  %5759 = vmatprep.mubr.bf16.mxu0 %v4254
  %5760 = vmatmul.mubr.bf16.gmra.mrb[0].mxu0 %v4253
  %v5761 = vpop.f32.mrb[0].mxu0
  %v5762 = vadd.f32 %v4510, %v5761
  %v5763 = vpop.f32.mrb[0].mxu0
  %v5764 = vadd.f32 %v4514, %v5763
  %v5765 = vpop.f32.mrb[0].mxu0
  %v5766 = vpop.f32.mrb[0].mxu0
  %5767 = vdwg.mxu0
  %5768 = vmatprep.subr.bf16.mxu0 %v5197
  %5769 = vmatpush1.bf16.msra.mxu0 %v5196
  %5770 = vmatprep.subr.bf16.mxu0 %v5210
  %5771 = vmatpush1.bf16.msra.mxu0 %v5209
  %5772 = vmatprep.subr.bf16.mxu0 %v5223
  %5773 = vmatpush1.bf16.msra.mxu0 %v5222
  %5774 = vmatprep.subr.bf16.mxu0 %v5236
  %5775 = vmatpush1.bf16.msra.mxu0 %v5235
  %5776 = vmatprep.subr.bf16.mxu0 %v5249
  %5777 = vmatpush1.bf16.msra.mxu0 %v5248
  %5778 = vmatprep.subr.bf16.mxu0 %v5262
  %5779 = vmatpush1.bf16.msra.mxu0 %v5261
  %5780 = vmatprep.subr.bf16.mxu0 %v5275
  %5781 = vmatpush1.bf16.msra.mxu0 %v5274
  %5782 = vmatprep.subr.bf16.mxu0 %v5288
  %5783 = vmatpush1.bf16.msra.mxu0 %v5287
  %5784 = vmatprep.subr.bf16.mxu0 %v5301
  %5785 = vmatpush1.bf16.msra.mxu0 %v5300
  %5786 = vmatprep.subr.bf16.mxu0 %v5314
  %5787 = vmatpush1.bf16.msra.mxu0 %v5313
  %5788 = vmatprep.subr.bf16.mxu0 %v5327
  %5789 = vmatpush1.bf16.msra.mxu0 %v5326
  %5790 = vmatprep.subr.bf16.mxu0 %v5340
  %5791 = vmatpush1.bf16.msra.mxu0 %v5339
  %5792 = vmatprep.subr.bf16.mxu0 %v5353
  %5793 = vmatpush1.bf16.msra.mxu0 %v5352
  %5794 = vmatprep.subr.bf16.mxu0 %v5366
  %5795 = vmatpush1.bf16.msra.mxu0 %v5365
  %5796 = vmatprep.subr.bf16.mxu0 %v5379
  %5797 = vmatpush1.bf16.msra.mxu0 %v5378
  %5798 = vmatprep.subr.bf16.mxu0 %v5392
  %5799 = vmatpush1.bf16.msra.mxu0 %v5391
  %5800 = vmatprep.mubr.bf16.mxu0 %v4254
  %5801 = vmatmul.mubr.bf16.gmra.mrb[0].mxu0 %v4253
  %v5802 = vpop.f32.mrb[0].mxu0
  %v5803 = vadd.f32 %v4518, %v5802
  %v5804 = vpop.f32.mrb[0].mxu0
  %v5805 = vadd.f32 %v4522, %v5804
  %v5806 = vpop.f32.mrb[0].mxu0
  %v5807 = vpop.f32.mrb[0].mxu0
  %5808 = vdwg.mxu0
  %5809 = vmatprep.subr.bf16.mxu0 %v5199
  %5810 = vmatpush1.bf16.msra.mxu0 %v5198
  %5811 = vmatprep.subr.bf16.mxu0 %v5212
  %5812 = vmatpush1.bf16.msra.mxu0 %v5211
  %5813 = vmatprep.subr.bf16.mxu0 %v5225
  %5814 = vmatpush1.bf16.msra.mxu0 %v5224
  %5815 = vmatprep.subr.bf16.mxu0 %v5238
  %5816 = vmatpush1.bf16.msra.mxu0 %v5237
  %5817 = vmatprep.subr.bf16.mxu0 %v5251
  %5818 = vmatpush1.bf16.msra.mxu0 %v5250
  %5819 = vmatprep.subr.bf16.mxu0 %v5264
  %5820 = vmatpush1.bf16.msra.mxu0 %v5263
  %5821 = vmatprep.subr.bf16.mxu0 %v5277
  %5822 = vmatpush1.bf16.msra.mxu0 %v5276
  %5823 = vmatprep.subr.bf16.mxu0 %v5290
  %5824 = vmatpush1.bf16.msra.mxu0 %v5289
  %5825 = vmatprep.subr.bf16.mxu0 %v5303
  %5826 = vmatpush1.bf16.msra.mxu0 %v5302
  %5827 = vmatprep.subr.bf16.mxu0 %v5316
  %5828 = vmatpush1.bf16.msra.mxu0 %v5315
  %5829 = vmatprep.subr.bf16.mxu0 %v5329
  %5830 = vmatpush1.bf16.msra.mxu0 %v5328
  %5831 = vmatprep.subr.bf16.mxu0 %v5342
  %5832 = vmatpush1.bf16.msra.mxu0 %v5341
  %5833 = vmatprep.subr.bf16.mxu0 %v5355
  %5834 = vmatpush1.bf16.msra.mxu0 %v5354
  %5835 = vmatprep.subr.bf16.mxu0 %v5368
  %5836 = vmatpush1.bf16.msra.mxu0 %v5367
  %5837 = vmatprep.subr.bf16.mxu0 %v5381
  %5838 = vmatpush1.bf16.msra.mxu0 %v5380
  %5839 = vmatprep.subr.bf16.mxu0 %v5394
  %5840 = vmatpush1.bf16.msra.mxu0 %v5393
  %5841 = vmatprep.mubr.bf16.mxu0 %v4254
  %5842 = vmatmul.mubr.bf16.gmra.mrb[0].mxu0 %v4253
  %v5843 = vpop.f32.mrb[0].mxu0
  %v5844 = vadd.f32 %v4526, %v5843
  %v5845 = vpop.f32.mrb[0].mxu0
  %v5846 = vadd.f32 %v4530, %v5845
  %v5847 = vpop.f32.mrb[0].mxu0
  %v5848 = vpop.f32.mrb[0].mxu0
  %5849 = vdwg.mxu0
  %5850 = vmatprep.subr.bf16.mxu0 0
  %5851 = vmatpush1.bf16.msra.mxu0 %v5200
  %5852 = vmatprep.subr.bf16.mxu0 0
  %5853 = vmatpush1.bf16.msra.mxu0 %v5213
  %5854 = vmatprep.subr.bf16.mxu0 0
  %5855 = vmatpush1.bf16.msra.mxu0 %v5226
  %5856 = vmatprep.subr.bf16.mxu0 0
  %5857 = vmatpush1.bf16.msra.mxu0 %v5239
  %5858 = vmatprep.subr.bf16.mxu0 0
  %5859 = vmatpush1.bf16.msra.mxu0 %v5252
  %5860 = vmatprep.subr.bf16.mxu0 0
  %5861 = vmatpush1.bf16.msra.mxu0 %v5265
  %5862 = vmatprep.subr.bf16.mxu0 0
  %5863 = vmatpush1.bf16.msra.mxu0 %v5278
  %5864 = vmatprep.subr.bf16.mxu0 0
  %5865 = vmatpush1.bf16.msra.mxu0 %v5291
  %5866 = vmatprep.subr.bf16.mxu0 0
  %5867 = vmatpush1.bf16.msra.mxu0 %v5304
  %5868 = vmatprep.subr.bf16.mxu0 0
  %5869 = vmatpush1.bf16.msra.mxu0 %v5317
  %5870 = vmatprep.subr.bf16.mxu0 0
  %5871 = vmatpush1.bf16.msra.mxu0 %v5330
  %5872 = vmatprep.subr.bf16.mxu0 0
  %5873 = vmatpush1.bf16.msra.mxu0 %v5343
  %5874 = vmatprep.subr.bf16.mxu0 0
  %5875 = vmatpush1.bf16.msra.mxu0 %v5356
  %5876 = vmatprep.subr.bf16.mxu0 0
  %5877 = vmatpush1.bf16.msra.mxu0 %v5369
  %5878 = vmatprep.subr.bf16.mxu0 0
  %5879 = vmatpush1.bf16.msra.mxu0 %v5382
  %5880 = vmatprep.subr.bf16.mxu0 0
  %5881 = vmatpush1.bf16.msra.mxu0 %v5395
  %5882 = vmatprep.mubr.bf16.mxu0 %v4254
  %5883 = vmatmul.mubr.bf16.gmra.mrb[0].mxu0 %v4253
  %v5884 = vpop.f32.mrb[0].mxu0
  %v5885 = vadd.f32 %v4534, %v5884
  %v5886 = vpop.f32.mrb[0].mxu0
  %v5887 = vpop.f32.mrb[0].mxu0
  %v5888 = vpop.f32.mrb[0].mxu0
  %5889 = vdwg.mxu0
  %v5890 = vmax.f32 %v5639, 0.0
  %v5891 = vmax.f32 %v5641, 0.0
  %v5892 = vmax.f32 %v5680, 0.0
  %v5893 = vmax.f32 %v5682, 0.0
  %v5894 = vmax.f32 %v5721, 0.0
  %v5895 = vmax.f32 %v5723, 0.0
  %v5896 = vmax.f32 %v5762, 0.0
  %v5897 = vmax.f32 %v5764, 0.0
  %v5898 = vmax.f32 %v5803, 0.0
  %v5899 = vmax.f32 %v5805, 0.0
  %v5900 = vmax.f32 %v5844, 0.0
  %v5901 = vmax.f32 %v5846, 0.0
  %v5902 = vmax.f32 %v5885, 0.0
  %v5916 = vcombine.low %v5890, %v5891
  %v5917 = vcombine.low %v5892, %v5893
  %v5919 = vunpack.c.l.s4 1983009808
  %v5920 = vunpack.c.0.s8 %v5919
  %v5921 = vlaneseq
  %v5922 = vshrl.u32 %v5921, 7
  %v5923 = vsub.s32 %v5920, %v5922
  %v5924 = vrot.slane %v5916, %v5923
  %v5926 = vunpack.c.l.s4 1983009808
  %v5927 = vunpack.c.0.s8 %v5926
  %v5928 = vlaneseq
  %v5929 = vshrl.u32 %v5928, 7
  %v5930 = vsub.s32 %v5927, %v5929
  %v5931 = vrot.slane %v5917, %v5930
  %v5932 = vcombine.low %v5924, %v5931
  %v5933 = vcombine.low %v5894, %v5895
  %v5934 = vcombine.low %v5896, %v5897
  %v5936 = vunpack.c.l.s4 1983009808
  %v5937 = vunpack.c.0.s8 %v5936
  %v5938 = vlaneseq
  %v5939 = vshrl.u32 %v5938, 7
  %v5940 = vsub.s32 %v5937, %v5939
  %v5941 = vrot.slane %v5933, %v5940
  %v5943 = vunpack.c.l.s4 1983009808
  %v5944 = vunpack.c.0.s8 %v5943
  %v5945 = vlaneseq
  %v5946 = vshrl.u32 %v5945, 7
  %v5947 = vsub.s32 %v5944, %v5946
  %v5948 = vrot.slane %v5934, %v5947
  %v5949 = vcombine.low %v5941, %v5948
  %v5950 = vcombine.low %v5898, %v5899
  %v5951 = vcombine.low %v5900, %v5901
  %v5953 = vunpack.c.l.s4 1983009808
  %v5954 = vunpack.c.0.s8 %v5953
  %v5955 = vlaneseq
  %v5956 = vshrl.u32 %v5955, 7
  %v5957 = vsub.s32 %v5954, %v5956
  %v5958 = vrot.slane %v5950, %v5957
  %v5960 = vunpack.c.l.s4 1983009808
  %v5961 = vunpack.c.0.s8 %v5960
  %v5962 = vlaneseq
  %v5963 = vshrl.u32 %v5962, 7
  %v5964 = vsub.s32 %v5961, %v5963
  %v5965 = vrot.slane %v5951, %v5964
  %v5966 = vcombine.low %v5958, %v5965
  %v5968 = vunpack.c.l.s4 1983009808
  %v5969 = vunpack.c.0.s8 %v5968
  %v5970 = vlaneseq
  %v5971 = vshrl.u32 %v5970, 7
  %v5972 = vsub.s32 %v5969, %v5971
  %v5973 = vrot.slane %v5902, %v5972
  %5978 = vst [vmem:[%s11] sm:$0xff] %v5932
  %5979 = vst [vmem:[%s11 + $0x8] sm:$0xff] %v5949
  %5980 = vst [vmem:[%s11 + $0x10] sm:$0xff] %v5966
  %vm5981 = vcmask 254976
  %5982 = vst.msk [vmem:[%s11 + $0x18] sm:$0x3] %vm5981, %v5973
  // Predicated region
  $region46: #{simple_deconv_forward.7} parent=0 // pred_check
    _
  $region47: #{simple_deconv_forward.7} parent=0 // pred_check_branch
    %5984 = sbr.rel (0) target = $region49
  $region48: #{simple_deconv_forward.7} parent=0 // pred_region
    _
  $region49: #{simple_deconv_forward.7} parent=0 // pred_fallthru
    _
  // Predicated region
  $region50: #{simple_deconv_forward.7} parent=0 // pred_check
    _
  $region51: #{simple_deconv_forward.7} parent=0 // pred_check_branch
    %5986 = sbr.rel (0) target = $region53
  $region52: #{simple_deconv_forward.7} parent=0 // pred_region
    _
  $region53: #{simple_deconv_forward.7} parent=0 // pred_fallthru
    _

// kernel: simple_deconv_forward.8
$region0: #{simple_deconv_forward.8}
  #allocation0 [shape = 'u32[]', space=smem, size = 0x4, offset = 0x4, fixed_abs, tag = 'smem constant byte address 0x4 - core index']
  #allocation1 [shape = 'u32[144,128]{1,0:T(1,128)}', space=vmem, size = 0x12000, scoped, tag = 'internal scratch']
  %s0 = inlined_call_operand.vmem [shape: bf16[32,288], index: 0, kind: input, shape index: {}]
  %s1 = inlined_call_operand.vmem [shape: f32[32,1], index: 1, kind: input, shape index: {}]
  %s2 = inlined_call_operand.vmem [shape: bf16[288,256], index: 2, kind: input, shape index: {}]
  %s3 = inlined_call_operand.vmem [shape: f32[32,256], index: 3, kind: output, shape index: {}]
  %s4 = sld [smem:[#allocation0]]
  $region22: #{simple_deconv_forward.8} parent=0
    _
  %s6 = ssub.s32 1, %s4
  %s7 = scalar_select 0, %s6, %s4
  // Predicated region
  $region2: #{simple_deconv_forward.8} parent=0 // pred_check
    _
  $region3: #{simple_deconv_forward.8} parent=0 // pred_check_branch
    %9 = sbr.rel (0) target = $region5
  $region4: #{simple_deconv_forward.8} parent=0 // pred_region
    _
  $region5: #{simple_deconv_forward.8} parent=0 // pred_fallthru
    _
  // Predicated region
  $region6: #{simple_deconv_forward.8} parent=0 // pred_check
    _
  $region7: #{simple_deconv_forward.8} parent=0 // pred_check_branch
    %11 = sbr.rel (0) target = $region9
  $region8: #{simple_deconv_forward.8} parent=0 // pred_region
    _
  $region9: #{simple_deconv_forward.8} parent=0 // pred_fallthru
    _
  // Predicated region
  $region10: #{simple_deconv_forward.8} parent=0 // pred_check
    _
  $region11: #{simple_deconv_forward.8} parent=0 // pred_check_branch
    %13 = sbr.rel (0) target = $region13
  $region12: #{simple_deconv_forward.8} parent=0 // pred_region
    _
  $region13: #{simple_deconv_forward.8} parent=0 // pred_fallthru
    _
  %v15 = vld [vmem:[%s0] sm:$0xff]
  %v16 = vld [vmem:[%s0 + $0x8] sm:$0xf]
  %v17 = vld [vmem:[%s0 + $0xc] sm:$0xff]
  %v18 = vld [vmem:[%s0 + $0x14] sm:$0xf]
  %v19 = vld [vmem:[%s0 + $0x18] sm:$0xff]
  %v20 = vld [vmem:[%s0 + $0x20] sm:$0xf]
  %v21 = vld [vmem:[%s0 + $0x24] sm:$0xff]
  %v22 = vld [vmem:[%s0 + $0x2c] sm:$0xf]
  %v23 = vld [vmem:[%s2] sm:$0xff]
  %v24 = vld [vmem:[%s2 + $0x8] sm:$0xff]
  %v25 = vld [vmem:[%s2 + $0x10] sm:$0xff]
  %v26 = vld [vmem:[%s2 + $0x18] sm:$0xff]
  %v27 = vld [vmem:[%s2 + $0x20] sm:$0xff]
  %v28 = vld [vmem:[%s2 + $0x28] sm:$0xff]
  %v29 = vld [vmem:[%s2 + $0x30] sm:$0xff]
  %v30 = vld [vmem:[%s2 + $0x38] sm:$0xff]
  %v31 = vld [vmem:[%s2 + $0x40] sm:$0xff]
  %v32 = vld [vmem:[%s2 + $0x48] sm:$0xff]
  %v33 = vld [vmem:[%s2 + $0x50] sm:$0xff]
  %v34 = vld [vmem:[%s2 + $0x58] sm:$0xff]
  %v35 = vld [vmem:[%s2 + $0x60] sm:$0xff]
  %v36 = vld [vmem:[%s2 + $0x68] sm:$0xff]
  %v37 = vld [vmem:[%s2 + $0x70] sm:$0xff]
  %v38 = vld [vmem:[%s2 + $0x78] sm:$0xff]
  %v39 = vld [vmem:[%s2 + $0x80] sm:$0xff]
  %v40 = vld [vmem:[%s2 + $0x88] sm:$0xff]
  %v41 = vld [vmem:[%s2 + $0x90] sm:$0xff]
  %v42 = vld [vmem:[%s2 + $0x98] sm:$0xff]
  %v43 = vld [vmem:[%s2 + $0xa0] sm:$0xff]
  %v44 = vld [vmem:[%s2 + $0xa8] sm:$0xff]
  %v45 = vld [vmem:[%s2 + $0xb0] sm:$0xff]
  %v46 = vld [vmem:[%s2 + $0xb8] sm:$0xff]
  %v47 = vld [vmem:[%s2 + $0xc0] sm:$0xff]
  %v48 = vld [vmem:[%s2 + $0xc8] sm:$0xff]
  %v49 = vld [vmem:[%s2 + $0xd0] sm:$0xff]
  %v50 = vld [vmem:[%s2 + $0xd8] sm:$0xff]
  %v51 = vld [vmem:[%s2 + $0xe0] sm:$0xff]
  %v52 = vld [vmem:[%s2 + $0xe8] sm:$0xff]
  %v53 = vld [vmem:[%s2 + $0xf0] sm:$0xff]
  %v54 = vld [vmem:[%s2 + $0xf8] sm:$0xff]
  %v55 = vld [vmem:[%s2 + $0x100] sm:$0xff]
  %v56 = vld [vmem:[%s2 + $0x108] sm:$0xff]
  %v57 = vld [vmem:[%s2 + $0x110] sm:$0xff]
  %v58 = vld [vmem:[%s2 + $0x118] sm:$0xff]
  %v59 = vld [vmem:[%s1] sm:$0xff]
  %v60 = vld [vmem:[%s1 + $0x8] sm:$0xff]
  %v61 = vld [vmem:[%s1 + $0x10] sm:$0xff]
  %v62 = vld [vmem:[%s1 + $0x18] sm:$0xff]
  %64 = vset.pattern.permute.xlu0 0
  %65 = vperm.xlu0 %64, %v59
  %v66 = vpop.permute.xlu0 %65
  %69 = vset.pattern.permute.xlu0 0
  %70 = vperm.xlu0 %69, %v60
  %v71 = vpop.permute.xlu0 %70
  %74 = vset.pattern.permute.xlu0 0
  %75 = vperm.xlu0 %74, %v61
  %v76 = vpop.permute.xlu0 %75
  %79 = vset.pattern.permute.xlu0 0
  %80 = vperm.xlu0 %79, %v62
  %v81 = vpop.permute.xlu0 %80
  %v91 = vunpack.c.l.b16 %v15
  %v92 = vunpack.c.h.b16 %v15
  %v93 = vunpack.c.l.b16 %v16
  %v94 = vunpack.c.l.b16 %v17
  %v95 = vunpack.c.h.b16 %v17
  %v96 = vunpack.c.l.b16 %v18
  %v97 = vunpack.c.l.b16 %v19
  %v98 = vunpack.c.h.b16 %v19
  %v99 = vunpack.c.l.b16 %v20
  %v100 = vunpack.c.l.b16 %v21
  %v101 = vunpack.c.h.b16 %v21
  %v102 = vunpack.c.l.b16 %v22
  %v103 = vpack.c.b16 %v94, %v91
  %v104 = vpack.c.b16 %v95, %v92
  %v105 = vpack.c.b16 %v96, %v93
  %v106 = vpack.c.b16 %v100, %v97
  %v107 = vpack.c.b16 %v101, %v98
  %v108 = vpack.c.b16 %v102, %v99
  %v149 = vunpack.c.l.b16 %v23
  %v150 = vunpack.c.h.b16 %v23
  %v151 = vunpack.c.l.b16 %v24
  %v152 = vunpack.c.h.b16 %v24
  %v153 = vunpack.c.l.b16 %v25
  %v154 = vunpack.c.h.b16 %v25
  %v155 = vunpack.c.l.b16 %v26
  %v156 = vunpack.c.h.b16 %v26
  %v157 = vunpack.c.l.b16 %v27
  %v158 = vunpack.c.h.b16 %v27
  %v159 = vunpack.c.l.b16 %v28
  %v160 = vunpack.c.h.b16 %v28
  %v161 = vunpack.c.l.b16 %v29
  %v162 = vunpack.c.h.b16 %v29
  %v163 = vunpack.c.l.b16 %v30
  %v164 = vunpack.c.h.b16 %v30
  %v165 = vunpack.c.l.b16 %v31
  %v166 = vunpack.c.h.b16 %v31
  %v167 = vunpack.c.l.b16 %v32
  %v168 = vunpack.c.h.b16 %v32
  %v169 = vunpack.c.l.b16 %v33
  %v170 = vunpack.c.h.b16 %v33
  %v171 = vunpack.c.l.b16 %v34
  %v172 = vunpack.c.h.b16 %v34
  %v173 = vunpack.c.l.b16 %v35
  %v174 = vunpack.c.h.b16 %v35
  %v175 = vunpack.c.l.b16 %v36
  %v176 = vunpack.c.h.b16 %v36
  %v177 = vunpack.c.l.b16 %v37
  %v178 = vunpack.c.h.b16 %v37
  %v179 = vunpack.c.l.b16 %v38
  %v180 = vunpack.c.h.b16 %v38
  %v181 = vunpack.c.l.b16 %v39
  %v182 = vunpack.c.h.b16 %v39
  %v183 = vunpack.c.l.b16 %v40
  %v184 = vunpack.c.h.b16 %v40
  %v185 = vunpack.c.l.b16 %v41
  %v186 = vunpack.c.h.b16 %v41
  %v187 = vunpack.c.l.b16 %v42
  %v188 = vunpack.c.h.b16 %v42
  %v189 = vunpack.c.l.b16 %v43
  %v190 = vunpack.c.h.b16 %v43
  %v191 = vunpack.c.l.b16 %v44
  %v192 = vunpack.c.h.b16 %v44
  %v193 = vunpack.c.l.b16 %v45
  %v194 = vunpack.c.h.b16 %v45
  %v195 = vunpack.c.l.b16 %v46
  %v196 = vunpack.c.h.b16 %v46
  %v197 = vunpack.c.l.b16 %v47
  %v198 = vunpack.c.h.b16 %v47
  %v199 = vunpack.c.l.b16 %v48
  %v200 = vunpack.c.h.b16 %v48
  %v201 = vunpack.c.l.b16 %v49
  %v202 = vunpack.c.h.b16 %v49
  %v203 = vunpack.c.l.b16 %v50
  %v204 = vunpack.c.h.b16 %v50
  %v205 = vunpack.c.l.b16 %v51
  %v206 = vunpack.c.h.b16 %v51
  %v207 = vunpack.c.l.b16 %v52
  %v208 = vunpack.c.h.b16 %v52
  %v209 = vunpack.c.l.b16 %v53
  %v210 = vunpack.c.h.b16 %v53
  %v211 = vunpack.c.l.b16 %v54
  %v212 = vunpack.c.h.b16 %v54
  %v213 = vunpack.c.l.b16 %v55
  %v214 = vunpack.c.h.b16 %v55
  %v215 = vunpack.c.l.b16 %v56
  %v216 = vunpack.c.h.b16 %v56
  %v217 = vunpack.c.l.b16 %v57
  %v218 = vunpack.c.h.b16 %v57
  %v219 = vunpack.c.l.b16 %v58
  %v220 = vunpack.c.h.b16 %v58
  %v221 = vpack.c.b16 %v151, %v149
  %v222 = vpack.c.b16 %v152, %v150
  %v223 = vpack.c.b16 %v155, %v153
  %v224 = vpack.c.b16 %v156, %v154
  %v225 = vpack.c.b16 %v159, %v157
  %v226 = vpack.c.b16 %v160, %v158
  %v227 = vpack.c.b16 %v163, %v161
  %v228 = vpack.c.b16 %v164, %v162
  %v229 = vpack.c.b16 %v167, %v165
  %v230 = vpack.c.b16 %v168, %v166
  %v231 = vpack.c.b16 %v171, %v169
  %v232 = vpack.c.b16 %v172, %v170
  %v233 = vpack.c.b16 %v175, %v173
  %v234 = vpack.c.b16 %v176, %v174
  %v235 = vpack.c.b16 %v179, %v177
  %v236 = vpack.c.b16 %v180, %v178
  %v237 = vpack.c.b16 %v183, %v181
  %v238 = vpack.c.b16 %v184, %v182
  %v239 = vpack.c.b16 %v187, %v185
  %v240 = vpack.c.b16 %v188, %v186
  %v241 = vpack.c.b16 %v191, %v189
  %v242 = vpack.c.b16 %v192, %v190
  %v243 = vpack.c.b16 %v195, %v193
  %v244 = vpack.c.b16 %v196, %v194
  %v245 = vpack.c.b16 %v199, %v197
  %v246 = vpack.c.b16 %v200, %v198
  %v247 = vpack.c.b16 %v203, %v201
  %v248 = vpack.c.b16 %v204, %v202
  %v249 = vpack.c.b16 %v207, %v205
  %v250 = vpack.c.b16 %v208, %v206
  %v251 = vpack.c.b16 %v211, %v209
  %v252 = vpack.c.b16 %v212, %v210
  %v253 = vpack.c.b16 %v215, %v213
  %v254 = vpack.c.b16 %v216, %v214
  %v255 = vpack.c.b16 %v219, %v217
  %v256 = vpack.c.b16 %v220, %v218
  %vm293 = vcmask 261120
  %v295 = vsel %vm293, %v105, 0
  %v298 = vsel %vm293, %v108, 0
  %300 = vmatprep.subr.bf16.mxu0 %v222
  %301 = vmatpush1.bf16.msra.mxu0 %v221
  %302 = vmatprep.subr.bf16.mxu0 %v224
  %303 = vmatpush1.bf16.msra.mxu0 %v223
  %304 = vmatprep.subr.bf16.mxu0 %v226
  %305 = vmatpush1.bf16.msra.mxu0 %v225
  %306 = vmatprep.subr.bf16.mxu0 %v228
  %307 = vmatpush1.bf16.msra.mxu0 %v227
  %308 = vmatprep.subr.bf16.mxu0 %v230
  %309 = vmatpush1.bf16.msra.mxu0 %v229
  %310 = vmatprep.subr.bf16.mxu0 %v232
  %311 = vmatpush1.bf16.msra.mxu0 %v231
  %312 = vmatprep.subr.bf16.mxu0 %v234
  %313 = vmatpush1.bf16.msra.mxu0 %v233
  %314 = vmatprep.subr.bf16.mxu0 %v236
  %315 = vmatpush1.bf16.msra.mxu0 %v235
  %316 = vmatprep.subr.bf16.mxu0 %v238
  %317 = vmatpush1.bf16.msra.mxu0 %v237
  %318 = vmatprep.subr.bf16.mxu0 %v240
  %319 = vmatpush1.bf16.msra.mxu0 %v239
  %320 = vmatprep.subr.bf16.mxu0 %v242
  %321 = vmatpush1.bf16.msra.mxu0 %v241
  %322 = vmatprep.subr.bf16.mxu0 %v244
  %323 = vmatpush1.bf16.msra.mxu0 %v243
  %324 = vmatprep.subr.bf16.mxu0 %v246
  %325 = vmatpush1.bf16.msra.mxu0 %v245
  %326 = vmatprep.subr.bf16.mxu0 %v248
  %327 = vmatpush1.bf16.msra.mxu0 %v247
  %328 = vmatprep.subr.bf16.mxu0 %v250
  %329 = vmatpush1.bf16.msra.mxu0 %v249
  %330 = vmatprep.subr.bf16.mxu0 %v252
  %331 = vmatpush1.bf16.msra.mxu0 %v251
  %332 = vmatprep.mubr.bf16.mxu0 %v104
  %333 = vmatmul.mubr.bf16.gmra.mrb[0].mxu0 %v103
  %v334 = vpop.f32.mrb[0].mxu0
  %v335 = vadd.f32 %v66, %v334
  %v336 = vpop.f32.mrb[0].mxu0
  %v337 = vadd.f32 %v66, %v336
  %v338 = vpop.f32.mrb[0].mxu0
  %v339 = vadd.f32 %v71, %v338
  %v340 = vpop.f32.mrb[0].mxu0
  %v341 = vadd.f32 %v71, %v340
  %342 = vmatprep.mubr.bf16.mxu0 %v107
  %343 = vmatmul.mubr.bf16.gmra.mrb[0].mxu0 %v106
  %v344 = vpop.f32.mrb[0].mxu0
  %v345 = vadd.f32 %v76, %v344
  %v346 = vpop.f32.mrb[0].mxu0
  %v347 = vadd.f32 %v76, %v346
  %v348 = vpop.f32.mrb[0].mxu0
  %v349 = vadd.f32 %v81, %v348
  %v350 = vpop.f32.mrb[0].mxu0
  %v351 = vadd.f32 %v81, %v350
  %352 = vdwg.mxu0
  %353 = vmatprep.subr.bf16.mxu0 %v254
  %354 = vmatpush1.bf16.msra.mxu0 %v253
  %355 = vmatprep.subr.bf16.mxu0 %v256
  %356 = vmatpush1.bf16.msra.mxu0 %v255
  %357 = vmatprep.subr.bf16.mxu0 0
  %358 = vmatpush1.bf16.msra.mxu0 0
  %359 = vmatprep.subr.bf16.mxu0 0
  %360 = vmatpush1.bf16.msra.mxu0 0
  %361 = vmatprep.subr.bf16.mxu0 0
  %362 = vmatpush1.bf16.msra.mxu0 0
  %363 = vmatprep.subr.bf16.mxu0 0
  %364 = vmatpush1.bf16.msra.mxu0 0
  %365 = vmatprep.subr.bf16.mxu0 0
  %366 = vmatpush1.bf16.msra.mxu0 0
  %367 = vmatprep.subr.bf16.mxu0 0
  %368 = vmatpush1.bf16.msra.mxu0 0
  %369 = vmatprep.subr.bf16.mxu0 0
  %370 = vmatpush1.bf16.msra.mxu0 0
  %371 = vmatprep.subr.bf16.mxu0 0
  %372 = vmatpush1.bf16.msra.mxu0 0
  %373 = vmatprep.subr.bf16.mxu0 0
  %374 = vmatpush1.bf16.msra.mxu0 0
  %375 = vmatprep.subr.bf16.mxu0 0
  %376 = vmatpush1.bf16.msra.mxu0 0
  %377 = vmatprep.subr.bf16.mxu0 0
  %378 = vmatpush1.bf16.msra.mxu0 0
  %379 = vmatprep.subr.bf16.mxu0 0
  %380 = vmatpush1.bf16.msra.mxu0 0
  %381 = vmatprep.subr.bf16.mxu0 0
  %382 = vmatpush1.bf16.msra.mxu0 0
  %383 = vmatprep.subr.bf16.mxu0 0
  %384 = vmatpush1.bf16.msra.mxu0 0
  %385 = vmatprep.mubr.bf16.mxu0 0
  %386 = vmatmul.mubr.bf16.gmra.mrb[0].mxu0 %v295
  %v387 = vpop.f32.mrb[0].mxu0
  %v388 = vadd.f32 %v335, %v387
  %v389 = vpop.f32.mrb[0].mxu0
  %v390 = vadd.f32 %v337, %v389
  %v391 = vpop.f32.mrb[0].mxu0
  %v392 = vadd.f32 %v339, %v391
  %v393 = vpop.f32.mrb[0].mxu0
  %v394 = vadd.f32 %v341, %v393
  %395 = vmatprep.mubr.bf16.mxu0 0
  %396 = vmatmul.mubr.bf16.gmra.mrb[0].mxu0 %v298
  %v397 = vpop.f32.mrb[0].mxu0
  %v398 = vadd.f32 %v345, %v397
  %v399 = vpop.f32.mrb[0].mxu0
  %v400 = vadd.f32 %v347, %v399
  %v401 = vpop.f32.mrb[0].mxu0
  %v402 = vadd.f32 %v349, %v401
  %v403 = vpop.f32.mrb[0].mxu0
  %v404 = vadd.f32 %v351, %v403
  %405 = vdwg.mxu0
  %v406 = vmax.f32 %v388, 0.0
  %v407 = vmax.f32 %v390, 0.0
  %v408 = vmax.f32 %v392, 0.0
  %v409 = vmax.f32 %v394, 0.0
  %v410 = vmax.f32 %v398, 0.0
  %v411 = vmax.f32 %v400, 0.0
  %v412 = vmax.f32 %v402, 0.0
  %v413 = vmax.f32 %v404, 0.0
  %414 = vst [vmem:[%s3] sm:$0xff] %v406
  %415 = vst [vmem:[%s3 + $0x8] sm:$0xff] %v407
  %416 = vst [vmem:[%s3 + $0x10] sm:$0xff] %v408
  %417 = vst [vmem:[%s3 + $0x18] sm:$0xff] %v409
  %418 = vst [vmem:[%s3 + $0x20] sm:$0xff] %v410
  %419 = vst [vmem:[%s3 + $0x28] sm:$0xff] %v411
  %420 = vst [vmem:[%s3 + $0x30] sm:$0xff] %v412
  %421 = vst [vmem:[%s3 + $0x38] sm:$0xff] %v413
  // Predicated region
  $region14: #{simple_deconv_forward.8} parent=0 // pred_check
    _
  $region15: #{simple_deconv_forward.8} parent=0 // pred_check_branch
    %423 = sbr.rel (0) target = $region17
  $region16: #{simple_deconv_forward.8} parent=0 // pred_region
    _
  $region17: #{simple_deconv_forward.8} parent=0 // pred_fallthru
    _
  // Predicated region
  $region18: #{simple_deconv_forward.8} parent=0 // pred_check
    _
  $region19: #{simple_deconv_forward.8} parent=0 // pred_check_branch
    %425 = sbr.rel (0) target = $region21
  $region20: #{simple_deconv_forward.8} parent=0 // pred_region
    _
  $region21: #{simple_deconv_forward.8} parent=0 // pred_fallthru
    _

// kernel: simple_deconv_forward.9
$region0: #{simple_deconv_forward.9}
  #allocation0 [shape = 'u32[]', space=smem, size = 0x4, offset = 0x4, fixed_abs, tag = 'smem constant byte address 0x4 - core index']
  #allocation1 [shape = 'u32[144,128]{1,0:T(1,128)}', space=vmem, size = 0x12000, scoped, tag = 'internal scratch']
  %s0 = inlined_call_operand.vmem [shape: bf16[56,128], index: 0, kind: input, shape index: {}]
  %s1 = inlined_call_operand.vmem [shape: f32[56,1], index: 1, kind: input, shape index: {}]
  %s2 = inlined_call_operand.vmem [shape: bf16[128,256], index: 2, kind: input, shape index: {}]
  %s3 = inlined_call_operand.vmem [shape: f32[56,256], index: 3, kind: output, shape index: {}]
  %s4 = sld [smem:[#allocation0]]
  $region22: #{simple_deconv_forward.9} parent=0
    _
  %s6 = ssub.s32 1, %s4
  %s7 = scalar_select 0, %s6, %s4
  // Predicated region
  $region2: #{simple_deconv_forward.9} parent=0 // pred_check
    _
  $region3: #{simple_deconv_forward.9} parent=0 // pred_check_branch
    %9 = sbr.rel (0) target = $region5
  $region4: #{simple_deconv_forward.9} parent=0 // pred_region
    _
  $region5: #{simple_deconv_forward.9} parent=0 // pred_fallthru
    _
  // Predicated region
  $region6: #{simple_deconv_forward.9} parent=0 // pred_check
    _
  $region7: #{simple_deconv_forward.9} parent=0 // pred_check_branch
    %11 = sbr.rel (0) target = $region9
  $region8: #{simple_deconv_forward.9} parent=0 // pred_region
    _
  $region9: #{simple_deconv_forward.9} parent=0 // pred_fallthru
    _
  // Predicated region
  $region10: #{simple_deconv_forward.9} parent=0 // pred_check
    _
  $region11: #{simple_deconv_forward.9} parent=0 // pred_check_branch
    %13 = sbr.rel (0) target = $region13
  $region12: #{simple_deconv_forward.9} parent=0 // pred_region
    _
  $region13: #{simple_deconv_forward.9} parent=0 // pred_fallthru
    _
  %v15 = vld [vmem:[%s0] sm:$0xf]
  %v16 = vld [vmem:[%s0 + $0x4] sm:$0xf]
  %v17 = vld [vmem:[%s0 + $0x8] sm:$0xf]
  %v18 = vld [vmem:[%s0 + $0xc] sm:$0xf]
  %v19 = vld [vmem:[%s0 + $0x10] sm:$0xf]
  %v20 = vld [vmem:[%s0 + $0x14] sm:$0xf]
  %v21 = vld [vmem:[%s0 + $0x18] sm:$0xf]
  %v22 = vld [vmem:[%s2] sm:$0xff]
  %v23 = vld [vmem:[%s2 + $0x8] sm:$0xff]
  %v24 = vld [vmem:[%s2 + $0x10] sm:$0xff]
  %v25 = vld [vmem:[%s2 + $0x18] sm:$0xff]
  %v26 = vld [vmem:[%s2 + $0x20] sm:$0xff]
  %v27 = vld [vmem:[%s2 + $0x28] sm:$0xff]
  %v28 = vld [vmem:[%s2 + $0x30] sm:$0xff]
  %v29 = vld [vmem:[%s2 + $0x38] sm:$0xff]
  %v30 = vld [vmem:[%s2 + $0x40] sm:$0xff]
  %v31 = vld [vmem:[%s2 + $0x48] sm:$0xff]
  %v32 = vld [vmem:[%s2 + $0x50] sm:$0xff]
  %v33 = vld [vmem:[%s2 + $0x58] sm:$0xff]
  %v34 = vld [vmem:[%s2 + $0x60] sm:$0xff]
  %v35 = vld [vmem:[%s2 + $0x68] sm:$0xff]
  %v36 = vld [vmem:[%s2 + $0x70] sm:$0xff]
  %v37 = vld [vmem:[%s2 + $0x78] sm:$0xff]
  %v38 = vld [vmem:[%s1] sm:$0xff]
  %v39 = vld [vmem:[%s1 + $0x8] sm:$0xff]
  %v40 = vld [vmem:[%s1 + $0x10] sm:$0xff]
  %v41 = vld [vmem:[%s1 + $0x18] sm:$0xff]
  %v42 = vld [vmem:[%s1 + $0x20] sm:$0xff]
  %v43 = vld [vmem:[%s1 + $0x28] sm:$0xff]
  %v44 = vld [vmem:[%s1 + $0x30] sm:$0xff]
  %46 = vset.pattern.permute.xlu0 0
  %47 = vperm.xlu0 %46, %v38
  %v48 = vpop.permute.xlu0 %47
  %51 = vset.pattern.permute.xlu0 0
  %52 = vperm.xlu0 %51, %v39
  %v53 = vpop.permute.xlu0 %52
  %56 = vset.pattern.permute.xlu0 0
  %57 = vperm.xlu0 %56, %v40
  %v58 = vpop.permute.xlu0 %57
  %61 = vset.pattern.permute.xlu0 0
  %62 = vperm.xlu0 %61, %v41
  %v63 = vpop.permute.xlu0 %62
  %66 = vset.pattern.permute.xlu0 0
  %67 = vperm.xlu0 %66, %v42
  %v68 = vpop.permute.xlu0 %67
  %71 = vset.pattern.permute.xlu0 0
  %72 = vperm.xlu0 %71, %v43
  %v73 = vpop.permute.xlu0 %72
  %76 = vset.pattern.permute.xlu0 0
  %77 = vperm.xlu0 %76, %v44
  %v78 = vpop.permute.xlu0 %77
  %v87 = vunpack.c.l.b16 %v15
  %v88 = vunpack.c.l.b16 %v16
  %v89 = vunpack.c.l.b16 %v17
  %v90 = vunpack.c.l.b16 %v18
  %v91 = vunpack.c.l.b16 %v19
  %v92 = vunpack.c.l.b16 %v20
  %v93 = vunpack.c.l.b16 %v21
  %v94 = vpack.c.b16 %v88, %v87
  %v95 = vpack.c.b16 %v90, %v89
  %v96 = vpack.c.b16 %v92, %v91
  %v97 = vpack.c.b16 %v93, %v93
  %v118 = vunpack.c.l.b16 %v22
  %v119 = vunpack.c.h.b16 %v22
  %v120 = vunpack.c.l.b16 %v23
  %v121 = vunpack.c.h.b16 %v23
  %v122 = vunpack.c.l.b16 %v24
  %v123 = vunpack.c.h.b16 %v24
  %v124 = vunpack.c.l.b16 %v25
  %v125 = vunpack.c.h.b16 %v25
  %v126 = vunpack.c.l.b16 %v26
  %v127 = vunpack.c.h.b16 %v26
  %v128 = vunpack.c.l.b16 %v27
  %v129 = vunpack.c.h.b16 %v27
  %v130 = vunpack.c.l.b16 %v28
  %v131 = vunpack.c.h.b16 %v28
  %v132 = vunpack.c.l.b16 %v29
  %v133 = vunpack.c.h.b16 %v29
  %v134 = vunpack.c.l.b16 %v30
  %v135 = vunpack.c.h.b16 %v30
  %v136 = vunpack.c.l.b16 %v31
  %v137 = vunpack.c.h.b16 %v31
  %v138 = vunpack.c.l.b16 %v32
  %v139 = vunpack.c.h.b16 %v32
  %v140 = vunpack.c.l.b16 %v33
  %v141 = vunpack.c.h.b16 %v33
  %v142 = vunpack.c.l.b16 %v34
  %v143 = vunpack.c.h.b16 %v34
  %v144 = vunpack.c.l.b16 %v35
  %v145 = vunpack.c.h.b16 %v35
  %v146 = vunpack.c.l.b16 %v36
  %v147 = vunpack.c.h.b16 %v36
  %v148 = vunpack.c.l.b16 %v37
  %v149 = vunpack.c.h.b16 %v37
  %v150 = vpack.c.b16 %v120, %v118
  %v151 = vpack.c.b16 %v121, %v119
  %v152 = vpack.c.b16 %v124, %v122
  %v153 = vpack.c.b16 %v125, %v123
  %v154 = vpack.c.b16 %v128, %v126
  %v155 = vpack.c.b16 %v129, %v127
  %v156 = vpack.c.b16 %v132, %v130
  %v157 = vpack.c.b16 %v133, %v131
  %v158 = vpack.c.b16 %v136, %v134
  %v159 = vpack.c.b16 %v137, %v135
  %v160 = vpack.c.b16 %v140, %v138
  %v161 = vpack.c.b16 %v141, %v139
  %v162 = vpack.c.b16 %v144, %v142
  %v163 = vpack.c.b16 %v145, %v143
  %v164 = vpack.c.b16 %v148, %v146
  %v165 = vpack.c.b16 %v149, %v147
  %182 = vmatprep.subr.bf16.mxu0 %v151
  %183 = vmatpush1.bf16.msra.mxu0 %v150
  %184 = vmatprep.subr.bf16.mxu0 %v153
  %185 = vmatpush1.bf16.msra.mxu0 %v152
  %186 = vmatprep.subr.bf16.mxu0 %v155
  %187 = vmatpush1.bf16.msra.mxu0 %v154
  %188 = vmatprep.subr.bf16.mxu0 %v157
  %189 = vmatpush1.bf16.msra.mxu0 %v156
  %190 = vmatprep.subr.bf16.mxu0 %v159
  %191 = vmatpush1.bf16.msra.mxu0 %v158
  %192 = vmatprep.subr.bf16.mxu0 %v161
  %193 = vmatpush1.bf16.msra.mxu0 %v160
  %194 = vmatprep.subr.bf16.mxu0 %v163
  %195 = vmatpush1.bf16.msra.mxu0 %v162
  %196 = vmatprep.subr.bf16.mxu0 %v165
  %197 = vmatpush1.bf16.msra.mxu0 %v164
  %198 = vmatprep.subr.bf16.mxu0 0
  %199 = vmatpush1.bf16.msra.mxu0 0
  %200 = vmatprep.subr.bf16.mxu0 0
  %201 = vmatpush1.bf16.msra.mxu0 0
  %202 = vmatprep.subr.bf16.mxu0 0
  %203 = vmatpush1.bf16.msra.mxu0 0
  %204 = vmatprep.subr.bf16.mxu0 0
  %205 = vmatpush1.bf16.msra.mxu0 0
  %206 = vmatprep.subr.bf16.mxu0 0
  %207 = vmatpush1.bf16.msra.mxu0 0
  %208 = vmatprep.subr.bf16.mxu0 0
  %209 = vmatpush1.bf16.msra.mxu0 0
  %210 = vmatprep.subr.bf16.mxu0 0
  %211 = vmatpush1.bf16.msra.mxu0 0
  %212 = vmatprep.subr.bf16.mxu0 0
  %213 = vmatpush1.bf16.msra.mxu0 0
  %214 = vmatprep.mubr.bf16.mxu0 0
  %215 = vmatmul.mubr.bf16.gmra.mrb[0].mxu0 %v94
  %v216 = vpop.f32.mrb[0].mxu0
  %v217 = vadd.f32 %v48, %v216
  %v218 = vpop.f32.mrb[0].mxu0
  %v219 = vadd.f32 %v48, %v218
  %v220 = vpop.f32.mrb[0].mxu0
  %v221 = vadd.f32 %v53, %v220
  %v222 = vpop.f32.mrb[0].mxu0
  %v223 = vadd.f32 %v53, %v222
  %224 = vmatprep.mubr.bf16.mxu0 0
  %225 = vmatmul.mubr.bf16.gmra.mrb[0].mxu0 %v95
  %v226 = vpop.f32.mrb[0].mxu0
  %v227 = vadd.f32 %v58, %v226
  %v228 = vpop.f32.mrb[0].mxu0
  %v229 = vadd.f32 %v58, %v228
  %v230 = vpop.f32.mrb[0].mxu0
  %v231 = vadd.f32 %v63, %v230
  %v232 = vpop.f32.mrb[0].mxu0
  %v233 = vadd.f32 %v63, %v232
  %234 = vmatprep.mubr.bf16.mxu0 0
  %235 = vmatmul.mubr.bf16.gmra.mrb[0].mxu0 %v96
  %v236 = vpop.f32.mrb[0].mxu0
  %v237 = vadd.f32 %v68, %v236
  %v238 = vpop.f32.mrb[0].mxu0
  %v239 = vadd.f32 %v68, %v238
  %v240 = vpop.f32.mrb[0].mxu0
  %v241 = vadd.f32 %v73, %v240
  %v242 = vpop.f32.mrb[0].mxu0
  %v243 = vadd.f32 %v73, %v242
  %244 = vmatprep.mubr.bf16.mxu0 0
  %245 = vmatmul.mubr.bf16.gmra.mrb[0].mxu0 %v97
  %v246 = vpop.f32.mrb[0].mxu0
  %v247 = vadd.f32 %v78, %v246
  %v248 = vpop.f32.mrb[0].mxu0
  %v249 = vadd.f32 %v78, %v248
  %v250 = vpop.f32.mrb[0].mxu0
  %v251 = vpop.f32.mrb[0].mxu0
  %252 = vdwg.mxu0
  %253 = vst [vmem:[%s3] sm:$0xff] %v217
  %254 = vst [vmem:[%s3 + $0x8] sm:$0xff] %v219
  %255 = vst [vmem:[%s3 + $0x10] sm:$0xff] %v221
  %256 = vst [vmem:[%s3 + $0x18] sm:$0xff] %v223
  %257 = vst [vmem:[%s3 + $0x20] sm:$0xff] %v227
  %258 = vst [vmem:[%s3 + $0x28] sm:$0xff] %v229
  %259 = vst [vmem:[%s3 + $0x30] sm:$0xff] %v231
  %260 = vst [vmem:[%s3 + $0x38] sm:$0xff] %v233
  %261 = vst [vmem:[%s3 + $0x40] sm:$0xff] %v237
  %262 = vst [vmem:[%s3 + $0x48] sm:$0xff] %v239
  %263 = vst [vmem:[%s3 + $0x50] sm:$0xff] %v241
  %264 = vst [vmem:[%s3 + $0x58] sm:$0xff] %v243
  %265 = vst [vmem:[%s3 + $0x60] sm:$0xff] %v247
  %266 = vst [vmem:[%s3 + $0x68] sm:$0xff] %v249
  // Predicated region
  $region14: #{simple_deconv_forward.9} parent=0 // pred_check
    _
  $region15: #{simple_deconv_forward.9} parent=0 // pred_check_branch
    %268 = sbr.rel (0) target = $region17
  $region16: #{simple_deconv_forward.9} parent=0 // pred_region
    _
  $region17: #{simple_deconv_forward.9} parent=0 // pred_fallthru
    _
  // Predicated region
  $region18: #{simple_deconv_forward.9} parent=0 // pred_check
    _
  $region19: #{simple_deconv_forward.9} parent=0 // pred_check_branch
    %270 = sbr.rel (0) target = $region21
  $region20: #{simple_deconv_forward.9} parent=0 // pred_region
    _
  $region21: #{simple_deconv_forward.9} parent=0 // pred_fallthru
    _

</llo_original>
